<compile_context>
chip_gen: v6e
topology: v6e:2x2x1
jax: 0.10.0
libtpu: 0.0.40
codegen_flags: <defaults>
</compile_context>

<pallas_src>
import jax
import jax.numpy as jnp
import numpy as np
from jax import lax
from jax.experimental import pallas as pl
from jax.experimental.pallas import tpu as pltpu


def _cbrr_kernel(x_ref, w1_ref, b1_ref, w2_ref, b2_ref, o_ref,
                 xp1_ref, xp2_ref, y1_ref):
    """Fused cbr1 -> cbr2 -> cbr2 (+ residual) for one batch chunk.

    x_ref  : (nb, H, W, Cin)  f32   input tile
    w*_ref : (9*C, Cout)      bf16  BN-scale-folded conv weights, rows in
                                    (kh, kw, ci) order
    b*_ref : (1, Cout)        f32   folded BN bias
    o_ref  : (nb, H, W, Cout)       output tile
    xp*_ref: (nb, H+2, W+2, C) bf16 zero-border padded activation scratch
    y1_ref : (nb*H*W, Cout)   f32   cbr1 output kept for the residual add
    """
    nb, H, W, _ = x_ref.shape
    Cout = w1_ref.shape[1]
    M = nb * H * W

    def zero_border(xp_ref):
        # Only the 1-pixel border needs zeroing; the interior is fully
        # rewritten before every conv stage.
        _, Hp, Wp, C = xp_ref.shape
        zr = jnp.zeros((nb, 1, Wp, C), xp_ref.dtype)
        zc = jnp.zeros((nb, Hp, 1, C), xp_ref.dtype)
        xp_ref[:, 0:1, :, :] = zr
        xp_ref[:, Hp - 1:Hp, :, :] = zr
        xp_ref[:, :, 0:1, :] = zc
        xp_ref[:, :, Wp - 1:Wp, :] = zc

    def conv_stage(xp_ref, w_ref, b_ref):
        # 3x3 conv as 9 accumulating K=C matmuls over shifted views of the
        # padded bf16 activation (no im2col materialization), then folded-BN
        # bias + ReLU in f32.
        C = xp_ref.shape[3]
        xp = xp_ref[...]                                   # one bf16 load/stage
        acc = None
        for kh in range(3):
            for kw in range(3):
                t = kh * 3 + kw
                xs = xp[:, kh:kh + H, kw:kw + W, :].reshape(M, C)
                part = jnp.dot(xs, w_ref[t * C:(t + 1) * C, :],
                               preferred_element_type=jnp.float32)
                acc = part if acc is None else acc + part
        return jnp.maximum(acc + b_ref[...], 0.0)          # (M, Cout) f32

    zero_border(xp1_ref)
    zero_border(xp2_ref)

    # stage 1: y1 = cbr1(x)      (single f32->bf16 cast at the interior write)
    xp1_ref[:, 1:H + 1, 1:W + 1, :] = x_ref[...].astype(xp1_ref.dtype)
    y1 = conv_stage(xp1_ref, w1_ref, b1_ref)
    y1_ref[...] = y1                                       # f32 copy for residual

    # stage 2: y2 = cbr2(y1)
    xp2_ref[:, 1:H + 1, 1:W + 1, :] = y1.reshape(nb, H, W, Cout).astype(xp2_ref.dtype)
    y2 = conv_stage(xp2_ref, w2_ref, b2_ref)

    # stage 3: y3 = cbr2(y2)  (shared weights), then residual add with y1.
    xp2_ref[:, 1:H + 1, 1:W + 1, :] = y2.reshape(nb, H, W, Cout).astype(xp2_ref.dtype)
    y3 = conv_stage(xp2_ref, w2_ref, b2_ref)

    out = y3 + y1_ref[...]
    o_ref[...] = out.reshape(nb, H, W, Cout).astype(o_ref.dtype)


def _fold_bn(conv_bias, gamma, beta, mean, var, eps):
    scale = gamma / jnp.sqrt(var + eps)
    bias = beta + (conv_bias - mean) * scale
    return scale, bias


def cbrr_forward(x_nchw, p, images_per_step=1):
    """CBRR.forward: x1 = cbr1(x); out = cbr2(x1); out = cbr2(out); out + x1.

    images_per_step: batch images folded into the matmul M dimension per grid
    step. Keep >=2 grid steps on v7x (2 TensorCores); on v5e/v6e a single fat
    step (images_per_step=N) amortizes per-step overhead and weight staging.
    """
    x = jnp.transpose(x_nchw, (0, 2, 3, 1))                  # NCHW -> NHWC
    N, H, W, Cin = x.shape
    Cout = p["w1"].shape[-1]
    nb = images_per_step
    assert N % nb == 0, "batch must be divisible by images_per_step"

    sc1, bi1 = _fold_bn(p["b1"], p["g1"], p["be1"], p["m1"], p["v1"], p["eps"])
    sc2, bi2 = _fold_bn(p["b2"], p["g2"], p["be2"], p["m2"], p["v2"], p["eps"])

    # Fold BN scale into the conv weights; flatten taps to (9*C, Cout) rows in
    # (kh, kw, ci) order to match the in-kernel tap loop; bf16 matmul operands.
    w1 = (p["w1"] * sc1).reshape(9 * Cin, Cout).astype(jnp.bfloat16)
    w2 = (p["w2"] * sc2).reshape(9 * Cout, Cout).astype(jnp.bfloat16)
    b1 = bi1.reshape(1, Cout).astype(jnp.float32)
    b2 = bi2.reshape(1, Cout).astype(jnp.float32)

    out = pl.pallas_call(
        _cbrr_kernel,
        out_shape=jax.ShapeDtypeStruct((N, H, W, Cout), x.dtype),
        grid=(N // nb,),
        in_specs=[
            pl.BlockSpec((nb, H, W, Cin), lambda n: (n, 0, 0, 0)),
            pl.BlockSpec((9 * Cin, Cout), lambda n: (0, 0)),
            pl.BlockSpec((1, Cout), lambda n: (0, 0)),
            pl.BlockSpec((9 * Cout, Cout), lambda n: (0, 0)),
            pl.BlockSpec((1, Cout), lambda n: (0, 0)),
        ],
        out_specs=pl.BlockSpec((nb, H, W, Cout), lambda n: (n, 0, 0, 0)),
        scratch_shapes=[
            pltpu.VMEM((nb, H + 2, W + 2, Cin), jnp.bfloat16),   # padded stage-1 in
            pltpu.VMEM((nb, H + 2, W + 2, Cout), jnp.bfloat16),  # padded stage-2/3 in
            pltpu.VMEM((nb * H * W, Cout), jnp.float32),         # y1 for residual
        ],
        compiler_params=pltpu.CompilerParams(
            dimension_semantics=("parallel",)),
    )(x, w1, b1, w2, b2)

    return jnp.transpose(out, (0, 3, 1, 2))                  # NHWC -> NCHW


# ---------------- pure-JAX reference (for verification only) ----------------
def _ref_cbr(x, w, b, gamma, beta, mean, var, eps):
    y = lax.conv_general_dilated(
        x, w, window_strides=(1, 1), padding=((1, 1), (1, 1)),
        dimension_numbers=("NHWC", "HWIO", "NHWC"),
        precision=lax.Precision.HIGHEST) + b
    y = (y - mean) / jnp.sqrt(var + eps) * gamma + beta
    return jnp.maximum(y, 0.0)


def cbrr_reference(x_nchw, p):
    x = jnp.transpose(x_nchw, (0, 2, 3, 1))
    y1 = _ref_cbr(x, p["w1"], p["b1"], p["g1"], p["be1"], p["m1"], p["v1"], p["eps"])
    y2 = _ref_cbr(y1, p["w2"], p["b2"], p["g2"], p["be2"], p["m2"], p["v2"], p["eps"])
    y3 = _ref_cbr(y2, p["w2"], p["b2"], p["g2"], p["be2"], p["m2"], p["v2"], p["eps"])
    return jnp.transpose(y3 + y1, (0, 3, 1, 2))


if __name__ == "__main__":
    # Module defaults: c_in_ch=64, padding=1, dilation=1, eps=1e-5.
    N, C_IN, H, W = 2, 64, 16, 16
    C_MID = 64

    key = jax.random.PRNGKey(0)
    ks = jax.random.split(key, 13)

    params = {
        "eps": 1e-5,
        # cbr1: Conv2d(c_in_ch -> 64), BN(64)
        "w1": 0.05 * jax.random.normal(ks[0], (3, 3, C_IN, C_MID), jnp.float32),
        "b1": 0.05 * jax.random.normal(ks[1], (C_MID,), jnp.float32),
        "g1": 1.0 + 0.1 * jax.random.normal(ks[2], (C_MID,), jnp.float32),
        "be1": 0.1 * jax.random.normal(ks[3], (C_MID,), jnp.float32),
        "m1": 0.1 * jax.random.normal(ks[4], (C_MID,), jnp.float32),
        "v1": 1.0 + 0.1 * jax.nn.sigmoid(jax.random.normal(ks[5], (C_MID,))),
        # cbr2: Conv2d(64 -> 64), BN(64)  (applied twice with shared weights)
        "w2": 0.05 * jax.random.normal(ks[6], (3, 3, C_MID, C_MID), jnp.float32),
        "b2": 0.05 * jax.random.normal(ks[7], (C_MID,), jnp.float32),
        "g2": 1.0 + 0.1 * jax.random.normal(ks[8], (C_MID,), jnp.float32),
        "be2": 0.1 * jax.random.normal(ks[9], (C_MID,), jnp.float32),
        "m2": 0.1 * jax.random.normal(ks[10], (C_MID,), jnp.float32),
        "v2": 1.0 + 0.1 * jax.nn.sigmoid(jax.random.normal(ks[11], (C_MID,))),
    }

    x = jax.random.normal(ks[12], (N, C_IN, H, W), jnp.float32)

    # Default images_per_step=1: two "parallel" grid steps so both v7x TCs work.
    out = jax.block_until_ready(cbrr_forward(x, params))
    ref = jax.block_until_ready(cbrr_reference(x, params))

    assert out.shape == (N, C_MID, H, W)
    # bf16 matmul operands (f32 accumulation) vs. a full-f32 reference:
    # expected max abs deviation ~0.03 at output std ~1, so 5e-2 is a
    # comfortable yet meaningful tolerance (indexing bugs give O(1) errors).
    np.testing.assert_allclose(np.asarray(out), np.asarray(ref),
                               rtol=5e-2, atol=5e-2)

    # Also exercise the batch-folded-into-M path (single fat step, v5e/v6e style).
    out2 = jax.block_until_ready(cbrr_forward(x, params, images_per_step=N))
    np.testing.assert_allclose(np.asarray(out2), np.asarray(ref),
                               rtol=5e-2, atol=5e-2)
    print("KERNEL_OK")
</pallas_src>

<mosaic_0001>
module attributes {stable_mosaic.version = 11 : i64} {
  func.func @_cbrr_kernel(%arg0: i32, %arg1: memref<1x16x16x64xf32, #tpu.memory_space<vmem>>, %arg2: memref<576x64xbf16, #tpu.memory_space<vmem>>, %arg3: memref<1x64xf32, #tpu.memory_space<vmem>>, %arg4: memref<576x64xbf16, #tpu.memory_space<vmem>>, %arg5: memref<1x64xf32, #tpu.memory_space<vmem>>, %arg6: memref<1x16x16x64xf32, #tpu.memory_space<vmem>>, %arg7: memref<1x18x18x64xbf16, #tpu.memory_space<vmem>>, %arg8: memref<1x18x18x64xbf16, #tpu.memory_space<vmem>>, %arg9: memref<256x64xf32, #tpu.memory_space<vmem>>) attributes {dimension_semantics = [#tpu.dimension_semantics<parallel>], iteration_bounds = array<i64: 2>, scalar_prefetch = 0 : i64, scratch_operands = 3 : i64, tpu.core_type = #tpu.core_type<tc>, window_params = [{transform_indices = @transform_0, window_bounds = array<i64: 1, 16, 16, 64>}, {pipeline_mode = #tpu.pipeline_mode<synchronous>, transform_indices = @transform_1, window_bounds = array<i64: 576, 64>}, {pipeline_mode = #tpu.pipeline_mode<synchronous>, transform_indices = @transform_2, window_bounds = array<i64: 1, 64>}, {pipeline_mode = #tpu.pipeline_mode<synchronous>, transform_indices = @transform_3, window_bounds = array<i64: 576, 64>}, {pipeline_mode = #tpu.pipeline_mode<synchronous>, transform_indices = @transform_4, window_bounds = array<i64: 1, 64>}, {transform_indices = @transform_5, window_bounds = array<i64: 1, 16, 16, 64>}]} {
    %cst = arith.constant 0.000000e+00 : bf16
    %0 = vector.broadcast %cst : bf16 to vector<1x1x18x64xbf16>
    %cst_0 = arith.constant 0.000000e+00 : bf16
    %1 = vector.broadcast %cst_0 : bf16 to vector<1x18x1x64xbf16>
    %c0 = arith.constant 0 : index
    %c0_1 = arith.constant 0 : index
    %c0_2 = arith.constant 0 : index
    %c0_3 = arith.constant 0 : index
    %2 = vector.load %arg7[%c0, %c0_1, %c0_2, %c0_3] : memref<1x18x18x64xbf16, #tpu.memory_space<vmem>>, vector<1x1x18x64xbf16>
    tpu.vector_store %arg7[%c0, %c0_1, %c0_2, %c0_3], %0 {strides = array<i32>} : memref<1x18x18x64xbf16, #tpu.memory_space<vmem>>, vector<1x1x18x64xbf16>,
    %c0_4 = arith.constant 0 : index
    %c17 = arith.constant 17 : index
    %c0_5 = arith.constant 0 : index
    %c0_6 = arith.constant 0 : index
    %3 = vector.load %arg7[%c0_4, %c17, %c0_5, %c0_6] : memref<1x18x18x64xbf16, #tpu.memory_space<vmem>>, vector<1x1x18x64xbf16>
    tpu.vector_store %arg7[%c0_4, %c17, %c0_5, %c0_6], %0 {strides = array<i32>} : memref<1x18x18x64xbf16, #tpu.memory_space<vmem>>, vector<1x1x18x64xbf16>,
    %c0_7 = arith.constant 0 : index
    %c0_8 = arith.constant 0 : index
    %c0_9 = arith.constant 0 : index
    %c0_10 = arith.constant 0 : index
    %4 = vector.load %arg7[%c0_7, %c0_8, %c0_9, %c0_10] : memref<1x18x18x64xbf16, #tpu.memory_space<vmem>>, vector<1x18x1x64xbf16>
    tpu.vector_store %arg7[%c0_7, %c0_8, %c0_9, %c0_10], %1 {strides = array<i32>} : memref<1x18x18x64xbf16, #tpu.memory_space<vmem>>, vector<1x18x1x64xbf16>,
    %c0_11 = arith.constant 0 : index
    %c0_12 = arith.constant 0 : index
    %c17_13 = arith.constant 17 : index
    %c0_14 = arith.constant 0 : index
    %5 = vector.load %arg7[%c0_11, %c0_12, %c17_13, %c0_14] : memref<1x18x18x64xbf16, #tpu.memory_space<vmem>>, vector<1x18x1x64xbf16>
    tpu.vector_store %arg7[%c0_11, %c0_12, %c17_13, %c0_14], %1 {strides = array<i32>} : memref<1x18x18x64xbf16, #tpu.memory_space<vmem>>, vector<1x18x1x64xbf16>,
    %cst_15 = arith.constant 0.000000e+00 : bf16
    %6 = vector.broadcast %cst_15 : bf16 to vector<1x1x18x64xbf16>
    %cst_16 = arith.constant 0.000000e+00 : bf16
    %7 = vector.broadcast %cst_16 : bf16 to vector<1x18x1x64xbf16>
    %c0_17 = arith.constant 0 : index
    %c0_18 = arith.constant 0 : index
    %c0_19 = arith.constant 0 : index
    %c0_20 = arith.constant 0 : index
    %8 = vector.load %arg8[%c0_17, %c0_18, %c0_19, %c0_20] : memref<1x18x18x64xbf16, #tpu.memory_space<vmem>>, vector<1x1x18x64xbf16>
    tpu.vector_store %arg8[%c0_17, %c0_18, %c0_19, %c0_20], %6 {strides = array<i32>} : memref<1x18x18x64xbf16, #tpu.memory_space<vmem>>, vector<1x1x18x64xbf16>,
    %c0_21 = arith.constant 0 : index
    %c17_22 = arith.constant 17 : index
    %c0_23 = arith.constant 0 : index
    %c0_24 = arith.constant 0 : index
    %9 = vector.load %arg8[%c0_21, %c17_22, %c0_23, %c0_24] : memref<1x18x18x64xbf16, #tpu.memory_space<vmem>>, vector<1x1x18x64xbf16>
    tpu.vector_store %arg8[%c0_21, %c17_22, %c0_23, %c0_24], %6 {strides = array<i32>} : memref<1x18x18x64xbf16, #tpu.memory_space<vmem>>, vector<1x1x18x64xbf16>,
    %c0_25 = arith.constant 0 : index
    %c0_26 = arith.constant 0 : index
    %c0_27 = arith.constant 0 : index
    %c0_28 = arith.constant 0 : index
    %10 = vector.load %arg8[%c0_25, %c0_26, %c0_27, %c0_28] : memref<1x18x18x64xbf16, #tpu.memory_space<vmem>>, vector<1x18x1x64xbf16>
    tpu.vector_store %arg8[%c0_25, %c0_26, %c0_27, %c0_28], %7 {strides = array<i32>} : memref<1x18x18x64xbf16, #tpu.memory_space<vmem>>, vector<1x18x1x64xbf16>,
    %c0_29 = arith.constant 0 : index
    %c0_30 = arith.constant 0 : index
    %c17_31 = arith.constant 17 : index
    %c0_32 = arith.constant 0 : index
    %11 = vector.load %arg8[%c0_29, %c0_30, %c17_31, %c0_32] : memref<1x18x18x64xbf16, #tpu.memory_space<vmem>>, vector<1x18x1x64xbf16>
    tpu.vector_store %arg8[%c0_29, %c0_30, %c17_31, %c0_32], %7 {strides = array<i32>} : memref<1x18x18x64xbf16, #tpu.memory_space<vmem>>, vector<1x18x1x64xbf16>,
    %c0_33 = arith.constant 0 : index
    %c0_34 = arith.constant 0 : index
    %c0_35 = arith.constant 0 : index
    %c0_36 = arith.constant 0 : index
    %12 = vector.load %arg1[%c0_33, %c0_34, %c0_35, %c0_36] : memref<1x16x16x64xf32, #tpu.memory_space<vmem>>, vector<1x16x16x64xf32>
    %13 = arith.truncf %12 : vector<1x16x16x64xf32> to vector<1x16x16x64xbf16>
    %c0_37 = arith.constant 0 : index
    %c1 = arith.constant 1 : index
    %c1_38 = arith.constant 1 : index
    %c0_39 = arith.constant 0 : index
    %14 = vector.load %arg7[%c0_37, %c1, %c1_38, %c0_39] : memref<1x18x18x64xbf16, #tpu.memory_space<vmem>>, vector<1x16x16x64xbf16>
    tpu.vector_store %arg7[%c0_37, %c1, %c1_38, %c0_39], %13 {strides = array<i32>} : memref<1x18x18x64xbf16, #tpu.memory_space<vmem>>, vector<1x16x16x64xbf16>,
    %c0_40 = arith.constant 0 : index
    %c0_41 = arith.constant 0 : index
    %c0_42 = arith.constant 0 : index
    %c0_43 = arith.constant 0 : index
    %15 = vector.load %arg7[%c0_40, %c0_41, %c0_42, %c0_43] : memref<1x18x18x64xbf16, #tpu.memory_space<vmem>>, vector<1x18x18x64xbf16>
    %16 = vector.extract_strided_slice %15 {offsets = [0, 0, 0, 0], sizes = [1, 16, 16, 64], strides = [1, 1, 1, 1]} : vector<1x18x18x64xbf16> to vector<1x16x16x64xbf16>
    %17 = vector.shape_cast %16 : vector<1x16x16x64xbf16> to vector<256x64xbf16>
    %c0_44 = arith.constant 0 : index
    %c0_45 = arith.constant 0 : index
    %18 = vector.load %arg2[%c0_44, %c0_45] : memref<576x64xbf16, #tpu.memory_space<vmem>>, vector<64x64xbf16>
    %cst_46 = arith.constant dense<0.000000e+00> : vector<256x64xf32>
    %19 = tpu.matmul %17, %18, %cst_46 {dimension_numbers = #tpu.dot_dimension_numbers<[1], [0], [0], [1], [0, 0, 1, 1], [], []>} : vector<256x64xbf16>, vector<64x64xbf16>, vector<256x64xf32> -> vector<256x64xf32>
    %20 = vector.extract_strided_slice %15 {offsets = [0, 0, 1, 0], sizes = [1, 16, 16, 64], strides = [1, 1, 1, 1]} : vector<1x18x18x64xbf16> to vector<1x16x16x64xbf16>
    %21 = vector.shape_cast %20 : vector<1x16x16x64xbf16> to vector<256x64xbf16>
    %c64 = arith.constant 64 : index
    %c0_47 = arith.constant 0 : index
    %22 = vector.load %arg2[%c64, %c0_47] : memref<576x64xbf16, #tpu.memory_space<vmem>>, vector<64x64xbf16>
    %cst_48 = arith.constant dense<0.000000e+00> : vector<256x64xf32>
    %23 = tpu.matmul %21, %22, %cst_48 {dimension_numbers = #tpu.dot_dimension_numbers<[1], [0], [0], [1], [0, 0, 1, 1], [], []>} : vector<256x64xbf16>, vector<64x64xbf16>, vector<256x64xf32> -> vector<256x64xf32>
    %24 = arith.addf %19, %23 : vector<256x64xf32>
    %25 = vector.extract_strided_slice %15 {offsets = [0, 0, 2, 0], sizes = [1, 16, 16, 64], strides = [1, 1, 1, 1]} : vector<1x18x18x64xbf16> to vector<1x16x16x64xbf16>
    %26 = vector.shape_cast %25 : vector<1x16x16x64xbf16> to vector<256x64xbf16>
    %c128 = arith.constant 128 : index
    %c0_49 = arith.constant 0 : index
    %27 = vector.load %arg2[%c128, %c0_49] : memref<576x64xbf16, #tpu.memory_space<vmem>>, vector<64x64xbf16>
    %cst_50 = arith.constant dense<0.000000e+00> : vector<256x64xf32>
    %28 = tpu.matmul %26, %27, %cst_50 {dimension_numbers = #tpu.dot_dimension_numbers<[1], [0], [0], [1], [0, 0, 1, 1], [], []>} : vector<256x64xbf16>, vector<64x64xbf16>, vector<256x64xf32> -> vector<256x64xf32>
    %29 = arith.addf %24, %28 : vector<256x64xf32>
    %30 = vector.extract_strided_slice %15 {offsets = [0, 1, 0, 0], sizes = [1, 16, 16, 64], strides = [1, 1, 1, 1]} : vector<1x18x18x64xbf16> to vector<1x16x16x64xbf16>
    %31 = vector.shape_cast %30 : vector<1x16x16x64xbf16> to vector<256x64xbf16>
    %c192 = arith.constant 192 : index
    %c0_51 = arith.constant 0 : index
    %32 = vector.load %arg2[%c192, %c0_51] : memref<576x64xbf16, #tpu.memory_space<vmem>>, vector<64x64xbf16>
    %cst_52 = arith.constant dense<0.000000e+00> : vector<256x64xf32>
    %33 = tpu.matmul %31, %32, %cst_52 {dimension_numbers = #tpu.dot_dimension_numbers<[1], [0], [0], [1], [0, 0, 1, 1], [], []>} : vector<256x64xbf16>, vector<64x64xbf16>, vector<256x64xf32> -> vector<256x64xf32>
    %34 = arith.addf %29, %33 : vector<256x64xf32>
    %35 = vector.extract_strided_slice %15 {offsets = [0, 1, 1, 0], sizes = [1, 16, 16, 64], strides = [1, 1, 1, 1]} : vector<1x18x18x64xbf16> to vector<1x16x16x64xbf16>
    %36 = vector.shape_cast %35 : vector<1x16x16x64xbf16> to vector<256x64xbf16>
    %c256 = arith.constant 256 : index
    %c0_53 = arith.constant 0 : index
    %37 = vector.load %arg2[%c256, %c0_53] : memref<576x64xbf16, #tpu.memory_space<vmem>>, vector<64x64xbf16>
    %cst_54 = arith.constant dense<0.000000e+00> : vector<256x64xf32>
    %38 = tpu.matmul %36, %37, %cst_54 {dimension_numbers = #tpu.dot_dimension_numbers<[1], [0], [0], [1], [0, 0, 1, 1], [], []>} : vector<256x64xbf16>, vector<64x64xbf16>, vector<256x64xf32> -> vector<256x64xf32>
    %39 = arith.addf %34, %38 : vector<256x64xf32>
    %40 = vector.extract_strided_slice %15 {offsets = [0, 1, 2, 0], sizes = [1, 16, 16, 64], strides = [1, 1, 1, 1]} : vector<1x18x18x64xbf16> to vector<1x16x16x64xbf16>
    %41 = vector.shape_cast %40 : vector<1x16x16x64xbf16> to vector<256x64xbf16>
    %c320 = arith.constant 320 : index
    %c0_55 = arith.constant 0 : index
    %42 = vector.load %arg2[%c320, %c0_55] : memref<576x64xbf16, #tpu.memory_space<vmem>>, vector<64x64xbf16>
    %cst_56 = arith.constant dense<0.000000e+00> : vector<256x64xf32>
    %43 = tpu.matmul %41, %42, %cst_56 {dimension_numbers = #tpu.dot_dimension_numbers<[1], [0], [0], [1], [0, 0, 1, 1], [], []>} : vector<256x64xbf16>, vector<64x64xbf16>, vector<256x64xf32> -> vector<256x64xf32>
    %44 = arith.addf %39, %43 : vector<256x64xf32>
    %45 = vector.extract_strided_slice %15 {offsets = [0, 2, 0, 0], sizes = [1, 16, 16, 64], strides = [1, 1, 1, 1]} : vector<1x18x18x64xbf16> to vector<1x16x16x64xbf16>
    %46 = vector.shape_cast %45 : vector<1x16x16x64xbf16> to vector<256x64xbf16>
    %c384 = arith.constant 384 : index
    %c0_57 = arith.constant 0 : index
    %47 = vector.load %arg2[%c384, %c0_57] : memref<576x64xbf16, #tpu.memory_space<vmem>>, vector<64x64xbf16>
    %cst_58 = arith.constant dense<0.000000e+00> : vector<256x64xf32>
    %48 = tpu.matmul %46, %47, %cst_58 {dimension_numbers = #tpu.dot_dimension_numbers<[1], [0], [0], [1], [0, 0, 1, 1], [], []>} : vector<256x64xbf16>, vector<64x64xbf16>, vector<256x64xf32> -> vector<256x64xf32>
    %49 = arith.addf %44, %48 : vector<256x64xf32>
    %50 = vector.extract_strided_slice %15 {offsets = [0, 2, 1, 0], sizes = [1, 16, 16, 64], strides = [1, 1, 1, 1]} : vector<1x18x18x64xbf16> to vector<1x16x16x64xbf16>
    %51 = vector.shape_cast %50 : vector<1x16x16x64xbf16> to vector<256x64xbf16>
    %c448 = arith.constant 448 : index
    %c0_59 = arith.constant 0 : index
    %52 = vector.load %arg2[%c448, %c0_59] : memref<576x64xbf16, #tpu.memory_space<vmem>>, vector<64x64xbf16>
    %cst_60 = arith.constant dense<0.000000e+00> : vector<256x64xf32>
    %53 = tpu.matmul %51, %52, %cst_60 {dimension_numbers = #tpu.dot_dimension_numbers<[1], [0], [0], [1], [0, 0, 1, 1], [], []>} : vector<256x64xbf16>, vector<64x64xbf16>, vector<256x64xf32> -> vector<256x64xf32>
    %54 = arith.addf %49, %53 : vector<256x64xf32>
    %55 = vector.extract_strided_slice %15 {offsets = [0, 2, 2, 0], sizes = [1, 16, 16, 64], strides = [1, 1, 1, 1]} : vector<1x18x18x64xbf16> to vector<1x16x16x64xbf16>
    %56 = vector.shape_cast %55 : vector<1x16x16x64xbf16> to vector<256x64xbf16>
    %c512 = arith.constant 512 : index
    %c0_61 = arith.constant 0 : index
    %57 = vector.load %arg2[%c512, %c0_61] : memref<576x64xbf16, #tpu.memory_space<vmem>>, vector<64x64xbf16>
    %cst_62 = arith.constant dense<0.000000e+00> : vector<256x64xf32>
    %58 = tpu.matmul %56, %57, %cst_62 {dimension_numbers = #tpu.dot_dimension_numbers<[1], [0], [0], [1], [0, 0, 1, 1], [], []>} : vector<256x64xbf16>, vector<64x64xbf16>, vector<256x64xf32> -> vector<256x64xf32>
    %59 = arith.addf %54, %58 : vector<256x64xf32>
    %c0_63 = arith.constant 0 : index
    %c0_64 = arith.constant 0 : index
    %60 = vector.load %arg3[%c0_63, %c0_64] : memref<1x64xf32, #tpu.memory_space<vmem>>, vector<1x64xf32>
    %61 = vector.broadcast %60 : vector<1x64xf32> to vector<256x64xf32>
    %62 = arith.addf %59, %61 : vector<256x64xf32>
    %cst_65 = arith.constant 0.000000e+00 : f32
    %63 = vector.broadcast %cst_65 : f32 to vector<256x64xf32>
    %64 = arith.maximumf %62, %63 : vector<256x64xf32>
    %c0_66 = arith.constant 0 : index
    %c0_67 = arith.constant 0 : index
    %65 = vector.load %arg9[%c0_66, %c0_67] : memref<256x64xf32, #tpu.memory_space<vmem>>, vector<256x64xf32>
    tpu.vector_store %arg9[%c0_66, %c0_67], %64 {strides = array<i32>} : memref<256x64xf32, #tpu.memory_space<vmem>>, vector<256x64xf32>,
    %66 = vector.shape_cast %64 : vector<256x64xf32> to vector<1x16x16x64xf32>
    %67 = arith.truncf %66 : vector<1x16x16x64xf32> to vector<1x16x16x64xbf16>
    %c0_68 = arith.constant 0 : index
    %c1_69 = arith.constant 1 : index
    %c1_70 = arith.constant 1 : index
    %c0_71 = arith.constant 0 : index
    %68 = vector.load %arg8[%c0_68, %c1_69, %c1_70, %c0_71] : memref<1x18x18x64xbf16, #tpu.memory_space<vmem>>, vector<1x16x16x64xbf16>
    tpu.vector_store %arg8[%c0_68, %c1_69, %c1_70, %c0_71], %67 {strides = array<i32>} : memref<1x18x18x64xbf16, #tpu.memory_space<vmem>>, vector<1x16x16x64xbf16>,
    %c0_72 = arith.constant 0 : index
    %c0_73 = arith.constant 0 : index
    %c0_74 = arith.constant 0 : index
    %c0_75 = arith.constant 0 : index
    %69 = vector.load %arg8[%c0_72, %c0_73, %c0_74, %c0_75] : memref<1x18x18x64xbf16, #tpu.memory_space<vmem>>, vector<1x18x18x64xbf16>
    %70 = vector.extract_strided_slice %69 {offsets = [0, 0, 0, 0], sizes = [1, 16, 16, 64], strides = [1, 1, 1, 1]} : vector<1x18x18x64xbf16> to vector<1x16x16x64xbf16>
    %71 = vector.shape_cast %70 : vector<1x16x16x64xbf16> to vector<256x64xbf16>
    %c0_76 = arith.constant 0 : index
    %c0_77 = arith.constant 0 : index
    %72 = vector.load %arg4[%c0_76, %c0_77] : memref<576x64xbf16, #tpu.memory_space<vmem>>, vector<64x64xbf16>
    %cst_78 = arith.constant dense<0.000000e+00> : vector<256x64xf32>
    %73 = tpu.matmul %71, %72, %cst_78 {dimension_numbers = #tpu.dot_dimension_numbers<[1], [0], [0], [1], [0, 0, 1, 1], [], []>} : vector<256x64xbf16>, vector<64x64xbf16>, vector<256x64xf32> -> vector<256x64xf32>
    %74 = vector.extract_strided_slice %69 {offsets = [0, 0, 1, 0], sizes = [1, 16, 16, 64], strides = [1, 1, 1, 1]} : vector<1x18x18x64xbf16> to vector<1x16x16x64xbf16>
    %75 = vector.shape_cast %74 : vector<1x16x16x64xbf16> to vector<256x64xbf16>
    %c64_79 = arith.constant 64 : index
    %c0_80 = arith.constant 0 : index
    %76 = vector.load %arg4[%c64_79, %c0_80] : memref<576x64xbf16, #tpu.memory_space<vmem>>, vector<64x64xbf16>
    %cst_81 = arith.constant dense<0.000000e+00> : vector<256x64xf32>
    %77 = tpu.matmul %75, %76, %cst_81 {dimension_numbers = #tpu.dot_dimension_numbers<[1], [0], [0], [1], [0, 0, 1, 1], [], []>} : vector<256x64xbf16>, vector<64x64xbf16>, vector<256x64xf32> -> vector<256x64xf32>
    %78 = arith.addf %73, %77 : vector<256x64xf32>
    %79 = vector.extract_strided_slice %69 {offsets = [0, 0, 2, 0], sizes = [1, 16, 16, 64], strides = [1, 1, 1, 1]} : vector<1x18x18x64xbf16> to vector<1x16x16x64xbf16>
    %80 = vector.shape_cast %79 : vector<1x16x16x64xbf16> to vector<256x64xbf16>
    %c128_82 = arith.constant 128 : index
    %c0_83 = arith.constant 0 : index
    %81 = vector.load %arg4[%c128_82, %c0_83] : memref<576x64xbf16, #tpu.memory_space<vmem>>, vector<64x64xbf16>
    %cst_84 = arith.constant dense<0.000000e+00> : vector<256x64xf32>
    %82 = tpu.matmul %80, %81, %cst_84 {dimension_numbers = #tpu.dot_dimension_numbers<[1], [0], [0], [1], [0, 0, 1, 1], [], []>} : vector<256x64xbf16>, vector<64x64xbf16>, vector<256x64xf32> -> vector<256x64xf32>
    %83 = arith.addf %78, %82 : vector<256x64xf32>
    %84 = vector.extract_strided_slice %69 {offsets = [0, 1, 0, 0], sizes = [1, 16, 16, 64], strides = [1, 1, 1, 1]} : vector<1x18x18x64xbf16> to vector<1x16x16x64xbf16>
    %85 = vector.shape_cast %84 : vector<1x16x16x64xbf16> to vector<256x64xbf16>
    %c192_85 = arith.constant 192 : index
    %c0_86 = arith.constant 0 : index
    %86 = vector.load %arg4[%c192_85, %c0_86] : memref<576x64xbf16, #tpu.memory_space<vmem>>, vector<64x64xbf16>
    %cst_87 = arith.constant dense<0.000000e+00> : vector<256x64xf32>
    %87 = tpu.matmul %85, %86, %cst_87 {dimension_numbers = #tpu.dot_dimension_numbers<[1], [0], [0], [1], [0, 0, 1, 1], [], []>} : vector<256x64xbf16>, vector<64x64xbf16>, vector<256x64xf32> -> vector<256x64xf32>
    %88 = arith.addf %83, %87 : vector<256x64xf32>
    %89 = vector.extract_strided_slice %69 {offsets = [0, 1, 1, 0], sizes = [1, 16, 16, 64], strides = [1, 1, 1, 1]} : vector<1x18x18x64xbf16> to vector<1x16x16x64xbf16>
    %90 = vector.shape_cast %89 : vector<1x16x16x64xbf16> to vector<256x64xbf16>
    %c256_88 = arith.constant 256 : index
    %c0_89 = arith.constant 0 : index
    %91 = vector.load %arg4[%c256_88, %c0_89] : memref<576x64xbf16, #tpu.memory_space<vmem>>, vector<64x64xbf16>
    %cst_90 = arith.constant dense<0.000000e+00> : vector<256x64xf32>
    %92 = tpu.matmul %90, %91, %cst_90 {dimension_numbers = #tpu.dot_dimension_numbers<[1], [0], [0], [1], [0, 0, 1, 1], [], []>} : vector<256x64xbf16>, vector<64x64xbf16>, vector<256x64xf32> -> vector<256x64xf32>
    %93 = arith.addf %88, %92 : vector<256x64xf32>
    %94 = vector.extract_strided_slice %69 {offsets = [0, 1, 2, 0], sizes = [1, 16, 16, 64], strides = [1, 1, 1, 1]} : vector<1x18x18x64xbf16> to vector<1x16x16x64xbf16>
    %95 = vector.shape_cast %94 : vector<1x16x16x64xbf16> to vector<256x64xbf16>
    %c320_91 = arith.constant 320 : index
    %c0_92 = arith.constant 0 : index
    %96 = vector.load %arg4[%c320_91, %c0_92] : memref<576x64xbf16, #tpu.memory_space<vmem>>, vector<64x64xbf16>
    %cst_93 = arith.constant dense<0.000000e+00> : vector<256x64xf32>
    %97 = tpu.matmul %95, %96, %cst_93 {dimension_numbers = #tpu.dot_dimension_numbers<[1], [0], [0], [1], [0, 0, 1, 1], [], []>} : vector<256x64xbf16>, vector<64x64xbf16>, vector<256x64xf32> -> vector<256x64xf32>
    %98 = arith.addf %93, %97 : vector<256x64xf32>
    %99 = vector.extract_strided_slice %69 {offsets = [0, 2, 0, 0], sizes = [1, 16, 16, 64], strides = [1, 1, 1, 1]} : vector<1x18x18x64xbf16> to vector<1x16x16x64xbf16>
    %100 = vector.shape_cast %99 : vector<1x16x16x64xbf16> to vector<256x64xbf16>
    %c384_94 = arith.constant 384 : index
    %c0_95 = arith.constant 0 : index
    %101 = vector.load %arg4[%c384_94, %c0_95] : memref<576x64xbf16, #tpu.memory_space<vmem>>, vector<64x64xbf16>
    %cst_96 = arith.constant dense<0.000000e+00> : vector<256x64xf32>
    %102 = tpu.matmul %100, %101, %cst_96 {dimension_numbers = #tpu.dot_dimension_numbers<[1], [0], [0], [1], [0, 0, 1, 1], [], []>} : vector<256x64xbf16>, vector<64x64xbf16>, vector<256x64xf32> -> vector<256x64xf32>
    %103 = arith.addf %98, %102 : vector<256x64xf32>
    %104 = vector.extract_strided_slice %69 {offsets = [0, 2, 1, 0], sizes = [1, 16, 16, 64], strides = [1, 1, 1, 1]} : vector<1x18x18x64xbf16> to vector<1x16x16x64xbf16>
    %105 = vector.shape_cast %104 : vector<1x16x16x64xbf16> to vector<256x64xbf16>
    %c448_97 = arith.constant 448 : index
    %c0_98 = arith.constant 0 : index
    %106 = vector.load %arg4[%c448_97, %c0_98] : memref<576x64xbf16, #tpu.memory_space<vmem>>, vector<64x64xbf16>
    %cst_99 = arith.constant dense<0.000000e+00> : vector<256x64xf32>
    %107 = tpu.matmul %105, %106, %cst_99 {dimension_numbers = #tpu.dot_dimension_numbers<[1], [0], [0], [1], [0, 0, 1, 1], [], []>} : vector<256x64xbf16>, vector<64x64xbf16>, vector<256x64xf32> -> vector<256x64xf32>
    %108 = arith.addf %103, %107 : vector<256x64xf32>
    %109 = vector.extract_strided_slice %69 {offsets = [0, 2, 2, 0], sizes = [1, 16, 16, 64], strides = [1, 1, 1, 1]} : vector<1x18x18x64xbf16> to vector<1x16x16x64xbf16>
    %110 = vector.shape_cast %109 : vector<1x16x16x64xbf16> to vector<256x64xbf16>
    %c512_100 = arith.constant 512 : index
    %c0_101 = arith.constant 0 : index
    %111 = vector.load %arg4[%c512_100, %c0_101] : memref<576x64xbf16, #tpu.memory_space<vmem>>, vector<64x64xbf16>
    %cst_102 = arith.constant dense<0.000000e+00> : vector<256x64xf32>
    %112 = tpu.matmul %110, %111, %cst_102 {dimension_numbers = #tpu.dot_dimension_numbers<[1], [0], [0], [1], [0, 0, 1, 1], [], []>} : vector<256x64xbf16>, vector<64x64xbf16>, vector<256x64xf32> -> vector<256x64xf32>
    %113 = arith.addf %108, %112 : vector<256x64xf32>
    %c0_103 = arith.constant 0 : index
    %c0_104 = arith.constant 0 : index
    %114 = vector.load %arg5[%c0_103, %c0_104] : memref<1x64xf32, #tpu.memory_space<vmem>>, vector<1x64xf32>
    %115 = vector.broadcast %114 : vector<1x64xf32> to vector<256x64xf32>
    %116 = arith.addf %113, %115 : vector<256x64xf32>
    %cst_105 = arith.constant 0.000000e+00 : f32
    %117 = vector.broadcast %cst_105 : f32 to vector<256x64xf32>
    %118 = arith.maximumf %116, %117 : vector<256x64xf32>
    %119 = vector.shape_cast %118 : vector<256x64xf32> to vector<1x16x16x64xf32>
    %120 = arith.truncf %119 : vector<1x16x16x64xf32> to vector<1x16x16x64xbf16>
    %c0_106 = arith.constant 0 : index
    %c1_107 = arith.constant 1 : index
    %c1_108 = arith.constant 1 : index
    %c0_109 = arith.constant 0 : index
    %121 = vector.load %arg8[%c0_106, %c1_107, %c1_108, %c0_109] : memref<1x18x18x64xbf16, #tpu.memory_space<vmem>>, vector<1x16x16x64xbf16>
    tpu.vector_store %arg8[%c0_106, %c1_107, %c1_108, %c0_109], %120 {strides = array<i32>} : memref<1x18x18x64xbf16, #tpu.memory_space<vmem>>, vector<1x16x16x64xbf16>,
    %c0_110 = arith.constant 0 : index
    %c0_111 = arith.constant 0 : index
    %c0_112 = arith.constant 0 : index
    %c0_113 = arith.constant 0 : index
    %122 = vector.load %arg8[%c0_110, %c0_111, %c0_112, %c0_113] : memref<1x18x18x64xbf16, #tpu.memory_space<vmem>>, vector<1x18x18x64xbf16>
    %123 = vector.extract_strided_slice %122 {offsets = [0, 0, 0, 0], sizes = [1, 16, 16, 64], strides = [1, 1, 1, 1]} : vector<1x18x18x64xbf16> to vector<1x16x16x64xbf16>
    %124 = vector.shape_cast %123 : vector<1x16x16x64xbf16> to vector<256x64xbf16>
    %c0_114 = arith.constant 0 : index
    %c0_115 = arith.constant 0 : index
    %125 = vector.load %arg4[%c0_114, %c0_115] : memref<576x64xbf16, #tpu.memory_space<vmem>>, vector<64x64xbf16>
    %cst_116 = arith.constant dense<0.000000e+00> : vector<256x64xf32>
    %126 = tpu.matmul %124, %125, %cst_116 {dimension_numbers = #tpu.dot_dimension_numbers<[1], [0], [0], [1], [0, 0, 1, 1], [], []>} : vector<256x64xbf16>, vector<64x64xbf16>, vector<256x64xf32> -> vector<256x64xf32>
    %127 = vector.extract_strided_slice %122 {offsets = [0, 0, 1, 0], sizes = [1, 16, 16, 64], strides = [1, 1, 1, 1]} : vector<1x18x18x64xbf16> to vector<1x16x16x64xbf16>
    %128 = vector.shape_cast %127 : vector<1x16x16x64xbf16> to vector<256x64xbf16>
    %c64_117 = arith.constant 64 : index
    %c0_118 = arith.constant 0 : index
    %129 = vector.load %arg4[%c64_117, %c0_118] : memref<576x64xbf16, #tpu.memory_space<vmem>>, vector<64x64xbf16>
    %cst_119 = arith.constant dense<0.000000e+00> : vector<256x64xf32>
    %130 = tpu.matmul %128, %129, %cst_119 {dimension_numbers = #tpu.dot_dimension_numbers<[1], [0], [0], [1], [0, 0, 1, 1], [], []>} : vector<256x64xbf16>, vector<64x64xbf16>, vector<256x64xf32> -> vector<256x64xf32>
    %131 = arith.addf %126, %130 : vector<256x64xf32>
    %132 = vector.extract_strided_slice %122 {offsets = [0, 0, 2, 0], sizes = [1, 16, 16, 64], strides = [1, 1, 1, 1]} : vector<1x18x18x64xbf16> to vector<1x16x16x64xbf16>
    %133 = vector.shape_cast %132 : vector<1x16x16x64xbf16> to vector<256x64xbf16>
    %c128_120 = arith.constant 128 : index
    %c0_121 = arith.constant 0 : index
    %134 = vector.load %arg4[%c128_120, %c0_121] : memref<576x64xbf16, #tpu.memory_space<vmem>>, vector<64x64xbf16>
    %cst_122 = arith.constant dense<0.000000e+00> : vector<256x64xf32>
    %135 = tpu.matmul %133, %134, %cst_122 {dimension_numbers = #tpu.dot_dimension_numbers<[1], [0], [0], [1], [0, 0, 1, 1], [], []>} : vector<256x64xbf16>, vector<64x64xbf16>, vector<256x64xf32> -> vector<256x64xf32>
    %136 = arith.addf %131, %135 : vector<256x64xf32>
    %137 = vector.extract_strided_slice %122 {offsets = [0, 1, 0, 0], sizes = [1, 16, 16, 64], strides = [1, 1, 1, 1]} : vector<1x18x18x64xbf16> to vector<1x16x16x64xbf16>
    %138 = vector.shape_cast %137 : vector<1x16x16x64xbf16> to vector<256x64xbf16>
    %c192_123 = arith.constant 192 : index
    %c0_124 = arith.constant 0 : index
    %139 = vector.load %arg4[%c192_123, %c0_124] : memref<576x64xbf16, #tpu.memory_space<vmem>>, vector<64x64xbf16>
    %cst_125 = arith.constant dense<0.000000e+00> : vector<256x64xf32>
    %140 = tpu.matmul %138, %139, %cst_125 {dimension_numbers = #tpu.dot_dimension_numbers<[1], [0], [0], [1], [0, 0, 1, 1], [], []>} : vector<256x64xbf16>, vector<64x64xbf16>, vector<256x64xf32> -> vector<256x64xf32>
    %141 = arith.addf %136, %140 : vector<256x64xf32>
    %142 = vector.extract_strided_slice %122 {offsets = [0, 1, 1, 0], sizes = [1, 16, 16, 64], strides = [1, 1, 1, 1]} : vector<1x18x18x64xbf16> to vector<1x16x16x64xbf16>
    %143 = vector.shape_cast %142 : vector<1x16x16x64xbf16> to vector<256x64xbf16>
    %c256_126 = arith.constant 256 : index
    %c0_127 = arith.constant 0 : index
    %144 = vector.load %arg4[%c256_126, %c0_127] : memref<576x64xbf16, #tpu.memory_space<vmem>>, vector<64x64xbf16>
    %cst_128 = arith.constant dense<0.000000e+00> : vector<256x64xf32>
    %145 = tpu.matmul %143, %144, %cst_128 {dimension_numbers = #tpu.dot_dimension_numbers<[1], [0], [0], [1], [0, 0, 1, 1], [], []>} : vector<256x64xbf16>, vector<64x64xbf16>, vector<256x64xf32> -> vector<256x64xf32>
    %146 = arith.addf %141, %145 : vector<256x64xf32>
    %147 = vector.extract_strided_slice %122 {offsets = [0, 1, 2, 0], sizes = [1, 16, 16, 64], strides = [1, 1, 1, 1]} : vector<1x18x18x64xbf16> to vector<1x16x16x64xbf16>
    %148 = vector.shape_cast %147 : vector<1x16x16x64xbf16> to vector<256x64xbf16>
    %c320_129 = arith.constant 320 : index
    %c0_130 = arith.constant 0 : index
    %149 = vector.load %arg4[%c320_129, %c0_130] : memref<576x64xbf16, #tpu.memory_space<vmem>>, vector<64x64xbf16>
    %cst_131 = arith.constant dense<0.000000e+00> : vector<256x64xf32>
    %150 = tpu.matmul %148, %149, %cst_131 {dimension_numbers = #tpu.dot_dimension_numbers<[1], [0], [0], [1], [0, 0, 1, 1], [], []>} : vector<256x64xbf16>, vector<64x64xbf16>, vector<256x64xf32> -> vector<256x64xf32>
    %151 = arith.addf %146, %150 : vector<256x64xf32>
    %152 = vector.extract_strided_slice %122 {offsets = [0, 2, 0, 0], sizes = [1, 16, 16, 64], strides = [1, 1, 1, 1]} : vector<1x18x18x64xbf16> to vector<1x16x16x64xbf16>
    %153 = vector.shape_cast %152 : vector<1x16x16x64xbf16> to vector<256x64xbf16>
    %c384_132 = arith.constant 384 : index
    %c0_133 = arith.constant 0 : index
    %154 = vector.load %arg4[%c384_132, %c0_133] : memref<576x64xbf16, #tpu.memory_space<vmem>>, vector<64x64xbf16>
    %cst_134 = arith.constant dense<0.000000e+00> : vector<256x64xf32>
    %155 = tpu.matmul %153, %154, %cst_134 {dimension_numbers = #tpu.dot_dimension_numbers<[1], [0], [0], [1], [0, 0, 1, 1], [], []>} : vector<256x64xbf16>, vector<64x64xbf16>, vector<256x64xf32> -> vector<256x64xf32>
    %156 = arith.addf %151, %155 : vector<256x64xf32>
    %157 = vector.extract_strided_slice %122 {offsets = [0, 2, 1, 0], sizes = [1, 16, 16, 64], strides = [1, 1, 1, 1]} : vector<1x18x18x64xbf16> to vector<1x16x16x64xbf16>
    %158 = vector.shape_cast %157 : vector<1x16x16x64xbf16> to vector<256x64xbf16>
    %c448_135 = arith.constant 448 : index
    %c0_136 = arith.constant 0 : index
    %159 = vector.load %arg4[%c448_135, %c0_136] : memref<576x64xbf16, #tpu.memory_space<vmem>>, vector<64x64xbf16>
    %cst_137 = arith.constant dense<0.000000e+00> : vector<256x64xf32>
    %160 = tpu.matmul %158, %159, %cst_137 {dimension_numbers = #tpu.dot_dimension_numbers<[1], [0], [0], [1], [0, 0, 1, 1], [], []>} : vector<256x64xbf16>, vector<64x64xbf16>, vector<256x64xf32> -> vector<256x64xf32>
    %161 = arith.addf %156, %160 : vector<256x64xf32>
    %162 = vector.extract_strided_slice %122 {offsets = [0, 2, 2, 0], sizes = [1, 16, 16, 64], strides = [1, 1, 1, 1]} : vector<1x18x18x64xbf16> to vector<1x16x16x64xbf16>
    %163 = vector.shape_cast %162 : vector<1x16x16x64xbf16> to vector<256x64xbf16>
    %c512_138 = arith.constant 512 : index
    %c0_139 = arith.constant 0 : index
    %164 = vector.load %arg4[%c512_138, %c0_139] : memref<576x64xbf16, #tpu.memory_space<vmem>>, vector<64x64xbf16>
    %cst_140 = arith.constant dense<0.000000e+00> : vector<256x64xf32>
    %165 = tpu.matmul %163, %164, %cst_140 {dimension_numbers = #tpu.dot_dimension_numbers<[1], [0], [0], [1], [0, 0, 1, 1], [], []>} : vector<256x64xbf16>, vector<64x64xbf16>, vector<256x64xf32> -> vector<256x64xf32>
    %166 = arith.addf %161, %165 : vector<256x64xf32>
    %c0_141 = arith.constant 0 : index
    %c0_142 = arith.constant 0 : index
    %167 = vector.load %arg5[%c0_141, %c0_142] : memref<1x64xf32, #tpu.memory_space<vmem>>, vector<1x64xf32>
    %168 = vector.broadcast %167 : vector<1x64xf32> to vector<256x64xf32>
    %169 = arith.addf %166, %168 : vector<256x64xf32>
    %cst_143 = arith.constant 0.000000e+00 : f32
    %170 = vector.broadcast %cst_143 : f32 to vector<256x64xf32>
    %171 = arith.maximumf %169, %170 : vector<256x64xf32>
    %c0_144 = arith.constant 0 : index
    %c0_145 = arith.constant 0 : index
    %172 = vector.load %arg9[%c0_144, %c0_145] : memref<256x64xf32, #tpu.memory_space<vmem>>, vector<256x64xf32>
    %173 = arith.addf %171, %172 : vector<256x64xf32>
    %174 = vector.shape_cast %173 : vector<256x64xf32> to vector<1x16x16x64xf32>
    %c0_146 = arith.constant 0 : index
    %c0_147 = arith.constant 0 : index
    %c0_148 = arith.constant 0 : index
    %c0_149 = arith.constant 0 : index
    %175 = vector.load %arg6[%c0_146, %c0_147, %c0_148, %c0_149] : memref<1x16x16x64xf32, #tpu.memory_space<vmem>>, vector<1x16x16x64xf32>
    tpu.vector_store %arg6[%c0_146, %c0_147, %c0_148, %c0_149], %174 {strides = array<i32>} : memref<1x16x16x64xf32, #tpu.memory_space<vmem>>, vector<1x16x16x64xf32>,
    return
  }
  func.func @transform_0(%arg0: i32) -> (i32, i32, i32, i32) {
    %c0_i32 = arith.constant 0 : i32
    %c0_i32_0 = arith.constant 0 : i32
    %c0_i32_1 = arith.constant 0 : i32
    %c0_i32_2 = arith.constant 0 : i32
    return %arg0, %c0_i32, %c0_i32_0, %c0_i32_1 : i32, i32, i32, i32
  }
  func.func @transform_1(%arg0: i32) -> (i32, i32) {
    %c0_i32 = arith.constant 0 : i32
    %c0_i32_0 = arith.constant 0 : i32
    %c0_i32_1 = arith.constant 0 : i32
    return %c0_i32, %c0_i32_0 : i32, i32
  }
  func.func @transform_2(%arg0: i32) -> (i32, i32) {
    %c0_i32 = arith.constant 0 : i32
    %c0_i32_0 = arith.constant 0 : i32
    %c0_i32_1 = arith.constant 0 : i32
    return %c0_i32, %c0_i32_0 : i32, i32
  }
  func.func @transform_3(%arg0: i32) -> (i32, i32) {
    %c0_i32 = arith.constant 0 : i32
    %c0_i32_0 = arith.constant 0 : i32
    %c0_i32_1 = arith.constant 0 : i32
    return %c0_i32, %c0_i32_0 : i32, i32
  }
  func.func @transform_4(%arg0: i32) -> (i32, i32) {
    %c0_i32 = arith.constant 0 : i32
    %c0_i32_0 = arith.constant 0 : i32
    %c0_i32_1 = arith.constant 0 : i32
    return %c0_i32, %c0_i32_0 : i32, i32
  }
  func.func @transform_5(%arg0: i32) -> (i32, i32, i32, i32) {
    %c0_i32 = arith.constant 0 : i32
    %c0_i32_0 = arith.constant 0 : i32
    %c0_i32_1 = arith.constant 0 : i32
    %c0_i32_2 = arith.constant 0 : i32
    return %arg0, %c0_i32, %c0_i32_0, %c0_i32_1 : i32, i32, i32, i32
  }
}

</mosaic_0001>

<llo_original>
// kernel: tpu_custom_call.1
$region0: #{tpu_custom_call.1}
  #allocation0 [shape = 'u32[]', space=smem, size = 0x4, offset = 0x4, fixed_abs, tag = 'smem constant byte address 0x4 - core index']
  #allocation1 [shape = 'u32[144,128]{1,0:T(1,128)}', space=vmem, size = 0x12000, scoped, tag = 'internal scratch']
  #allocation2 [shape = 'bf16[1,18,18,64]{3,2,1,0:T(8,128)(2,1)}', space=vmem, size = 0x1b000, scoped, tag = 'scratch operand']
  #allocation3 [shape = 'bf16[1,18,18,64]{3,2,1,0:T(8,128)(2,1)}', space=vmem, size = 0x1b000, scoped, tag = 'scratch operand']
  #allocation4 [shape = 'f32[256,64]{1,0:T(8,128)}', space=vmem, size = 0x20000, scoped, tag = 'scratch operand']
  %s0 = inlined_call_operand.vmem [shape: f32[2,16,16,64], index: 0, kind: input, shape index: {}]
  %s1 = inlined_call_operand.vmem [shape: bf16[576,64], index: 1, kind: input, shape index: {}]
  %s2 = inlined_call_operand.vmem [shape: f32[1,64], index: 2, kind: input, shape index: {}]
  %s3 = inlined_call_operand.vmem [shape: bf16[576,64], index: 3, kind: input, shape index: {}]
  %s4 = inlined_call_operand.vmem [shape: f32[1,64], index: 4, kind: input, shape index: {}]
  %s5 = inlined_call_operand.hbm [shape: f32[2,16,16,64], index: 5, kind: output, shape index: {}]
  %s6 = sld [smem:[#allocation0]]
  $region53: #{tpu_custom_call.1} parent=0
    _
  %s8 = ssub.s32 1, %s6
  %s9 = scalar_select 0, %s8, %s6
  $region1: #{tpu_custom_call.1} parent=0
    #allocation5 [shape = 'u8[262144]{0}', space=vmem, size = 0x40000, scoped, tag = 'output window, operand 0']
    #allocation6 [shape = 's32[2]{0}', space=sflag, size = 0x8, scoped, tag = 'scoped memory for tpu_custom_call.1']
    %10 = vsyncpa [#allocation6], 0
    %s11 = scalar_lea.sflag [#allocation6], 1
    %12 = vsyncpa %s11, 0
    loop: start=0, step=1, limit=4
    $region2: #{tpu_custom_call.1} parent=1 // loop_pre_header
      _
    $region3: #{tpu_custom_call.1} parent=1 // loop_header
      %s14 = sphi 0, %s18
      %p15 = scmp.ge.s32.totalorder %s14, 4
      %s24 = sphi 0, %s26
      %s27 = sphi 0, %s24
      %s28 = sphi 0, %s27
      %s44 = sphi 0, %s28
      %s48 = sphi 0, %s48
      %s50 = sphi 0, %s48
      %s51 = sphi 0, %s50
      %s65 = sphi 0, %s51
      %s69 = sphi 0, %s69
      %s71 = sphi 0, %s69
      %s72 = sphi 0, %s71
      %s86 = sphi 0, %s72
      %s90 = sphi 0, %s90
      %s92 = sphi 0, %s90
      %s93 = sphi 0, %s92
      %s107 = sphi 0, %s93
      %s111 = sphi 0, %s111
      %s113 = sphi 0, %s111
      %s114 = sphi 0, %s113
      %s128 = sphi 0, %s114
      %s134 = sphi 0, %s136
      %s137 = sphi 0, %s134
      %s138 = sphi 0, %s137
      %s154 = sphi 0, %s138
    $region4: #{tpu_custom_call.1} parent=1 // loop_header_branch
      %17 = sbr.rel (%p15) target = $region8
    $region5: #{tpu_custom_call.1} parent=1 // loop_body
      %s19 = ssub.s32 %s14, 1
      %s20 = ssub.s32 %s14, 2
      %s21 = sadd.s32 %s14, 1
      %s22 = ssub.s32 %s14, %s21
      %p23 = scmp.eq.s32.totalorder %s22, 0
      %s25 = sadd.s32 %s24, 1
      %s26 = scalar_select %p23, %s24, %s25
      %p29 = pneg %p23
      %p30 = scmp.eq.s32.totalorder %s14, 1
      %p31 = por %p29, %p30
      %p32 = scmp.ne.s32.totalorder %s24, %s27
      %p33 = scmp.eq.s32.totalorder %s14, 0
      %p34 = por %p32, %p33
      %p35 = scmp.ne.s32.totalorder %s24, %s27
      %p36 = scmp.eq.s32.totalorder %s19, 1
      %p37 = por %p35, %p36
      %p38 = scmp.ne.s32.totalorder %s27, %s28
      %p39 = scmp.eq.s32.totalorder %s19, 0
      %p40 = por %p38, %p39
      %p41 = scmp.ne.s32.totalorder %s27, %s28
      %p42 = scmp.eq.s32.totalorder %s20, 1
      %p43 = por %p41, %p42
      %p45 = scmp.ne.s32.totalorder %s28, %s44
      %p46 = scmp.eq.s32.totalorder %s20, 0
      %p47 = por %p45, %p46
      %s49 = sadd.s32 %s48, 1
      %p52 = scmp.eq.s32.totalorder %s14, 1
      %p53 = scmp.ne.s32.totalorder %s48, %s50
      %p54 = scmp.eq.s32.totalorder %s14, 0
      %p55 = por %p53, %p54
      %p56 = scmp.ne.s32.totalorder %s48, %s50
      %p57 = scmp.eq.s32.totalorder %s19, 1
      %p58 = por %p56, %p57
      %p59 = scmp.ne.s32.totalorder %s50, %s51
      %p60 = scmp.eq.s32.totalorder %s19, 0
      %p61 = por %p59, %p60
      %p62 = scmp.ne.s32.totalorder %s50, %s51
      %p63 = scmp.eq.s32.totalorder %s20, 1
      %p64 = por %p62, %p63
      %p66 = scmp.ne.s32.totalorder %s51, %s65
      %p67 = scmp.eq.s32.totalorder %s20, 0
      %p68 = por %p66, %p67
      %s70 = sadd.s32 %s69, 1
      %p73 = scmp.eq.s32.totalorder %s14, 1
      %p74 = scmp.ne.s32.totalorder %s69, %s71
      %p75 = scmp.eq.s32.totalorder %s14, 0
      %p76 = por %p74, %p75
      %p77 = scmp.ne.s32.totalorder %s69, %s71
      %p78 = scmp.eq.s32.totalorder %s19, 1
      %p79 = por %p77, %p78
      %p80 = scmp.ne.s32.totalorder %s71, %s72
      %p81 = scmp.eq.s32.totalorder %s19, 0
      %p82 = por %p80, %p81
      %p83 = scmp.ne.s32.totalorder %s71, %s72
      %p84 = scmp.eq.s32.totalorder %s20, 1
      %p85 = por %p83, %p84
      %p87 = scmp.ne.s32.totalorder %s72, %s86
      %p88 = scmp.eq.s32.totalorder %s20, 0
      %p89 = por %p87, %p88
      %s91 = sadd.s32 %s90, 1
      %p94 = scmp.eq.s32.totalorder %s14, 1
      %p95 = scmp.ne.s32.totalorder %s90, %s92
      %p96 = scmp.eq.s32.totalorder %s14, 0
      %p97 = por %p95, %p96
      %p98 = scmp.ne.s32.totalorder %s90, %s92
      %p99 = scmp.eq.s32.totalorder %s19, 1
      %p100 = por %p98, %p99
      %p101 = scmp.ne.s32.totalorder %s92, %s93
      %p102 = scmp.eq.s32.totalorder %s19, 0
      %p103 = por %p101, %p102
      %p104 = scmp.ne.s32.totalorder %s92, %s93
      %p105 = scmp.eq.s32.totalorder %s20, 1
      %p106 = por %p104, %p105
      %p108 = scmp.ne.s32.totalorder %s93, %s107
      %p109 = scmp.eq.s32.totalorder %s20, 0
      %p110 = por %p108, %p109
      %s112 = sadd.s32 %s111, 1
      %p115 = scmp.eq.s32.totalorder %s14, 1
      %p116 = scmp.ne.s32.totalorder %s111, %s113
      %p117 = scmp.eq.s32.totalorder %s14, 0
      %p118 = por %p116, %p117
      %p119 = scmp.ne.s32.totalorder %s111, %s113
      %p120 = scmp.eq.s32.totalorder %s19, 1
      %p121 = por %p119, %p120
      %p122 = scmp.ne.s32.totalorder %s113, %s114
      %p123 = scmp.eq.s32.totalorder %s19, 0
      %p124 = por %p122, %p123
      %p125 = scmp.ne.s32.totalorder %s113, %s114
      %p126 = scmp.eq.s32.totalorder %s20, 1
      %p127 = por %p125, %p126
      %p129 = scmp.ne.s32.totalorder %s114, %s128
      %p130 = scmp.eq.s32.totalorder %s20, 0
      %p131 = por %p129, %p130
      %s132 = ssub.s32 %s14, %s21
      %p133 = scmp.eq.s32.totalorder %s132, 0
      %s135 = sadd.s32 %s134, 1
      %s136 = scalar_select %p133, %s134, %s135
      %p139 = pneg %p133
      %p140 = scmp.eq.s32.totalorder %s14, 1
      %p141 = por %p139, %p140
      %p142 = scmp.ne.s32.totalorder %s134, %s137
      %p143 = scmp.eq.s32.totalorder %s14, 0
      %p144 = por %p142, %p143
      %p145 = scmp.ne.s32.totalorder %s134, %s137
      %p146 = scmp.eq.s32.totalorder %s19, 1
      %p147 = por %p145, %p146
      %p148 = scmp.ne.s32.totalorder %s137, %s138
      %p149 = scmp.eq.s32.totalorder %s19, 0
      %p150 = por %p148, %p149
      %p151 = scmp.ne.s32.totalorder %s137, %s138
      %p152 = scmp.eq.s32.totalorder %s20, 1
      %p153 = por %p151, %p152
      %p155 = scmp.ne.s32.totalorder %s138, %s154
      %p156 = scmp.eq.s32.totalorder %s20, 0
      %p157 = por %p155, %p156
      %p158 = scmp.le.s32.totalorder 1, %s14
      %p159 = scmp.lt.s32.totalorder %s14, 3
      %p160 = pnand %p158, %p159
      %p161 = pneg %p160
      // Predicated region
      $region9: #{tpu_custom_call.1} parent=5 // pred_check
        _
      $region10: #{tpu_custom_call.1} parent=5 // pred_check_branch
        %163 = sbr.rel (%p160) target = $region12
      $region11: #{tpu_custom_call.1} parent=5 // pred_region
        %s164 = ssub.s32 %s14, 1
        // Predicated region
        $region13: #{tpu_custom_call.1} parent=11 // pred_check
          %p165 = pneg %p61
        $region14: #{tpu_custom_call.1} parent=11 // pred_check_branch
          %167 = sbr.rel (%p165) target = $region16
        $region15: #{tpu_custom_call.1} parent=11 // pred_region
          _
        $region16: #{tpu_custom_call.1} parent=11 // pred_fallthru
          _
        // Predicated region
        $region17: #{tpu_custom_call.1} parent=11 // pred_check
          %p168 = pneg %p82
        $region18: #{tpu_custom_call.1} parent=11 // pred_check_branch
          %170 = sbr.rel (%p168) target = $region20
        $region19: #{tpu_custom_call.1} parent=11 // pred_region
          _
        $region20: #{tpu_custom_call.1} parent=11 // pred_fallthru
          _
        // Predicated region
        $region21: #{tpu_custom_call.1} parent=11 // pred_check
          %p171 = pneg %p103
        $region22: #{tpu_custom_call.1} parent=11 // pred_check_branch
          %173 = sbr.rel (%p171) target = $region24
        $region23: #{tpu_custom_call.1} parent=11 // pred_region
          _
        $region24: #{tpu_custom_call.1} parent=11 // pred_fallthru
          _
        // Predicated region
        $region25: #{tpu_custom_call.1} parent=11 // pred_check
          %p174 = pneg %p124
        $region26: #{tpu_custom_call.1} parent=11 // pred_check_branch
          %176 = sbr.rel (%p174) target = $region28
        $region27: #{tpu_custom_call.1} parent=11 // pred_region
          _
        $region28: #{tpu_custom_call.1} parent=11 // pred_fallthru
          _
      $region12: #{tpu_custom_call.1} parent=5 // pred_fallthru
        _
      %p177 = scmp.lt.s32.totalorder %s14, 2
      // Predicated region
      $region29: #{tpu_custom_call.1} parent=5 // pred_check
        %p178 = pneg %p177
      $region30: #{tpu_custom_call.1} parent=5 // pred_check_branch
        %180 = sbr.rel (%p178) target = $region32
      $region31: #{tpu_custom_call.1} parent=5 // pred_region
        // Predicated region
        $region33: #{tpu_custom_call.1} parent=31 // pred_check
          %p181 = pneg %p34
        $region34: #{tpu_custom_call.1} parent=31 // pred_check_branch
          %183 = sbr.rel (%p181) target = $region36
        $region35: #{tpu_custom_call.1} parent=31 // pred_region
          %p184 = scmp.lt.s32.totalorder %s14, 1
          %s185 = scalar_select %p184, %s14, 1
          %s186 = smul.addr %s185, 32
          %s187 = smul.addr %s186, 8
          %s188 = scalar_lea.vmem %s0, %s187
        $region36: #{tpu_custom_call.1} parent=31 // pred_fallthru
          _
      $region32: #{tpu_custom_call.1} parent=5 // pred_fallthru
        _
      %p189 = scmp.le.s32.totalorder 1, %s14
      %p190 = scmp.lt.s32.totalorder %s14, 3
      %p191 = pnand %p189, %p190
      %p192 = pneg %p191
      // Predicated region
      $region37: #{tpu_custom_call.1} parent=5 // pred_check
        _
      $region38: #{tpu_custom_call.1} parent=5 // pred_check_branch
        %194 = sbr.rel (%p191) target = $region40
      $region39: #{tpu_custom_call.1} parent=5 // pred_region
        %s195 = ssub.s32 %s14, 1
        %p196 = scmp.lt.s32.totalorder %s19, 1
        %s197 = scalar_select %p196, %s19, 1
        %s198 = smul.addr %s197, 32
        %s199 = smul.addr %s198, 8
        %s200 = scalar_lea.vmem %s0, %s199
        %p201 = pneg %p40
        %p202 = pneg %p37
        %p203 = pneg %p61
        %p204 = pneg %p58
        %p205 = pneg %p82
        %p206 = pneg %p79
        %p207 = pneg %p103
        %p208 = pneg %p100
        %p209 = pneg %p124
        %p210 = pneg %p121
        %p211 = pneg %p150
        %p212 = pneg %p147
        %s213 = sand.u32 %s137, 1
        %s214 = scalar_lea.sflag [#allocation6], %s213
        %s215 = sand.u32 %s137, 1
        %s216 = smul.addr %s215, 256
        %s217 = scalar_lea.vmem [#allocation5], %s216
        %p218 = scmp.lt.s32.totalorder %s19, 1
        %s219 = scalar_select %p218, %s19, 1
        %s220 = smul.addr %s219, 32
        %s221 = smul.addr %s220, 8
        %s222 = scalar_lea.vmem %s0, %s221
        %vm224 = vcmask 519168
        %225 = vst.msk [vmem:[#allocation2] sm:$0xf] %vm224, 0
        %226 = vst.msk [vmem:[#allocation2 + $0x4] sm:$0xf] %vm224, 0
        %vm227 = vcmask 516096
        %228 = vst.msk [vmem:[#allocation2 + $0x8] sm:$0x1] %vm227, 0
        %s229 = scalar_lea.vmem [#allocation2], 204
        %230 = vst.msk [vmem:[%s229] sm:$0xf] %vm224, 0
        %231 = vst.msk [vmem:[%s229 + $0x4] sm:$0xf] %vm224, 0
        %232 = vst.msk [vmem:[%s229 + $0x8] sm:$0x1] %vm227, 0
        %vm233 = vcmask 516096
        %vm234 = vsmask.f32 256
        %vm235 = vmand %vm233, %vm234
        %v236 = vld [vmem:[#allocation2] sm:$0x1]
        %v237 = vsel %vm235, 0, %v236
        %238 = vst [vmem:[#allocation2] sm:$0x1] %v237
        %v239 = vld [vmem:[#allocation2 + $0xc] sm:$0x1]
        %v240 = vsel %vm235, 0, %v239
        %241 = vst [vmem:[#allocation2 + $0xc] sm:$0x1] %v240
        %v242 = vld [vmem:[#allocation2 + $0x18] sm:$0x1]
        %v243 = vsel %vm235, 0, %v242
        %244 = vst [vmem:[#allocation2 + $0x18] sm:$0x1] %v243
        %v245 = vld [vmem:[#allocation2 + $0x24] sm:$0x1]
        %v246 = vsel %vm235, 0, %v245
        %247 = vst [vmem:[#allocation2 + $0x24] sm:$0x1] %v246
        %v248 = vld [vmem:[#allocation2 + $0x30] sm:$0x1]
        %v249 = vsel %vm235, 0, %v248
        %250 = vst [vmem:[#allocation2 + $0x30] sm:$0x1] %v249
        %v251 = vld [vmem:[#allocation2 + $0x3c] sm:$0x1]
        %v252 = vsel %vm235, 0, %v251
        %253 = vst [vmem:[#allocation2 + $0x3c] sm:$0x1] %v252
        %v254 = vld [vmem:[#allocation2 + $0x48] sm:$0x1]
        %v255 = vsel %vm235, 0, %v254
        %256 = vst [vmem:[#allocation2 + $0x48] sm:$0x1] %v255
        %v257 = vld [vmem:[#allocation2 + $0x54] sm:$0x1]
        %v258 = vsel %vm235, 0, %v257
        %259 = vst [vmem:[#allocation2 + $0x54] sm:$0x1] %v258
        %v260 = vld [vmem:[#allocation2 + $0x60] sm:$0x1]
        %v261 = vsel %vm235, 0, %v260
        %262 = vst [vmem:[#allocation2 + $0x60] sm:$0x1] %v261
        %v263 = vld [vmem:[#allocation2 + $0x6c] sm:$0x1]
        %v264 = vsel %vm235, 0, %v263
        %265 = vst [vmem:[#allocation2 + $0x6c] sm:$0x1] %v264
        %v266 = vld [vmem:[#allocation2 + $0x78] sm:$0x1]
        %v267 = vsel %vm235, 0, %v266
        %268 = vst [vmem:[#allocation2 + $0x78] sm:$0x1] %v267
        %v269 = vld [vmem:[#allocation2 + $0x84] sm:$0x1]
        %v270 = vsel %vm235, 0, %v269
        %271 = vst [vmem:[#allocation2 + $0x84] sm:$0x1] %v270
        %v272 = vld [vmem:[#allocation2 + $0x90] sm:$0x1]
        %v273 = vsel %vm235, 0, %v272
        %274 = vst [vmem:[#allocation2 + $0x90] sm:$0x1] %v273
        %v275 = vld [vmem:[#allocation2 + $0x9c] sm:$0x1]
        %v276 = vsel %vm235, 0, %v275
        %277 = vst [vmem:[#allocation2 + $0x9c] sm:$0x1] %v276
        %v278 = vld [vmem:[#allocation2 + $0xa8] sm:$0x1]
        %v279 = vsel %vm235, 0, %v278
        %280 = vst [vmem:[#allocation2 + $0xa8] sm:$0x1] %v279
        %v281 = vld [vmem:[#allocation2 + $0xb4] sm:$0x1]
        %v282 = vsel %vm235, 0, %v281
        %283 = vst [vmem:[#allocation2 + $0xb4] sm:$0x1] %v282
        %v284 = vld [vmem:[#allocation2 + $0xc0] sm:$0x1]
        %v285 = vsel %vm235, 0, %v284
        %286 = vst [vmem:[#allocation2 + $0xc0] sm:$0x1] %v285
        %v287 = vld [vmem:[#allocation2 + $0xcc] sm:$0x1]
        %v288 = vsel %vm235, 0, %v287
        %289 = vst [vmem:[#allocation2 + $0xcc] sm:$0x1] %v288
        %vm290 = vsmask.f32 7938
        %vm291 = vmand %vm233, %vm290
        %v292 = vld [vmem:[#allocation2 + $0x8] sm:$0x1]
        %v293 = vsel %vm291, 0, %v292
        %294 = vst [vmem:[#allocation2 + $0x8] sm:$0x1] %v293
        %v295 = vld [vmem:[#allocation2 + $0x14] sm:$0x1]
        %v296 = vsel %vm291, 0, %v295
        %297 = vst [vmem:[#allocation2 + $0x14] sm:$0x1] %v296
        %v298 = vld [vmem:[#allocation2 + $0x20] sm:$0x1]
        %v299 = vsel %vm291, 0, %v298
        %300 = vst [vmem:[#allocation2 + $0x20] sm:$0x1] %v299
        %v301 = vld [vmem:[#allocation2 + $0x2c] sm:$0x1]
        %v302 = vsel %vm291, 0, %v301
        %303 = vst [vmem:[#allocation2 + $0x2c] sm:$0x1] %v302
        %v304 = vld [vmem:[#allocation2 + $0x38] sm:$0x1]
        %v305 = vsel %vm291, 0, %v304
        %306 = vst [vmem:[#allocation2 + $0x38] sm:$0x1] %v305
        %v307 = vld [vmem:[#allocation2 + $0x44] sm:$0x1]
        %v308 = vsel %vm291, 0, %v307
        %309 = vst [vmem:[#allocation2 + $0x44] sm:$0x1] %v308
        %v310 = vld [vmem:[#allocation2 + $0x50] sm:$0x1]
        %v311 = vsel %vm291, 0, %v310
        %312 = vst [vmem:[#allocation2 + $0x50] sm:$0x1] %v311
        %v313 = vld [vmem:[#allocation2 + $0x5c] sm:$0x1]
        %v314 = vsel %vm291, 0, %v313
        %315 = vst [vmem:[#allocation2 + $0x5c] sm:$0x1] %v314
        %v316 = vld [vmem:[#allocation2 + $0x68] sm:$0x1]
        %v317 = vsel %vm291, 0, %v316
        %318 = vst [vmem:[#allocation2 + $0x68] sm:$0x1] %v317
        %v319 = vld [vmem:[#allocation2 + $0x74] sm:$0x1]
        %v320 = vsel %vm291, 0, %v319
        %321 = vst [vmem:[#allocation2 + $0x74] sm:$0x1] %v320
        %v322 = vld [vmem:[#allocation2 + $0x80] sm:$0x1]
        %v323 = vsel %vm291, 0, %v322
        %324 = vst [vmem:[#allocation2 + $0x80] sm:$0x1] %v323
        %v325 = vld [vmem:[#allocation2 + $0x8c] sm:$0x1]
        %v326 = vsel %vm291, 0, %v325
        %327 = vst [vmem:[#allocation2 + $0x8c] sm:$0x1] %v326
        %v328 = vld [vmem:[#allocation2 + $0x98] sm:$0x1]
        %v329 = vsel %vm291, 0, %v328
        %330 = vst [vmem:[#allocation2 + $0x98] sm:$0x1] %v329
        %v331 = vld [vmem:[#allocation2 + $0xa4] sm:$0x1]
        %v332 = vsel %vm291, 0, %v331
        %333 = vst [vmem:[#allocation2 + $0xa4] sm:$0x1] %v332
        %v334 = vld [vmem:[#allocation2 + $0xb0] sm:$0x1]
        %v335 = vsel %vm291, 0, %v334
        %336 = vst [vmem:[#allocation2 + $0xb0] sm:$0x1] %v335
        %v337 = vld [vmem:[#allocation2 + $0xbc] sm:$0x1]
        %v338 = vsel %vm291, 0, %v337
        %339 = vst [vmem:[#allocation2 + $0xbc] sm:$0x1] %v338
        %v340 = vld [vmem:[#allocation2 + $0xc8] sm:$0x1]
        %v341 = vsel %vm291, 0, %v340
        %342 = vst [vmem:[#allocation2 + $0xc8] sm:$0x1] %v341
        %v343 = vld [vmem:[#allocation2 + $0xd4] sm:$0x1]
        %v344 = vsel %vm291, 0, %v343
        %345 = vst [vmem:[#allocation2 + $0xd4] sm:$0x1] %v344
        %346 = vst.msk [vmem:[#allocation3] sm:$0xf] %vm224, 0
        %347 = vst.msk [vmem:[#allocation3 + $0x4] sm:$0xf] %vm224, 0
        %348 = vst.msk [vmem:[#allocation3 + $0x8] sm:$0x1] %vm227, 0
        %s349 = scalar_lea.vmem [#allocation3], 204
        %350 = vst.msk [vmem:[%s349] sm:$0xf] %vm224, 0
        %351 = vst.msk [vmem:[%s349 + $0x4] sm:$0xf] %vm224, 0
        %352 = vst.msk [vmem:[%s349 + $0x8] sm:$0x1] %vm227, 0
        %v353 = vld [vmem:[#allocation3] sm:$0x1]
        %v354 = vsel %vm235, 0, %v353
        %355 = vst [vmem:[#allocation3] sm:$0x1] %v354
        %v356 = vld [vmem:[#allocation3 + $0xc] sm:$0x1]
        %v357 = vsel %vm235, 0, %v356
        %358 = vst [vmem:[#allocation3 + $0xc] sm:$0x1] %v357
        %v359 = vld [vmem:[#allocation3 + $0x18] sm:$0x1]
        %v360 = vsel %vm235, 0, %v359
        %361 = vst [vmem:[#allocation3 + $0x18] sm:$0x1] %v360
        %v362 = vld [vmem:[#allocation3 + $0x24] sm:$0x1]
        %v363 = vsel %vm235, 0, %v362
        %364 = vst [vmem:[#allocation3 + $0x24] sm:$0x1] %v363
        %v365 = vld [vmem:[#allocation3 + $0x30] sm:$0x1]
        %v366 = vsel %vm235, 0, %v365
        %367 = vst [vmem:[#allocation3 + $0x30] sm:$0x1] %v366
        %v368 = vld [vmem:[#allocation3 + $0x3c] sm:$0x1]
        %v369 = vsel %vm235, 0, %v368
        %370 = vst [vmem:[#allocation3 + $0x3c] sm:$0x1] %v369
        %v371 = vld [vmem:[#allocation3 + $0x48] sm:$0x1]
        %v372 = vsel %vm235, 0, %v371
        %373 = vst [vmem:[#allocation3 + $0x48] sm:$0x1] %v372
        %v374 = vld [vmem:[#allocation3 + $0x54] sm:$0x1]
        %v375 = vsel %vm235, 0, %v374
        %376 = vst [vmem:[#allocation3 + $0x54] sm:$0x1] %v375
        %v377 = vld [vmem:[#allocation3 + $0x60] sm:$0x1]
        %v378 = vsel %vm235, 0, %v377
        %379 = vst [vmem:[#allocation3 + $0x60] sm:$0x1] %v378
        %v380 = vld [vmem:[#allocation3 + $0x6c] sm:$0x1]
        %v381 = vsel %vm235, 0, %v380
        %382 = vst [vmem:[#allocation3 + $0x6c] sm:$0x1] %v381
        %v383 = vld [vmem:[#allocation3 + $0x78] sm:$0x1]
        %v384 = vsel %vm235, 0, %v383
        %385 = vst [vmem:[#allocation3 + $0x78] sm:$0x1] %v384
        %v386 = vld [vmem:[#allocation3 + $0x84] sm:$0x1]
        %v387 = vsel %vm235, 0, %v386
        %388 = vst [vmem:[#allocation3 + $0x84] sm:$0x1] %v387
        %v389 = vld [vmem:[#allocation3 + $0x90] sm:$0x1]
        %v390 = vsel %vm235, 0, %v389
        %391 = vst [vmem:[#allocation3 + $0x90] sm:$0x1] %v390
        %v392 = vld [vmem:[#allocation3 + $0x9c] sm:$0x1]
        %v393 = vsel %vm235, 0, %v392
        %394 = vst [vmem:[#allocation3 + $0x9c] sm:$0x1] %v393
        %v395 = vld [vmem:[#allocation3 + $0xa8] sm:$0x1]
        %v396 = vsel %vm235, 0, %v395
        %397 = vst [vmem:[#allocation3 + $0xa8] sm:$0x1] %v396
        %v398 = vld [vmem:[#allocation3 + $0xb4] sm:$0x1]
        %v399 = vsel %vm235, 0, %v398
        %400 = vst [vmem:[#allocation3 + $0xb4] sm:$0x1] %v399
        %v401 = vld [vmem:[#allocation3 + $0xc0] sm:$0x1]
        %v402 = vsel %vm235, 0, %v401
        %403 = vst [vmem:[#allocation3 + $0xc0] sm:$0x1] %v402
        %v404 = vld [vmem:[#allocation3 + $0xcc] sm:$0x1]
        %v405 = vsel %vm235, 0, %v404
        %406 = vst [vmem:[#allocation3 + $0xcc] sm:$0x1] %v405
        %v407 = vld [vmem:[#allocation3 + $0x8] sm:$0x1]
        %v408 = vsel %vm291, 0, %v407
        %409 = vst [vmem:[#allocation3 + $0x8] sm:$0x1] %v408
        %v410 = vld [vmem:[#allocation3 + $0x14] sm:$0x1]
        %v411 = vsel %vm291, 0, %v410
        %412 = vst [vmem:[#allocation3 + $0x14] sm:$0x1] %v411
        %v413 = vld [vmem:[#allocation3 + $0x20] sm:$0x1]
        %v414 = vsel %vm291, 0, %v413
        %415 = vst [vmem:[#allocation3 + $0x20] sm:$0x1] %v414
        %v416 = vld [vmem:[#allocation3 + $0x2c] sm:$0x1]
        %v417 = vsel %vm291, 0, %v416
        %418 = vst [vmem:[#allocation3 + $0x2c] sm:$0x1] %v417
        %v419 = vld [vmem:[#allocation3 + $0x38] sm:$0x1]
        %v420 = vsel %vm291, 0, %v419
        %421 = vst [vmem:[#allocation3 + $0x38] sm:$0x1] %v420
        %v422 = vld [vmem:[#allocation3 + $0x44] sm:$0x1]
        %v423 = vsel %vm291, 0, %v422
        %424 = vst [vmem:[#allocation3 + $0x44] sm:$0x1] %v423
        %v425 = vld [vmem:[#allocation3 + $0x50] sm:$0x1]
        %v426 = vsel %vm291, 0, %v425
        %427 = vst [vmem:[#allocation3 + $0x50] sm:$0x1] %v426
        %v428 = vld [vmem:[#allocation3 + $0x5c] sm:$0x1]
        %v429 = vsel %vm291, 0, %v428
        %430 = vst [vmem:[#allocation3 + $0x5c] sm:$0x1] %v429
        %v431 = vld [vmem:[#allocation3 + $0x68] sm:$0x1]
        %v432 = vsel %vm291, 0, %v431
        %433 = vst [vmem:[#allocation3 + $0x68] sm:$0x1] %v432
        %v434 = vld [vmem:[#allocation3 + $0x74] sm:$0x1]
        %v435 = vsel %vm291, 0, %v434
        %436 = vst [vmem:[#allocation3 + $0x74] sm:$0x1] %v435
        %v437 = vld [vmem:[#allocation3 + $0x80] sm:$0x1]
        %v438 = vsel %vm291, 0, %v437
        %439 = vst [vmem:[#allocation3 + $0x80] sm:$0x1] %v438
        %v440 = vld [vmem:[#allocation3 + $0x8c] sm:$0x1]
        %v441 = vsel %vm291, 0, %v440
        %442 = vst [vmem:[#allocation3 + $0x8c] sm:$0x1] %v441
        %v443 = vld [vmem:[#allocation3 + $0x98] sm:$0x1]
        %v444 = vsel %vm291, 0, %v443
        %445 = vst [vmem:[#allocation3 + $0x98] sm:$0x1] %v444
        %v446 = vld [vmem:[#allocation3 + $0xa4] sm:$0x1]
        %v447 = vsel %vm291, 0, %v446
        %448 = vst [vmem:[#allocation3 + $0xa4] sm:$0x1] %v447
        %v449 = vld [vmem:[#allocation3 + $0xb0] sm:$0x1]
        %v450 = vsel %vm291, 0, %v449
        %451 = vst [vmem:[#allocation3 + $0xb0] sm:$0x1] %v450
        %v452 = vld [vmem:[#allocation3 + $0xbc] sm:$0x1]
        %v453 = vsel %vm291, 0, %v452
        %454 = vst [vmem:[#allocation3 + $0xbc] sm:$0x1] %v453
        %v455 = vld [vmem:[#allocation3 + $0xc8] sm:$0x1]
        %v456 = vsel %vm291, 0, %v455
        %457 = vst [vmem:[#allocation3 + $0xc8] sm:$0x1] %v456
        %v458 = vld [vmem:[#allocation3 + $0xd4] sm:$0x1]
        %v459 = vsel %vm291, 0, %v458
        %460 = vst [vmem:[#allocation3 + $0xd4] sm:$0x1] %v459
        %v461 = vld [vmem:[%s222] sm:$0xff]
        %v462 = vld [vmem:[%s222 + $0x8] sm:$0xff]
        %v463 = vld [vmem:[%s222 + $0x10] sm:$0xff]
        %v464 = vld [vmem:[%s222 + $0x18] sm:$0xff]
        %v465 = vld [vmem:[%s222 + $0x20] sm:$0xff]
        %v466 = vld [vmem:[%s222 + $0x28] sm:$0xff]
        %v467 = vld [vmem:[%s222 + $0x30] sm:$0xff]
        %v468 = vld [vmem:[%s222 + $0x38] sm:$0xff]
        %v469 = vld [vmem:[%s222 + $0x40] sm:$0xff]
        %v470 = vld [vmem:[%s222 + $0x48] sm:$0xff]
        %v471 = vld [vmem:[%s222 + $0x50] sm:$0xff]
        %v472 = vld [vmem:[%s222 + $0x58] sm:$0xff]
        %v473 = vld [vmem:[%s222 + $0x60] sm:$0xff]
        %v474 = vld [vmem:[%s222 + $0x68] sm:$0xff]
        %v475 = vld [vmem:[%s222 + $0x70] sm:$0xff]
        %v476 = vld [vmem:[%s222 + $0x78] sm:$0xff]
        %v477 = vld [vmem:[%s222 + $0x80] sm:$0xff]
        %v478 = vld [vmem:[%s222 + $0x88] sm:$0xff]
        %v479 = vld [vmem:[%s222 + $0x90] sm:$0xff]
        %v480 = vld [vmem:[%s222 + $0x98] sm:$0xff]
        %v481 = vld [vmem:[%s222 + $0xa0] sm:$0xff]
        %v482 = vld [vmem:[%s222 + $0xa8] sm:$0xff]
        %v483 = vld [vmem:[%s222 + $0xb0] sm:$0xff]
        %v484 = vld [vmem:[%s222 + $0xb8] sm:$0xff]
        %v485 = vld [vmem:[%s222 + $0xc0] sm:$0xff]
        %v486 = vld [vmem:[%s222 + $0xc8] sm:$0xff]
        %v487 = vld [vmem:[%s222 + $0xd0] sm:$0xff]
        %v488 = vld [vmem:[%s222 + $0xd8] sm:$0xff]
        %v489 = vld [vmem:[%s222 + $0xe0] sm:$0xff]
        %v490 = vld [vmem:[%s222 + $0xe8] sm:$0xff]
        %v491 = vld [vmem:[%s222 + $0xf0] sm:$0xff]
        %v492 = vld [vmem:[%s222 + $0xf8] sm:$0xff]
        %v493 = vpack.c.bf16 %v462, %v461
        %v494 = vpack.c.bf16 %v464, %v463
        %v495 = vpack.c.bf16 %v466, %v465
        %v496 = vpack.c.bf16 %v468, %v467
        %v497 = vpack.c.bf16 %v470, %v469
        %v498 = vpack.c.bf16 %v472, %v471
        %v499 = vpack.c.bf16 %v474, %v473
        %v500 = vpack.c.bf16 %v476, %v475
        %v501 = vpack.c.bf16 %v478, %v477
        %v502 = vpack.c.bf16 %v480, %v479
        %v503 = vpack.c.bf16 %v482, %v481
        %v504 = vpack.c.bf16 %v484, %v483
        %v505 = vpack.c.bf16 %v486, %v485
        %v506 = vpack.c.bf16 %v488, %v487
        %v507 = vpack.c.bf16 %v490, %v489
        %v508 = vpack.c.bf16 %v492, %v491
        %v525 = vunpack.c.l.b16 %v493
        %v526 = vunpack.c.h.b16 %v493
        %v527 = vunpack.c.l.b16 %v494
        %v528 = vunpack.c.h.b16 %v494
        %v529 = vunpack.c.l.b16 %v495
        %v530 = vunpack.c.h.b16 %v495
        %v531 = vunpack.c.l.b16 %v496
        %v532 = vunpack.c.h.b16 %v496
        %v533 = vunpack.c.l.b16 %v497
        %v534 = vunpack.c.h.b16 %v497
        %v535 = vunpack.c.l.b16 %v498
        %v536 = vunpack.c.h.b16 %v498
        %v537 = vunpack.c.l.b16 %v499
        %v538 = vunpack.c.h.b16 %v499
        %v539 = vunpack.c.l.b16 %v500
        %v540 = vunpack.c.h.b16 %v500
        %v541 = vunpack.c.l.b16 %v501
        %v542 = vunpack.c.h.b16 %v501
        %v543 = vunpack.c.l.b16 %v502
        %v544 = vunpack.c.h.b16 %v502
        %v545 = vunpack.c.l.b16 %v503
        %v546 = vunpack.c.h.b16 %v503
        %v547 = vunpack.c.l.b16 %v504
        %v548 = vunpack.c.h.b16 %v504
        %v549 = vunpack.c.l.b16 %v505
        %v550 = vunpack.c.h.b16 %v505
        %v551 = vunpack.c.l.b16 %v506
        %v552 = vunpack.c.h.b16 %v506
        %v553 = vunpack.c.l.b16 %v507
        %v554 = vunpack.c.h.b16 %v507
        %v555 = vunpack.c.l.b16 %v508
        %v556 = vunpack.c.h.b16 %v508
        %v557 = vpack.c.b16 %v525, %v525
        %v558 = vpack.c.b16 %v526, %v526
        %v559 = vpack.c.b16 %v527, %v527
        %v560 = vpack.c.b16 %v528, %v528
        %v561 = vpack.c.b16 %v529, %v529
        %v562 = vpack.c.b16 %v530, %v530
        %v563 = vpack.c.b16 %v531, %v531
        %v564 = vpack.c.b16 %v532, %v532
        %v565 = vpack.c.b16 %v533, %v533
        %v566 = vpack.c.b16 %v534, %v534
        %v567 = vpack.c.b16 %v535, %v535
        %v568 = vpack.c.b16 %v536, %v536
        %v569 = vpack.c.b16 %v537, %v537
        %v570 = vpack.c.b16 %v538, %v538
        %v571 = vpack.c.b16 %v539, %v539
        %v572 = vpack.c.b16 %v540, %v540
        %v573 = vpack.c.b16 %v541, %v541
        %v574 = vpack.c.b16 %v542, %v542
        %v575 = vpack.c.b16 %v543, %v543
        %v576 = vpack.c.b16 %v544, %v544
        %v577 = vpack.c.b16 %v545, %v545
        %v578 = vpack.c.b16 %v546, %v546
        %v579 = vpack.c.b16 %v547, %v547
        %v580 = vpack.c.b16 %v548, %v548
        %v581 = vpack.c.b16 %v549, %v549
        %v582 = vpack.c.b16 %v550, %v550
        %v583 = vpack.c.b16 %v551, %v551
        %v584 = vpack.c.b16 %v552, %v552
        %v585 = vpack.c.b16 %v553, %v553
        %v586 = vpack.c.b16 %v554, %v554
        %v587 = vpack.c.b16 %v555, %v555
        %v588 = vpack.c.b16 %v556, %v556
        %vm589 = vsmask.f32 4368
        %vm590 = vmor %vm234, %vm589
        %v592 = vshrl.u32 %v557, 16
        %v594 = vrot.slane %v592, 7
        %v595 = vshll.u32 %v557, 16
        %v597 = vor.u32 %v594, %v595
        %v598 = vrot.slane %v594, 4
        %v600 = vshrl.u32 %v558, 16
        %v602 = vrot.slane %v600, 7
        %v603 = vshll.u32 %v558, 16
        %v605 = vor.u32 %v602, %v603
        %v606 = vsel %vm590, %v598, %v605
        %v607 = vrot.slane %v602, 4
        %v609 = vshrl.u32 %v559, 16
        %v611 = vrot.slane %v609, 7
        %v612 = vshll.u32 %v559, 16
        %v614 = vor.u32 %v611, %v612
        %v615 = vrot.slane %v611, 4
        %v617 = vshrl.u32 %v560, 16
        %v619 = vrot.slane %v617, 7
        %v620 = vshll.u32 %v560, 16
        %v622 = vor.u32 %v619, %v620
        %v623 = vsel %vm590, %v615, %v622
        %v624 = vrot.slane %v619, 4
        %v626 = vshrl.u32 %v561, 16
        %v628 = vrot.slane %v626, 7
        %v629 = vshll.u32 %v561, 16
        %v631 = vor.u32 %v628, %v629
        %v632 = vrot.slane %v628, 4
        %v634 = vshrl.u32 %v562, 16
        %v636 = vrot.slane %v634, 7
        %v637 = vshll.u32 %v562, 16
        %v639 = vor.u32 %v636, %v637
        %v640 = vsel %vm590, %v632, %v639
        %v641 = vrot.slane %v636, 4
        %v643 = vshrl.u32 %v563, 16
        %v645 = vrot.slane %v643, 7
        %v646 = vshll.u32 %v563, 16
        %v648 = vor.u32 %v645, %v646
        %v649 = vrot.slane %v645, 4
        %v651 = vshrl.u32 %v564, 16
        %v653 = vrot.slane %v651, 7
        %v654 = vshll.u32 %v564, 16
        %v656 = vor.u32 %v653, %v654
        %v657 = vsel %vm590, %v649, %v656
        %v658 = vrot.slane %v653, 4
        %v660 = vshrl.u32 %v565, 16
        %v662 = vrot.slane %v660, 7
        %v663 = vshll.u32 %v565, 16
        %v665 = vor.u32 %v662, %v663
        %v666 = vrot.slane %v662, 4
        %v668 = vshrl.u32 %v566, 16
        %v670 = vrot.slane %v668, 7
        %v671 = vshll.u32 %v566, 16
        %v673 = vor.u32 %v670, %v671
        %v674 = vsel %vm590, %v666, %v673
        %v675 = vrot.slane %v670, 4
        %v677 = vshrl.u32 %v567, 16
        %v679 = vrot.slane %v677, 7
        %v680 = vshll.u32 %v567, 16
        %v682 = vor.u32 %v679, %v680
        %v683 = vrot.slane %v679, 4
        %v685 = vshrl.u32 %v568, 16
        %v687 = vrot.slane %v685, 7
        %v688 = vshll.u32 %v568, 16
        %v690 = vor.u32 %v687, %v688
        %v691 = vsel %vm590, %v683, %v690
        %v692 = vrot.slane %v687, 4
        %v694 = vshrl.u32 %v569, 16
        %v696 = vrot.slane %v694, 7
        %v697 = vshll.u32 %v569, 16
        %v699 = vor.u32 %v696, %v697
        %v700 = vrot.slane %v696, 4
        %v702 = vshrl.u32 %v570, 16
        %v704 = vrot.slane %v702, 7
        %v705 = vshll.u32 %v570, 16
        %v707 = vor.u32 %v704, %v705
        %v708 = vsel %vm590, %v700, %v707
        %v709 = vrot.slane %v704, 4
        %v711 = vshrl.u32 %v571, 16
        %v713 = vrot.slane %v711, 7
        %v714 = vshll.u32 %v571, 16
        %v716 = vor.u32 %v713, %v714
        %v717 = vrot.slane %v713, 4
        %v719 = vshrl.u32 %v572, 16
        %v721 = vrot.slane %v719, 7
        %v722 = vshll.u32 %v572, 16
        %v724 = vor.u32 %v721, %v722
        %v725 = vsel %vm590, %v717, %v724
        %v726 = vrot.slane %v721, 4
        %v728 = vshrl.u32 %v573, 16
        %v730 = vrot.slane %v728, 7
        %v731 = vshll.u32 %v573, 16
        %v733 = vor.u32 %v730, %v731
        %v734 = vrot.slane %v730, 4
        %v736 = vshrl.u32 %v574, 16
        %v738 = vrot.slane %v736, 7
        %v739 = vshll.u32 %v574, 16
        %v741 = vor.u32 %v738, %v739
        %v742 = vsel %vm590, %v734, %v741
        %v743 = vrot.slane %v738, 4
        %v745 = vshrl.u32 %v575, 16
        %v747 = vrot.slane %v745, 7
        %v748 = vshll.u32 %v575, 16
        %v750 = vor.u32 %v747, %v748
        %v751 = vrot.slane %v747, 4
        %v753 = vshrl.u32 %v576, 16
        %v755 = vrot.slane %v753, 7
        %v756 = vshll.u32 %v576, 16
        %v758 = vor.u32 %v755, %v756
        %v759 = vsel %vm590, %v751, %v758
        %v760 = vrot.slane %v755, 4
        %v762 = vshrl.u32 %v577, 16
        %v764 = vrot.slane %v762, 7
        %v765 = vshll.u32 %v577, 16
        %v767 = vor.u32 %v764, %v765
        %v768 = vrot.slane %v764, 4
        %v770 = vshrl.u32 %v578, 16
        %v772 = vrot.slane %v770, 7
        %v773 = vshll.u32 %v578, 16
        %v775 = vor.u32 %v772, %v773
        %v776 = vsel %vm590, %v768, %v775
        %v777 = vrot.slane %v772, 4
        %v779 = vshrl.u32 %v579, 16
        %v781 = vrot.slane %v779, 7
        %v782 = vshll.u32 %v579, 16
        %v784 = vor.u32 %v781, %v782
        %v785 = vrot.slane %v781, 4
        %v787 = vshrl.u32 %v580, 16
        %v789 = vrot.slane %v787, 7
        %v790 = vshll.u32 %v580, 16
        %v792 = vor.u32 %v789, %v790
        %v793 = vsel %vm590, %v785, %v792
        %v794 = vrot.slane %v789, 4
        %v796 = vshrl.u32 %v581, 16
        %v798 = vrot.slane %v796, 7
        %v799 = vshll.u32 %v581, 16
        %v801 = vor.u32 %v798, %v799
        %v802 = vrot.slane %v798, 4
        %v804 = vshrl.u32 %v582, 16
        %v806 = vrot.slane %v804, 7
        %v807 = vshll.u32 %v582, 16
        %v809 = vor.u32 %v806, %v807
        %v810 = vsel %vm590, %v802, %v809
        %v811 = vrot.slane %v806, 4
        %v813 = vshrl.u32 %v583, 16
        %v815 = vrot.slane %v813, 7
        %v816 = vshll.u32 %v583, 16
        %v818 = vor.u32 %v815, %v816
        %v819 = vrot.slane %v815, 4
        %v821 = vshrl.u32 %v584, 16
        %v823 = vrot.slane %v821, 7
        %v824 = vshll.u32 %v584, 16
        %v826 = vor.u32 %v823, %v824
        %v827 = vsel %vm590, %v819, %v826
        %v828 = vrot.slane %v823, 4
        %v830 = vshrl.u32 %v585, 16
        %v832 = vrot.slane %v830, 7
        %v833 = vshll.u32 %v585, 16
        %v835 = vor.u32 %v832, %v833
        %v836 = vrot.slane %v832, 4
        %v838 = vshrl.u32 %v586, 16
        %v840 = vrot.slane %v838, 7
        %v841 = vshll.u32 %v586, 16
        %v843 = vor.u32 %v840, %v841
        %v844 = vsel %vm590, %v836, %v843
        %v845 = vrot.slane %v840, 4
        %v847 = vshrl.u32 %v587, 16
        %v849 = vrot.slane %v847, 7
        %v850 = vshll.u32 %v587, 16
        %v852 = vor.u32 %v849, %v850
        %v853 = vrot.slane %v849, 4
        %v855 = vshrl.u32 %v588, 16
        %v857 = vrot.slane %v855, 7
        %v858 = vshll.u32 %v588, 16
        %v860 = vor.u32 %v857, %v858
        %v861 = vsel %vm590, %v853, %v860
        %v862 = vrot.slane %v857, 4
        %s911 = scalar_lea.vmem [#allocation2], 12
        %vm912 = vcmask 519168
        %vm913 = vmand %vm912, %vm290
        %v914 = vld [vmem:[%s911] sm:$0xf]
        %v915 = vsel %vm913, %v597, %v914
        %916 = vst [vmem:[%s911] sm:$0xf] %v915
        %917 = vst.msk [vmem:[%s911 + $0x4] sm:$0xf] %vm224, %v606
        %v918 = vld [vmem:[%s911 + $0x8] sm:$0x1]
        %v919 = vsel %vm235, %v607, %v918
        %920 = vst [vmem:[%s911 + $0x8] sm:$0x1] %v919
        %v921 = vld [vmem:[%s911 + $0xc] sm:$0xf]
        %v922 = vsel %vm913, %v614, %v921
        %923 = vst [vmem:[%s911 + $0xc] sm:$0xf] %v922
        %924 = vst.msk [vmem:[%s911 + $0x10] sm:$0xf] %vm224, %v623
        %v925 = vld [vmem:[%s911 + $0x14] sm:$0x1]
        %v926 = vsel %vm235, %v624, %v925
        %927 = vst [vmem:[%s911 + $0x14] sm:$0x1] %v926
        %v928 = vld [vmem:[%s911 + $0x18] sm:$0xf]
        %v929 = vsel %vm913, %v631, %v928
        %930 = vst [vmem:[%s911 + $0x18] sm:$0xf] %v929
        %931 = vst.msk [vmem:[%s911 + $0x1c] sm:$0xf] %vm224, %v640
        %v932 = vld [vmem:[%s911 + $0x20] sm:$0x1]
        %v933 = vsel %vm235, %v641, %v932
        %934 = vst [vmem:[%s911 + $0x20] sm:$0x1] %v933
        %v935 = vld [vmem:[%s911 + $0x24] sm:$0xf]
        %v936 = vsel %vm913, %v648, %v935
        %937 = vst [vmem:[%s911 + $0x24] sm:$0xf] %v936
        %938 = vst.msk [vmem:[%s911 + $0x28] sm:$0xf] %vm224, %v657
        %v939 = vld [vmem:[%s911 + $0x2c] sm:$0x1]
        %v940 = vsel %vm235, %v658, %v939
        %941 = vst [vmem:[%s911 + $0x2c] sm:$0x1] %v940
        %v942 = vld [vmem:[%s911 + $0x30] sm:$0xf]
        %v943 = vsel %vm913, %v665, %v942
        %944 = vst [vmem:[%s911 + $0x30] sm:$0xf] %v943
        %945 = vst.msk [vmem:[%s911 + $0x34] sm:$0xf] %vm224, %v674
        %v946 = vld [vmem:[%s911 + $0x38] sm:$0x1]
        %v947 = vsel %vm235, %v675, %v946
        %948 = vst [vmem:[%s911 + $0x38] sm:$0x1] %v947
        %v949 = vld [vmem:[%s911 + $0x3c] sm:$0xf]
        %v950 = vsel %vm913, %v682, %v949
        %951 = vst [vmem:[%s911 + $0x3c] sm:$0xf] %v950
        %952 = vst.msk [vmem:[%s911 + $0x40] sm:$0xf] %vm224, %v691
        %v953 = vld [vmem:[%s911 + $0x44] sm:$0x1]
        %v954 = vsel %vm235, %v692, %v953
        %955 = vst [vmem:[%s911 + $0x44] sm:$0x1] %v954
        %v956 = vld [vmem:[%s911 + $0x48] sm:$0xf]
        %v957 = vsel %vm913, %v699, %v956
        %958 = vst [vmem:[%s911 + $0x48] sm:$0xf] %v957
        %959 = vst.msk [vmem:[%s911 + $0x4c] sm:$0xf] %vm224, %v708
        %v960 = vld [vmem:[%s911 + $0x50] sm:$0x1]
        %v961 = vsel %vm235, %v709, %v960
        %962 = vst [vmem:[%s911 + $0x50] sm:$0x1] %v961
        %v963 = vld [vmem:[%s911 + $0x54] sm:$0xf]
        %v964 = vsel %vm913, %v716, %v963
        %965 = vst [vmem:[%s911 + $0x54] sm:$0xf] %v964
        %966 = vst.msk [vmem:[%s911 + $0x58] sm:$0xf] %vm224, %v725
        %v967 = vld [vmem:[%s911 + $0x5c] sm:$0x1]
        %v968 = vsel %vm235, %v726, %v967
        %969 = vst [vmem:[%s911 + $0x5c] sm:$0x1] %v968
        %v970 = vld [vmem:[%s911 + $0x60] sm:$0xf]
        %v971 = vsel %vm913, %v733, %v970
        %972 = vst [vmem:[%s911 + $0x60] sm:$0xf] %v971
        %973 = vst.msk [vmem:[%s911 + $0x64] sm:$0xf] %vm224, %v742
        %v974 = vld [vmem:[%s911 + $0x68] sm:$0x1]
        %v975 = vsel %vm235, %v743, %v974
        %976 = vst [vmem:[%s911 + $0x68] sm:$0x1] %v975
        %v977 = vld [vmem:[%s911 + $0x6c] sm:$0xf]
        %v978 = vsel %vm913, %v750, %v977
        %979 = vst [vmem:[%s911 + $0x6c] sm:$0xf] %v978
        %980 = vst.msk [vmem:[%s911 + $0x70] sm:$0xf] %vm224, %v759
        %v981 = vld [vmem:[%s911 + $0x74] sm:$0x1]
        %v982 = vsel %vm235, %v760, %v981
        %983 = vst [vmem:[%s911 + $0x74] sm:$0x1] %v982
        %v984 = vld [vmem:[%s911 + $0x78] sm:$0xf]
        %v985 = vsel %vm913, %v767, %v984
        %986 = vst [vmem:[%s911 + $0x78] sm:$0xf] %v985
        %987 = vst.msk [vmem:[%s911 + $0x7c] sm:$0xf] %vm224, %v776
        %v988 = vld [vmem:[%s911 + $0x80] sm:$0x1]
        %v989 = vsel %vm235, %v777, %v988
        %990 = vst [vmem:[%s911 + $0x80] sm:$0x1] %v989
        %v991 = vld [vmem:[%s911 + $0x84] sm:$0xf]
        %v992 = vsel %vm913, %v784, %v991
        %993 = vst [vmem:[%s911 + $0x84] sm:$0xf] %v992
        %994 = vst.msk [vmem:[%s911 + $0x88] sm:$0xf] %vm224, %v793
        %v995 = vld [vmem:[%s911 + $0x8c] sm:$0x1]
        %v996 = vsel %vm235, %v794, %v995
        %997 = vst [vmem:[%s911 + $0x8c] sm:$0x1] %v996
        %v998 = vld [vmem:[%s911 + $0x90] sm:$0xf]
        %v999 = vsel %vm913, %v801, %v998
        %1000 = vst [vmem:[%s911 + $0x90] sm:$0xf] %v999
        %1001 = vst.msk [vmem:[%s911 + $0x94] sm:$0xf] %vm224, %v810
        %v1002 = vld [vmem:[%s911 + $0x98] sm:$0x1]
        %v1003 = vsel %vm235, %v811, %v1002
        %1004 = vst [vmem:[%s911 + $0x98] sm:$0x1] %v1003
        %v1005 = vld [vmem:[%s911 + $0x9c] sm:$0xf]
        %v1006 = vsel %vm913, %v818, %v1005
        %1007 = vst [vmem:[%s911 + $0x9c] sm:$0xf] %v1006
        %1008 = vst.msk [vmem:[%s911 + $0xa0] sm:$0xf] %vm224, %v827
        %v1009 = vld [vmem:[%s911 + $0xa4] sm:$0x1]
        %v1010 = vsel %vm235, %v828, %v1009
        %1011 = vst [vmem:[%s911 + $0xa4] sm:$0x1] %v1010
        %v1012 = vld [vmem:[%s911 + $0xa8] sm:$0xf]
        %v1013 = vsel %vm913, %v835, %v1012
        %1014 = vst [vmem:[%s911 + $0xa8] sm:$0xf] %v1013
        %1015 = vst.msk [vmem:[%s911 + $0xac] sm:$0xf] %vm224, %v844
        %v1016 = vld [vmem:[%s911 + $0xb0] sm:$0x1]
        %v1017 = vsel %vm235, %v845, %v1016
        %1018 = vst [vmem:[%s911 + $0xb0] sm:$0x1] %v1017
        %v1019 = vld [vmem:[%s911 + $0xb4] sm:$0xf]
        %v1020 = vsel %vm913, %v852, %v1019
        %1021 = vst [vmem:[%s911 + $0xb4] sm:$0xf] %v1020
        %1022 = vst.msk [vmem:[%s911 + $0xb8] sm:$0xf] %vm224, %v861
        %v1023 = vld [vmem:[%s911 + $0xbc] sm:$0x1]
        %v1024 = vsel %vm235, %v862, %v1023
        %1025 = vst [vmem:[%s911 + $0xbc] sm:$0x1] %v1024
        %v1026 = vld [vmem:[#allocation2] sm:$0xf]
        %v1027 = vld [vmem:[#allocation2 + $0x4] sm:$0xf]
        %v1028 = vld [vmem:[#allocation2 + $0x8] sm:$0x1]
        %v1029 = vld [vmem:[#allocation2 + $0xc] sm:$0xf]
        %v1030 = vld [vmem:[#allocation2 + $0x10] sm:$0xf]
        %v1031 = vld [vmem:[#allocation2 + $0x14] sm:$0x1]
        %v1032 = vld [vmem:[#allocation2 + $0x18] sm:$0xf]
        %v1033 = vld [vmem:[#allocation2 + $0x1c] sm:$0xf]
        %v1034 = vld [vmem:[#allocation2 + $0x20] sm:$0x1]
        %v1035 = vld [vmem:[#allocation2 + $0x24] sm:$0xf]
        %v1036 = vld [vmem:[#allocation2 + $0x28] sm:$0xf]
        %v1037 = vld [vmem:[#allocation2 + $0x2c] sm:$0x1]
        %v1038 = vld [vmem:[#allocation2 + $0x30] sm:$0xf]
        %v1039 = vld [vmem:[#allocation2 + $0x34] sm:$0xf]
        %v1040 = vld [vmem:[#allocation2 + $0x38] sm:$0x1]
        %v1041 = vld [vmem:[#allocation2 + $0x3c] sm:$0xf]
        %v1042 = vld [vmem:[#allocation2 + $0x40] sm:$0xf]
        %v1043 = vld [vmem:[#allocation2 + $0x44] sm:$0x1]
        %v1044 = vld [vmem:[#allocation2 + $0x48] sm:$0xf]
        %v1045 = vld [vmem:[#allocation2 + $0x4c] sm:$0xf]
        %v1046 = vld [vmem:[#allocation2 + $0x50] sm:$0x1]
        %v1047 = vld [vmem:[#allocation2 + $0x54] sm:$0xf]
        %v1048 = vld [vmem:[#allocation2 + $0x58] sm:$0xf]
        %v1049 = vld [vmem:[#allocation2 + $0x5c] sm:$0x1]
        %v1050 = vld [vmem:[#allocation2 + $0x60] sm:$0xf]
        %v1051 = vld [vmem:[#allocation2 + $0x64] sm:$0xf]
        %v1052 = vld [vmem:[#allocation2 + $0x68] sm:$0x1]
        %v1053 = vld [vmem:[#allocation2 + $0x6c] sm:$0xf]
        %v1054 = vld [vmem:[#allocation2 + $0x70] sm:$0xf]
        %v1055 = vld [vmem:[#allocation2 + $0x74] sm:$0x1]
        %v1056 = vld [vmem:[#allocation2 + $0x78] sm:$0xf]
        %v1057 = vld [vmem:[#allocation2 + $0x7c] sm:$0xf]
        %v1058 = vld [vmem:[#allocation2 + $0x80] sm:$0x1]
        %v1059 = vld [vmem:[#allocation2 + $0x84] sm:$0xf]
        %v1060 = vld [vmem:[#allocation2 + $0x88] sm:$0xf]
        %v1061 = vld [vmem:[#allocation2 + $0x8c] sm:$0x1]
        %v1062 = vld [vmem:[#allocation2 + $0x90] sm:$0xf]
        %v1063 = vld [vmem:[#allocation2 + $0x94] sm:$0xf]
        %v1064 = vld [vmem:[#allocation2 + $0x98] sm:$0x1]
        %v1065 = vld [vmem:[#allocation2 + $0x9c] sm:$0xf]
        %v1066 = vld [vmem:[#allocation2 + $0xa0] sm:$0xf]
        %v1067 = vld [vmem:[#allocation2 + $0xa4] sm:$0x1]
        %v1068 = vld [vmem:[#allocation2 + $0xa8] sm:$0xf]
        %v1069 = vld [vmem:[#allocation2 + $0xac] sm:$0xf]
        %v1070 = vld [vmem:[#allocation2 + $0xb0] sm:$0x1]
        %v1071 = vld [vmem:[#allocation2 + $0xb4] sm:$0xf]
        %v1072 = vld [vmem:[#allocation2 + $0xb8] sm:$0xf]
        %v1073 = vld [vmem:[#allocation2 + $0xbc] sm:$0x1]
        %v1074 = vld [vmem:[#allocation2 + $0xc0] sm:$0xf]
        %v1075 = vld [vmem:[#allocation2 + $0xc4] sm:$0xf]
        %v1076 = vld [vmem:[#allocation2 + $0xc8] sm:$0x1]
        %v1077 = vld [vmem:[#allocation2 + $0xcc] sm:$0xf]
        %v1078 = vld [vmem:[#allocation2 + $0xd0] sm:$0xf]
        %v1079 = vld [vmem:[#allocation2 + $0xd4] sm:$0x1]
        %v1080 = vld [vmem:[%s1] sm:$0xf]
        %v1081 = vld [vmem:[%s1 + $0x4] sm:$0xf]
        %v1082 = vld [vmem:[%s1 + $0x8] sm:$0xf]
        %v1083 = vld [vmem:[%s1 + $0xc] sm:$0xf]
        %v1084 = vld [vmem:[%s1 + $0x10] sm:$0xf]
        %v1085 = vld [vmem:[%s1 + $0x14] sm:$0xf]
        %v1086 = vld [vmem:[%s1 + $0x18] sm:$0xf]
        %v1087 = vld [vmem:[%s1 + $0x1c] sm:$0xf]
        %vm1088 = vsmask.f32 3328
        %vm1089 = vsmask.f32 7440
        %vm1090 = vmor %vm1088, %vm1089
        %v1092 = vshrl.u32 %v1026, 16
        %v1094 = vrot.slane %v1092, 4
        %v1095 = vshll.u32 %v1026, 16
        %v1097 = vrot.slane %v1095, 5
        %v1098 = vor.u32 %v1094, %v1097
        %v1099 = vrot.slane %v1098, 4
        %v1101 = vshll.u32 %v1027, 16
        %v1103 = vrot.slane %v1101, 5
        %v1104 = vsel %vm1090, %v1099, %v1103
        %v1105 = vshrl.u32 %v1027, 16
        %v1107 = vrot.slane %v1105, 4
        %v1108 = vor.u32 %v1107, %v1103
        %v1109 = vrot.slane %v1108, 4
        %v1111 = vshll.u32 %v1028, 16
        %v1113 = vrot.slane %v1111, 5
        %v1114 = vsel %vm1090, %v1109, %v1113
        %v1116 = vshrl.u32 %v1029, 16
        %v1118 = vrot.slane %v1116, 4
        %v1119 = vshll.u32 %v1029, 16
        %v1121 = vrot.slane %v1119, 5
        %v1122 = vor.u32 %v1118, %v1121
        %v1123 = vrot.slane %v1122, 4
        %v1125 = vshll.u32 %v1030, 16
        %v1127 = vrot.slane %v1125, 5
        %v1128 = vsel %vm1090, %v1123, %v1127
        %v1129 = vshrl.u32 %v1030, 16
        %v1131 = vrot.slane %v1129, 4
        %v1132 = vor.u32 %v1131, %v1127
        %v1133 = vrot.slane %v1132, 4
        %v1135 = vshll.u32 %v1031, 16
        %v1137 = vrot.slane %v1135, 5
        %v1138 = vsel %vm1090, %v1133, %v1137
        %v1140 = vshrl.u32 %v1032, 16
        %v1142 = vrot.slane %v1140, 4
        %v1143 = vshll.u32 %v1032, 16
        %v1145 = vrot.slane %v1143, 5
        %v1146 = vor.u32 %v1142, %v1145
        %v1147 = vrot.slane %v1146, 4
        %v1149 = vshll.u32 %v1033, 16
        %v1151 = vrot.slane %v1149, 5
        %v1152 = vsel %vm1090, %v1147, %v1151
        %v1153 = vshrl.u32 %v1033, 16
        %v1155 = vrot.slane %v1153, 4
        %v1156 = vor.u32 %v1155, %v1151
        %v1157 = vrot.slane %v1156, 4
        %v1159 = vshll.u32 %v1034, 16
        %v1161 = vrot.slane %v1159, 5
        %v1162 = vsel %vm1090, %v1157, %v1161
        %v1164 = vshrl.u32 %v1035, 16
        %v1166 = vrot.slane %v1164, 4
        %v1167 = vshll.u32 %v1035, 16
        %v1169 = vrot.slane %v1167, 5
        %v1170 = vor.u32 %v1166, %v1169
        %v1171 = vrot.slane %v1170, 4
        %v1173 = vshll.u32 %v1036, 16
        %v1175 = vrot.slane %v1173, 5
        %v1176 = vsel %vm1090, %v1171, %v1175
        %v1177 = vshrl.u32 %v1036, 16
        %v1179 = vrot.slane %v1177, 4
        %v1180 = vor.u32 %v1179, %v1175
        %v1181 = vrot.slane %v1180, 4
        %v1183 = vshll.u32 %v1037, 16
        %v1185 = vrot.slane %v1183, 5
        %v1186 = vsel %vm1090, %v1181, %v1185
        %v1188 = vshrl.u32 %v1038, 16
        %v1190 = vrot.slane %v1188, 4
        %v1191 = vshll.u32 %v1038, 16
        %v1193 = vrot.slane %v1191, 5
        %v1194 = vor.u32 %v1190, %v1193
        %v1195 = vrot.slane %v1194, 4
        %v1197 = vshll.u32 %v1039, 16
        %v1199 = vrot.slane %v1197, 5
        %v1200 = vsel %vm1090, %v1195, %v1199
        %v1201 = vshrl.u32 %v1039, 16
        %v1203 = vrot.slane %v1201, 4
        %v1204 = vor.u32 %v1203, %v1199
        %v1205 = vrot.slane %v1204, 4
        %v1207 = vshll.u32 %v1040, 16
        %v1209 = vrot.slane %v1207, 5
        %v1210 = vsel %vm1090, %v1205, %v1209
        %v1212 = vshrl.u32 %v1041, 16
        %v1214 = vrot.slane %v1212, 4
        %v1215 = vshll.u32 %v1041, 16
        %v1217 = vrot.slane %v1215, 5
        %v1218 = vor.u32 %v1214, %v1217
        %v1219 = vrot.slane %v1218, 4
        %v1221 = vshll.u32 %v1042, 16
        %v1223 = vrot.slane %v1221, 5
        %v1224 = vsel %vm1090, %v1219, %v1223
        %v1225 = vshrl.u32 %v1042, 16
        %v1227 = vrot.slane %v1225, 4
        %v1228 = vor.u32 %v1227, %v1223
        %v1229 = vrot.slane %v1228, 4
        %v1231 = vshll.u32 %v1043, 16
        %v1233 = vrot.slane %v1231, 5
        %v1234 = vsel %vm1090, %v1229, %v1233
        %v1236 = vshrl.u32 %v1044, 16
        %v1238 = vrot.slane %v1236, 4
        %v1239 = vshll.u32 %v1044, 16
        %v1241 = vrot.slane %v1239, 5
        %v1242 = vor.u32 %v1238, %v1241
        %v1243 = vrot.slane %v1242, 4
        %v1245 = vshll.u32 %v1045, 16
        %v1247 = vrot.slane %v1245, 5
        %v1248 = vsel %vm1090, %v1243, %v1247
        %v1249 = vshrl.u32 %v1045, 16
        %v1251 = vrot.slane %v1249, 4
        %v1252 = vor.u32 %v1251, %v1247
        %v1253 = vrot.slane %v1252, 4
        %v1255 = vshll.u32 %v1046, 16
        %v1257 = vrot.slane %v1255, 5
        %v1258 = vsel %vm1090, %v1253, %v1257
        %v1260 = vshrl.u32 %v1047, 16
        %v1262 = vrot.slane %v1260, 4
        %v1263 = vshll.u32 %v1047, 16
        %v1265 = vrot.slane %v1263, 5
        %v1266 = vor.u32 %v1262, %v1265
        %v1267 = vrot.slane %v1266, 4
        %v1269 = vshll.u32 %v1048, 16
        %v1271 = vrot.slane %v1269, 5
        %v1272 = vsel %vm1090, %v1267, %v1271
        %v1273 = vshrl.u32 %v1048, 16
        %v1275 = vrot.slane %v1273, 4
        %v1276 = vor.u32 %v1275, %v1271
        %v1277 = vrot.slane %v1276, 4
        %v1279 = vshll.u32 %v1049, 16
        %v1281 = vrot.slane %v1279, 5
        %v1282 = vsel %vm1090, %v1277, %v1281
        %v1284 = vshrl.u32 %v1050, 16
        %v1286 = vrot.slane %v1284, 4
        %v1287 = vshll.u32 %v1050, 16
        %v1289 = vrot.slane %v1287, 5
        %v1290 = vor.u32 %v1286, %v1289
        %v1291 = vrot.slane %v1290, 4
        %v1293 = vshll.u32 %v1051, 16
        %v1295 = vrot.slane %v1293, 5
        %v1296 = vsel %vm1090, %v1291, %v1295
        %v1297 = vshrl.u32 %v1051, 16
        %v1299 = vrot.slane %v1297, 4
        %v1300 = vor.u32 %v1299, %v1295
        %v1301 = vrot.slane %v1300, 4
        %v1303 = vshll.u32 %v1052, 16
        %v1305 = vrot.slane %v1303, 5
        %v1306 = vsel %vm1090, %v1301, %v1305
        %v1308 = vshrl.u32 %v1053, 16
        %v1310 = vrot.slane %v1308, 4
        %v1311 = vshll.u32 %v1053, 16
        %v1313 = vrot.slane %v1311, 5
        %v1314 = vor.u32 %v1310, %v1313
        %v1315 = vrot.slane %v1314, 4
        %v1317 = vshll.u32 %v1054, 16
        %v1319 = vrot.slane %v1317, 5
        %v1320 = vsel %vm1090, %v1315, %v1319
        %v1321 = vshrl.u32 %v1054, 16
        %v1323 = vrot.slane %v1321, 4
        %v1324 = vor.u32 %v1323, %v1319
        %v1325 = vrot.slane %v1324, 4
        %v1327 = vshll.u32 %v1055, 16
        %v1329 = vrot.slane %v1327, 5
        %v1330 = vsel %vm1090, %v1325, %v1329
        %v1332 = vshrl.u32 %v1056, 16
        %v1334 = vrot.slane %v1332, 4
        %v1335 = vshll.u32 %v1056, 16
        %v1337 = vrot.slane %v1335, 5
        %v1338 = vor.u32 %v1334, %v1337
        %v1339 = vrot.slane %v1338, 4
        %v1341 = vshll.u32 %v1057, 16
        %v1343 = vrot.slane %v1341, 5
        %v1344 = vsel %vm1090, %v1339, %v1343
        %v1345 = vshrl.u32 %v1057, 16
        %v1347 = vrot.slane %v1345, 4
        %v1348 = vor.u32 %v1347, %v1343
        %v1349 = vrot.slane %v1348, 4
        %v1351 = vshll.u32 %v1058, 16
        %v1353 = vrot.slane %v1351, 5
        %v1354 = vsel %vm1090, %v1349, %v1353
        %v1356 = vshrl.u32 %v1059, 16
        %v1358 = vrot.slane %v1356, 4
        %v1359 = vshll.u32 %v1059, 16
        %v1361 = vrot.slane %v1359, 5
        %v1362 = vor.u32 %v1358, %v1361
        %v1363 = vrot.slane %v1362, 4
        %v1365 = vshll.u32 %v1060, 16
        %v1367 = vrot.slane %v1365, 5
        %v1368 = vsel %vm1090, %v1363, %v1367
        %v1369 = vshrl.u32 %v1060, 16
        %v1371 = vrot.slane %v1369, 4
        %v1372 = vor.u32 %v1371, %v1367
        %v1373 = vrot.slane %v1372, 4
        %v1375 = vshll.u32 %v1061, 16
        %v1377 = vrot.slane %v1375, 5
        %v1378 = vsel %vm1090, %v1373, %v1377
        %v1380 = vshrl.u32 %v1062, 16
        %v1382 = vrot.slane %v1380, 4
        %v1383 = vshll.u32 %v1062, 16
        %v1385 = vrot.slane %v1383, 5
        %v1386 = vor.u32 %v1382, %v1385
        %v1387 = vrot.slane %v1386, 4
        %v1389 = vshll.u32 %v1063, 16
        %v1391 = vrot.slane %v1389, 5
        %v1392 = vsel %vm1090, %v1387, %v1391
        %v1393 = vshrl.u32 %v1063, 16
        %v1395 = vrot.slane %v1393, 4
        %v1396 = vor.u32 %v1395, %v1391
        %v1397 = vrot.slane %v1396, 4
        %v1399 = vshll.u32 %v1064, 16
        %v1401 = vrot.slane %v1399, 5
        %v1402 = vsel %vm1090, %v1397, %v1401
        %v1404 = vshrl.u32 %v1065, 16
        %v1406 = vrot.slane %v1404, 4
        %v1407 = vshll.u32 %v1065, 16
        %v1409 = vrot.slane %v1407, 5
        %v1410 = vor.u32 %v1406, %v1409
        %v1411 = vrot.slane %v1410, 4
        %v1413 = vshll.u32 %v1066, 16
        %v1415 = vrot.slane %v1413, 5
        %v1416 = vsel %vm1090, %v1411, %v1415
        %v1417 = vshrl.u32 %v1066, 16
        %v1419 = vrot.slane %v1417, 4
        %v1420 = vor.u32 %v1419, %v1415
        %v1421 = vrot.slane %v1420, 4
        %v1423 = vshll.u32 %v1067, 16
        %v1425 = vrot.slane %v1423, 5
        %v1426 = vsel %vm1090, %v1421, %v1425
        %v1428 = vshrl.u32 %v1068, 16
        %v1430 = vrot.slane %v1428, 4
        %v1431 = vshll.u32 %v1068, 16
        %v1433 = vrot.slane %v1431, 5
        %v1434 = vor.u32 %v1430, %v1433
        %v1435 = vrot.slane %v1434, 4
        %v1437 = vshll.u32 %v1069, 16
        %v1439 = vrot.slane %v1437, 5
        %v1440 = vsel %vm1090, %v1435, %v1439
        %v1441 = vshrl.u32 %v1069, 16
        %v1443 = vrot.slane %v1441, 4
        %v1444 = vor.u32 %v1443, %v1439
        %v1445 = vrot.slane %v1444, 4
        %v1447 = vshll.u32 %v1070, 16
        %v1449 = vrot.slane %v1447, 5
        %v1450 = vsel %vm1090, %v1445, %v1449
        %v1452 = vshrl.u32 %v1071, 16
        %v1454 = vrot.slane %v1452, 4
        %v1455 = vshll.u32 %v1071, 16
        %v1457 = vrot.slane %v1455, 5
        %v1458 = vor.u32 %v1454, %v1457
        %v1459 = vrot.slane %v1458, 4
        %v1461 = vshll.u32 %v1072, 16
        %v1463 = vrot.slane %v1461, 5
        %v1464 = vsel %vm1090, %v1459, %v1463
        %v1465 = vshrl.u32 %v1072, 16
        %v1467 = vrot.slane %v1465, 4
        %v1468 = vor.u32 %v1467, %v1463
        %v1469 = vrot.slane %v1468, 4
        %v1471 = vshll.u32 %v1073, 16
        %v1473 = vrot.slane %v1471, 5
        %v1474 = vsel %vm1090, %v1469, %v1473
        %v1475 = vld [vmem:[%s1 + $0x20] sm:$0xf]
        %v1476 = vld [vmem:[%s1 + $0x24] sm:$0xf]
        %v1477 = vld [vmem:[%s1 + $0x28] sm:$0xf]
        %v1478 = vld [vmem:[%s1 + $0x2c] sm:$0xf]
        %v1479 = vld [vmem:[%s1 + $0x30] sm:$0xf]
        %v1480 = vld [vmem:[%s1 + $0x34] sm:$0xf]
        %v1481 = vld [vmem:[%s1 + $0x38] sm:$0xf]
        %v1482 = vld [vmem:[%s1 + $0x3c] sm:$0xf]
        %v1483 = vunpack.c.l.b16 %v1104
        %v1484 = vunpack.c.l.b16 %v1114
        %v1485 = vunpack.c.l.b16 %v1128
        %v1486 = vunpack.c.l.b16 %v1138
        %v1487 = vunpack.c.l.b16 %v1152
        %v1488 = vunpack.c.l.b16 %v1162
        %v1489 = vunpack.c.l.b16 %v1176
        %v1490 = vunpack.c.l.b16 %v1186
        %v1491 = vunpack.c.l.b16 %v1200
        %v1492 = vunpack.c.l.b16 %v1210
        %v1493 = vunpack.c.l.b16 %v1224
        %v1494 = vunpack.c.l.b16 %v1234
        %v1495 = vunpack.c.l.b16 %v1248
        %v1496 = vunpack.c.l.b16 %v1258
        %v1497 = vunpack.c.l.b16 %v1272
        %v1498 = vunpack.c.l.b16 %v1282
        %v1499 = vunpack.c.l.b16 %v1296
        %v1500 = vunpack.c.l.b16 %v1306
        %v1501 = vunpack.c.l.b16 %v1320
        %v1502 = vunpack.c.l.b16 %v1330
        %v1503 = vunpack.c.l.b16 %v1344
        %v1504 = vunpack.c.l.b16 %v1354
        %v1505 = vunpack.c.l.b16 %v1368
        %v1506 = vunpack.c.l.b16 %v1378
        %v1507 = vunpack.c.l.b16 %v1392
        %v1508 = vunpack.c.l.b16 %v1402
        %v1509 = vunpack.c.l.b16 %v1416
        %v1510 = vunpack.c.l.b16 %v1426
        %v1511 = vunpack.c.l.b16 %v1440
        %v1512 = vunpack.c.l.b16 %v1450
        %v1513 = vunpack.c.l.b16 %v1464
        %v1514 = vunpack.c.l.b16 %v1474
        %v1515 = vpack.c.b16 %v1484, %v1483
        %v1516 = vpack.c.b16 %v1486, %v1485
        %v1517 = vpack.c.b16 %v1488, %v1487
        %v1518 = vpack.c.b16 %v1490, %v1489
        %v1519 = vpack.c.b16 %v1492, %v1491
        %v1520 = vpack.c.b16 %v1494, %v1493
        %v1521 = vpack.c.b16 %v1496, %v1495
        %v1522 = vpack.c.b16 %v1498, %v1497
        %v1523 = vpack.c.b16 %v1500, %v1499
        %v1524 = vpack.c.b16 %v1502, %v1501
        %v1525 = vpack.c.b16 %v1504, %v1503
        %v1526 = vpack.c.b16 %v1506, %v1505
        %v1527 = vpack.c.b16 %v1508, %v1507
        %v1528 = vpack.c.b16 %v1510, %v1509
        %v1529 = vpack.c.b16 %v1512, %v1511
        %v1530 = vpack.c.b16 %v1514, %v1513
        %v1539 = vunpack.c.l.b16 %v1475
        %v1540 = vunpack.c.l.b16 %v1476
        %v1541 = vunpack.c.l.b16 %v1477
        %v1542 = vunpack.c.l.b16 %v1478
        %v1543 = vunpack.c.l.b16 %v1479
        %v1544 = vunpack.c.l.b16 %v1480
        %v1545 = vunpack.c.l.b16 %v1481
        %v1546 = vunpack.c.l.b16 %v1482
        %v1547 = vpack.c.b16 %v1540, %v1539
        %v1548 = vpack.c.b16 %v1542, %v1541
        %v1549 = vpack.c.b16 %v1544, %v1543
        %v1550 = vpack.c.b16 %v1546, %v1545
        %vm1555 = vcmask 523264
        %v1557 = vsel %vm1555, %v1515, 0
        %v1560 = vsel %vm1555, %v1516, 0
        %v1563 = vsel %vm1555, %v1517, 0
        %v1566 = vsel %vm1555, %v1518, 0
        %v1569 = vsel %vm1555, %v1519, 0
        %v1572 = vsel %vm1555, %v1520, 0
        %v1575 = vsel %vm1555, %v1521, 0
        %v1578 = vsel %vm1555, %v1522, 0
        %v1581 = vsel %vm1555, %v1523, 0
        %v1584 = vsel %vm1555, %v1524, 0
        %v1587 = vsel %vm1555, %v1525, 0
        %v1590 = vsel %vm1555, %v1526, 0
        %v1593 = vsel %vm1555, %v1527, 0
        %v1596 = vsel %vm1555, %v1528, 0
        %v1599 = vsel %vm1555, %v1529, 0
        %v1602 = vsel %vm1555, %v1530, 0
        %1604 = vmatprep.subr.bf16.mxu0 0
        %1605 = vmatpush1.bf16.msra.mxu0 0
        %1606 = vmatprep.subr.bf16.mxu0 0
        %1607 = vmatpush1.bf16.msra.mxu0 0
        %1608 = vmatprep.subr.bf16.mxu0 0
        %1609 = vmatpush1.bf16.msra.mxu0 0
        %1610 = vmatprep.subr.bf16.mxu0 0
        %1611 = vmatpush1.bf16.msra.mxu0 0
        %1612 = vmatprep.subr.bf16.mxu0 0
        %1613 = vmatpush1.bf16.msra.mxu0 %v1550
        %1614 = vmatprep.subr.bf16.mxu0 0
        %1615 = vmatpush1.bf16.msra.mxu0 %v1549
        %1616 = vmatprep.subr.bf16.mxu0 0
        %1617 = vmatpush1.bf16.msra.mxu0 %v1548
        %1618 = vmatprep.subr.bf16.mxu0 0
        %1619 = vmatpush1.bf16.msra.mxu0 %v1547
        %1620 = vmatprep.subr.bf16.mxu0 0
        %1621 = vmatpush2.bf16.msra.mxu0 0
        %1622 = vmatprep.subr.bf16.mxu0 0
        %1623 = vmatpush2.bf16.msra.mxu0 0
        %1624 = vmatprep.subr.bf16.mxu0 0
        %1625 = vmatpush2.bf16.msra.mxu0 0
        %1626 = vmatprep.subr.bf16.mxu0 0
        %1627 = vmatpush2.bf16.msra.mxu0 0
        %1628 = vmatprep.subr.bf16.mxu0 0
        %1629 = vmatpush2.bf16.msra.mxu0 0
        %1630 = vmatprep.subr.bf16.mxu0 0
        %1631 = vmatpush2.bf16.msra.mxu0 0
        %1632 = vmatprep.subr.bf16.mxu0 0
        %1633 = vmatpush2.bf16.msra.mxu0 0
        %1634 = vmatprep.subr.bf16.mxu0 0
        %1635 = vmatpush2.bf16.msra.mxu0 0
        %1636 = vmatprep.mubr.bf16.mxu0 0
        %1637 = vmatmul.mubr.bf16.gmra.mxu0 %v1557
        %v1638 = vpop.f32.mrf.mxu0
        %v1639 = vadd.f32 0.0, %v1638
        %v1640 = vpop.f32.mrf.mxu0
        %v1641 = vpop.f32.mrf.mxu0
        %v1642 = vadd.f32 0.0, %v1641
        %v1643 = vpop.f32.mrf.mxu0
        %1644 = vmatprep.mubr.bf16.mxu0 0
        %1645 = vmatmul.mubr.bf16.gmra.mxu0 %v1560
        %v1646 = vpop.f32.mrf.mxu0
        %v1647 = vadd.f32 0.0, %v1646
        %v1648 = vpop.f32.mrf.mxu0
        %v1649 = vpop.f32.mrf.mxu0
        %v1650 = vadd.f32 0.0, %v1649
        %v1651 = vpop.f32.mrf.mxu0
        %1652 = vmatprep.mubr.bf16.mxu0 0
        %1653 = vmatmul.mubr.bf16.gmra.mxu0 %v1563
        %v1654 = vpop.f32.mrf.mxu0
        %v1655 = vadd.f32 0.0, %v1654
        %v1656 = vpop.f32.mrf.mxu0
        %v1657 = vpop.f32.mrf.mxu0
        %v1658 = vadd.f32 0.0, %v1657
        %v1659 = vpop.f32.mrf.mxu0
        %1660 = vmatprep.mubr.bf16.mxu0 0
        %1661 = vmatmul.mubr.bf16.gmra.mxu0 %v1566
        %v1662 = vpop.f32.mrf.mxu0
        %v1663 = vadd.f32 0.0, %v1662
        %v1664 = vpop.f32.mrf.mxu0
        %v1665 = vpop.f32.mrf.mxu0
        %v1666 = vadd.f32 0.0, %v1665
        %v1667 = vpop.f32.mrf.mxu0
        %1668 = vmatprep.mubr.bf16.mxu0 0
        %1669 = vmatmul.mubr.bf16.gmra.mxu0 %v1569
        %v1670 = vpop.f32.mrf.mxu0
        %v1671 = vadd.f32 0.0, %v1670
        %v1672 = vpop.f32.mrf.mxu0
        %v1673 = vpop.f32.mrf.mxu0
        %v1674 = vadd.f32 0.0, %v1673
        %v1675 = vpop.f32.mrf.mxu0
        %1676 = vmatprep.mubr.bf16.mxu0 0
        %1677 = vmatmul.mubr.bf16.gmra.mxu0 %v1572
        %v1678 = vpop.f32.mrf.mxu0
        %v1679 = vadd.f32 0.0, %v1678
        %v1680 = vpop.f32.mrf.mxu0
        %v1681 = vpop.f32.mrf.mxu0
        %v1682 = vadd.f32 0.0, %v1681
        %v1683 = vpop.f32.mrf.mxu0
        %1684 = vmatprep.mubr.bf16.mxu0 0
        %1685 = vmatmul.mubr.bf16.gmra.mxu0 %v1575
        %v1686 = vpop.f32.mrf.mxu0
        %v1687 = vadd.f32 0.0, %v1686
        %v1688 = vpop.f32.mrf.mxu0
        %v1689 = vpop.f32.mrf.mxu0
        %v1690 = vadd.f32 0.0, %v1689
        %v1691 = vpop.f32.mrf.mxu0
        %1692 = vmatprep.mubr.bf16.mxu0 0
        %1693 = vmatmul.mubr.bf16.gmra.mxu0 %v1578
        %v1694 = vpop.f32.mrf.mxu0
        %v1695 = vadd.f32 0.0, %v1694
        %v1696 = vpop.f32.mrf.mxu0
        %v1697 = vpop.f32.mrf.mxu0
        %v1698 = vadd.f32 0.0, %v1697
        %v1699 = vpop.f32.mrf.mxu0
        %1700 = vmatprep.mubr.bf16.mxu0 0
        %1701 = vmatmul.mubr.bf16.gmra.mxu0 %v1581
        %v1702 = vpop.f32.mrf.mxu0
        %v1703 = vadd.f32 0.0, %v1702
        %v1704 = vpop.f32.mrf.mxu0
        %v1705 = vpop.f32.mrf.mxu0
        %v1706 = vadd.f32 0.0, %v1705
        %v1707 = vpop.f32.mrf.mxu0
        %1708 = vmatprep.mubr.bf16.mxu0 0
        %1709 = vmatmul.mubr.bf16.gmra.mxu0 %v1584
        %v1710 = vpop.f32.mrf.mxu0
        %v1711 = vadd.f32 0.0, %v1710
        %v1712 = vpop.f32.mrf.mxu0
        %v1713 = vpop.f32.mrf.mxu0
        %v1714 = vadd.f32 0.0, %v1713
        %v1715 = vpop.f32.mrf.mxu0
        %1716 = vmatprep.mubr.bf16.mxu0 0
        %1717 = vmatmul.mubr.bf16.gmra.mxu0 %v1587
        %v1718 = vpop.f32.mrf.mxu0
        %v1719 = vadd.f32 0.0, %v1718
        %v1720 = vpop.f32.mrf.mxu0
        %v1721 = vpop.f32.mrf.mxu0
        %v1722 = vadd.f32 0.0, %v1721
        %v1723 = vpop.f32.mrf.mxu0
        %1724 = vmatprep.mubr.bf16.mxu0 0
        %1725 = vmatmul.mubr.bf16.gmra.mxu0 %v1590
        %v1726 = vpop.f32.mrf.mxu0
        %v1727 = vadd.f32 0.0, %v1726
        %v1728 = vpop.f32.mrf.mxu0
        %v1729 = vpop.f32.mrf.mxu0
        %v1730 = vadd.f32 0.0, %v1729
        %v1731 = vpop.f32.mrf.mxu0
        %1732 = vmatprep.mubr.bf16.mxu0 0
        %1733 = vmatmul.mubr.bf16.gmra.mxu0 %v1593
        %v1734 = vpop.f32.mrf.mxu0
        %v1735 = vadd.f32 0.0, %v1734
        %v1736 = vpop.f32.mrf.mxu0
        %v1737 = vpop.f32.mrf.mxu0
        %v1738 = vadd.f32 0.0, %v1737
        %v1739 = vpop.f32.mrf.mxu0
        %1740 = vmatprep.mubr.bf16.mxu0 0
        %1741 = vmatmul.mubr.bf16.gmra.mxu0 %v1596
        %v1742 = vpop.f32.mrf.mxu0
        %v1743 = vadd.f32 0.0, %v1742
        %v1744 = vpop.f32.mrf.mxu0
        %v1745 = vpop.f32.mrf.mxu0
        %v1746 = vadd.f32 0.0, %v1745
        %v1747 = vpop.f32.mrf.mxu0
        %1748 = vmatprep.mubr.bf16.mxu0 0
        %1749 = vmatmul.mubr.bf16.gmra.mxu0 %v1599
        %v1750 = vpop.f32.mrf.mxu0
        %v1751 = vadd.f32 0.0, %v1750
        %v1752 = vpop.f32.mrf.mxu0
        %v1753 = vpop.f32.mrf.mxu0
        %v1754 = vadd.f32 0.0, %v1753
        %v1755 = vpop.f32.mrf.mxu0
        %1756 = vmatprep.mubr.bf16.mxu0 0
        %1757 = vmatmul.mubr.bf16.gmra.mxu0 %v1602
        %v1758 = vpop.f32.mrf.mxu0
        %v1759 = vadd.f32 0.0, %v1758
        %v1760 = vpop.f32.mrf.mxu0
        %v1761 = vpop.f32.mrf.mxu0
        %v1762 = vadd.f32 0.0, %v1761
        %v1763 = vpop.f32.mrf.mxu0
        %1764 = vdwg.mxu0
        %v1797 = vunpack.c.l.b16 %v1026
        %v1798 = vunpack.c.l.b16 %v1027
        %v1799 = vunpack.c.l.b16 %v1029
        %v1800 = vunpack.c.l.b16 %v1030
        %v1801 = vunpack.c.l.b16 %v1032
        %v1802 = vunpack.c.l.b16 %v1033
        %v1803 = vunpack.c.l.b16 %v1035
        %v1804 = vunpack.c.l.b16 %v1036
        %v1805 = vunpack.c.l.b16 %v1038
        %v1806 = vunpack.c.l.b16 %v1039
        %v1807 = vunpack.c.l.b16 %v1041
        %v1808 = vunpack.c.l.b16 %v1042
        %v1809 = vunpack.c.l.b16 %v1044
        %v1810 = vunpack.c.l.b16 %v1045
        %v1811 = vunpack.c.l.b16 %v1047
        %v1812 = vunpack.c.l.b16 %v1048
        %v1813 = vunpack.c.l.b16 %v1050
        %v1814 = vunpack.c.l.b16 %v1051
        %v1815 = vunpack.c.l.b16 %v1053
        %v1816 = vunpack.c.l.b16 %v1054
        %v1817 = vunpack.c.l.b16 %v1056
        %v1818 = vunpack.c.l.b16 %v1057
        %v1819 = vunpack.c.l.b16 %v1059
        %v1820 = vunpack.c.l.b16 %v1060
        %v1821 = vunpack.c.l.b16 %v1062
        %v1822 = vunpack.c.l.b16 %v1063
        %v1823 = vunpack.c.l.b16 %v1065
        %v1824 = vunpack.c.l.b16 %v1066
        %v1825 = vunpack.c.l.b16 %v1068
        %v1826 = vunpack.c.l.b16 %v1069
        %v1827 = vunpack.c.l.b16 %v1071
        %v1828 = vunpack.c.l.b16 %v1072
        %v1829 = vpack.c.b16 %v1798, %v1797
        %v1830 = vpack.c.b16 %v1800, %v1799
        %v1831 = vpack.c.b16 %v1802, %v1801
        %v1832 = vpack.c.b16 %v1804, %v1803
        %v1833 = vpack.c.b16 %v1806, %v1805
        %v1834 = vpack.c.b16 %v1808, %v1807
        %v1835 = vpack.c.b16 %v1810, %v1809
        %v1836 = vpack.c.b16 %v1812, %v1811
        %v1837 = vpack.c.b16 %v1814, %v1813
        %v1838 = vpack.c.b16 %v1816, %v1815
        %v1839 = vpack.c.b16 %v1818, %v1817
        %v1840 = vpack.c.b16 %v1820, %v1819
        %v1841 = vpack.c.b16 %v1822, %v1821
        %v1842 = vpack.c.b16 %v1824, %v1823
        %v1843 = vpack.c.b16 %v1826, %v1825
        %v1844 = vpack.c.b16 %v1828, %v1827
        %v1853 = vunpack.c.l.b16 %v1080
        %v1854 = vunpack.c.l.b16 %v1081
        %v1855 = vunpack.c.l.b16 %v1082
        %v1856 = vunpack.c.l.b16 %v1083
        %v1857 = vunpack.c.l.b16 %v1084
        %v1858 = vunpack.c.l.b16 %v1085
        %v1859 = vunpack.c.l.b16 %v1086
        %v1860 = vunpack.c.l.b16 %v1087
        %v1861 = vpack.c.b16 %v1854, %v1853
        %v1862 = vpack.c.b16 %v1856, %v1855
        %v1863 = vpack.c.b16 %v1858, %v1857
        %v1864 = vpack.c.b16 %v1860, %v1859
        %v1870 = vsel %vm1555, %v1829, 0
        %v1873 = vsel %vm1555, %v1830, 0
        %v1876 = vsel %vm1555, %v1831, 0
        %v1879 = vsel %vm1555, %v1832, 0
        %v1882 = vsel %vm1555, %v1833, 0
        %v1885 = vsel %vm1555, %v1834, 0
        %v1888 = vsel %vm1555, %v1835, 0
        %v1891 = vsel %vm1555, %v1836, 0
        %v1894 = vsel %vm1555, %v1837, 0
        %v1897 = vsel %vm1555, %v1838, 0
        %v1900 = vsel %vm1555, %v1839, 0
        %v1903 = vsel %vm1555, %v1840, 0
        %v1906 = vsel %vm1555, %v1841, 0
        %v1909 = vsel %vm1555, %v1842, 0
        %v1912 = vsel %vm1555, %v1843, 0
        %v1915 = vsel %vm1555, %v1844, 0
        %1917 = vmatprep.subr.bf16.mxu0 0
        %1918 = vmatpush1.bf16.msra.mxu0 0
        %1919 = vmatprep.subr.bf16.mxu0 0
        %1920 = vmatpush1.bf16.msra.mxu0 0
        %1921 = vmatprep.subr.bf16.mxu0 0
        %1922 = vmatpush1.bf16.msra.mxu0 0
        %1923 = vmatprep.subr.bf16.mxu0 0
        %1924 = vmatpush1.bf16.msra.mxu0 0
        %1925 = vmatprep.subr.bf16.mxu0 0
        %1926 = vmatpush1.bf16.msra.mxu0 %v1864
        %1927 = vmatprep.subr.bf16.mxu0 0
        %1928 = vmatpush1.bf16.msra.mxu0 %v1863
        %1929 = vmatprep.subr.bf16.mxu0 0
        %1930 = vmatpush1.bf16.msra.mxu0 %v1862
        %1931 = vmatprep.subr.bf16.mxu0 0
        %1932 = vmatpush1.bf16.msra.mxu0 %v1861
        %1933 = vmatprep.subr.bf16.mxu0 0
        %1934 = vmatpush2.bf16.msra.mxu0 0
        %1935 = vmatprep.subr.bf16.mxu0 0
        %1936 = vmatpush2.bf16.msra.mxu0 0
        %1937 = vmatprep.subr.bf16.mxu0 0
        %1938 = vmatpush2.bf16.msra.mxu0 0
        %1939 = vmatprep.subr.bf16.mxu0 0
        %1940 = vmatpush2.bf16.msra.mxu0 0
        %1941 = vmatprep.subr.bf16.mxu0 0
        %1942 = vmatpush2.bf16.msra.mxu0 0
        %1943 = vmatprep.subr.bf16.mxu0 0
        %1944 = vmatpush2.bf16.msra.mxu0 0
        %1945 = vmatprep.subr.bf16.mxu0 0
        %1946 = vmatpush2.bf16.msra.mxu0 0
        %1947 = vmatprep.subr.bf16.mxu0 0
        %1948 = vmatpush2.bf16.msra.mxu0 0
        %1949 = vmatprep.mubr.bf16.mxu0 0
        %1950 = vmatmul.mubr.bf16.gmra.mxu0 %v1870
        %v1951 = vpop.f32.mrf.mxu0
        %v1952 = vadd.f32 %v1639, %v1951
        %v1953 = vpop.f32.mrf.mxu0
        %v1954 = vpop.f32.mrf.mxu0
        %v1955 = vadd.f32 %v1642, %v1954
        %v1956 = vpop.f32.mrf.mxu0
        %1957 = vmatprep.mubr.bf16.mxu0 0
        %1958 = vmatmul.mubr.bf16.gmra.mxu0 %v1873
        %v1959 = vpop.f32.mrf.mxu0
        %v1960 = vadd.f32 %v1647, %v1959
        %v1961 = vpop.f32.mrf.mxu0
        %v1962 = vpop.f32.mrf.mxu0
        %v1963 = vadd.f32 %v1650, %v1962
        %v1964 = vpop.f32.mrf.mxu0
        %1965 = vmatprep.mubr.bf16.mxu0 0
        %1966 = vmatmul.mubr.bf16.gmra.mxu0 %v1876
        %v1967 = vpop.f32.mrf.mxu0
        %v1968 = vadd.f32 %v1655, %v1967
        %v1969 = vpop.f32.mrf.mxu0
        %v1970 = vpop.f32.mrf.mxu0
        %v1971 = vadd.f32 %v1658, %v1970
        %v1972 = vpop.f32.mrf.mxu0
        %1973 = vmatprep.mubr.bf16.mxu0 0
        %1974 = vmatmul.mubr.bf16.gmra.mxu0 %v1879
        %v1975 = vpop.f32.mrf.mxu0
        %v1976 = vadd.f32 %v1663, %v1975
        %v1977 = vpop.f32.mrf.mxu0
        %v1978 = vpop.f32.mrf.mxu0
        %v1979 = vadd.f32 %v1666, %v1978
        %v1980 = vpop.f32.mrf.mxu0
        %1981 = vmatprep.mubr.bf16.mxu0 0
        %1982 = vmatmul.mubr.bf16.gmra.mxu0 %v1882
        %v1983 = vpop.f32.mrf.mxu0
        %v1984 = vadd.f32 %v1671, %v1983
        %v1985 = vpop.f32.mrf.mxu0
        %v1986 = vpop.f32.mrf.mxu0
        %v1987 = vadd.f32 %v1674, %v1986
        %v1988 = vpop.f32.mrf.mxu0
        %1989 = vmatprep.mubr.bf16.mxu0 0
        %1990 = vmatmul.mubr.bf16.gmra.mxu0 %v1885
        %v1991 = vpop.f32.mrf.mxu0
        %v1992 = vadd.f32 %v1679, %v1991
        %v1993 = vpop.f32.mrf.mxu0
        %v1994 = vpop.f32.mrf.mxu0
        %v1995 = vadd.f32 %v1682, %v1994
        %v1996 = vpop.f32.mrf.mxu0
        %1997 = vmatprep.mubr.bf16.mxu0 0
        %1998 = vmatmul.mubr.bf16.gmra.mxu0 %v1888
        %v1999 = vpop.f32.mrf.mxu0
        %v2000 = vadd.f32 %v1687, %v1999
        %v2001 = vpop.f32.mrf.mxu0
        %v2002 = vpop.f32.mrf.mxu0
        %v2003 = vadd.f32 %v1690, %v2002
        %v2004 = vpop.f32.mrf.mxu0
        %2005 = vmatprep.mubr.bf16.mxu0 0
        %2006 = vmatmul.mubr.bf16.gmra.mxu0 %v1891
        %v2007 = vpop.f32.mrf.mxu0
        %v2008 = vadd.f32 %v1695, %v2007
        %v2009 = vpop.f32.mrf.mxu0
        %v2010 = vpop.f32.mrf.mxu0
        %v2011 = vadd.f32 %v1698, %v2010
        %v2012 = vpop.f32.mrf.mxu0
        %2013 = vmatprep.mubr.bf16.mxu0 0
        %2014 = vmatmul.mubr.bf16.gmra.mxu0 %v1894
        %v2015 = vpop.f32.mrf.mxu0
        %v2016 = vadd.f32 %v1703, %v2015
        %v2017 = vpop.f32.mrf.mxu0
        %v2018 = vpop.f32.mrf.mxu0
        %v2019 = vadd.f32 %v1706, %v2018
        %v2020 = vpop.f32.mrf.mxu0
        %2021 = vmatprep.mubr.bf16.mxu0 0
        %2022 = vmatmul.mubr.bf16.gmra.mxu0 %v1897
        %v2023 = vpop.f32.mrf.mxu0
        %v2024 = vadd.f32 %v1711, %v2023
        %v2025 = vpop.f32.mrf.mxu0
        %v2026 = vpop.f32.mrf.mxu0
        %v2027 = vadd.f32 %v1714, %v2026
        %v2028 = vpop.f32.mrf.mxu0
        %2029 = vmatprep.mubr.bf16.mxu0 0
        %2030 = vmatmul.mubr.bf16.gmra.mxu0 %v1900
        %v2031 = vpop.f32.mrf.mxu0
        %v2032 = vadd.f32 %v1719, %v2031
        %v2033 = vpop.f32.mrf.mxu0
        %v2034 = vpop.f32.mrf.mxu0
        %v2035 = vadd.f32 %v1722, %v2034
        %v2036 = vpop.f32.mrf.mxu0
        %2037 = vmatprep.mubr.bf16.mxu0 0
        %2038 = vmatmul.mubr.bf16.gmra.mxu0 %v1903
        %v2039 = vpop.f32.mrf.mxu0
        %v2040 = vadd.f32 %v1727, %v2039
        %v2041 = vpop.f32.mrf.mxu0
        %v2042 = vpop.f32.mrf.mxu0
        %v2043 = vadd.f32 %v1730, %v2042
        %v2044 = vpop.f32.mrf.mxu0
        %2045 = vmatprep.mubr.bf16.mxu0 0
        %2046 = vmatmul.mubr.bf16.gmra.mxu0 %v1906
        %v2047 = vpop.f32.mrf.mxu0
        %v2048 = vadd.f32 %v1735, %v2047
        %v2049 = vpop.f32.mrf.mxu0
        %v2050 = vpop.f32.mrf.mxu0
        %v2051 = vadd.f32 %v1738, %v2050
        %v2052 = vpop.f32.mrf.mxu0
        %2053 = vmatprep.mubr.bf16.mxu0 0
        %2054 = vmatmul.mubr.bf16.gmra.mxu0 %v1909
        %v2055 = vpop.f32.mrf.mxu0
        %v2056 = vadd.f32 %v1743, %v2055
        %v2057 = vpop.f32.mrf.mxu0
        %v2058 = vpop.f32.mrf.mxu0
        %v2059 = vadd.f32 %v1746, %v2058
        %v2060 = vpop.f32.mrf.mxu0
        %2061 = vmatprep.mubr.bf16.mxu0 0
        %2062 = vmatmul.mubr.bf16.gmra.mxu0 %v1912
        %v2063 = vpop.f32.mrf.mxu0
        %v2064 = vadd.f32 %v1751, %v2063
        %v2065 = vpop.f32.mrf.mxu0
        %v2066 = vpop.f32.mrf.mxu0
        %v2067 = vadd.f32 %v1754, %v2066
        %v2068 = vpop.f32.mrf.mxu0
        %2069 = vmatprep.mubr.bf16.mxu0 0
        %2070 = vmatmul.mubr.bf16.gmra.mxu0 %v1915
        %v2071 = vpop.f32.mrf.mxu0
        %v2072 = vadd.f32 %v1759, %v2071
        %v2073 = vpop.f32.mrf.mxu0
        %v2074 = vpop.f32.mrf.mxu0
        %v2075 = vadd.f32 %v1762, %v2074
        %v2076 = vpop.f32.mrf.mxu0
        %2077 = vdwg.mxu0
        %vm2094 = vcmask 1042432
        %vm2095 = vcmask 1046532
        %vm2096 = vmor %vm2094, %vm2095
        %v2097 = vrot.slane %v1026, 5
        %v2098 = vrot.slane %v2097, 4
        %v2099 = vrot.slane %v1027, 5
        %v2100 = vsel %vm2096, %v2098, %v2099
        %v2101 = vrot.slane %v2099, 4
        %v2102 = vrot.slane %v1028, 5
        %v2103 = vsel %vm2096, %v2101, %v2102
        %v2104 = vrot.slane %v1029, 5
        %v2105 = vrot.slane %v2104, 4
        %v2106 = vrot.slane %v1030, 5
        %v2107 = vsel %vm2096, %v2105, %v2106
        %v2108 = vrot.slane %v2106, 4
        %v2109 = vrot.slane %v1031, 5
        %v2110 = vsel %vm2096, %v2108, %v2109
        %v2111 = vrot.slane %v1032, 5
        %v2112 = vrot.slane %v2111, 4
        %v2113 = vrot.slane %v1033, 5
        %v2114 = vsel %vm2096, %v2112, %v2113
        %v2115 = vrot.slane %v2113, 4
        %v2116 = vrot.slane %v1034, 5
        %v2117 = vsel %vm2096, %v2115, %v2116
        %v2118 = vrot.slane %v1035, 5
        %v2119 = vrot.slane %v2118, 4
        %v2120 = vrot.slane %v1036, 5
        %v2121 = vsel %vm2096, %v2119, %v2120
        %v2122 = vrot.slane %v2120, 4
        %v2123 = vrot.slane %v1037, 5
        %v2124 = vsel %vm2096, %v2122, %v2123
        %v2125 = vrot.slane %v1038, 5
        %v2126 = vrot.slane %v2125, 4
        %v2127 = vrot.slane %v1039, 5
        %v2128 = vsel %vm2096, %v2126, %v2127
        %v2129 = vrot.slane %v2127, 4
        %v2130 = vrot.slane %v1040, 5
        %v2131 = vsel %vm2096, %v2129, %v2130
        %v2132 = vrot.slane %v1041, 5
        %v2133 = vrot.slane %v2132, 4
        %v2134 = vrot.slane %v1042, 5
        %v2135 = vsel %vm2096, %v2133, %v2134
        %v2136 = vrot.slane %v2134, 4
        %v2137 = vrot.slane %v1043, 5
        %v2138 = vsel %vm2096, %v2136, %v2137
        %v2139 = vrot.slane %v1044, 5
        %v2140 = vrot.slane %v2139, 4
        %v2141 = vrot.slane %v1045, 5
        %v2142 = vsel %vm2096, %v2140, %v2141
        %v2143 = vrot.slane %v2141, 4
        %v2144 = vrot.slane %v1046, 5
        %v2145 = vsel %vm2096, %v2143, %v2144
        %v2146 = vrot.slane %v1047, 5
        %v2147 = vrot.slane %v2146, 4
        %v2148 = vrot.slane %v1048, 5
        %v2149 = vsel %vm2096, %v2147, %v2148
        %v2150 = vrot.slane %v2148, 4
        %v2151 = vrot.slane %v1049, 5
        %v2152 = vsel %vm2096, %v2150, %v2151
        %v2153 = vrot.slane %v1050, 5
        %v2154 = vrot.slane %v2153, 4
        %v2155 = vrot.slane %v1051, 5
        %v2156 = vsel %vm2096, %v2154, %v2155
        %v2157 = vrot.slane %v2155, 4
        %v2158 = vrot.slane %v1052, 5
        %v2159 = vsel %vm2096, %v2157, %v2158
        %v2160 = vrot.slane %v1053, 5
        %v2161 = vrot.slane %v2160, 4
        %v2162 = vrot.slane %v1054, 5
        %v2163 = vsel %vm2096, %v2161, %v2162
        %v2164 = vrot.slane %v2162, 4
        %v2165 = vrot.slane %v1055, 5
        %v2166 = vsel %vm2096, %v2164, %v2165
        %v2167 = vrot.slane %v1056, 5
        %v2168 = vrot.slane %v2167, 4
        %v2169 = vrot.slane %v1057, 5
        %v2170 = vsel %vm2096, %v2168, %v2169
        %v2171 = vrot.slane %v2169, 4
        %v2172 = vrot.slane %v1058, 5
        %v2173 = vsel %vm2096, %v2171, %v2172
        %v2174 = vrot.slane %v1059, 5
        %v2175 = vrot.slane %v2174, 4
        %v2176 = vrot.slane %v1060, 5
        %v2177 = vsel %vm2096, %v2175, %v2176
        %v2178 = vrot.slane %v2176, 4
        %v2179 = vrot.slane %v1061, 5
        %v2180 = vsel %vm2096, %v2178, %v2179
        %v2181 = vrot.slane %v1062, 5
        %v2182 = vrot.slane %v2181, 4
        %v2183 = vrot.slane %v1063, 5
        %v2184 = vsel %vm2096, %v2182, %v2183
        %v2185 = vrot.slane %v2183, 4
        %v2186 = vrot.slane %v1064, 5
        %v2187 = vsel %vm2096, %v2185, %v2186
        %v2188 = vrot.slane %v1065, 5
        %v2189 = vrot.slane %v2188, 4
        %v2190 = vrot.slane %v1066, 5
        %v2191 = vsel %vm2096, %v2189, %v2190
        %v2192 = vrot.slane %v2190, 4
        %v2193 = vrot.slane %v1067, 5
        %v2194 = vsel %vm2096, %v2192, %v2193
        %v2195 = vrot.slane %v1068, 5
        %v2196 = vrot.slane %v2195, 4
        %v2197 = vrot.slane %v1069, 5
        %v2198 = vsel %vm2096, %v2196, %v2197
        %v2199 = vrot.slane %v2197, 4
        %v2200 = vrot.slane %v1070, 5
        %v2201 = vsel %vm2096, %v2199, %v2200
        %v2202 = vrot.slane %v1071, 5
        %v2203 = vrot.slane %v2202, 4
        %v2204 = vrot.slane %v1072, 5
        %v2205 = vsel %vm2096, %v2203, %v2204
        %v2206 = vrot.slane %v2204, 4
        %v2207 = vrot.slane %v1073, 5
        %v2208 = vsel %vm2096, %v2206, %v2207
        %v2209 = vld [vmem:[%s1 + $0x40] sm:$0xf]
        %v2210 = vld [vmem:[%s1 + $0x44] sm:$0xf]
        %v2211 = vld [vmem:[%s1 + $0x48] sm:$0xf]
        %v2212 = vld [vmem:[%s1 + $0x4c] sm:$0xf]
        %v2213 = vld [vmem:[%s1 + $0x50] sm:$0xf]
        %v2214 = vld [vmem:[%s1 + $0x54] sm:$0xf]
        %v2215 = vld [vmem:[%s1 + $0x58] sm:$0xf]
        %v2216 = vld [vmem:[%s1 + $0x5c] sm:$0xf]
        %v2217 = vunpack.c.l.b16 %v2100
        %v2218 = vunpack.c.l.b16 %v2103
        %v2219 = vunpack.c.l.b16 %v2107
        %v2220 = vunpack.c.l.b16 %v2110
        %v2221 = vunpack.c.l.b16 %v2114
        %v2222 = vunpack.c.l.b16 %v2117
        %v2223 = vunpack.c.l.b16 %v2121
        %v2224 = vunpack.c.l.b16 %v2124
        %v2225 = vunpack.c.l.b16 %v2128
        %v2226 = vunpack.c.l.b16 %v2131
        %v2227 = vunpack.c.l.b16 %v2135
        %v2228 = vunpack.c.l.b16 %v2138
        %v2229 = vunpack.c.l.b16 %v2142
        %v2230 = vunpack.c.l.b16 %v2145
        %v2231 = vunpack.c.l.b16 %v2149
        %v2232 = vunpack.c.l.b16 %v2152
        %v2233 = vunpack.c.l.b16 %v2156
        %v2234 = vunpack.c.l.b16 %v2159
        %v2235 = vunpack.c.l.b16 %v2163
        %v2236 = vunpack.c.l.b16 %v2166
        %v2237 = vunpack.c.l.b16 %v2170
        %v2238 = vunpack.c.l.b16 %v2173
        %v2239 = vunpack.c.l.b16 %v2177
        %v2240 = vunpack.c.l.b16 %v2180
        %v2241 = vunpack.c.l.b16 %v2184
        %v2242 = vunpack.c.l.b16 %v2187
        %v2243 = vunpack.c.l.b16 %v2191
        %v2244 = vunpack.c.l.b16 %v2194
        %v2245 = vunpack.c.l.b16 %v2198
        %v2246 = vunpack.c.l.b16 %v2201
        %v2247 = vunpack.c.l.b16 %v2205
        %v2248 = vunpack.c.l.b16 %v2208
        %v2249 = vpack.c.b16 %v2218, %v2217
        %v2250 = vpack.c.b16 %v2220, %v2219
        %v2251 = vpack.c.b16 %v2222, %v2221
        %v2252 = vpack.c.b16 %v2224, %v2223
        %v2253 = vpack.c.b16 %v2226, %v2225
        %v2254 = vpack.c.b16 %v2228, %v2227
        %v2255 = vpack.c.b16 %v2230, %v2229
        %v2256 = vpack.c.b16 %v2232, %v2231
        %v2257 = vpack.c.b16 %v2234, %v2233
        %v2258 = vpack.c.b16 %v2236, %v2235
        %v2259 = vpack.c.b16 %v2238, %v2237
        %v2260 = vpack.c.b16 %v2240, %v2239
        %v2261 = vpack.c.b16 %v2242, %v2241
        %v2262 = vpack.c.b16 %v2244, %v2243
        %v2263 = vpack.c.b16 %v2246, %v2245
        %v2264 = vpack.c.b16 %v2248, %v2247
        %v2273 = vunpack.c.l.b16 %v2209
        %v2274 = vunpack.c.l.b16 %v2210
        %v2275 = vunpack.c.l.b16 %v2211
        %v2276 = vunpack.c.l.b16 %v2212
        %v2277 = vunpack.c.l.b16 %v2213
        %v2278 = vunpack.c.l.b16 %v2214
        %v2279 = vunpack.c.l.b16 %v2215
        %v2280 = vunpack.c.l.b16 %v2216
        %v2281 = vpack.c.b16 %v2274, %v2273
        %v2282 = vpack.c.b16 %v2276, %v2275
        %v2283 = vpack.c.b16 %v2278, %v2277
        %v2284 = vpack.c.b16 %v2280, %v2279
        %v2290 = vsel %vm1555, %v2249, 0
        %v2293 = vsel %vm1555, %v2250, 0
        %v2296 = vsel %vm1555, %v2251, 0
        %v2299 = vsel %vm1555, %v2252, 0
        %v2302 = vsel %vm1555, %v2253, 0
        %v2305 = vsel %vm1555, %v2254, 0
        %v2308 = vsel %vm1555, %v2255, 0
        %v2311 = vsel %vm1555, %v2256, 0
        %v2314 = vsel %vm1555, %v2257, 0
        %v2317 = vsel %vm1555, %v2258, 0
        %v2320 = vsel %vm1555, %v2259, 0
        %v2323 = vsel %vm1555, %v2260, 0
        %v2326 = vsel %vm1555, %v2261, 0
        %v2329 = vsel %vm1555, %v2262, 0
        %v2332 = vsel %vm1555, %v2263, 0
        %v2335 = vsel %vm1555, %v2264, 0
        %2337 = vmatprep.subr.bf16.mxu0 0
        %2338 = vmatpush1.bf16.msra.mxu0 0
        %2339 = vmatprep.subr.bf16.mxu0 0
        %2340 = vmatpush1.bf16.msra.mxu0 0
        %2341 = vmatprep.subr.bf16.mxu0 0
        %2342 = vmatpush1.bf16.msra.mxu0 0
        %2343 = vmatprep.subr.bf16.mxu0 0
        %2344 = vmatpush1.bf16.msra.mxu0 0
        %2345 = vmatprep.subr.bf16.mxu0 0
        %2346 = vmatpush1.bf16.msra.mxu0 %v2284
        %2347 = vmatprep.subr.bf16.mxu0 0
        %2348 = vmatpush1.bf16.msra.mxu0 %v2283
        %2349 = vmatprep.subr.bf16.mxu0 0
        %2350 = vmatpush1.bf16.msra.mxu0 %v2282
        %2351 = vmatprep.subr.bf16.mxu0 0
        %2352 = vmatpush1.bf16.msra.mxu0 %v2281
        %2353 = vmatprep.subr.bf16.mxu0 0
        %2354 = vmatpush2.bf16.msra.mxu0 0
        %2355 = vmatprep.subr.bf16.mxu0 0
        %2356 = vmatpush2.bf16.msra.mxu0 0
        %2357 = vmatprep.subr.bf16.mxu0 0
        %2358 = vmatpush2.bf16.msra.mxu0 0
        %2359 = vmatprep.subr.bf16.mxu0 0
        %2360 = vmatpush2.bf16.msra.mxu0 0
        %2361 = vmatprep.subr.bf16.mxu0 0
        %2362 = vmatpush2.bf16.msra.mxu0 0
        %2363 = vmatprep.subr.bf16.mxu0 0
        %2364 = vmatpush2.bf16.msra.mxu0 0
        %2365 = vmatprep.subr.bf16.mxu0 0
        %2366 = vmatpush2.bf16.msra.mxu0 0
        %2367 = vmatprep.subr.bf16.mxu0 0
        %2368 = vmatpush2.bf16.msra.mxu0 0
        %2369 = vmatprep.mubr.bf16.mxu0 0
        %2370 = vmatmul.mubr.bf16.gmra.mxu0 %v2290
        %v2371 = vpop.f32.mrf.mxu0
        %v2372 = vadd.f32 0.0, %v2371
        %v2373 = vpop.f32.mrf.mxu0
        %v2374 = vpop.f32.mrf.mxu0
        %v2375 = vadd.f32 0.0, %v2374
        %v2376 = vpop.f32.mrf.mxu0
        %2377 = vmatprep.mubr.bf16.mxu0 0
        %2378 = vmatmul.mubr.bf16.gmra.mxu0 %v2293
        %v2379 = vpop.f32.mrf.mxu0
        %v2380 = vadd.f32 0.0, %v2379
        %v2381 = vpop.f32.mrf.mxu0
        %v2382 = vpop.f32.mrf.mxu0
        %v2383 = vadd.f32 0.0, %v2382
        %v2384 = vpop.f32.mrf.mxu0
        %2385 = vmatprep.mubr.bf16.mxu0 0
        %2386 = vmatmul.mubr.bf16.gmra.mxu0 %v2296
        %v2387 = vpop.f32.mrf.mxu0
        %v2388 = vadd.f32 0.0, %v2387
        %v2389 = vpop.f32.mrf.mxu0
        %v2390 = vpop.f32.mrf.mxu0
        %v2391 = vadd.f32 0.0, %v2390
        %v2392 = vpop.f32.mrf.mxu0
        %2393 = vmatprep.mubr.bf16.mxu0 0
        %2394 = vmatmul.mubr.bf16.gmra.mxu0 %v2299
        %v2395 = vpop.f32.mrf.mxu0
        %v2396 = vadd.f32 0.0, %v2395
        %v2397 = vpop.f32.mrf.mxu0
        %v2398 = vpop.f32.mrf.mxu0
        %v2399 = vadd.f32 0.0, %v2398
        %v2400 = vpop.f32.mrf.mxu0
        %2401 = vmatprep.mubr.bf16.mxu0 0
        %2402 = vmatmul.mubr.bf16.gmra.mxu0 %v2302
        %v2403 = vpop.f32.mrf.mxu0
        %v2404 = vadd.f32 0.0, %v2403
        %v2405 = vpop.f32.mrf.mxu0
        %v2406 = vpop.f32.mrf.mxu0
        %v2407 = vadd.f32 0.0, %v2406
        %v2408 = vpop.f32.mrf.mxu0
        %2409 = vmatprep.mubr.bf16.mxu0 0
        %2410 = vmatmul.mubr.bf16.gmra.mxu0 %v2305
        %v2411 = vpop.f32.mrf.mxu0
        %v2412 = vadd.f32 0.0, %v2411
        %v2413 = vpop.f32.mrf.mxu0
        %v2414 = vpop.f32.mrf.mxu0
        %v2415 = vadd.f32 0.0, %v2414
        %v2416 = vpop.f32.mrf.mxu0
        %2417 = vmatprep.mubr.bf16.mxu0 0
        %2418 = vmatmul.mubr.bf16.gmra.mxu0 %v2308
        %v2419 = vpop.f32.mrf.mxu0
        %v2420 = vadd.f32 0.0, %v2419
        %v2421 = vpop.f32.mrf.mxu0
        %v2422 = vpop.f32.mrf.mxu0
        %v2423 = vadd.f32 0.0, %v2422
        %v2424 = vpop.f32.mrf.mxu0
        %2425 = vmatprep.mubr.bf16.mxu0 0
        %2426 = vmatmul.mubr.bf16.gmra.mxu0 %v2311
        %v2427 = vpop.f32.mrf.mxu0
        %v2428 = vadd.f32 0.0, %v2427
        %v2429 = vpop.f32.mrf.mxu0
        %v2430 = vpop.f32.mrf.mxu0
        %v2431 = vadd.f32 0.0, %v2430
        %v2432 = vpop.f32.mrf.mxu0
        %2433 = vmatprep.mubr.bf16.mxu0 0
        %2434 = vmatmul.mubr.bf16.gmra.mxu0 %v2314
        %v2435 = vpop.f32.mrf.mxu0
        %v2436 = vadd.f32 0.0, %v2435
        %v2437 = vpop.f32.mrf.mxu0
        %v2438 = vpop.f32.mrf.mxu0
        %v2439 = vadd.f32 0.0, %v2438
        %v2440 = vpop.f32.mrf.mxu0
        %2441 = vmatprep.mubr.bf16.mxu0 0
        %2442 = vmatmul.mubr.bf16.gmra.mxu0 %v2317
        %v2443 = vpop.f32.mrf.mxu0
        %v2444 = vadd.f32 0.0, %v2443
        %v2445 = vpop.f32.mrf.mxu0
        %v2446 = vpop.f32.mrf.mxu0
        %v2447 = vadd.f32 0.0, %v2446
        %v2448 = vpop.f32.mrf.mxu0
        %2449 = vmatprep.mubr.bf16.mxu0 0
        %2450 = vmatmul.mubr.bf16.gmra.mxu0 %v2320
        %v2451 = vpop.f32.mrf.mxu0
        %v2452 = vadd.f32 0.0, %v2451
        %v2453 = vpop.f32.mrf.mxu0
        %v2454 = vpop.f32.mrf.mxu0
        %v2455 = vadd.f32 0.0, %v2454
        %v2456 = vpop.f32.mrf.mxu0
        %2457 = vmatprep.mubr.bf16.mxu0 0
        %2458 = vmatmul.mubr.bf16.gmra.mxu0 %v2323
        %v2459 = vpop.f32.mrf.mxu0
        %v2460 = vadd.f32 0.0, %v2459
        %v2461 = vpop.f32.mrf.mxu0
        %v2462 = vpop.f32.mrf.mxu0
        %v2463 = vadd.f32 0.0, %v2462
        %v2464 = vpop.f32.mrf.mxu0
        %2465 = vmatprep.mubr.bf16.mxu0 0
        %2466 = vmatmul.mubr.bf16.gmra.mxu0 %v2326
        %v2467 = vpop.f32.mrf.mxu0
        %v2468 = vadd.f32 0.0, %v2467
        %v2469 = vpop.f32.mrf.mxu0
        %v2470 = vpop.f32.mrf.mxu0
        %v2471 = vadd.f32 0.0, %v2470
        %v2472 = vpop.f32.mrf.mxu0
        %2473 = vmatprep.mubr.bf16.mxu0 0
        %2474 = vmatmul.mubr.bf16.gmra.mxu0 %v2329
        %v2475 = vpop.f32.mrf.mxu0
        %v2476 = vadd.f32 0.0, %v2475
        %v2477 = vpop.f32.mrf.mxu0
        %v2478 = vpop.f32.mrf.mxu0
        %v2479 = vadd.f32 0.0, %v2478
        %v2480 = vpop.f32.mrf.mxu0
        %2481 = vmatprep.mubr.bf16.mxu0 0
        %2482 = vmatmul.mubr.bf16.gmra.mxu0 %v2332
        %v2483 = vpop.f32.mrf.mxu0
        %v2484 = vadd.f32 0.0, %v2483
        %v2485 = vpop.f32.mrf.mxu0
        %v2486 = vpop.f32.mrf.mxu0
        %v2487 = vadd.f32 0.0, %v2486
        %v2488 = vpop.f32.mrf.mxu0
        %2489 = vmatprep.mubr.bf16.mxu0 0
        %2490 = vmatmul.mubr.bf16.gmra.mxu0 %v2335
        %v2491 = vpop.f32.mrf.mxu0
        %v2492 = vadd.f32 0.0, %v2491
        %v2493 = vpop.f32.mrf.mxu0
        %v2494 = vpop.f32.mrf.mxu0
        %v2495 = vadd.f32 0.0, %v2494
        %v2496 = vpop.f32.mrf.mxu0
        %2497 = vdwg.mxu0
        %v2498 = vadd.f32 %v1952, %v2372
        %v2499 = vadd.f32 %v1955, %v2375
        %v2500 = vadd.f32 %v1960, %v2380
        %v2501 = vadd.f32 %v1963, %v2383
        %v2502 = vadd.f32 %v1968, %v2388
        %v2503 = vadd.f32 %v1971, %v2391
        %v2504 = vadd.f32 %v1976, %v2396
        %v2505 = vadd.f32 %v1979, %v2399
        %v2506 = vadd.f32 %v1984, %v2404
        %v2507 = vadd.f32 %v1987, %v2407
        %v2508 = vadd.f32 %v1992, %v2412
        %v2509 = vadd.f32 %v1995, %v2415
        %v2510 = vadd.f32 %v2000, %v2420
        %v2511 = vadd.f32 %v2003, %v2423
        %v2512 = vadd.f32 %v2008, %v2428
        %v2513 = vadd.f32 %v2011, %v2431
        %v2514 = vadd.f32 %v2016, %v2436
        %v2515 = vadd.f32 %v2019, %v2439
        %v2516 = vadd.f32 %v2024, %v2444
        %v2517 = vadd.f32 %v2027, %v2447
        %v2518 = vadd.f32 %v2032, %v2452
        %v2519 = vadd.f32 %v2035, %v2455
        %v2520 = vadd.f32 %v2040, %v2460
        %v2521 = vadd.f32 %v2043, %v2463
        %v2522 = vadd.f32 %v2048, %v2468
        %v2523 = vadd.f32 %v2051, %v2471
        %v2524 = vadd.f32 %v2056, %v2476
        %v2525 = vadd.f32 %v2059, %v2479
        %v2526 = vadd.f32 %v2064, %v2484
        %v2527 = vadd.f32 %v2067, %v2487
        %v2528 = vadd.f32 %v2072, %v2492
        %v2529 = vadd.f32 %v2075, %v2495
        %v2530 = vld [vmem:[%s1 + $0x60] sm:$0xf]
        %v2531 = vld [vmem:[%s1 + $0x64] sm:$0xf]
        %v2532 = vld [vmem:[%s1 + $0x68] sm:$0xf]
        %v2533 = vld [vmem:[%s1 + $0x6c] sm:$0xf]
        %v2534 = vld [vmem:[%s1 + $0x70] sm:$0xf]
        %v2535 = vld [vmem:[%s1 + $0x74] sm:$0xf]
        %v2536 = vld [vmem:[%s1 + $0x78] sm:$0xf]
        %v2537 = vld [vmem:[%s1 + $0x7c] sm:$0xf]
        %v2540 = vunpack.c.l.b16 %v1074
        %v2541 = vunpack.c.l.b16 %v1075
        %v2542 = vpack.c.b16 %v2541, %v2540
        %v2551 = vunpack.c.l.b16 %v2530
        %v2552 = vunpack.c.l.b16 %v2531
        %v2553 = vunpack.c.l.b16 %v2532
        %v2554 = vunpack.c.l.b16 %v2533
        %v2555 = vunpack.c.l.b16 %v2534
        %v2556 = vunpack.c.l.b16 %v2535
        %v2557 = vunpack.c.l.b16 %v2536
        %v2558 = vunpack.c.l.b16 %v2537
        %v2559 = vpack.c.b16 %v2552, %v2551
        %v2560 = vpack.c.b16 %v2554, %v2553
        %v2561 = vpack.c.b16 %v2556, %v2555
        %v2562 = vpack.c.b16 %v2558, %v2557
        %v2568 = vsel %vm1555, %v2542, 0
        %2570 = vmatprep.subr.bf16.mxu0 0
        %2571 = vmatpush1.bf16.msra.mxu0 0
        %2572 = vmatprep.subr.bf16.mxu0 0
        %2573 = vmatpush1.bf16.msra.mxu0 0
        %2574 = vmatprep.subr.bf16.mxu0 0
        %2575 = vmatpush1.bf16.msra.mxu0 0
        %2576 = vmatprep.subr.bf16.mxu0 0
        %2577 = vmatpush1.bf16.msra.mxu0 0
        %2578 = vmatprep.subr.bf16.mxu0 0
        %2579 = vmatpush1.bf16.msra.mxu0 %v2562
        %2580 = vmatprep.subr.bf16.mxu0 0
        %2581 = vmatpush1.bf16.msra.mxu0 %v2561
        %2582 = vmatprep.subr.bf16.mxu0 0
        %2583 = vmatpush1.bf16.msra.mxu0 %v2560
        %2584 = vmatprep.subr.bf16.mxu0 0
        %2585 = vmatpush1.bf16.msra.mxu0 %v2559
        %2586 = vmatprep.subr.bf16.mxu0 0
        %2587 = vmatpush2.bf16.msra.mxu0 0
        %2588 = vmatprep.subr.bf16.mxu0 0
        %2589 = vmatpush2.bf16.msra.mxu0 0
        %2590 = vmatprep.subr.bf16.mxu0 0
        %2591 = vmatpush2.bf16.msra.mxu0 0
        %2592 = vmatprep.subr.bf16.mxu0 0
        %2593 = vmatpush2.bf16.msra.mxu0 0
        %2594 = vmatprep.subr.bf16.mxu0 0
        %2595 = vmatpush2.bf16.msra.mxu0 0
        %2596 = vmatprep.subr.bf16.mxu0 0
        %2597 = vmatpush2.bf16.msra.mxu0 0
        %2598 = vmatprep.subr.bf16.mxu0 0
        %2599 = vmatpush2.bf16.msra.mxu0 0
        %2600 = vmatprep.subr.bf16.mxu0 0
        %2601 = vmatpush2.bf16.msra.mxu0 0
        %2602 = vmatprep.mubr.bf16.mxu0 0
        %2603 = vmatmul.mubr.bf16.gmra.mxu0 %v1873
        %v2604 = vpop.f32.mrf.mxu0
        %v2605 = vadd.f32 0.0, %v2604
        %v2606 = vpop.f32.mrf.mxu0
        %v2607 = vpop.f32.mrf.mxu0
        %v2608 = vadd.f32 0.0, %v2607
        %v2609 = vpop.f32.mrf.mxu0
        %2610 = vmatprep.mubr.bf16.mxu0 0
        %2611 = vmatmul.mubr.bf16.gmra.mxu0 %v1876
        %v2612 = vpop.f32.mrf.mxu0
        %v2613 = vadd.f32 0.0, %v2612
        %v2614 = vpop.f32.mrf.mxu0
        %v2615 = vpop.f32.mrf.mxu0
        %v2616 = vadd.f32 0.0, %v2615
        %v2617 = vpop.f32.mrf.mxu0
        %2618 = vmatprep.mubr.bf16.mxu0 0
        %2619 = vmatmul.mubr.bf16.gmra.mxu0 %v1879
        %v2620 = vpop.f32.mrf.mxu0
        %v2621 = vadd.f32 0.0, %v2620
        %v2622 = vpop.f32.mrf.mxu0
        %v2623 = vpop.f32.mrf.mxu0
        %v2624 = vadd.f32 0.0, %v2623
        %v2625 = vpop.f32.mrf.mxu0
        %2626 = vmatprep.mubr.bf16.mxu0 0
        %2627 = vmatmul.mubr.bf16.gmra.mxu0 %v1882
        %v2628 = vpop.f32.mrf.mxu0
        %v2629 = vadd.f32 0.0, %v2628
        %v2630 = vpop.f32.mrf.mxu0
        %v2631 = vpop.f32.mrf.mxu0
        %v2632 = vadd.f32 0.0, %v2631
        %v2633 = vpop.f32.mrf.mxu0
        %2634 = vmatprep.mubr.bf16.mxu0 0
        %2635 = vmatmul.mubr.bf16.gmra.mxu0 %v1885
        %v2636 = vpop.f32.mrf.mxu0
        %v2637 = vadd.f32 0.0, %v2636
        %v2638 = vpop.f32.mrf.mxu0
        %v2639 = vpop.f32.mrf.mxu0
        %v2640 = vadd.f32 0.0, %v2639
        %v2641 = vpop.f32.mrf.mxu0
        %2642 = vmatprep.mubr.bf16.mxu0 0
        %2643 = vmatmul.mubr.bf16.gmra.mxu0 %v1888
        %v2644 = vpop.f32.mrf.mxu0
        %v2645 = vadd.f32 0.0, %v2644
        %v2646 = vpop.f32.mrf.mxu0
        %v2647 = vpop.f32.mrf.mxu0
        %v2648 = vadd.f32 0.0, %v2647
        %v2649 = vpop.f32.mrf.mxu0
        %2650 = vmatprep.mubr.bf16.mxu0 0
        %2651 = vmatmul.mubr.bf16.gmra.mxu0 %v1891
        %v2652 = vpop.f32.mrf.mxu0
        %v2653 = vadd.f32 0.0, %v2652
        %v2654 = vpop.f32.mrf.mxu0
        %v2655 = vpop.f32.mrf.mxu0
        %v2656 = vadd.f32 0.0, %v2655
        %v2657 = vpop.f32.mrf.mxu0
        %2658 = vmatprep.mubr.bf16.mxu0 0
        %2659 = vmatmul.mubr.bf16.gmra.mxu0 %v1894
        %v2660 = vpop.f32.mrf.mxu0
        %v2661 = vadd.f32 0.0, %v2660
        %v2662 = vpop.f32.mrf.mxu0
        %v2663 = vpop.f32.mrf.mxu0
        %v2664 = vadd.f32 0.0, %v2663
        %v2665 = vpop.f32.mrf.mxu0
        %2666 = vmatprep.mubr.bf16.mxu0 0
        %2667 = vmatmul.mubr.bf16.gmra.mxu0 %v1897
        %v2668 = vpop.f32.mrf.mxu0
        %v2669 = vadd.f32 0.0, %v2668
        %v2670 = vpop.f32.mrf.mxu0
        %v2671 = vpop.f32.mrf.mxu0
        %v2672 = vadd.f32 0.0, %v2671
        %v2673 = vpop.f32.mrf.mxu0
        %2674 = vmatprep.mubr.bf16.mxu0 0
        %2675 = vmatmul.mubr.bf16.gmra.mxu0 %v1900
        %v2676 = vpop.f32.mrf.mxu0
        %v2677 = vadd.f32 0.0, %v2676
        %v2678 = vpop.f32.mrf.mxu0
        %v2679 = vpop.f32.mrf.mxu0
        %v2680 = vadd.f32 0.0, %v2679
        %v2681 = vpop.f32.mrf.mxu0
        %2682 = vmatprep.mubr.bf16.mxu0 0
        %2683 = vmatmul.mubr.bf16.gmra.mxu0 %v1903
        %v2684 = vpop.f32.mrf.mxu0
        %v2685 = vadd.f32 0.0, %v2684
        %v2686 = vpop.f32.mrf.mxu0
        %v2687 = vpop.f32.mrf.mxu0
        %v2688 = vadd.f32 0.0, %v2687
        %v2689 = vpop.f32.mrf.mxu0
        %2690 = vmatprep.mubr.bf16.mxu0 0
        %2691 = vmatmul.mubr.bf16.gmra.mxu0 %v1906
        %v2692 = vpop.f32.mrf.mxu0
        %v2693 = vadd.f32 0.0, %v2692
        %v2694 = vpop.f32.mrf.mxu0
        %v2695 = vpop.f32.mrf.mxu0
        %v2696 = vadd.f32 0.0, %v2695
        %v2697 = vpop.f32.mrf.mxu0
        %2698 = vmatprep.mubr.bf16.mxu0 0
        %2699 = vmatmul.mubr.bf16.gmra.mxu0 %v1909
        %v2700 = vpop.f32.mrf.mxu0
        %v2701 = vadd.f32 0.0, %v2700
        %v2702 = vpop.f32.mrf.mxu0
        %v2703 = vpop.f32.mrf.mxu0
        %v2704 = vadd.f32 0.0, %v2703
        %v2705 = vpop.f32.mrf.mxu0
        %2706 = vmatprep.mubr.bf16.mxu0 0
        %2707 = vmatmul.mubr.bf16.gmra.mxu0 %v1912
        %v2708 = vpop.f32.mrf.mxu0
        %v2709 = vadd.f32 0.0, %v2708
        %v2710 = vpop.f32.mrf.mxu0
        %v2711 = vpop.f32.mrf.mxu0
        %v2712 = vadd.f32 0.0, %v2711
        %v2713 = vpop.f32.mrf.mxu0
        %2714 = vmatprep.mubr.bf16.mxu0 0
        %2715 = vmatmul.mubr.bf16.gmra.mxu0 %v1915
        %v2716 = vpop.f32.mrf.mxu0
        %v2717 = vadd.f32 0.0, %v2716
        %v2718 = vpop.f32.mrf.mxu0
        %v2719 = vpop.f32.mrf.mxu0
        %v2720 = vadd.f32 0.0, %v2719
        %v2721 = vpop.f32.mrf.mxu0
        %2722 = vmatprep.mubr.bf16.mxu0 0
        %2723 = vmatmul.mubr.bf16.gmra.mxu0 %v2568
        %v2724 = vpop.f32.mrf.mxu0
        %v2725 = vadd.f32 0.0, %v2724
        %v2726 = vpop.f32.mrf.mxu0
        %v2727 = vpop.f32.mrf.mxu0
        %v2728 = vadd.f32 0.0, %v2727
        %v2729 = vpop.f32.mrf.mxu0
        %2730 = vdwg.mxu0
        %v2731 = vadd.f32 %v2498, %v2605
        %v2732 = vadd.f32 %v2499, %v2608
        %v2733 = vadd.f32 %v2500, %v2613
        %v2734 = vadd.f32 %v2501, %v2616
        %v2735 = vadd.f32 %v2502, %v2621
        %v2736 = vadd.f32 %v2503, %v2624
        %v2737 = vadd.f32 %v2504, %v2629
        %v2738 = vadd.f32 %v2505, %v2632
        %v2739 = vadd.f32 %v2506, %v2637
        %v2740 = vadd.f32 %v2507, %v2640
        %v2741 = vadd.f32 %v2508, %v2645
        %v2742 = vadd.f32 %v2509, %v2648
        %v2743 = vadd.f32 %v2510, %v2653
        %v2744 = vadd.f32 %v2511, %v2656
        %v2745 = vadd.f32 %v2512, %v2661
        %v2746 = vadd.f32 %v2513, %v2664
        %v2747 = vadd.f32 %v2514, %v2669
        %v2748 = vadd.f32 %v2515, %v2672
        %v2749 = vadd.f32 %v2516, %v2677
        %v2750 = vadd.f32 %v2517, %v2680
        %v2751 = vadd.f32 %v2518, %v2685
        %v2752 = vadd.f32 %v2519, %v2688
        %v2753 = vadd.f32 %v2520, %v2693
        %v2754 = vadd.f32 %v2521, %v2696
        %v2755 = vadd.f32 %v2522, %v2701
        %v2756 = vadd.f32 %v2523, %v2704
        %v2757 = vadd.f32 %v2524, %v2709
        %v2758 = vadd.f32 %v2525, %v2712
        %v2759 = vadd.f32 %v2526, %v2717
        %v2760 = vadd.f32 %v2527, %v2720
        %v2761 = vadd.f32 %v2528, %v2725
        %v2762 = vadd.f32 %v2529, %v2728
        %v2764 = vshrl.u32 %v1074, 16
        %v2766 = vrot.slane %v2764, 4
        %v2767 = vshll.u32 %v1074, 16
        %v2769 = vrot.slane %v2767, 5
        %v2770 = vor.u32 %v2766, %v2769
        %v2771 = vrot.slane %v2770, 4
        %v2773 = vshll.u32 %v1075, 16
        %v2775 = vrot.slane %v2773, 5
        %v2776 = vsel %vm1090, %v2771, %v2775
        %v2777 = vshrl.u32 %v1075, 16
        %v2779 = vrot.slane %v2777, 4
        %v2780 = vor.u32 %v2779, %v2775
        %v2781 = vrot.slane %v2780, 4
        %v2783 = vshll.u32 %v1076, 16
        %v2785 = vrot.slane %v2783, 5
        %v2786 = vsel %vm1090, %v2781, %v2785
        %v2787 = vld [vmem:[%s1 + $0x80] sm:$0xf]
        %v2788 = vld [vmem:[%s1 + $0x84] sm:$0xf]
        %v2789 = vld [vmem:[%s1 + $0x88] sm:$0xf]
        %v2790 = vld [vmem:[%s1 + $0x8c] sm:$0xf]
        %v2791 = vld [vmem:[%s1 + $0x90] sm:$0xf]
        %v2792 = vld [vmem:[%s1 + $0x94] sm:$0xf]
        %v2793 = vld [vmem:[%s1 + $0x98] sm:$0xf]
        %v2794 = vld [vmem:[%s1 + $0x9c] sm:$0xf]
        %v2795 = vunpack.c.l.b16 %v2776
        %v2796 = vunpack.c.l.b16 %v2786
        %v2797 = vpack.c.b16 %v2796, %v2795
        %v2806 = vunpack.c.l.b16 %v2787
        %v2807 = vunpack.c.l.b16 %v2788
        %v2808 = vunpack.c.l.b16 %v2789
        %v2809 = vunpack.c.l.b16 %v2790
        %v2810 = vunpack.c.l.b16 %v2791
        %v2811 = vunpack.c.l.b16 %v2792
        %v2812 = vunpack.c.l.b16 %v2793
        %v2813 = vunpack.c.l.b16 %v2794
        %v2814 = vpack.c.b16 %v2807, %v2806
        %v2815 = vpack.c.b16 %v2809, %v2808
        %v2816 = vpack.c.b16 %v2811, %v2810
        %v2817 = vpack.c.b16 %v2813, %v2812
        %v2823 = vsel %vm1555, %v2797, 0
        %2825 = vmatprep.subr.bf16.mxu0 0
        %2826 = vmatpush1.bf16.msra.mxu0 0
        %2827 = vmatprep.subr.bf16.mxu0 0
        %2828 = vmatpush1.bf16.msra.mxu0 0
        %2829 = vmatprep.subr.bf16.mxu0 0
        %2830 = vmatpush1.bf16.msra.mxu0 0
        %2831 = vmatprep.subr.bf16.mxu0 0
        %2832 = vmatpush1.bf16.msra.mxu0 0
        %2833 = vmatprep.subr.bf16.mxu0 0
        %2834 = vmatpush1.bf16.msra.mxu0 %v2817
        %2835 = vmatprep.subr.bf16.mxu0 0
        %2836 = vmatpush1.bf16.msra.mxu0 %v2816
        %2837 = vmatprep.subr.bf16.mxu0 0
        %2838 = vmatpush1.bf16.msra.mxu0 %v2815
        %2839 = vmatprep.subr.bf16.mxu0 0
        %2840 = vmatpush1.bf16.msra.mxu0 %v2814
        %2841 = vmatprep.subr.bf16.mxu0 0
        %2842 = vmatpush2.bf16.msra.mxu0 0
        %2843 = vmatprep.subr.bf16.mxu0 0
        %2844 = vmatpush2.bf16.msra.mxu0 0
        %2845 = vmatprep.subr.bf16.mxu0 0
        %2846 = vmatpush2.bf16.msra.mxu0 0
        %2847 = vmatprep.subr.bf16.mxu0 0
        %2848 = vmatpush2.bf16.msra.mxu0 0
        %2849 = vmatprep.subr.bf16.mxu0 0
        %2850 = vmatpush2.bf16.msra.mxu0 0
        %2851 = vmatprep.subr.bf16.mxu0 0
        %2852 = vmatpush2.bf16.msra.mxu0 0
        %2853 = vmatprep.subr.bf16.mxu0 0
        %2854 = vmatpush2.bf16.msra.mxu0 0
        %2855 = vmatprep.subr.bf16.mxu0 0
        %2856 = vmatpush2.bf16.msra.mxu0 0
        %2857 = vmatprep.mubr.bf16.mxu0 0
        %2858 = vmatmul.mubr.bf16.gmra.mxu0 %v1560
        %v2859 = vpop.f32.mrf.mxu0
        %v2860 = vadd.f32 0.0, %v2859
        %v2861 = vpop.f32.mrf.mxu0
        %v2862 = vpop.f32.mrf.mxu0
        %v2863 = vadd.f32 0.0, %v2862
        %v2864 = vpop.f32.mrf.mxu0
        %2865 = vmatprep.mubr.bf16.mxu0 0
        %2866 = vmatmul.mubr.bf16.gmra.mxu0 %v1563
        %v2867 = vpop.f32.mrf.mxu0
        %v2868 = vadd.f32 0.0, %v2867
        %v2869 = vpop.f32.mrf.mxu0
        %v2870 = vpop.f32.mrf.mxu0
        %v2871 = vadd.f32 0.0, %v2870
        %v2872 = vpop.f32.mrf.mxu0
        %2873 = vmatprep.mubr.bf16.mxu0 0
        %2874 = vmatmul.mubr.bf16.gmra.mxu0 %v1566
        %v2875 = vpop.f32.mrf.mxu0
        %v2876 = vadd.f32 0.0, %v2875
        %v2877 = vpop.f32.mrf.mxu0
        %v2878 = vpop.f32.mrf.mxu0
        %v2879 = vadd.f32 0.0, %v2878
        %v2880 = vpop.f32.mrf.mxu0
        %2881 = vmatprep.mubr.bf16.mxu0 0
        %2882 = vmatmul.mubr.bf16.gmra.mxu0 %v1569
        %v2883 = vpop.f32.mrf.mxu0
        %v2884 = vadd.f32 0.0, %v2883
        %v2885 = vpop.f32.mrf.mxu0
        %v2886 = vpop.f32.mrf.mxu0
        %v2887 = vadd.f32 0.0, %v2886
        %v2888 = vpop.f32.mrf.mxu0
        %2889 = vmatprep.mubr.bf16.mxu0 0
        %2890 = vmatmul.mubr.bf16.gmra.mxu0 %v1572
        %v2891 = vpop.f32.mrf.mxu0
        %v2892 = vadd.f32 0.0, %v2891
        %v2893 = vpop.f32.mrf.mxu0
        %v2894 = vpop.f32.mrf.mxu0
        %v2895 = vadd.f32 0.0, %v2894
        %v2896 = vpop.f32.mrf.mxu0
        %2897 = vmatprep.mubr.bf16.mxu0 0
        %2898 = vmatmul.mubr.bf16.gmra.mxu0 %v1575
        %v2899 = vpop.f32.mrf.mxu0
        %v2900 = vadd.f32 0.0, %v2899
        %v2901 = vpop.f32.mrf.mxu0
        %v2902 = vpop.f32.mrf.mxu0
        %v2903 = vadd.f32 0.0, %v2902
        %v2904 = vpop.f32.mrf.mxu0
        %2905 = vmatprep.mubr.bf16.mxu0 0
        %2906 = vmatmul.mubr.bf16.gmra.mxu0 %v1578
        %v2907 = vpop.f32.mrf.mxu0
        %v2908 = vadd.f32 0.0, %v2907
        %v2909 = vpop.f32.mrf.mxu0
        %v2910 = vpop.f32.mrf.mxu0
        %v2911 = vadd.f32 0.0, %v2910
        %v2912 = vpop.f32.mrf.mxu0
        %2913 = vmatprep.mubr.bf16.mxu0 0
        %2914 = vmatmul.mubr.bf16.gmra.mxu0 %v1581
        %v2915 = vpop.f32.mrf.mxu0
        %v2916 = vadd.f32 0.0, %v2915
        %v2917 = vpop.f32.mrf.mxu0
        %v2918 = vpop.f32.mrf.mxu0
        %v2919 = vadd.f32 0.0, %v2918
        %v2920 = vpop.f32.mrf.mxu0
        %2921 = vmatprep.mubr.bf16.mxu0 0
        %2922 = vmatmul.mubr.bf16.gmra.mxu0 %v1584
        %v2923 = vpop.f32.mrf.mxu0
        %v2924 = vadd.f32 0.0, %v2923
        %v2925 = vpop.f32.mrf.mxu0
        %v2926 = vpop.f32.mrf.mxu0
        %v2927 = vadd.f32 0.0, %v2926
        %v2928 = vpop.f32.mrf.mxu0
        %2929 = vmatprep.mubr.bf16.mxu0 0
        %2930 = vmatmul.mubr.bf16.gmra.mxu0 %v1587
        %v2931 = vpop.f32.mrf.mxu0
        %v2932 = vadd.f32 0.0, %v2931
        %v2933 = vpop.f32.mrf.mxu0
        %v2934 = vpop.f32.mrf.mxu0
        %v2935 = vadd.f32 0.0, %v2934
        %v2936 = vpop.f32.mrf.mxu0
        %2937 = vmatprep.mubr.bf16.mxu0 0
        %2938 = vmatmul.mubr.bf16.gmra.mxu0 %v1590
        %v2939 = vpop.f32.mrf.mxu0
        %v2940 = vadd.f32 0.0, %v2939
        %v2941 = vpop.f32.mrf.mxu0
        %v2942 = vpop.f32.mrf.mxu0
        %v2943 = vadd.f32 0.0, %v2942
        %v2944 = vpop.f32.mrf.mxu0
        %2945 = vmatprep.mubr.bf16.mxu0 0
        %2946 = vmatmul.mubr.bf16.gmra.mxu0 %v1593
        %v2947 = vpop.f32.mrf.mxu0
        %v2948 = vadd.f32 0.0, %v2947
        %v2949 = vpop.f32.mrf.mxu0
        %v2950 = vpop.f32.mrf.mxu0
        %v2951 = vadd.f32 0.0, %v2950
        %v2952 = vpop.f32.mrf.mxu0
        %2953 = vmatprep.mubr.bf16.mxu0 0
        %2954 = vmatmul.mubr.bf16.gmra.mxu0 %v1596
        %v2955 = vpop.f32.mrf.mxu0
        %v2956 = vadd.f32 0.0, %v2955
        %v2957 = vpop.f32.mrf.mxu0
        %v2958 = vpop.f32.mrf.mxu0
        %v2959 = vadd.f32 0.0, %v2958
        %v2960 = vpop.f32.mrf.mxu0
        %2961 = vmatprep.mubr.bf16.mxu0 0
        %2962 = vmatmul.mubr.bf16.gmra.mxu0 %v1599
        %v2963 = vpop.f32.mrf.mxu0
        %v2964 = vadd.f32 0.0, %v2963
        %v2965 = vpop.f32.mrf.mxu0
        %v2966 = vpop.f32.mrf.mxu0
        %v2967 = vadd.f32 0.0, %v2966
        %v2968 = vpop.f32.mrf.mxu0
        %2969 = vmatprep.mubr.bf16.mxu0 0
        %2970 = vmatmul.mubr.bf16.gmra.mxu0 %v1602
        %v2971 = vpop.f32.mrf.mxu0
        %v2972 = vadd.f32 0.0, %v2971
        %v2973 = vpop.f32.mrf.mxu0
        %v2974 = vpop.f32.mrf.mxu0
        %v2975 = vadd.f32 0.0, %v2974
        %v2976 = vpop.f32.mrf.mxu0
        %2977 = vmatprep.mubr.bf16.mxu0 0
        %2978 = vmatmul.mubr.bf16.gmra.mxu0 %v2823
        %v2979 = vpop.f32.mrf.mxu0
        %v2980 = vadd.f32 0.0, %v2979
        %v2981 = vpop.f32.mrf.mxu0
        %v2982 = vpop.f32.mrf.mxu0
        %v2983 = vadd.f32 0.0, %v2982
        %v2984 = vpop.f32.mrf.mxu0
        %2985 = vdwg.mxu0
        %v2986 = vadd.f32 %v2731, %v2860
        %v2987 = vadd.f32 %v2732, %v2863
        %v2988 = vadd.f32 %v2733, %v2868
        %v2989 = vadd.f32 %v2734, %v2871
        %v2990 = vadd.f32 %v2735, %v2876
        %v2991 = vadd.f32 %v2736, %v2879
        %v2992 = vadd.f32 %v2737, %v2884
        %v2993 = vadd.f32 %v2738, %v2887
        %v2994 = vadd.f32 %v2739, %v2892
        %v2995 = vadd.f32 %v2740, %v2895
        %v2996 = vadd.f32 %v2741, %v2900
        %v2997 = vadd.f32 %v2742, %v2903
        %v2998 = vadd.f32 %v2743, %v2908
        %v2999 = vadd.f32 %v2744, %v2911
        %v3000 = vadd.f32 %v2745, %v2916
        %v3001 = vadd.f32 %v2746, %v2919
        %v3002 = vadd.f32 %v2747, %v2924
        %v3003 = vadd.f32 %v2748, %v2927
        %v3004 = vadd.f32 %v2749, %v2932
        %v3005 = vadd.f32 %v2750, %v2935
        %v3006 = vadd.f32 %v2751, %v2940
        %v3007 = vadd.f32 %v2752, %v2943
        %v3008 = vadd.f32 %v2753, %v2948
        %v3009 = vadd.f32 %v2754, %v2951
        %v3010 = vadd.f32 %v2755, %v2956
        %v3011 = vadd.f32 %v2756, %v2959
        %v3012 = vadd.f32 %v2757, %v2964
        %v3013 = vadd.f32 %v2758, %v2967
        %v3014 = vadd.f32 %v2759, %v2972
        %v3015 = vadd.f32 %v2760, %v2975
        %v3016 = vadd.f32 %v2761, %v2980
        %v3017 = vadd.f32 %v2762, %v2983
        %v3019 = vrot.slane %v1074, 5
        %v3020 = vrot.slane %v3019, 4
        %v3021 = vrot.slane %v1075, 5
        %v3022 = vsel %vm2096, %v3020, %v3021
        %v3023 = vrot.slane %v3021, 4
        %v3024 = vrot.slane %v1076, 5
        %v3025 = vsel %vm2096, %v3023, %v3024
        %v3026 = vld [vmem:[%s1 + $0xa0] sm:$0xf]
        %v3027 = vld [vmem:[%s1 + $0xa4] sm:$0xf]
        %v3028 = vld [vmem:[%s1 + $0xa8] sm:$0xf]
        %v3029 = vld [vmem:[%s1 + $0xac] sm:$0xf]
        %v3030 = vld [vmem:[%s1 + $0xb0] sm:$0xf]
        %v3031 = vld [vmem:[%s1 + $0xb4] sm:$0xf]
        %v3032 = vld [vmem:[%s1 + $0xb8] sm:$0xf]
        %v3033 = vld [vmem:[%s1 + $0xbc] sm:$0xf]
        %v3034 = vunpack.c.l.b16 %v3022
        %v3035 = vunpack.c.l.b16 %v3025
        %v3036 = vpack.c.b16 %v3035, %v3034
        %v3045 = vunpack.c.l.b16 %v3026
        %v3046 = vunpack.c.l.b16 %v3027
        %v3047 = vunpack.c.l.b16 %v3028
        %v3048 = vunpack.c.l.b16 %v3029
        %v3049 = vunpack.c.l.b16 %v3030
        %v3050 = vunpack.c.l.b16 %v3031
        %v3051 = vunpack.c.l.b16 %v3032
        %v3052 = vunpack.c.l.b16 %v3033
        %v3053 = vpack.c.b16 %v3046, %v3045
        %v3054 = vpack.c.b16 %v3048, %v3047
        %v3055 = vpack.c.b16 %v3050, %v3049
        %v3056 = vpack.c.b16 %v3052, %v3051
        %v3062 = vsel %vm1555, %v3036, 0
        %3064 = vmatprep.subr.bf16.mxu0 0
        %3065 = vmatpush1.bf16.msra.mxu0 0
        %3066 = vmatprep.subr.bf16.mxu0 0
        %3067 = vmatpush1.bf16.msra.mxu0 0
        %3068 = vmatprep.subr.bf16.mxu0 0
        %3069 = vmatpush1.bf16.msra.mxu0 0
        %3070 = vmatprep.subr.bf16.mxu0 0
        %3071 = vmatpush1.bf16.msra.mxu0 0
        %3072 = vmatprep.subr.bf16.mxu0 0
        %3073 = vmatpush1.bf16.msra.mxu0 %v3056
        %3074 = vmatprep.subr.bf16.mxu0 0
        %3075 = vmatpush1.bf16.msra.mxu0 %v3055
        %3076 = vmatprep.subr.bf16.mxu0 0
        %3077 = vmatpush1.bf16.msra.mxu0 %v3054
        %3078 = vmatprep.subr.bf16.mxu0 0
        %3079 = vmatpush1.bf16.msra.mxu0 %v3053
        %3080 = vmatprep.subr.bf16.mxu0 0
        %3081 = vmatpush2.bf16.msra.mxu0 0
        %3082 = vmatprep.subr.bf16.mxu0 0
        %3083 = vmatpush2.bf16.msra.mxu0 0
        %3084 = vmatprep.subr.bf16.mxu0 0
        %3085 = vmatpush2.bf16.msra.mxu0 0
        %3086 = vmatprep.subr.bf16.mxu0 0
        %3087 = vmatpush2.bf16.msra.mxu0 0
        %3088 = vmatprep.subr.bf16.mxu0 0
        %3089 = vmatpush2.bf16.msra.mxu0 0
        %3090 = vmatprep.subr.bf16.mxu0 0
        %3091 = vmatpush2.bf16.msra.mxu0 0
        %3092 = vmatprep.subr.bf16.mxu0 0
        %3093 = vmatpush2.bf16.msra.mxu0 0
        %3094 = vmatprep.subr.bf16.mxu0 0
        %3095 = vmatpush2.bf16.msra.mxu0 0
        %3096 = vmatprep.mubr.bf16.mxu0 0
        %3097 = vmatmul.mubr.bf16.gmra.mxu0 %v2293
        %v3098 = vpop.f32.mrf.mxu0
        %v3099 = vadd.f32 0.0, %v3098
        %v3100 = vpop.f32.mrf.mxu0
        %v3101 = vpop.f32.mrf.mxu0
        %v3102 = vadd.f32 0.0, %v3101
        %v3103 = vpop.f32.mrf.mxu0
        %3104 = vmatprep.mubr.bf16.mxu0 0
        %3105 = vmatmul.mubr.bf16.gmra.mxu0 %v2296
        %v3106 = vpop.f32.mrf.mxu0
        %v3107 = vadd.f32 0.0, %v3106
        %v3108 = vpop.f32.mrf.mxu0
        %v3109 = vpop.f32.mrf.mxu0
        %v3110 = vadd.f32 0.0, %v3109
        %v3111 = vpop.f32.mrf.mxu0
        %3112 = vmatprep.mubr.bf16.mxu0 0
        %3113 = vmatmul.mubr.bf16.gmra.mxu0 %v2299
        %v3114 = vpop.f32.mrf.mxu0
        %v3115 = vadd.f32 0.0, %v3114
        %v3116 = vpop.f32.mrf.mxu0
        %v3117 = vpop.f32.mrf.mxu0
        %v3118 = vadd.f32 0.0, %v3117
        %v3119 = vpop.f32.mrf.mxu0
        %3120 = vmatprep.mubr.bf16.mxu0 0
        %3121 = vmatmul.mubr.bf16.gmra.mxu0 %v2302
        %v3122 = vpop.f32.mrf.mxu0
        %v3123 = vadd.f32 0.0, %v3122
        %v3124 = vpop.f32.mrf.mxu0
        %v3125 = vpop.f32.mrf.mxu0
        %v3126 = vadd.f32 0.0, %v3125
        %v3127 = vpop.f32.mrf.mxu0
        %3128 = vmatprep.mubr.bf16.mxu0 0
        %3129 = vmatmul.mubr.bf16.gmra.mxu0 %v2305
        %v3130 = vpop.f32.mrf.mxu0
        %v3131 = vadd.f32 0.0, %v3130
        %v3132 = vpop.f32.mrf.mxu0
        %v3133 = vpop.f32.mrf.mxu0
        %v3134 = vadd.f32 0.0, %v3133
        %v3135 = vpop.f32.mrf.mxu0
        %3136 = vmatprep.mubr.bf16.mxu0 0
        %3137 = vmatmul.mubr.bf16.gmra.mxu0 %v2308
        %v3138 = vpop.f32.mrf.mxu0
        %v3139 = vadd.f32 0.0, %v3138
        %v3140 = vpop.f32.mrf.mxu0
        %v3141 = vpop.f32.mrf.mxu0
        %v3142 = vadd.f32 0.0, %v3141
        %v3143 = vpop.f32.mrf.mxu0
        %3144 = vmatprep.mubr.bf16.mxu0 0
        %3145 = vmatmul.mubr.bf16.gmra.mxu0 %v2311
        %v3146 = vpop.f32.mrf.mxu0
        %v3147 = vadd.f32 0.0, %v3146
        %v3148 = vpop.f32.mrf.mxu0
        %v3149 = vpop.f32.mrf.mxu0
        %v3150 = vadd.f32 0.0, %v3149
        %v3151 = vpop.f32.mrf.mxu0
        %3152 = vmatprep.mubr.bf16.mxu0 0
        %3153 = vmatmul.mubr.bf16.gmra.mxu0 %v2314
        %v3154 = vpop.f32.mrf.mxu0
        %v3155 = vadd.f32 0.0, %v3154
        %v3156 = vpop.f32.mrf.mxu0
        %v3157 = vpop.f32.mrf.mxu0
        %v3158 = vadd.f32 0.0, %v3157
        %v3159 = vpop.f32.mrf.mxu0
        %3160 = vmatprep.mubr.bf16.mxu0 0
        %3161 = vmatmul.mubr.bf16.gmra.mxu0 %v2317
        %v3162 = vpop.f32.mrf.mxu0
        %v3163 = vadd.f32 0.0, %v3162
        %v3164 = vpop.f32.mrf.mxu0
        %v3165 = vpop.f32.mrf.mxu0
        %v3166 = vadd.f32 0.0, %v3165
        %v3167 = vpop.f32.mrf.mxu0
        %3168 = vmatprep.mubr.bf16.mxu0 0
        %3169 = vmatmul.mubr.bf16.gmra.mxu0 %v2320
        %v3170 = vpop.f32.mrf.mxu0
        %v3171 = vadd.f32 0.0, %v3170
        %v3172 = vpop.f32.mrf.mxu0
        %v3173 = vpop.f32.mrf.mxu0
        %v3174 = vadd.f32 0.0, %v3173
        %v3175 = vpop.f32.mrf.mxu0
        %3176 = vmatprep.mubr.bf16.mxu0 0
        %3177 = vmatmul.mubr.bf16.gmra.mxu0 %v2323
        %v3178 = vpop.f32.mrf.mxu0
        %v3179 = vadd.f32 0.0, %v3178
        %v3180 = vpop.f32.mrf.mxu0
        %v3181 = vpop.f32.mrf.mxu0
        %v3182 = vadd.f32 0.0, %v3181
        %v3183 = vpop.f32.mrf.mxu0
        %3184 = vmatprep.mubr.bf16.mxu0 0
        %3185 = vmatmul.mubr.bf16.gmra.mxu0 %v2326
        %v3186 = vpop.f32.mrf.mxu0
        %v3187 = vadd.f32 0.0, %v3186
        %v3188 = vpop.f32.mrf.mxu0
        %v3189 = vpop.f32.mrf.mxu0
        %v3190 = vadd.f32 0.0, %v3189
        %v3191 = vpop.f32.mrf.mxu0
        %3192 = vmatprep.mubr.bf16.mxu0 0
        %3193 = vmatmul.mubr.bf16.gmra.mxu0 %v2329
        %v3194 = vpop.f32.mrf.mxu0
        %v3195 = vadd.f32 0.0, %v3194
        %v3196 = vpop.f32.mrf.mxu0
        %v3197 = vpop.f32.mrf.mxu0
        %v3198 = vadd.f32 0.0, %v3197
        %v3199 = vpop.f32.mrf.mxu0
        %3200 = vmatprep.mubr.bf16.mxu0 0
        %3201 = vmatmul.mubr.bf16.gmra.mxu0 %v2332
        %v3202 = vpop.f32.mrf.mxu0
        %v3203 = vadd.f32 0.0, %v3202
        %v3204 = vpop.f32.mrf.mxu0
        %v3205 = vpop.f32.mrf.mxu0
        %v3206 = vadd.f32 0.0, %v3205
        %v3207 = vpop.f32.mrf.mxu0
        %3208 = vmatprep.mubr.bf16.mxu0 0
        %3209 = vmatmul.mubr.bf16.gmra.mxu0 %v2335
        %v3210 = vpop.f32.mrf.mxu0
        %v3211 = vadd.f32 0.0, %v3210
        %v3212 = vpop.f32.mrf.mxu0
        %v3213 = vpop.f32.mrf.mxu0
        %v3214 = vadd.f32 0.0, %v3213
        %v3215 = vpop.f32.mrf.mxu0
        %3216 = vmatprep.mubr.bf16.mxu0 0
        %3217 = vmatmul.mubr.bf16.gmra.mxu0 %v3062
        %v3218 = vpop.f32.mrf.mxu0
        %v3219 = vadd.f32 0.0, %v3218
        %v3220 = vpop.f32.mrf.mxu0
        %v3221 = vpop.f32.mrf.mxu0
        %v3222 = vadd.f32 0.0, %v3221
        %v3223 = vpop.f32.mrf.mxu0
        %3224 = vdwg.mxu0
        %v3225 = vadd.f32 %v2986, %v3099
        %v3226 = vadd.f32 %v2987, %v3102
        %v3227 = vadd.f32 %v2988, %v3107
        %v3228 = vadd.f32 %v2989, %v3110
        %v3229 = vadd.f32 %v2990, %v3115
        %v3230 = vadd.f32 %v2991, %v3118
        %v3231 = vadd.f32 %v2992, %v3123
        %v3232 = vadd.f32 %v2993, %v3126
        %v3233 = vadd.f32 %v2994, %v3131
        %v3234 = vadd.f32 %v2995, %v3134
        %v3235 = vadd.f32 %v2996, %v3139
        %v3236 = vadd.f32 %v2997, %v3142
        %v3237 = vadd.f32 %v2998, %v3147
        %v3238 = vadd.f32 %v2999, %v3150
        %v3239 = vadd.f32 %v3000, %v3155
        %v3240 = vadd.f32 %v3001, %v3158
        %v3241 = vadd.f32 %v3002, %v3163
        %v3242 = vadd.f32 %v3003, %v3166
        %v3243 = vadd.f32 %v3004, %v3171
        %v3244 = vadd.f32 %v3005, %v3174
        %v3245 = vadd.f32 %v3006, %v3179
        %v3246 = vadd.f32 %v3007, %v3182
        %v3247 = vadd.f32 %v3008, %v3187
        %v3248 = vadd.f32 %v3009, %v3190
        %v3249 = vadd.f32 %v3010, %v3195
        %v3250 = vadd.f32 %v3011, %v3198
        %v3251 = vadd.f32 %v3012, %v3203
        %v3252 = vadd.f32 %v3013, %v3206
        %v3253 = vadd.f32 %v3014, %v3211
        %v3254 = vadd.f32 %v3015, %v3214
        %v3255 = vadd.f32 %v3016, %v3219
        %v3256 = vadd.f32 %v3017, %v3222
        %v3257 = vld [vmem:[%s1 + $0xc0] sm:$0xf]
        %v3258 = vld [vmem:[%s1 + $0xc4] sm:$0xf]
        %v3259 = vld [vmem:[%s1 + $0xc8] sm:$0xf]
        %v3260 = vld [vmem:[%s1 + $0xcc] sm:$0xf]
        %v3261 = vld [vmem:[%s1 + $0xd0] sm:$0xf]
        %v3262 = vld [vmem:[%s1 + $0xd4] sm:$0xf]
        %v3263 = vld [vmem:[%s1 + $0xd8] sm:$0xf]
        %v3264 = vld [vmem:[%s1 + $0xdc] sm:$0xf]
        %v3267 = vunpack.c.l.b16 %v1077
        %v3268 = vunpack.c.l.b16 %v1078
        %v3269 = vpack.c.b16 %v3268, %v3267
        %v3278 = vunpack.c.l.b16 %v3257
        %v3279 = vunpack.c.l.b16 %v3258
        %v3280 = vunpack.c.l.b16 %v3259
        %v3281 = vunpack.c.l.b16 %v3260
        %v3282 = vunpack.c.l.b16 %v3261
        %v3283 = vunpack.c.l.b16 %v3262
        %v3284 = vunpack.c.l.b16 %v3263
        %v3285 = vunpack.c.l.b16 %v3264
        %v3286 = vpack.c.b16 %v3279, %v3278
        %v3287 = vpack.c.b16 %v3281, %v3280
        %v3288 = vpack.c.b16 %v3283, %v3282
        %v3289 = vpack.c.b16 %v3285, %v3284
        %v3295 = vsel %vm1555, %v3269, 0
        %3297 = vmatprep.subr.bf16.mxu0 0
        %3298 = vmatpush1.bf16.msra.mxu0 0
        %3299 = vmatprep.subr.bf16.mxu0 0
        %3300 = vmatpush1.bf16.msra.mxu0 0
        %3301 = vmatprep.subr.bf16.mxu0 0
        %3302 = vmatpush1.bf16.msra.mxu0 0
        %3303 = vmatprep.subr.bf16.mxu0 0
        %3304 = vmatpush1.bf16.msra.mxu0 0
        %3305 = vmatprep.subr.bf16.mxu0 0
        %3306 = vmatpush1.bf16.msra.mxu0 %v3289
        %3307 = vmatprep.subr.bf16.mxu0 0
        %3308 = vmatpush1.bf16.msra.mxu0 %v3288
        %3309 = vmatprep.subr.bf16.mxu0 0
        %3310 = vmatpush1.bf16.msra.mxu0 %v3287
        %3311 = vmatprep.subr.bf16.mxu0 0
        %3312 = vmatpush1.bf16.msra.mxu0 %v3286
        %3313 = vmatprep.subr.bf16.mxu0 0
        %3314 = vmatpush2.bf16.msra.mxu0 0
        %3315 = vmatprep.subr.bf16.mxu0 0
        %3316 = vmatpush2.bf16.msra.mxu0 0
        %3317 = vmatprep.subr.bf16.mxu0 0
        %3318 = vmatpush2.bf16.msra.mxu0 0
        %3319 = vmatprep.subr.bf16.mxu0 0
        %3320 = vmatpush2.bf16.msra.mxu0 0
        %3321 = vmatprep.subr.bf16.mxu0 0
        %3322 = vmatpush2.bf16.msra.mxu0 0
        %3323 = vmatprep.subr.bf16.mxu0 0
        %3324 = vmatpush2.bf16.msra.mxu0 0
        %3325 = vmatprep.subr.bf16.mxu0 0
        %3326 = vmatpush2.bf16.msra.mxu0 0
        %3327 = vmatprep.subr.bf16.mxu0 0
        %3328 = vmatpush2.bf16.msra.mxu0 0
        %3329 = vmatprep.mubr.bf16.mxu0 0
        %3330 = vmatmul.mubr.bf16.gmra.mxu0 %v1876
        %v3331 = vpop.f32.mrf.mxu0
        %v3332 = vadd.f32 0.0, %v3331
        %v3333 = vpop.f32.mrf.mxu0
        %v3334 = vpop.f32.mrf.mxu0
        %v3335 = vadd.f32 0.0, %v3334
        %v3336 = vpop.f32.mrf.mxu0
        %3337 = vmatprep.mubr.bf16.mxu0 0
        %3338 = vmatmul.mubr.bf16.gmra.mxu0 %v1879
        %v3339 = vpop.f32.mrf.mxu0
        %v3340 = vadd.f32 0.0, %v3339
        %v3341 = vpop.f32.mrf.mxu0
        %v3342 = vpop.f32.mrf.mxu0
        %v3343 = vadd.f32 0.0, %v3342
        %v3344 = vpop.f32.mrf.mxu0
        %3345 = vmatprep.mubr.bf16.mxu0 0
        %3346 = vmatmul.mubr.bf16.gmra.mxu0 %v1882
        %v3347 = vpop.f32.mrf.mxu0
        %v3348 = vadd.f32 0.0, %v3347
        %v3349 = vpop.f32.mrf.mxu0
        %v3350 = vpop.f32.mrf.mxu0
        %v3351 = vadd.f32 0.0, %v3350
        %v3352 = vpop.f32.mrf.mxu0
        %3353 = vmatprep.mubr.bf16.mxu0 0
        %3354 = vmatmul.mubr.bf16.gmra.mxu0 %v1885
        %v3355 = vpop.f32.mrf.mxu0
        %v3356 = vadd.f32 0.0, %v3355
        %v3357 = vpop.f32.mrf.mxu0
        %v3358 = vpop.f32.mrf.mxu0
        %v3359 = vadd.f32 0.0, %v3358
        %v3360 = vpop.f32.mrf.mxu0
        %3361 = vmatprep.mubr.bf16.mxu0 0
        %3362 = vmatmul.mubr.bf16.gmra.mxu0 %v1888
        %v3363 = vpop.f32.mrf.mxu0
        %v3364 = vadd.f32 0.0, %v3363
        %v3365 = vpop.f32.mrf.mxu0
        %v3366 = vpop.f32.mrf.mxu0
        %v3367 = vadd.f32 0.0, %v3366
        %v3368 = vpop.f32.mrf.mxu0
        %3369 = vmatprep.mubr.bf16.mxu0 0
        %3370 = vmatmul.mubr.bf16.gmra.mxu0 %v1891
        %v3371 = vpop.f32.mrf.mxu0
        %v3372 = vadd.f32 0.0, %v3371
        %v3373 = vpop.f32.mrf.mxu0
        %v3374 = vpop.f32.mrf.mxu0
        %v3375 = vadd.f32 0.0, %v3374
        %v3376 = vpop.f32.mrf.mxu0
        %3377 = vmatprep.mubr.bf16.mxu0 0
        %3378 = vmatmul.mubr.bf16.gmra.mxu0 %v1894
        %v3379 = vpop.f32.mrf.mxu0
        %v3380 = vadd.f32 0.0, %v3379
        %v3381 = vpop.f32.mrf.mxu0
        %v3382 = vpop.f32.mrf.mxu0
        %v3383 = vadd.f32 0.0, %v3382
        %v3384 = vpop.f32.mrf.mxu0
        %3385 = vmatprep.mubr.bf16.mxu0 0
        %3386 = vmatmul.mubr.bf16.gmra.mxu0 %v1897
        %v3387 = vpop.f32.mrf.mxu0
        %v3388 = vadd.f32 0.0, %v3387
        %v3389 = vpop.f32.mrf.mxu0
        %v3390 = vpop.f32.mrf.mxu0
        %v3391 = vadd.f32 0.0, %v3390
        %v3392 = vpop.f32.mrf.mxu0
        %3393 = vmatprep.mubr.bf16.mxu0 0
        %3394 = vmatmul.mubr.bf16.gmra.mxu0 %v1900
        %v3395 = vpop.f32.mrf.mxu0
        %v3396 = vadd.f32 0.0, %v3395
        %v3397 = vpop.f32.mrf.mxu0
        %v3398 = vpop.f32.mrf.mxu0
        %v3399 = vadd.f32 0.0, %v3398
        %v3400 = vpop.f32.mrf.mxu0
        %3401 = vmatprep.mubr.bf16.mxu0 0
        %3402 = vmatmul.mubr.bf16.gmra.mxu0 %v1903
        %v3403 = vpop.f32.mrf.mxu0
        %v3404 = vadd.f32 0.0, %v3403
        %v3405 = vpop.f32.mrf.mxu0
        %v3406 = vpop.f32.mrf.mxu0
        %v3407 = vadd.f32 0.0, %v3406
        %v3408 = vpop.f32.mrf.mxu0
        %3409 = vmatprep.mubr.bf16.mxu0 0
        %3410 = vmatmul.mubr.bf16.gmra.mxu0 %v1906
        %v3411 = vpop.f32.mrf.mxu0
        %v3412 = vadd.f32 0.0, %v3411
        %v3413 = vpop.f32.mrf.mxu0
        %v3414 = vpop.f32.mrf.mxu0
        %v3415 = vadd.f32 0.0, %v3414
        %v3416 = vpop.f32.mrf.mxu0
        %3417 = vmatprep.mubr.bf16.mxu0 0
        %3418 = vmatmul.mubr.bf16.gmra.mxu0 %v1909
        %v3419 = vpop.f32.mrf.mxu0
        %v3420 = vadd.f32 0.0, %v3419
        %v3421 = vpop.f32.mrf.mxu0
        %v3422 = vpop.f32.mrf.mxu0
        %v3423 = vadd.f32 0.0, %v3422
        %v3424 = vpop.f32.mrf.mxu0
        %3425 = vmatprep.mubr.bf16.mxu0 0
        %3426 = vmatmul.mubr.bf16.gmra.mxu0 %v1912
        %v3427 = vpop.f32.mrf.mxu0
        %v3428 = vadd.f32 0.0, %v3427
        %v3429 = vpop.f32.mrf.mxu0
        %v3430 = vpop.f32.mrf.mxu0
        %v3431 = vadd.f32 0.0, %v3430
        %v3432 = vpop.f32.mrf.mxu0
        %3433 = vmatprep.mubr.bf16.mxu0 0
        %3434 = vmatmul.mubr.bf16.gmra.mxu0 %v1915
        %v3435 = vpop.f32.mrf.mxu0
        %v3436 = vadd.f32 0.0, %v3435
        %v3437 = vpop.f32.mrf.mxu0
        %v3438 = vpop.f32.mrf.mxu0
        %v3439 = vadd.f32 0.0, %v3438
        %v3440 = vpop.f32.mrf.mxu0
        %3441 = vmatprep.mubr.bf16.mxu0 0
        %3442 = vmatmul.mubr.bf16.gmra.mxu0 %v2568
        %v3443 = vpop.f32.mrf.mxu0
        %v3444 = vadd.f32 0.0, %v3443
        %v3445 = vpop.f32.mrf.mxu0
        %v3446 = vpop.f32.mrf.mxu0
        %v3447 = vadd.f32 0.0, %v3446
        %v3448 = vpop.f32.mrf.mxu0
        %3449 = vmatprep.mubr.bf16.mxu0 0
        %3450 = vmatmul.mubr.bf16.gmra.mxu0 %v3295
        %v3451 = vpop.f32.mrf.mxu0
        %v3452 = vadd.f32 0.0, %v3451
        %v3453 = vpop.f32.mrf.mxu0
        %v3454 = vpop.f32.mrf.mxu0
        %v3455 = vadd.f32 0.0, %v3454
        %v3456 = vpop.f32.mrf.mxu0
        %3457 = vdwg.mxu0
        %v3458 = vadd.f32 %v3225, %v3332
        %v3459 = vadd.f32 %v3226, %v3335
        %v3460 = vadd.f32 %v3227, %v3340
        %v3461 = vadd.f32 %v3228, %v3343
        %v3462 = vadd.f32 %v3229, %v3348
        %v3463 = vadd.f32 %v3230, %v3351
        %v3464 = vadd.f32 %v3231, %v3356
        %v3465 = vadd.f32 %v3232, %v3359
        %v3466 = vadd.f32 %v3233, %v3364
        %v3467 = vadd.f32 %v3234, %v3367
        %v3468 = vadd.f32 %v3235, %v3372
        %v3469 = vadd.f32 %v3236, %v3375
        %v3470 = vadd.f32 %v3237, %v3380
        %v3471 = vadd.f32 %v3238, %v3383
        %v3472 = vadd.f32 %v3239, %v3388
        %v3473 = vadd.f32 %v3240, %v3391
        %v3474 = vadd.f32 %v3241, %v3396
        %v3475 = vadd.f32 %v3242, %v3399
        %v3476 = vadd.f32 %v3243, %v3404
        %v3477 = vadd.f32 %v3244, %v3407
        %v3478 = vadd.f32 %v3245, %v3412
        %v3479 = vadd.f32 %v3246, %v3415
        %v3480 = vadd.f32 %v3247, %v3420
        %v3481 = vadd.f32 %v3248, %v3423
        %v3482 = vadd.f32 %v3249, %v3428
        %v3483 = vadd.f32 %v3250, %v3431
        %v3484 = vadd.f32 %v3251, %v3436
        %v3485 = vadd.f32 %v3252, %v3439
        %v3486 = vadd.f32 %v3253, %v3444
        %v3487 = vadd.f32 %v3254, %v3447
        %v3488 = vadd.f32 %v3255, %v3452
        %v3489 = vadd.f32 %v3256, %v3455
        %v3491 = vshrl.u32 %v1077, 16
        %v3493 = vrot.slane %v3491, 4
        %v3494 = vshll.u32 %v1077, 16
        %v3496 = vrot.slane %v3494, 5
        %v3497 = vor.u32 %v3493, %v3496
        %v3498 = vrot.slane %v3497, 4
        %v3500 = vshll.u32 %v1078, 16
        %v3502 = vrot.slane %v3500, 5
        %v3503 = vsel %vm1090, %v3498, %v3502
        %v3504 = vshrl.u32 %v1078, 16
        %v3506 = vrot.slane %v3504, 4
        %v3507 = vor.u32 %v3506, %v3502
        %v3508 = vrot.slane %v3507, 4
        %v3510 = vshll.u32 %v1079, 16
        %v3512 = vrot.slane %v3510, 5
        %v3513 = vsel %vm1090, %v3508, %v3512
        %v3514 = vld [vmem:[%s1 + $0xe0] sm:$0xf]
        %v3515 = vld [vmem:[%s1 + $0xe4] sm:$0xf]
        %v3516 = vld [vmem:[%s1 + $0xe8] sm:$0xf]
        %v3517 = vld [vmem:[%s1 + $0xec] sm:$0xf]
        %v3518 = vld [vmem:[%s1 + $0xf0] sm:$0xf]
        %v3519 = vld [vmem:[%s1 + $0xf4] sm:$0xf]
        %v3520 = vld [vmem:[%s1 + $0xf8] sm:$0xf]
        %v3521 = vld [vmem:[%s1 + $0xfc] sm:$0xf]
        %v3522 = vunpack.c.l.b16 %v3503
        %v3523 = vunpack.c.l.b16 %v3513
        %v3524 = vpack.c.b16 %v3523, %v3522
        %v3533 = vunpack.c.l.b16 %v3514
        %v3534 = vunpack.c.l.b16 %v3515
        %v3535 = vunpack.c.l.b16 %v3516
        %v3536 = vunpack.c.l.b16 %v3517
        %v3537 = vunpack.c.l.b16 %v3518
        %v3538 = vunpack.c.l.b16 %v3519
        %v3539 = vunpack.c.l.b16 %v3520
        %v3540 = vunpack.c.l.b16 %v3521
        %v3541 = vpack.c.b16 %v3534, %v3533
        %v3542 = vpack.c.b16 %v3536, %v3535
        %v3543 = vpack.c.b16 %v3538, %v3537
        %v3544 = vpack.c.b16 %v3540, %v3539
        %v3550 = vsel %vm1555, %v3524, 0
        %3552 = vmatprep.subr.bf16.mxu0 0
        %3553 = vmatpush1.bf16.msra.mxu0 0
        %3554 = vmatprep.subr.bf16.mxu0 0
        %3555 = vmatpush1.bf16.msra.mxu0 0
        %3556 = vmatprep.subr.bf16.mxu0 0
        %3557 = vmatpush1.bf16.msra.mxu0 0
        %3558 = vmatprep.subr.bf16.mxu0 0
        %3559 = vmatpush1.bf16.msra.mxu0 0
        %3560 = vmatprep.subr.bf16.mxu0 0
        %3561 = vmatpush1.bf16.msra.mxu0 %v3544
        %3562 = vmatprep.subr.bf16.mxu0 0
        %3563 = vmatpush1.bf16.msra.mxu0 %v3543
        %3564 = vmatprep.subr.bf16.mxu0 0
        %3565 = vmatpush1.bf16.msra.mxu0 %v3542
        %3566 = vmatprep.subr.bf16.mxu0 0
        %3567 = vmatpush1.bf16.msra.mxu0 %v3541
        %3568 = vmatprep.subr.bf16.mxu0 0
        %3569 = vmatpush2.bf16.msra.mxu0 0
        %3570 = vmatprep.subr.bf16.mxu0 0
        %3571 = vmatpush2.bf16.msra.mxu0 0
        %3572 = vmatprep.subr.bf16.mxu0 0
        %3573 = vmatpush2.bf16.msra.mxu0 0
        %3574 = vmatprep.subr.bf16.mxu0 0
        %3575 = vmatpush2.bf16.msra.mxu0 0
        %3576 = vmatprep.subr.bf16.mxu0 0
        %3577 = vmatpush2.bf16.msra.mxu0 0
        %3578 = vmatprep.subr.bf16.mxu0 0
        %3579 = vmatpush2.bf16.msra.mxu0 0
        %3580 = vmatprep.subr.bf16.mxu0 0
        %3581 = vmatpush2.bf16.msra.mxu0 0
        %3582 = vmatprep.subr.bf16.mxu0 0
        %3583 = vmatpush2.bf16.msra.mxu0 0
        %3584 = vmatprep.mubr.bf16.mxu0 0
        %3585 = vmatmul.mubr.bf16.gmra.mxu0 %v1563
        %v3586 = vpop.f32.mrf.mxu0
        %v3587 = vadd.f32 0.0, %v3586
        %v3588 = vpop.f32.mrf.mxu0
        %v3589 = vpop.f32.mrf.mxu0
        %v3590 = vadd.f32 0.0, %v3589
        %v3591 = vpop.f32.mrf.mxu0
        %3592 = vmatprep.mubr.bf16.mxu0 0
        %3593 = vmatmul.mubr.bf16.gmra.mxu0 %v1566
        %v3594 = vpop.f32.mrf.mxu0
        %v3595 = vadd.f32 0.0, %v3594
        %v3596 = vpop.f32.mrf.mxu0
        %v3597 = vpop.f32.mrf.mxu0
        %v3598 = vadd.f32 0.0, %v3597
        %v3599 = vpop.f32.mrf.mxu0
        %3600 = vmatprep.mubr.bf16.mxu0 0
        %3601 = vmatmul.mubr.bf16.gmra.mxu0 %v1569
        %v3602 = vpop.f32.mrf.mxu0
        %v3603 = vadd.f32 0.0, %v3602
        %v3604 = vpop.f32.mrf.mxu0
        %v3605 = vpop.f32.mrf.mxu0
        %v3606 = vadd.f32 0.0, %v3605
        %v3607 = vpop.f32.mrf.mxu0
        %3608 = vmatprep.mubr.bf16.mxu0 0
        %3609 = vmatmul.mubr.bf16.gmra.mxu0 %v1572
        %v3610 = vpop.f32.mrf.mxu0
        %v3611 = vadd.f32 0.0, %v3610
        %v3612 = vpop.f32.mrf.mxu0
        %v3613 = vpop.f32.mrf.mxu0
        %v3614 = vadd.f32 0.0, %v3613
        %v3615 = vpop.f32.mrf.mxu0
        %3616 = vmatprep.mubr.bf16.mxu0 0
        %3617 = vmatmul.mubr.bf16.gmra.mxu0 %v1575
        %v3618 = vpop.f32.mrf.mxu0
        %v3619 = vadd.f32 0.0, %v3618
        %v3620 = vpop.f32.mrf.mxu0
        %v3621 = vpop.f32.mrf.mxu0
        %v3622 = vadd.f32 0.0, %v3621
        %v3623 = vpop.f32.mrf.mxu0
        %3624 = vmatprep.mubr.bf16.mxu0 0
        %3625 = vmatmul.mubr.bf16.gmra.mxu0 %v1578
        %v3626 = vpop.f32.mrf.mxu0
        %v3627 = vadd.f32 0.0, %v3626
        %v3628 = vpop.f32.mrf.mxu0
        %v3629 = vpop.f32.mrf.mxu0
        %v3630 = vadd.f32 0.0, %v3629
        %v3631 = vpop.f32.mrf.mxu0
        %3632 = vmatprep.mubr.bf16.mxu0 0
        %3633 = vmatmul.mubr.bf16.gmra.mxu0 %v1581
        %v3634 = vpop.f32.mrf.mxu0
        %v3635 = vadd.f32 0.0, %v3634
        %v3636 = vpop.f32.mrf.mxu0
        %v3637 = vpop.f32.mrf.mxu0
        %v3638 = vadd.f32 0.0, %v3637
        %v3639 = vpop.f32.mrf.mxu0
        %3640 = vmatprep.mubr.bf16.mxu0 0
        %3641 = vmatmul.mubr.bf16.gmra.mxu0 %v1584
        %v3642 = vpop.f32.mrf.mxu0
        %v3643 = vadd.f32 0.0, %v3642
        %v3644 = vpop.f32.mrf.mxu0
        %v3645 = vpop.f32.mrf.mxu0
        %v3646 = vadd.f32 0.0, %v3645
        %v3647 = vpop.f32.mrf.mxu0
        %3648 = vmatprep.mubr.bf16.mxu0 0
        %3649 = vmatmul.mubr.bf16.gmra.mxu0 %v1587
        %v3650 = vpop.f32.mrf.mxu0
        %v3651 = vadd.f32 0.0, %v3650
        %v3652 = vpop.f32.mrf.mxu0
        %v3653 = vpop.f32.mrf.mxu0
        %v3654 = vadd.f32 0.0, %v3653
        %v3655 = vpop.f32.mrf.mxu0
        %3656 = vmatprep.mubr.bf16.mxu0 0
        %3657 = vmatmul.mubr.bf16.gmra.mxu0 %v1590
        %v3658 = vpop.f32.mrf.mxu0
        %v3659 = vadd.f32 0.0, %v3658
        %v3660 = vpop.f32.mrf.mxu0
        %v3661 = vpop.f32.mrf.mxu0
        %v3662 = vadd.f32 0.0, %v3661
        %v3663 = vpop.f32.mrf.mxu0
        %3664 = vmatprep.mubr.bf16.mxu0 0
        %3665 = vmatmul.mubr.bf16.gmra.mxu0 %v1593
        %v3666 = vpop.f32.mrf.mxu0
        %v3667 = vadd.f32 0.0, %v3666
        %v3668 = vpop.f32.mrf.mxu0
        %v3669 = vpop.f32.mrf.mxu0
        %v3670 = vadd.f32 0.0, %v3669
        %v3671 = vpop.f32.mrf.mxu0
        %3672 = vmatprep.mubr.bf16.mxu0 0
        %3673 = vmatmul.mubr.bf16.gmra.mxu0 %v1596
        %v3674 = vpop.f32.mrf.mxu0
        %v3675 = vadd.f32 0.0, %v3674
        %v3676 = vpop.f32.mrf.mxu0
        %v3677 = vpop.f32.mrf.mxu0
        %v3678 = vadd.f32 0.0, %v3677
        %v3679 = vpop.f32.mrf.mxu0
        %3680 = vmatprep.mubr.bf16.mxu0 0
        %3681 = vmatmul.mubr.bf16.gmra.mxu0 %v1599
        %v3682 = vpop.f32.mrf.mxu0
        %v3683 = vadd.f32 0.0, %v3682
        %v3684 = vpop.f32.mrf.mxu0
        %v3685 = vpop.f32.mrf.mxu0
        %v3686 = vadd.f32 0.0, %v3685
        %v3687 = vpop.f32.mrf.mxu0
        %3688 = vmatprep.mubr.bf16.mxu0 0
        %3689 = vmatmul.mubr.bf16.gmra.mxu0 %v1602
        %v3690 = vpop.f32.mrf.mxu0
        %v3691 = vadd.f32 0.0, %v3690
        %v3692 = vpop.f32.mrf.mxu0
        %v3693 = vpop.f32.mrf.mxu0
        %v3694 = vadd.f32 0.0, %v3693
        %v3695 = vpop.f32.mrf.mxu0
        %3696 = vmatprep.mubr.bf16.mxu0 0
        %3697 = vmatmul.mubr.bf16.gmra.mxu0 %v2823
        %v3698 = vpop.f32.mrf.mxu0
        %v3699 = vadd.f32 0.0, %v3698
        %v3700 = vpop.f32.mrf.mxu0
        %v3701 = vpop.f32.mrf.mxu0
        %v3702 = vadd.f32 0.0, %v3701
        %v3703 = vpop.f32.mrf.mxu0
        %3704 = vmatprep.mubr.bf16.mxu0 0
        %3705 = vmatmul.mubr.bf16.gmra.mxu0 %v3550
        %v3706 = vpop.f32.mrf.mxu0
        %v3707 = vadd.f32 0.0, %v3706
        %v3708 = vpop.f32.mrf.mxu0
        %v3709 = vpop.f32.mrf.mxu0
        %v3710 = vadd.f32 0.0, %v3709
        %v3711 = vpop.f32.mrf.mxu0
        %3712 = vdwg.mxu0
        %v3713 = vadd.f32 %v3458, %v3587
        %v3714 = vadd.f32 %v3459, %v3590
        %v3715 = vadd.f32 %v3460, %v3595
        %v3716 = vadd.f32 %v3461, %v3598
        %v3717 = vadd.f32 %v3462, %v3603
        %v3718 = vadd.f32 %v3463, %v3606
        %v3719 = vadd.f32 %v3464, %v3611
        %v3720 = vadd.f32 %v3465, %v3614
        %v3721 = vadd.f32 %v3466, %v3619
        %v3722 = vadd.f32 %v3467, %v3622
        %v3723 = vadd.f32 %v3468, %v3627
        %v3724 = vadd.f32 %v3469, %v3630
        %v3725 = vadd.f32 %v3470, %v3635
        %v3726 = vadd.f32 %v3471, %v3638
        %v3727 = vadd.f32 %v3472, %v3643
        %v3728 = vadd.f32 %v3473, %v3646
        %v3729 = vadd.f32 %v3474, %v3651
        %v3730 = vadd.f32 %v3475, %v3654
        %v3731 = vadd.f32 %v3476, %v3659
        %v3732 = vadd.f32 %v3477, %v3662
        %v3733 = vadd.f32 %v3478, %v3667
        %v3734 = vadd.f32 %v3479, %v3670
        %v3735 = vadd.f32 %v3480, %v3675
        %v3736 = vadd.f32 %v3481, %v3678
        %v3737 = vadd.f32 %v3482, %v3683
        %v3738 = vadd.f32 %v3483, %v3686
        %v3739 = vadd.f32 %v3484, %v3691
        %v3740 = vadd.f32 %v3485, %v3694
        %v3741 = vadd.f32 %v3486, %v3699
        %v3742 = vadd.f32 %v3487, %v3702
        %v3743 = vadd.f32 %v3488, %v3707
        %v3744 = vadd.f32 %v3489, %v3710
        %v3746 = vrot.slane %v1077, 5
        %v3747 = vrot.slane %v3746, 4
        %v3748 = vrot.slane %v1078, 5
        %v3749 = vsel %vm2096, %v3747, %v3748
        %v3750 = vrot.slane %v3748, 4
        %v3751 = vrot.slane %v1079, 5
        %v3752 = vsel %vm2096, %v3750, %v3751
        %v3753 = vld [vmem:[%s1 + $0x100] sm:$0xf]
        %v3754 = vld [vmem:[%s1 + $0x104] sm:$0xf]
        %v3755 = vld [vmem:[%s1 + $0x108] sm:$0xf]
        %v3756 = vld [vmem:[%s1 + $0x10c] sm:$0xf]
        %v3757 = vld [vmem:[%s1 + $0x110] sm:$0xf]
        %v3758 = vld [vmem:[%s1 + $0x114] sm:$0xf]
        %v3759 = vld [vmem:[%s1 + $0x118] sm:$0xf]
        %v3760 = vld [vmem:[%s1 + $0x11c] sm:$0xf]
        %v3761 = vunpack.c.l.b16 %v3749
        %v3762 = vunpack.c.l.b16 %v3752
        %v3763 = vpack.c.b16 %v3762, %v3761
        %v3772 = vunpack.c.l.b16 %v3753
        %v3773 = vunpack.c.l.b16 %v3754
        %v3774 = vunpack.c.l.b16 %v3755
        %v3775 = vunpack.c.l.b16 %v3756
        %v3776 = vunpack.c.l.b16 %v3757
        %v3777 = vunpack.c.l.b16 %v3758
        %v3778 = vunpack.c.l.b16 %v3759
        %v3779 = vunpack.c.l.b16 %v3760
        %v3780 = vpack.c.b16 %v3773, %v3772
        %v3781 = vpack.c.b16 %v3775, %v3774
        %v3782 = vpack.c.b16 %v3777, %v3776
        %v3783 = vpack.c.b16 %v3779, %v3778
        %v3789 = vsel %vm1555, %v3763, 0
        %3791 = vmatprep.subr.bf16.mxu0 0
        %3792 = vmatpush1.bf16.msra.mxu0 0
        %3793 = vmatprep.subr.bf16.mxu0 0
        %3794 = vmatpush1.bf16.msra.mxu0 0
        %3795 = vmatprep.subr.bf16.mxu0 0
        %3796 = vmatpush1.bf16.msra.mxu0 0
        %3797 = vmatprep.subr.bf16.mxu0 0
        %3798 = vmatpush1.bf16.msra.mxu0 0
        %3799 = vmatprep.subr.bf16.mxu0 0
        %3800 = vmatpush1.bf16.msra.mxu0 %v3783
        %3801 = vmatprep.subr.bf16.mxu0 0
        %3802 = vmatpush1.bf16.msra.mxu0 %v3782
        %3803 = vmatprep.subr.bf16.mxu0 0
        %3804 = vmatpush1.bf16.msra.mxu0 %v3781
        %3805 = vmatprep.subr.bf16.mxu0 0
        %3806 = vmatpush1.bf16.msra.mxu0 %v3780
        %3807 = vmatprep.subr.bf16.mxu0 0
        %3808 = vmatpush2.bf16.msra.mxu0 0
        %3809 = vmatprep.subr.bf16.mxu0 0
        %3810 = vmatpush2.bf16.msra.mxu0 0
        %3811 = vmatprep.subr.bf16.mxu0 0
        %3812 = vmatpush2.bf16.msra.mxu0 0
        %3813 = vmatprep.subr.bf16.mxu0 0
        %3814 = vmatpush2.bf16.msra.mxu0 0
        %3815 = vmatprep.subr.bf16.mxu0 0
        %3816 = vmatpush2.bf16.msra.mxu0 0
        %3817 = vmatprep.subr.bf16.mxu0 0
        %3818 = vmatpush2.bf16.msra.mxu0 0
        %3819 = vmatprep.subr.bf16.mxu0 0
        %3820 = vmatpush2.bf16.msra.mxu0 0
        %3821 = vmatprep.subr.bf16.mxu0 0
        %3822 = vmatpush2.bf16.msra.mxu0 0
        %3823 = vmatprep.mubr.bf16.mxu0 0
        %3824 = vmatmul.mubr.bf16.gmra.mxu0 %v2296
        %v3825 = vpop.f32.mrf.mxu0
        %v3826 = vadd.f32 0.0, %v3825
        %v3827 = vpop.f32.mrf.mxu0
        %v3828 = vpop.f32.mrf.mxu0
        %v3829 = vadd.f32 0.0, %v3828
        %v3830 = vpop.f32.mrf.mxu0
        %3831 = vmatprep.mubr.bf16.mxu0 0
        %3832 = vmatmul.mubr.bf16.gmra.mxu0 %v2299
        %v3833 = vpop.f32.mrf.mxu0
        %v3834 = vadd.f32 0.0, %v3833
        %v3835 = vpop.f32.mrf.mxu0
        %v3836 = vpop.f32.mrf.mxu0
        %v3837 = vadd.f32 0.0, %v3836
        %v3838 = vpop.f32.mrf.mxu0
        %3839 = vmatprep.mubr.bf16.mxu0 0
        %3840 = vmatmul.mubr.bf16.gmra.mxu0 %v2302
        %v3841 = vpop.f32.mrf.mxu0
        %v3842 = vadd.f32 0.0, %v3841
        %v3843 = vpop.f32.mrf.mxu0
        %v3844 = vpop.f32.mrf.mxu0
        %v3845 = vadd.f32 0.0, %v3844
        %v3846 = vpop.f32.mrf.mxu0
        %3847 = vmatprep.mubr.bf16.mxu0 0
        %3848 = vmatmul.mubr.bf16.gmra.mxu0 %v2305
        %v3849 = vpop.f32.mrf.mxu0
        %v3850 = vadd.f32 0.0, %v3849
        %v3851 = vpop.f32.mrf.mxu0
        %v3852 = vpop.f32.mrf.mxu0
        %v3853 = vadd.f32 0.0, %v3852
        %v3854 = vpop.f32.mrf.mxu0
        %3855 = vmatprep.mubr.bf16.mxu0 0
        %3856 = vmatmul.mubr.bf16.gmra.mxu0 %v2308
        %v3857 = vpop.f32.mrf.mxu0
        %v3858 = vadd.f32 0.0, %v3857
        %v3859 = vpop.f32.mrf.mxu0
        %v3860 = vpop.f32.mrf.mxu0
        %v3861 = vadd.f32 0.0, %v3860
        %v3862 = vpop.f32.mrf.mxu0
        %3863 = vmatprep.mubr.bf16.mxu0 0
        %3864 = vmatmul.mubr.bf16.gmra.mxu0 %v2311
        %v3865 = vpop.f32.mrf.mxu0
        %v3866 = vadd.f32 0.0, %v3865
        %v3867 = vpop.f32.mrf.mxu0
        %v3868 = vpop.f32.mrf.mxu0
        %v3869 = vadd.f32 0.0, %v3868
        %v3870 = vpop.f32.mrf.mxu0
        %3871 = vmatprep.mubr.bf16.mxu0 0
        %3872 = vmatmul.mubr.bf16.gmra.mxu0 %v2314
        %v3873 = vpop.f32.mrf.mxu0
        %v3874 = vadd.f32 0.0, %v3873
        %v3875 = vpop.f32.mrf.mxu0
        %v3876 = vpop.f32.mrf.mxu0
        %v3877 = vadd.f32 0.0, %v3876
        %v3878 = vpop.f32.mrf.mxu0
        %3879 = vmatprep.mubr.bf16.mxu0 0
        %3880 = vmatmul.mubr.bf16.gmra.mxu0 %v2317
        %v3881 = vpop.f32.mrf.mxu0
        %v3882 = vadd.f32 0.0, %v3881
        %v3883 = vpop.f32.mrf.mxu0
        %v3884 = vpop.f32.mrf.mxu0
        %v3885 = vadd.f32 0.0, %v3884
        %v3886 = vpop.f32.mrf.mxu0
        %3887 = vmatprep.mubr.bf16.mxu0 0
        %3888 = vmatmul.mubr.bf16.gmra.mxu0 %v2320
        %v3889 = vpop.f32.mrf.mxu0
        %v3890 = vadd.f32 0.0, %v3889
        %v3891 = vpop.f32.mrf.mxu0
        %v3892 = vpop.f32.mrf.mxu0
        %v3893 = vadd.f32 0.0, %v3892
        %v3894 = vpop.f32.mrf.mxu0
        %3895 = vmatprep.mubr.bf16.mxu0 0
        %3896 = vmatmul.mubr.bf16.gmra.mxu0 %v2323
        %v3897 = vpop.f32.mrf.mxu0
        %v3898 = vadd.f32 0.0, %v3897
        %v3899 = vpop.f32.mrf.mxu0
        %v3900 = vpop.f32.mrf.mxu0
        %v3901 = vadd.f32 0.0, %v3900
        %v3902 = vpop.f32.mrf.mxu0
        %3903 = vmatprep.mubr.bf16.mxu0 0
        %3904 = vmatmul.mubr.bf16.gmra.mxu0 %v2326
        %v3905 = vpop.f32.mrf.mxu0
        %v3906 = vadd.f32 0.0, %v3905
        %v3907 = vpop.f32.mrf.mxu0
        %v3908 = vpop.f32.mrf.mxu0
        %v3909 = vadd.f32 0.0, %v3908
        %v3910 = vpop.f32.mrf.mxu0
        %3911 = vmatprep.mubr.bf16.mxu0 0
        %3912 = vmatmul.mubr.bf16.gmra.mxu0 %v2329
        %v3913 = vpop.f32.mrf.mxu0
        %v3914 = vadd.f32 0.0, %v3913
        %v3915 = vpop.f32.mrf.mxu0
        %v3916 = vpop.f32.mrf.mxu0
        %v3917 = vadd.f32 0.0, %v3916
        %v3918 = vpop.f32.mrf.mxu0
        %3919 = vmatprep.mubr.bf16.mxu0 0
        %3920 = vmatmul.mubr.bf16.gmra.mxu0 %v2332
        %v3921 = vpop.f32.mrf.mxu0
        %v3922 = vadd.f32 0.0, %v3921
        %v3923 = vpop.f32.mrf.mxu0
        %v3924 = vpop.f32.mrf.mxu0
        %v3925 = vadd.f32 0.0, %v3924
        %v3926 = vpop.f32.mrf.mxu0
        %3927 = vmatprep.mubr.bf16.mxu0 0
        %3928 = vmatmul.mubr.bf16.gmra.mxu0 %v2335
        %v3929 = vpop.f32.mrf.mxu0
        %v3930 = vadd.f32 0.0, %v3929
        %v3931 = vpop.f32.mrf.mxu0
        %v3932 = vpop.f32.mrf.mxu0
        %v3933 = vadd.f32 0.0, %v3932
        %v3934 = vpop.f32.mrf.mxu0
        %3935 = vmatprep.mubr.bf16.mxu0 0
        %3936 = vmatmul.mubr.bf16.gmra.mxu0 %v3062
        %v3937 = vpop.f32.mrf.mxu0
        %v3938 = vadd.f32 0.0, %v3937
        %v3939 = vpop.f32.mrf.mxu0
        %v3940 = vpop.f32.mrf.mxu0
        %v3941 = vadd.f32 0.0, %v3940
        %v3942 = vpop.f32.mrf.mxu0
        %3943 = vmatprep.mubr.bf16.mxu0 0
        %3944 = vmatmul.mubr.bf16.gmra.mxu0 %v3789
        %v3945 = vpop.f32.mrf.mxu0
        %v3946 = vadd.f32 0.0, %v3945
        %v3947 = vpop.f32.mrf.mxu0
        %v3948 = vpop.f32.mrf.mxu0
        %v3949 = vadd.f32 0.0, %v3948
        %v3950 = vpop.f32.mrf.mxu0
        %3951 = vdwg.mxu0
        %v3952 = vadd.f32 %v3713, %v3826
        %v3953 = vadd.f32 %v3714, %v3829
        %v3954 = vadd.f32 %v3715, %v3834
        %v3955 = vadd.f32 %v3716, %v3837
        %v3956 = vadd.f32 %v3717, %v3842
        %v3957 = vadd.f32 %v3718, %v3845
        %v3958 = vadd.f32 %v3719, %v3850
        %v3959 = vadd.f32 %v3720, %v3853
        %v3960 = vadd.f32 %v3721, %v3858
        %v3961 = vadd.f32 %v3722, %v3861
        %v3962 = vadd.f32 %v3723, %v3866
        %v3963 = vadd.f32 %v3724, %v3869
        %v3964 = vadd.f32 %v3725, %v3874
        %v3965 = vadd.f32 %v3726, %v3877
        %v3966 = vadd.f32 %v3727, %v3882
        %v3967 = vadd.f32 %v3728, %v3885
        %v3968 = vadd.f32 %v3729, %v3890
        %v3969 = vadd.f32 %v3730, %v3893
        %v3970 = vadd.f32 %v3731, %v3898
        %v3971 = vadd.f32 %v3732, %v3901
        %v3972 = vadd.f32 %v3733, %v3906
        %v3973 = vadd.f32 %v3734, %v3909
        %v3974 = vadd.f32 %v3735, %v3914
        %v3975 = vadd.f32 %v3736, %v3917
        %v3976 = vadd.f32 %v3737, %v3922
        %v3977 = vadd.f32 %v3738, %v3925
        %v3978 = vadd.f32 %v3739, %v3930
        %v3979 = vadd.f32 %v3740, %v3933
        %v3980 = vadd.f32 %v3741, %v3938
        %v3981 = vadd.f32 %v3742, %v3941
        %v3982 = vadd.f32 %v3743, %v3946
        %v3983 = vadd.f32 %v3744, %v3949
        %v3984 = vld [vmem:[%s2] sm:$0x1]
        %v3986 = vlaneseq
        %v3987 = vshrl.u32 %v3986, 7
        %v3988 = vsub.s32 0, %v3987
        %v3989 = vrot.slane %v3984, %v3988
        %v3991 = vadd.f32 %v3952, %v3989
        %v3992 = vadd.f32 %v3953, %v3989
        %v3993 = vadd.f32 %v3954, %v3989
        %v3994 = vadd.f32 %v3955, %v3989
        %v3995 = vadd.f32 %v3956, %v3989
        %v3996 = vadd.f32 %v3957, %v3989
        %v3997 = vadd.f32 %v3958, %v3989
        %v3998 = vadd.f32 %v3959, %v3989
        %v3999 = vadd.f32 %v3960, %v3989
        %v4000 = vadd.f32 %v3961, %v3989
        %v4001 = vadd.f32 %v3962, %v3989
        %v4002 = vadd.f32 %v3963, %v3989
        %v4003 = vadd.f32 %v3964, %v3989
        %v4004 = vadd.f32 %v3965, %v3989
        %v4005 = vadd.f32 %v3966, %v3989
        %v4006 = vadd.f32 %v3967, %v3989
        %v4007 = vadd.f32 %v3968, %v3989
        %v4008 = vadd.f32 %v3969, %v3989
        %v4009 = vadd.f32 %v3970, %v3989
        %v4010 = vadd.f32 %v3971, %v3989
        %v4011 = vadd.f32 %v3972, %v3989
        %v4012 = vadd.f32 %v3973, %v3989
        %v4013 = vadd.f32 %v3974, %v3989
        %v4014 = vadd.f32 %v3975, %v3989
        %v4015 = vadd.f32 %v3976, %v3989
        %v4016 = vadd.f32 %v3977, %v3989
        %v4017 = vadd.f32 %v3978, %v3989
        %v4018 = vadd.f32 %v3979, %v3989
        %v4019 = vadd.f32 %v3980, %v3989
        %v4020 = vadd.f32 %v3981, %v3989
        %v4021 = vadd.f32 %v3982, %v3989
        %v4022 = vadd.f32 %v3983, %v3989
        %v4023 = vmax.f32 %v3991, 0.0
        %v4024 = vmax.f32 %v3992, 0.0
        %v4025 = vmax.f32 %v3993, 0.0
        %v4026 = vmax.f32 %v3994, 0.0
        %v4027 = vmax.f32 %v3995, 0.0
        %v4028 = vmax.f32 %v3996, 0.0
        %v4029 = vmax.f32 %v3997, 0.0
        %v4030 = vmax.f32 %v3998, 0.0
        %v4031 = vmax.f32 %v3999, 0.0
        %v4032 = vmax.f32 %v4000, 0.0
        %v4033 = vmax.f32 %v4001, 0.0
        %v4034 = vmax.f32 %v4002, 0.0
        %v4035 = vmax.f32 %v4003, 0.0
        %v4036 = vmax.f32 %v4004, 0.0
        %v4037 = vmax.f32 %v4005, 0.0
        %v4038 = vmax.f32 %v4006, 0.0
        %v4039 = vmax.f32 %v4007, 0.0
        %v4040 = vmax.f32 %v4008, 0.0
        %v4041 = vmax.f32 %v4009, 0.0
        %v4042 = vmax.f32 %v4010, 0.0
        %v4043 = vmax.f32 %v4011, 0.0
        %v4044 = vmax.f32 %v4012, 0.0
        %v4045 = vmax.f32 %v4013, 0.0
        %v4046 = vmax.f32 %v4014, 0.0
        %v4047 = vmax.f32 %v4015, 0.0
        %v4048 = vmax.f32 %v4016, 0.0
        %v4049 = vmax.f32 %v4017, 0.0
        %v4050 = vmax.f32 %v4018, 0.0
        %v4051 = vmax.f32 %v4019, 0.0
        %v4052 = vmax.f32 %v4020, 0.0
        %v4053 = vmax.f32 %v4021, 0.0
        %v4054 = vmax.f32 %v4022, 0.0
        %4055 = vst.msk [vmem:[#allocation4] sm:$0xff] %vm1555, %v4023
        %4056 = vst.msk [vmem:[#allocation4 + $0x8] sm:$0xff] %vm1555, %v4024
        %4057 = vst.msk [vmem:[#allocation4 + $0x10] sm:$0xff] %vm1555, %v4025
        %4058 = vst.msk [vmem:[#allocation4 + $0x18] sm:$0xff] %vm1555, %v4026
        %4059 = vst.msk [vmem:[#allocation4 + $0x20] sm:$0xff] %vm1555, %v4027
        %4060 = vst.msk [vmem:[#allocation4 + $0x28] sm:$0xff] %vm1555, %v4028
        %4061 = vst.msk [vmem:[#allocation4 + $0x30] sm:$0xff] %vm1555, %v4029
        %4062 = vst.msk [vmem:[#allocation4 + $0x38] sm:$0xff] %vm1555, %v4030
        %4063 = vst.msk [vmem:[#allocation4 + $0x40] sm:$0xff] %vm1555, %v4031
        %4064 = vst.msk [vmem:[#allocation4 + $0x48] sm:$0xff] %vm1555, %v4032
        %4065 = vst.msk [vmem:[#allocation4 + $0x50] sm:$0xff] %vm1555, %v4033
        %4066 = vst.msk [vmem:[#allocation4 + $0x58] sm:$0xff] %vm1555, %v4034
        %4067 = vst.msk [vmem:[#allocation4 + $0x60] sm:$0xff] %vm1555, %v4035
        %4068 = vst.msk [vmem:[#allocation4 + $0x68] sm:$0xff] %vm1555, %v4036
        %4069 = vst.msk [vmem:[#allocation4 + $0x70] sm:$0xff] %vm1555, %v4037
        %4070 = vst.msk [vmem:[#allocation4 + $0x78] sm:$0xff] %vm1555, %v4038
        %4071 = vst.msk [vmem:[#allocation4 + $0x80] sm:$0xff] %vm1555, %v4039
        %4072 = vst.msk [vmem:[#allocation4 + $0x88] sm:$0xff] %vm1555, %v4040
        %4073 = vst.msk [vmem:[#allocation4 + $0x90] sm:$0xff] %vm1555, %v4041
        %4074 = vst.msk [vmem:[#allocation4 + $0x98] sm:$0xff] %vm1555, %v4042
        %4075 = vst.msk [vmem:[#allocation4 + $0xa0] sm:$0xff] %vm1555, %v4043
        %4076 = vst.msk [vmem:[#allocation4 + $0xa8] sm:$0xff] %vm1555, %v4044
        %4077 = vst.msk [vmem:[#allocation4 + $0xb0] sm:$0xff] %vm1555, %v4045
        %4078 = vst.msk [vmem:[#allocation4 + $0xb8] sm:$0xff] %vm1555, %v4046
        %4079 = vst.msk [vmem:[#allocation4 + $0xc0] sm:$0xff] %vm1555, %v4047
        %4080 = vst.msk [vmem:[#allocation4 + $0xc8] sm:$0xff] %vm1555, %v4048
        %4081 = vst.msk [vmem:[#allocation4 + $0xd0] sm:$0xff] %vm1555, %v4049
        %4082 = vst.msk [vmem:[#allocation4 + $0xd8] sm:$0xff] %vm1555, %v4050
        %4083 = vst.msk [vmem:[#allocation4 + $0xe0] sm:$0xff] %vm1555, %v4051
        %4084 = vst.msk [vmem:[#allocation4 + $0xe8] sm:$0xff] %vm1555, %v4052
        %4085 = vst.msk [vmem:[#allocation4 + $0xf0] sm:$0xff] %vm1555, %v4053
        %4086 = vst.msk [vmem:[#allocation4 + $0xf8] sm:$0xff] %vm1555, %v4054
        %v4087 = vpack.c.bf16 %v4024, %v4023
        %v4088 = vpack.c.bf16 %v4026, %v4025
        %v4089 = vpack.c.bf16 %v4028, %v4027
        %v4090 = vpack.c.bf16 %v4030, %v4029
        %v4091 = vpack.c.bf16 %v4032, %v4031
        %v4092 = vpack.c.bf16 %v4034, %v4033
        %v4093 = vpack.c.bf16 %v4036, %v4035
        %v4094 = vpack.c.bf16 %v4038, %v4037
        %v4095 = vpack.c.bf16 %v4040, %v4039
        %v4096 = vpack.c.bf16 %v4042, %v4041
        %v4097 = vpack.c.bf16 %v4044, %v4043
        %v4098 = vpack.c.bf16 %v4046, %v4045
        %v4099 = vpack.c.bf16 %v4048, %v4047
        %v4100 = vpack.c.bf16 %v4050, %v4049
        %v4101 = vpack.c.bf16 %v4052, %v4051
        %v4102 = vpack.c.bf16 %v4054, %v4053
        %v4119 = vunpack.c.l.b16 %v4087
        %v4120 = vunpack.c.h.b16 %v4087
        %v4121 = vunpack.c.l.b16 %v4088
        %v4122 = vunpack.c.h.b16 %v4088
        %v4123 = vunpack.c.l.b16 %v4089
        %v4124 = vunpack.c.h.b16 %v4089
        %v4125 = vunpack.c.l.b16 %v4090
        %v4126 = vunpack.c.h.b16 %v4090
        %v4127 = vunpack.c.l.b16 %v4091
        %v4128 = vunpack.c.h.b16 %v4091
        %v4129 = vunpack.c.l.b16 %v4092
        %v4130 = vunpack.c.h.b16 %v4092
        %v4131 = vunpack.c.l.b16 %v4093
        %v4132 = vunpack.c.h.b16 %v4093
        %v4133 = vunpack.c.l.b16 %v4094
        %v4134 = vunpack.c.h.b16 %v4094
        %v4135 = vunpack.c.l.b16 %v4095
        %v4136 = vunpack.c.h.b16 %v4095
        %v4137 = vunpack.c.l.b16 %v4096
        %v4138 = vunpack.c.h.b16 %v4096
        %v4139 = vunpack.c.l.b16 %v4097
        %v4140 = vunpack.c.h.b16 %v4097
        %v4141 = vunpack.c.l.b16 %v4098
        %v4142 = vunpack.c.h.b16 %v4098
        %v4143 = vunpack.c.l.b16 %v4099
        %v4144 = vunpack.c.h.b16 %v4099
        %v4145 = vunpack.c.l.b16 %v4100
        %v4146 = vunpack.c.h.b16 %v4100
        %v4147 = vunpack.c.l.b16 %v4101
        %v4148 = vunpack.c.h.b16 %v4101
        %v4149 = vunpack.c.l.b16 %v4102
        %v4150 = vunpack.c.h.b16 %v4102
        %v4151 = vpack.c.b16 %v4119, %v4119
        %v4152 = vpack.c.b16 %v4120, %v4120
        %v4153 = vpack.c.b16 %v4121, %v4121
        %v4154 = vpack.c.b16 %v4122, %v4122
        %v4155 = vpack.c.b16 %v4123, %v4123
        %v4156 = vpack.c.b16 %v4124, %v4124
        %v4157 = vpack.c.b16 %v4125, %v4125
        %v4158 = vpack.c.b16 %v4126, %v4126
        %v4159 = vpack.c.b16 %v4127, %v4127
        %v4160 = vpack.c.b16 %v4128, %v4128
        %v4161 = vpack.c.b16 %v4129, %v4129
        %v4162 = vpack.c.b16 %v4130, %v4130
        %v4163 = vpack.c.b16 %v4131, %v4131
        %v4164 = vpack.c.b16 %v4132, %v4132
        %v4165 = vpack.c.b16 %v4133, %v4133
        %v4166 = vpack.c.b16 %v4134, %v4134
        %v4167 = vpack.c.b16 %v4135, %v4135
        %v4168 = vpack.c.b16 %v4136, %v4136
        %v4169 = vpack.c.b16 %v4137, %v4137
        %v4170 = vpack.c.b16 %v4138, %v4138
        %v4171 = vpack.c.b16 %v4139, %v4139
        %v4172 = vpack.c.b16 %v4140, %v4140
        %v4173 = vpack.c.b16 %v4141, %v4141
        %v4174 = vpack.c.b16 %v4142, %v4142
        %v4175 = vpack.c.b16 %v4143, %v4143
        %v4176 = vpack.c.b16 %v4144, %v4144
        %v4177 = vpack.c.b16 %v4145, %v4145
        %v4178 = vpack.c.b16 %v4146, %v4146
        %v4179 = vpack.c.b16 %v4147, %v4147
        %v4180 = vpack.c.b16 %v4148, %v4148
        %v4181 = vpack.c.b16 %v4149, %v4149
        %v4182 = vpack.c.b16 %v4150, %v4150
        %v4184 = vshrl.u32 %v4151, 16
        %v4186 = vrot.slane %v4184, 7
        %v4187 = vshll.u32 %v4151, 16
        %v4189 = vor.u32 %v4186, %v4187
        %v4190 = vrot.slane %v4186, 4
        %v4192 = vshrl.u32 %v4152, 16
        %v4194 = vrot.slane %v4192, 7
        %v4195 = vshll.u32 %v4152, 16
        %v4197 = vor.u32 %v4194, %v4195
        %v4198 = vsel %vm590, %v4190, %v4197
        %v4199 = vrot.slane %v4194, 4
        %v4201 = vshrl.u32 %v4153, 16
        %v4203 = vrot.slane %v4201, 7
        %v4204 = vshll.u32 %v4153, 16
        %v4206 = vor.u32 %v4203, %v4204
        %v4207 = vrot.slane %v4203, 4
        %v4209 = vshrl.u32 %v4154, 16
        %v4211 = vrot.slane %v4209, 7
        %v4212 = vshll.u32 %v4154, 16
        %v4214 = vor.u32 %v4211, %v4212
        %v4215 = vsel %vm590, %v4207, %v4214
        %v4216 = vrot.slane %v4211, 4
        %v4218 = vshrl.u32 %v4155, 16
        %v4220 = vrot.slane %v4218, 7
        %v4221 = vshll.u32 %v4155, 16
        %v4223 = vor.u32 %v4220, %v4221
        %v4224 = vrot.slane %v4220, 4
        %v4226 = vshrl.u32 %v4156, 16
        %v4228 = vrot.slane %v4226, 7
        %v4229 = vshll.u32 %v4156, 16
        %v4231 = vor.u32 %v4228, %v4229
        %v4232 = vsel %vm590, %v4224, %v4231
        %v4233 = vrot.slane %v4228, 4
        %v4235 = vshrl.u32 %v4157, 16
        %v4237 = vrot.slane %v4235, 7
        %v4238 = vshll.u32 %v4157, 16
        %v4240 = vor.u32 %v4237, %v4238
        %v4241 = vrot.slane %v4237, 4
        %v4243 = vshrl.u32 %v4158, 16
        %v4245 = vrot.slane %v4243, 7
        %v4246 = vshll.u32 %v4158, 16
        %v4248 = vor.u32 %v4245, %v4246
        %v4249 = vsel %vm590, %v4241, %v4248
        %v4250 = vrot.slane %v4245, 4
        %v4252 = vshrl.u32 %v4159, 16
        %v4254 = vrot.slane %v4252, 7
        %v4255 = vshll.u32 %v4159, 16
        %v4257 = vor.u32 %v4254, %v4255
        %v4258 = vrot.slane %v4254, 4
        %v4260 = vshrl.u32 %v4160, 16
        %v4262 = vrot.slane %v4260, 7
        %v4263 = vshll.u32 %v4160, 16
        %v4265 = vor.u32 %v4262, %v4263
        %v4266 = vsel %vm590, %v4258, %v4265
        %v4267 = vrot.slane %v4262, 4
        %v4269 = vshrl.u32 %v4161, 16
        %v4271 = vrot.slane %v4269, 7
        %v4272 = vshll.u32 %v4161, 16
        %v4274 = vor.u32 %v4271, %v4272
        %v4275 = vrot.slane %v4271, 4
        %v4277 = vshrl.u32 %v4162, 16
        %v4279 = vrot.slane %v4277, 7
        %v4280 = vshll.u32 %v4162, 16
        %v4282 = vor.u32 %v4279, %v4280
        %v4283 = vsel %vm590, %v4275, %v4282
        %v4284 = vrot.slane %v4279, 4
        %v4286 = vshrl.u32 %v4163, 16
        %v4288 = vrot.slane %v4286, 7
        %v4289 = vshll.u32 %v4163, 16
        %v4291 = vor.u32 %v4288, %v4289
        %v4292 = vrot.slane %v4288, 4
        %v4294 = vshrl.u32 %v4164, 16
        %v4296 = vrot.slane %v4294, 7
        %v4297 = vshll.u32 %v4164, 16
        %v4299 = vor.u32 %v4296, %v4297
        %v4300 = vsel %vm590, %v4292, %v4299
        %v4301 = vrot.slane %v4296, 4
        %v4303 = vshrl.u32 %v4165, 16
        %v4305 = vrot.slane %v4303, 7
        %v4306 = vshll.u32 %v4165, 16
        %v4308 = vor.u32 %v4305, %v4306
        %v4309 = vrot.slane %v4305, 4
        %v4311 = vshrl.u32 %v4166, 16
        %v4313 = vrot.slane %v4311, 7
        %v4314 = vshll.u32 %v4166, 16
        %v4316 = vor.u32 %v4313, %v4314
        %v4317 = vsel %vm590, %v4309, %v4316
        %v4318 = vrot.slane %v4313, 4
        %v4320 = vshrl.u32 %v4167, 16
        %v4322 = vrot.slane %v4320, 7
        %v4323 = vshll.u32 %v4167, 16
        %v4325 = vor.u32 %v4322, %v4323
        %v4326 = vrot.slane %v4322, 4
        %v4328 = vshrl.u32 %v4168, 16
        %v4330 = vrot.slane %v4328, 7
        %v4331 = vshll.u32 %v4168, 16
        %v4333 = vor.u32 %v4330, %v4331
        %v4334 = vsel %vm590, %v4326, %v4333
        %v4335 = vrot.slane %v4330, 4
        %v4337 = vshrl.u32 %v4169, 16
        %v4339 = vrot.slane %v4337, 7
        %v4340 = vshll.u32 %v4169, 16
        %v4342 = vor.u32 %v4339, %v4340
        %v4343 = vrot.slane %v4339, 4
        %v4345 = vshrl.u32 %v4170, 16
        %v4347 = vrot.slane %v4345, 7
        %v4348 = vshll.u32 %v4170, 16
        %v4350 = vor.u32 %v4347, %v4348
        %v4351 = vsel %vm590, %v4343, %v4350
        %v4352 = vrot.slane %v4347, 4
        %v4354 = vshrl.u32 %v4171, 16
        %v4356 = vrot.slane %v4354, 7
        %v4357 = vshll.u32 %v4171, 16
        %v4359 = vor.u32 %v4356, %v4357
        %v4360 = vrot.slane %v4356, 4
        %v4362 = vshrl.u32 %v4172, 16
        %v4364 = vrot.slane %v4362, 7
        %v4365 = vshll.u32 %v4172, 16
        %v4367 = vor.u32 %v4364, %v4365
        %v4368 = vsel %vm590, %v4360, %v4367
        %v4369 = vrot.slane %v4364, 4
        %v4371 = vshrl.u32 %v4173, 16
        %v4373 = vrot.slane %v4371, 7
        %v4374 = vshll.u32 %v4173, 16
        %v4376 = vor.u32 %v4373, %v4374
        %v4377 = vrot.slane %v4373, 4
        %v4379 = vshrl.u32 %v4174, 16
        %v4381 = vrot.slane %v4379, 7
        %v4382 = vshll.u32 %v4174, 16
        %v4384 = vor.u32 %v4381, %v4382
        %v4385 = vsel %vm590, %v4377, %v4384
        %v4386 = vrot.slane %v4381, 4
        %v4388 = vshrl.u32 %v4175, 16
        %v4390 = vrot.slane %v4388, 7
        %v4391 = vshll.u32 %v4175, 16
        %v4393 = vor.u32 %v4390, %v4391
        %v4394 = vrot.slane %v4390, 4
        %v4396 = vshrl.u32 %v4176, 16
        %v4398 = vrot.slane %v4396, 7
        %v4399 = vshll.u32 %v4176, 16
        %v4401 = vor.u32 %v4398, %v4399
        %v4402 = vsel %vm590, %v4394, %v4401
        %v4403 = vrot.slane %v4398, 4
        %v4405 = vshrl.u32 %v4177, 16
        %v4407 = vrot.slane %v4405, 7
        %v4408 = vshll.u32 %v4177, 16
        %v4410 = vor.u32 %v4407, %v4408
        %v4411 = vrot.slane %v4407, 4
        %v4413 = vshrl.u32 %v4178, 16
        %v4415 = vrot.slane %v4413, 7
        %v4416 = vshll.u32 %v4178, 16
        %v4418 = vor.u32 %v4415, %v4416
        %v4419 = vsel %vm590, %v4411, %v4418
        %v4420 = vrot.slane %v4415, 4
        %v4422 = vshrl.u32 %v4179, 16
        %v4424 = vrot.slane %v4422, 7
        %v4425 = vshll.u32 %v4179, 16
        %v4427 = vor.u32 %v4424, %v4425
        %v4428 = vrot.slane %v4424, 4
        %v4430 = vshrl.u32 %v4180, 16
        %v4432 = vrot.slane %v4430, 7
        %v4433 = vshll.u32 %v4180, 16
        %v4435 = vor.u32 %v4432, %v4433
        %v4436 = vsel %vm590, %v4428, %v4435
        %v4437 = vrot.slane %v4432, 4
        %v4439 = vshrl.u32 %v4181, 16
        %v4441 = vrot.slane %v4439, 7
        %v4442 = vshll.u32 %v4181, 16
        %v4444 = vor.u32 %v4441, %v4442
        %v4445 = vrot.slane %v4441, 4
        %v4447 = vshrl.u32 %v4182, 16
        %v4449 = vrot.slane %v4447, 7
        %v4450 = vshll.u32 %v4182, 16
        %v4452 = vor.u32 %v4449, %v4450
        %v4453 = vsel %vm590, %v4445, %v4452
        %v4454 = vrot.slane %v4449, 4
        %s4503 = scalar_lea.vmem [#allocation3], 12
        %v4504 = vld [vmem:[%s4503] sm:$0xf]
        %v4505 = vsel %vm913, %v4189, %v4504
        %4506 = vst [vmem:[%s4503] sm:$0xf] %v4505
        %4507 = vst.msk [vmem:[%s4503 + $0x4] sm:$0xf] %vm224, %v4198
        %v4508 = vld [vmem:[%s4503 + $0x8] sm:$0x1]
        %v4509 = vsel %vm235, %v4199, %v4508
        %4510 = vst [vmem:[%s4503 + $0x8] sm:$0x1] %v4509
        %v4511 = vld [vmem:[%s4503 + $0xc] sm:$0xf]
        %v4512 = vsel %vm913, %v4206, %v4511
        %4513 = vst [vmem:[%s4503 + $0xc] sm:$0xf] %v4512
        %4514 = vst.msk [vmem:[%s4503 + $0x10] sm:$0xf] %vm224, %v4215
        %v4515 = vld [vmem:[%s4503 + $0x14] sm:$0x1]
        %v4516 = vsel %vm235, %v4216, %v4515
        %4517 = vst [vmem:[%s4503 + $0x14] sm:$0x1] %v4516
        %v4518 = vld [vmem:[%s4503 + $0x18] sm:$0xf]
        %v4519 = vsel %vm913, %v4223, %v4518
        %4520 = vst [vmem:[%s4503 + $0x18] sm:$0xf] %v4519
        %4521 = vst.msk [vmem:[%s4503 + $0x1c] sm:$0xf] %vm224, %v4232
        %v4522 = vld [vmem:[%s4503 + $0x20] sm:$0x1]
        %v4523 = vsel %vm235, %v4233, %v4522
        %4524 = vst [vmem:[%s4503 + $0x20] sm:$0x1] %v4523
        %v4525 = vld [vmem:[%s4503 + $0x24] sm:$0xf]
        %v4526 = vsel %vm913, %v4240, %v4525
        %4527 = vst [vmem:[%s4503 + $0x24] sm:$0xf] %v4526
        %4528 = vst.msk [vmem:[%s4503 + $0x28] sm:$0xf] %vm224, %v4249
        %v4529 = vld [vmem:[%s4503 + $0x2c] sm:$0x1]
        %v4530 = vsel %vm235, %v4250, %v4529
        %4531 = vst [vmem:[%s4503 + $0x2c] sm:$0x1] %v4530
        %v4532 = vld [vmem:[%s4503 + $0x30] sm:$0xf]
        %v4533 = vsel %vm913, %v4257, %v4532
        %4534 = vst [vmem:[%s4503 + $0x30] sm:$0xf] %v4533
        %4535 = vst.msk [vmem:[%s4503 + $0x34] sm:$0xf] %vm224, %v4266
        %v4536 = vld [vmem:[%s4503 + $0x38] sm:$0x1]
        %v4537 = vsel %vm235, %v4267, %v4536
        %4538 = vst [vmem:[%s4503 + $0x38] sm:$0x1] %v4537
        %v4539 = vld [vmem:[%s4503 + $0x3c] sm:$0xf]
        %v4540 = vsel %vm913, %v4274, %v4539
        %4541 = vst [vmem:[%s4503 + $0x3c] sm:$0xf] %v4540
        %4542 = vst.msk [vmem:[%s4503 + $0x40] sm:$0xf] %vm224, %v4283
        %v4543 = vld [vmem:[%s4503 + $0x44] sm:$0x1]
        %v4544 = vsel %vm235, %v4284, %v4543
        %4545 = vst [vmem:[%s4503 + $0x44] sm:$0x1] %v4544
        %v4546 = vld [vmem:[%s4503 + $0x48] sm:$0xf]
        %v4547 = vsel %vm913, %v4291, %v4546
        %4548 = vst [vmem:[%s4503 + $0x48] sm:$0xf] %v4547
        %4549 = vst.msk [vmem:[%s4503 + $0x4c] sm:$0xf] %vm224, %v4300
        %v4550 = vld [vmem:[%s4503 + $0x50] sm:$0x1]
        %v4551 = vsel %vm235, %v4301, %v4550
        %4552 = vst [vmem:[%s4503 + $0x50] sm:$0x1] %v4551
        %v4553 = vld [vmem:[%s4503 + $0x54] sm:$0xf]
        %v4554 = vsel %vm913, %v4308, %v4553
        %4555 = vst [vmem:[%s4503 + $0x54] sm:$0xf] %v4554
        %4556 = vst.msk [vmem:[%s4503 + $0x58] sm:$0xf] %vm224, %v4317
        %v4557 = vld [vmem:[%s4503 + $0x5c] sm:$0x1]
        %v4558 = vsel %vm235, %v4318, %v4557
        %4559 = vst [vmem:[%s4503 + $0x5c] sm:$0x1] %v4558
        %v4560 = vld [vmem:[%s4503 + $0x60] sm:$0xf]
        %v4561 = vsel %vm913, %v4325, %v4560
        %4562 = vst [vmem:[%s4503 + $0x60] sm:$0xf] %v4561
        %4563 = vst.msk [vmem:[%s4503 + $0x64] sm:$0xf] %vm224, %v4334
        %v4564 = vld [vmem:[%s4503 + $0x68] sm:$0x1]
        %v4565 = vsel %vm235, %v4335, %v4564
        %4566 = vst [vmem:[%s4503 + $0x68] sm:$0x1] %v4565
        %v4567 = vld [vmem:[%s4503 + $0x6c] sm:$0xf]
        %v4568 = vsel %vm913, %v4342, %v4567
        %4569 = vst [vmem:[%s4503 + $0x6c] sm:$0xf] %v4568
        %4570 = vst.msk [vmem:[%s4503 + $0x70] sm:$0xf] %vm224, %v4351
        %v4571 = vld [vmem:[%s4503 + $0x74] sm:$0x1]
        %v4572 = vsel %vm235, %v4352, %v4571
        %4573 = vst [vmem:[%s4503 + $0x74] sm:$0x1] %v4572
        %v4574 = vld [vmem:[%s4503 + $0x78] sm:$0xf]
        %v4575 = vsel %vm913, %v4359, %v4574
        %4576 = vst [vmem:[%s4503 + $0x78] sm:$0xf] %v4575
        %4577 = vst.msk [vmem:[%s4503 + $0x7c] sm:$0xf] %vm224, %v4368
        %v4578 = vld [vmem:[%s4503 + $0x80] sm:$0x1]
        %v4579 = vsel %vm235, %v4369, %v4578
        %4580 = vst [vmem:[%s4503 + $0x80] sm:$0x1] %v4579
        %v4581 = vld [vmem:[%s4503 + $0x84] sm:$0xf]
        %v4582 = vsel %vm913, %v4376, %v4581
        %4583 = vst [vmem:[%s4503 + $0x84] sm:$0xf] %v4582
        %4584 = vst.msk [vmem:[%s4503 + $0x88] sm:$0xf] %vm224, %v4385
        %v4585 = vld [vmem:[%s4503 + $0x8c] sm:$0x1]
        %v4586 = vsel %vm235, %v4386, %v4585
        %4587 = vst [vmem:[%s4503 + $0x8c] sm:$0x1] %v4586
        %v4588 = vld [vmem:[%s4503 + $0x90] sm:$0xf]
        %v4589 = vsel %vm913, %v4393, %v4588
        %4590 = vst [vmem:[%s4503 + $0x90] sm:$0xf] %v4589
        %4591 = vst.msk [vmem:[%s4503 + $0x94] sm:$0xf] %vm224, %v4402
        %v4592 = vld [vmem:[%s4503 + $0x98] sm:$0x1]
        %v4593 = vsel %vm235, %v4403, %v4592
        %4594 = vst [vmem:[%s4503 + $0x98] sm:$0x1] %v4593
        %v4595 = vld [vmem:[%s4503 + $0x9c] sm:$0xf]
        %v4596 = vsel %vm913, %v4410, %v4595
        %4597 = vst [vmem:[%s4503 + $0x9c] sm:$0xf] %v4596
        %4598 = vst.msk [vmem:[%s4503 + $0xa0] sm:$0xf] %vm224, %v4419
        %v4599 = vld [vmem:[%s4503 + $0xa4] sm:$0x1]
        %v4600 = vsel %vm235, %v4420, %v4599
        %4601 = vst [vmem:[%s4503 + $0xa4] sm:$0x1] %v4600
        %v4602 = vld [vmem:[%s4503 + $0xa8] sm:$0xf]
        %v4603 = vsel %vm913, %v4427, %v4602
        %4604 = vst [vmem:[%s4503 + $0xa8] sm:$0xf] %v4603
        %4605 = vst.msk [vmem:[%s4503 + $0xac] sm:$0xf] %vm224, %v4436
        %v4606 = vld [vmem:[%s4503 + $0xb0] sm:$0x1]
        %v4607 = vsel %vm235, %v4437, %v4606
        %4608 = vst [vmem:[%s4503 + $0xb0] sm:$0x1] %v4607
        %v4609 = vld [vmem:[%s4503 + $0xb4] sm:$0xf]
        %v4610 = vsel %vm913, %v4444, %v4609
        %4611 = vst [vmem:[%s4503 + $0xb4] sm:$0xf] %v4610
        %4612 = vst.msk [vmem:[%s4503 + $0xb8] sm:$0xf] %vm224, %v4453
        %v4613 = vld [vmem:[%s4503 + $0xbc] sm:$0x1]
        %v4614 = vsel %vm235, %v4454, %v4613
        %4615 = vst [vmem:[%s4503 + $0xbc] sm:$0x1] %v4614
        %v4616 = vld [vmem:[#allocation3] sm:$0xf]
        %v4617 = vld [vmem:[#allocation3 + $0x4] sm:$0xf]
        %v4618 = vld [vmem:[#allocation3 + $0x8] sm:$0x1]
        %v4619 = vld [vmem:[#allocation3 + $0xc] sm:$0xf]
        %v4620 = vld [vmem:[#allocation3 + $0x10] sm:$0xf]
        %v4621 = vld [vmem:[#allocation3 + $0x14] sm:$0x1]
        %v4622 = vld [vmem:[#allocation3 + $0x18] sm:$0xf]
        %v4623 = vld [vmem:[#allocation3 + $0x1c] sm:$0xf]
        %v4624 = vld [vmem:[#allocation3 + $0x20] sm:$0x1]
        %v4625 = vld [vmem:[#allocation3 + $0x24] sm:$0xf]
        %v4626 = vld [vmem:[#allocation3 + $0x28] sm:$0xf]
        %v4627 = vld [vmem:[#allocation3 + $0x2c] sm:$0x1]
        %v4628 = vld [vmem:[#allocation3 + $0x30] sm:$0xf]
        %v4629 = vld [vmem:[#allocation3 + $0x34] sm:$0xf]
        %v4630 = vld [vmem:[#allocation3 + $0x38] sm:$0x1]
        %v4631 = vld [vmem:[#allocation3 + $0x3c] sm:$0xf]
        %v4632 = vld [vmem:[#allocation3 + $0x40] sm:$0xf]
        %v4633 = vld [vmem:[#allocation3 + $0x44] sm:$0x1]
        %v4634 = vld [vmem:[#allocation3 + $0x48] sm:$0xf]
        %v4635 = vld [vmem:[#allocation3 + $0x4c] sm:$0xf]
        %v4636 = vld [vmem:[#allocation3 + $0x50] sm:$0x1]
        %v4637 = vld [vmem:[#allocation3 + $0x54] sm:$0xf]
        %v4638 = vld [vmem:[#allocation3 + $0x58] sm:$0xf]
        %v4639 = vld [vmem:[#allocation3 + $0x5c] sm:$0x1]
        %v4640 = vld [vmem:[#allocation3 + $0x60] sm:$0xf]
        %v4641 = vld [vmem:[#allocation3 + $0x64] sm:$0xf]
        %v4642 = vld [vmem:[#allocation3 + $0x68] sm:$0x1]
        %v4643 = vld [vmem:[#allocation3 + $0x6c] sm:$0xf]
        %v4644 = vld [vmem:[#allocation3 + $0x70] sm:$0xf]
        %v4645 = vld [vmem:[#allocation3 + $0x74] sm:$0x1]
        %v4646 = vld [vmem:[#allocation3 + $0x78] sm:$0xf]
        %v4647 = vld [vmem:[#allocation3 + $0x7c] sm:$0xf]
        %v4648 = vld [vmem:[#allocation3 + $0x80] sm:$0x1]
        %v4649 = vld [vmem:[#allocation3 + $0x84] sm:$0xf]
        %v4650 = vld [vmem:[#allocation3 + $0x88] sm:$0xf]
        %v4651 = vld [vmem:[#allocation3 + $0x8c] sm:$0x1]
        %v4652 = vld [vmem:[#allocation3 + $0x90] sm:$0xf]
        %v4653 = vld [vmem:[#allocation3 + $0x94] sm:$0xf]
        %v4654 = vld [vmem:[#allocation3 + $0x98] sm:$0x1]
        %v4655 = vld [vmem:[#allocation3 + $0x9c] sm:$0xf]
        %v4656 = vld [vmem:[#allocation3 + $0xa0] sm:$0xf]
        %v4657 = vld [vmem:[#allocation3 + $0xa4] sm:$0x1]
        %v4658 = vld [vmem:[#allocation3 + $0xa8] sm:$0xf]
        %v4659 = vld [vmem:[#allocation3 + $0xac] sm:$0xf]
        %v4660 = vld [vmem:[#allocation3 + $0xb0] sm:$0x1]
        %v4661 = vld [vmem:[#allocation3 + $0xb4] sm:$0xf]
        %v4662 = vld [vmem:[#allocation3 + $0xb8] sm:$0xf]
        %v4663 = vld [vmem:[#allocation3 + $0xbc] sm:$0x1]
        %v4664 = vld [vmem:[#allocation3 + $0xc0] sm:$0xf]
        %v4665 = vld [vmem:[#allocation3 + $0xc4] sm:$0xf]
        %v4666 = vld [vmem:[#allocation3 + $0xc8] sm:$0x1]
        %v4667 = vld [vmem:[#allocation3 + $0xcc] sm:$0xf]
        %v4668 = vld [vmem:[#allocation3 + $0xd0] sm:$0xf]
        %v4669 = vld [vmem:[#allocation3 + $0xd4] sm:$0x1]
        %v4670 = vld [vmem:[%s3] sm:$0xf]
        %v4671 = vld [vmem:[%s3 + $0x4] sm:$0xf]
        %v4672 = vld [vmem:[%s3 + $0x8] sm:$0xf]
        %v4673 = vld [vmem:[%s3 + $0xc] sm:$0xf]
        %v4674 = vld [vmem:[%s3 + $0x10] sm:$0xf]
        %v4675 = vld [vmem:[%s3 + $0x14] sm:$0xf]
        %v4676 = vld [vmem:[%s3 + $0x18] sm:$0xf]
        %v4677 = vld [vmem:[%s3 + $0x1c] sm:$0xf]
        %v4679 = vshrl.u32 %v4616, 16
        %v4681 = vrot.slane %v4679, 4
        %v4682 = vshll.u32 %v4616, 16
        %v4684 = vrot.slane %v4682, 5
        %v4685 = vor.u32 %v4681, %v4684
        %v4686 = vrot.slane %v4685, 4
        %v4688 = vshll.u32 %v4617, 16
        %v4690 = vrot.slane %v4688, 5
        %v4691 = vsel %vm1090, %v4686, %v4690
        %v4692 = vshrl.u32 %v4617, 16
        %v4694 = vrot.slane %v4692, 4
        %v4695 = vor.u32 %v4694, %v4690
        %v4696 = vrot.slane %v4695, 4
        %v4698 = vshll.u32 %v4618, 16
        %v4700 = vrot.slane %v4698, 5
        %v4701 = vsel %vm1090, %v4696, %v4700
        %v4703 = vshrl.u32 %v4619, 16
        %v4705 = vrot.slane %v4703, 4
        %v4706 = vshll.u32 %v4619, 16
        %v4708 = vrot.slane %v4706, 5
        %v4709 = vor.u32 %v4705, %v4708
        %v4710 = vrot.slane %v4709, 4
        %v4712 = vshll.u32 %v4620, 16
        %v4714 = vrot.slane %v4712, 5
        %v4715 = vsel %vm1090, %v4710, %v4714
        %v4716 = vshrl.u32 %v4620, 16
        %v4718 = vrot.slane %v4716, 4
        %v4719 = vor.u32 %v4718, %v4714
        %v4720 = vrot.slane %v4719, 4
        %v4722 = vshll.u32 %v4621, 16
        %v4724 = vrot.slane %v4722, 5
        %v4725 = vsel %vm1090, %v4720, %v4724
        %v4727 = vshrl.u32 %v4622, 16
        %v4729 = vrot.slane %v4727, 4
        %v4730 = vshll.u32 %v4622, 16
        %v4732 = vrot.slane %v4730, 5
        %v4733 = vor.u32 %v4729, %v4732
        %v4734 = vrot.slane %v4733, 4
        %v4736 = vshll.u32 %v4623, 16
        %v4738 = vrot.slane %v4736, 5
        %v4739 = vsel %vm1090, %v4734, %v4738
        %v4740 = vshrl.u32 %v4623, 16
        %v4742 = vrot.slane %v4740, 4
        %v4743 = vor.u32 %v4742, %v4738
        %v4744 = vrot.slane %v4743, 4
        %v4746 = vshll.u32 %v4624, 16
        %v4748 = vrot.slane %v4746, 5
        %v4749 = vsel %vm1090, %v4744, %v4748
        %v4751 = vshrl.u32 %v4625, 16
        %v4753 = vrot.slane %v4751, 4
        %v4754 = vshll.u32 %v4625, 16
        %v4756 = vrot.slane %v4754, 5
        %v4757 = vor.u32 %v4753, %v4756
        %v4758 = vrot.slane %v4757, 4
        %v4760 = vshll.u32 %v4626, 16
        %v4762 = vrot.slane %v4760, 5
        %v4763 = vsel %vm1090, %v4758, %v4762
        %v4764 = vshrl.u32 %v4626, 16
        %v4766 = vrot.slane %v4764, 4
        %v4767 = vor.u32 %v4766, %v4762
        %v4768 = vrot.slane %v4767, 4
        %v4770 = vshll.u32 %v4627, 16
        %v4772 = vrot.slane %v4770, 5
        %v4773 = vsel %vm1090, %v4768, %v4772
        %v4775 = vshrl.u32 %v4628, 16
        %v4777 = vrot.slane %v4775, 4
        %v4778 = vshll.u32 %v4628, 16
        %v4780 = vrot.slane %v4778, 5
        %v4781 = vor.u32 %v4777, %v4780
        %v4782 = vrot.slane %v4781, 4
        %v4784 = vshll.u32 %v4629, 16
        %v4786 = vrot.slane %v4784, 5
        %v4787 = vsel %vm1090, %v4782, %v4786
        %v4788 = vshrl.u32 %v4629, 16
        %v4790 = vrot.slane %v4788, 4
        %v4791 = vor.u32 %v4790, %v4786
        %v4792 = vrot.slane %v4791, 4
        %v4794 = vshll.u32 %v4630, 16
        %v4796 = vrot.slane %v4794, 5
        %v4797 = vsel %vm1090, %v4792, %v4796
        %v4799 = vshrl.u32 %v4631, 16
        %v4801 = vrot.slane %v4799, 4
        %v4802 = vshll.u32 %v4631, 16
        %v4804 = vrot.slane %v4802, 5
        %v4805 = vor.u32 %v4801, %v4804
        %v4806 = vrot.slane %v4805, 4
        %v4808 = vshll.u32 %v4632, 16
        %v4810 = vrot.slane %v4808, 5
        %v4811 = vsel %vm1090, %v4806, %v4810
        %v4812 = vshrl.u32 %v4632, 16
        %v4814 = vrot.slane %v4812, 4
        %v4815 = vor.u32 %v4814, %v4810
        %v4816 = vrot.slane %v4815, 4
        %v4818 = vshll.u32 %v4633, 16
        %v4820 = vrot.slane %v4818, 5
        %v4821 = vsel %vm1090, %v4816, %v4820
        %v4823 = vshrl.u32 %v4634, 16
        %v4825 = vrot.slane %v4823, 4
        %v4826 = vshll.u32 %v4634, 16
        %v4828 = vrot.slane %v4826, 5
        %v4829 = vor.u32 %v4825, %v4828
        %v4830 = vrot.slane %v4829, 4
        %v4832 = vshll.u32 %v4635, 16
        %v4834 = vrot.slane %v4832, 5
        %v4835 = vsel %vm1090, %v4830, %v4834
        %v4836 = vshrl.u32 %v4635, 16
        %v4838 = vrot.slane %v4836, 4
        %v4839 = vor.u32 %v4838, %v4834
        %v4840 = vrot.slane %v4839, 4
        %v4842 = vshll.u32 %v4636, 16
        %v4844 = vrot.slane %v4842, 5
        %v4845 = vsel %vm1090, %v4840, %v4844
        %v4847 = vshrl.u32 %v4637, 16
        %v4849 = vrot.slane %v4847, 4
        %v4850 = vshll.u32 %v4637, 16
        %v4852 = vrot.slane %v4850, 5
        %v4853 = vor.u32 %v4849, %v4852
        %v4854 = vrot.slane %v4853, 4
        %v4856 = vshll.u32 %v4638, 16
        %v4858 = vrot.slane %v4856, 5
        %v4859 = vsel %vm1090, %v4854, %v4858
        %v4860 = vshrl.u32 %v4638, 16
        %v4862 = vrot.slane %v4860, 4
        %v4863 = vor.u32 %v4862, %v4858
        %v4864 = vrot.slane %v4863, 4
        %v4866 = vshll.u32 %v4639, 16
        %v4868 = vrot.slane %v4866, 5
        %v4869 = vsel %vm1090, %v4864, %v4868
        %v4871 = vshrl.u32 %v4640, 16
        %v4873 = vrot.slane %v4871, 4
        %v4874 = vshll.u32 %v4640, 16
        %v4876 = vrot.slane %v4874, 5
        %v4877 = vor.u32 %v4873, %v4876
        %v4878 = vrot.slane %v4877, 4
        %v4880 = vshll.u32 %v4641, 16
        %v4882 = vrot.slane %v4880, 5
        %v4883 = vsel %vm1090, %v4878, %v4882
        %v4884 = vshrl.u32 %v4641, 16
        %v4886 = vrot.slane %v4884, 4
        %v4887 = vor.u32 %v4886, %v4882
        %v4888 = vrot.slane %v4887, 4
        %v4890 = vshll.u32 %v4642, 16
        %v4892 = vrot.slane %v4890, 5
        %v4893 = vsel %vm1090, %v4888, %v4892
        %v4895 = vshrl.u32 %v4643, 16
        %v4897 = vrot.slane %v4895, 4
        %v4898 = vshll.u32 %v4643, 16
        %v4900 = vrot.slane %v4898, 5
        %v4901 = vor.u32 %v4897, %v4900
        %v4902 = vrot.slane %v4901, 4
        %v4904 = vshll.u32 %v4644, 16
        %v4906 = vrot.slane %v4904, 5
        %v4907 = vsel %vm1090, %v4902, %v4906
        %v4908 = vshrl.u32 %v4644, 16
        %v4910 = vrot.slane %v4908, 4
        %v4911 = vor.u32 %v4910, %v4906
        %v4912 = vrot.slane %v4911, 4
        %v4914 = vshll.u32 %v4645, 16
        %v4916 = vrot.slane %v4914, 5
        %v4917 = vsel %vm1090, %v4912, %v4916
        %v4919 = vshrl.u32 %v4646, 16
        %v4921 = vrot.slane %v4919, 4
        %v4922 = vshll.u32 %v4646, 16
        %v4924 = vrot.slane %v4922, 5
        %v4925 = vor.u32 %v4921, %v4924
        %v4926 = vrot.slane %v4925, 4
        %v4928 = vshll.u32 %v4647, 16
        %v4930 = vrot.slane %v4928, 5
        %v4931 = vsel %vm1090, %v4926, %v4930
        %v4932 = vshrl.u32 %v4647, 16
        %v4934 = vrot.slane %v4932, 4
        %v4935 = vor.u32 %v4934, %v4930
        %v4936 = vrot.slane %v4935, 4
        %v4938 = vshll.u32 %v4648, 16
        %v4940 = vrot.slane %v4938, 5
        %v4941 = vsel %vm1090, %v4936, %v4940
        %v4943 = vshrl.u32 %v4649, 16
        %v4945 = vrot.slane %v4943, 4
        %v4946 = vshll.u32 %v4649, 16
        %v4948 = vrot.slane %v4946, 5
        %v4949 = vor.u32 %v4945, %v4948
        %v4950 = vrot.slane %v4949, 4
        %v4952 = vshll.u32 %v4650, 16
        %v4954 = vrot.slane %v4952, 5
        %v4955 = vsel %vm1090, %v4950, %v4954
        %v4956 = vshrl.u32 %v4650, 16
        %v4958 = vrot.slane %v4956, 4
        %v4959 = vor.u32 %v4958, %v4954
        %v4960 = vrot.slane %v4959, 4
        %v4962 = vshll.u32 %v4651, 16
        %v4964 = vrot.slane %v4962, 5
        %v4965 = vsel %vm1090, %v4960, %v4964
        %v4967 = vshrl.u32 %v4652, 16
        %v4969 = vrot.slane %v4967, 4
        %v4970 = vshll.u32 %v4652, 16
        %v4972 = vrot.slane %v4970, 5
        %v4973 = vor.u32 %v4969, %v4972
        %v4974 = vrot.slane %v4973, 4
        %v4976 = vshll.u32 %v4653, 16
        %v4978 = vrot.slane %v4976, 5
        %v4979 = vsel %vm1090, %v4974, %v4978
        %v4980 = vshrl.u32 %v4653, 16
        %v4982 = vrot.slane %v4980, 4
        %v4983 = vor.u32 %v4982, %v4978
        %v4984 = vrot.slane %v4983, 4
        %v4986 = vshll.u32 %v4654, 16
        %v4988 = vrot.slane %v4986, 5
        %v4989 = vsel %vm1090, %v4984, %v4988
        %v4991 = vshrl.u32 %v4655, 16
        %v4993 = vrot.slane %v4991, 4
        %v4994 = vshll.u32 %v4655, 16
        %v4996 = vrot.slane %v4994, 5
        %v4997 = vor.u32 %v4993, %v4996
        %v4998 = vrot.slane %v4997, 4
        %v5000 = vshll.u32 %v4656, 16
        %v5002 = vrot.slane %v5000, 5
        %v5003 = vsel %vm1090, %v4998, %v5002
        %v5004 = vshrl.u32 %v4656, 16
        %v5006 = vrot.slane %v5004, 4
        %v5007 = vor.u32 %v5006, %v5002
        %v5008 = vrot.slane %v5007, 4
        %v5010 = vshll.u32 %v4657, 16
        %v5012 = vrot.slane %v5010, 5
        %v5013 = vsel %vm1090, %v5008, %v5012
        %v5015 = vshrl.u32 %v4658, 16
        %v5017 = vrot.slane %v5015, 4
        %v5018 = vshll.u32 %v4658, 16
        %v5020 = vrot.slane %v5018, 5
        %v5021 = vor.u32 %v5017, %v5020
        %v5022 = vrot.slane %v5021, 4
        %v5024 = vshll.u32 %v4659, 16
        %v5026 = vrot.slane %v5024, 5
        %v5027 = vsel %vm1090, %v5022, %v5026
        %v5028 = vshrl.u32 %v4659, 16
        %v5030 = vrot.slane %v5028, 4
        %v5031 = vor.u32 %v5030, %v5026
        %v5032 = vrot.slane %v5031, 4
        %v5034 = vshll.u32 %v4660, 16
        %v5036 = vrot.slane %v5034, 5
        %v5037 = vsel %vm1090, %v5032, %v5036
        %v5039 = vshrl.u32 %v4661, 16
        %v5041 = vrot.slane %v5039, 4
        %v5042 = vshll.u32 %v4661, 16
        %v5044 = vrot.slane %v5042, 5
        %v5045 = vor.u32 %v5041, %v5044
        %v5046 = vrot.slane %v5045, 4
        %v5048 = vshll.u32 %v4662, 16
        %v5050 = vrot.slane %v5048, 5
        %v5051 = vsel %vm1090, %v5046, %v5050
        %v5052 = vshrl.u32 %v4662, 16
        %v5054 = vrot.slane %v5052, 4
        %v5055 = vor.u32 %v5054, %v5050
        %v5056 = vrot.slane %v5055, 4
        %v5058 = vshll.u32 %v4663, 16
        %v5060 = vrot.slane %v5058, 5
        %v5061 = vsel %vm1090, %v5056, %v5060
        %v5062 = vld [vmem:[%s3 + $0x20] sm:$0xf]
        %v5063 = vld [vmem:[%s3 + $0x24] sm:$0xf]
        %v5064 = vld [vmem:[%s3 + $0x28] sm:$0xf]
        %v5065 = vld [vmem:[%s3 + $0x2c] sm:$0xf]
        %v5066 = vld [vmem:[%s3 + $0x30] sm:$0xf]
        %v5067 = vld [vmem:[%s3 + $0x34] sm:$0xf]
        %v5068 = vld [vmem:[%s3 + $0x38] sm:$0xf]
        %v5069 = vld [vmem:[%s3 + $0x3c] sm:$0xf]
        %v5070 = vunpack.c.l.b16 %v4691
        %v5071 = vunpack.c.l.b16 %v4701
        %v5072 = vunpack.c.l.b16 %v4715
        %v5073 = vunpack.c.l.b16 %v4725
        %v5074 = vunpack.c.l.b16 %v4739
        %v5075 = vunpack.c.l.b16 %v4749
        %v5076 = vunpack.c.l.b16 %v4763
        %v5077 = vunpack.c.l.b16 %v4773
        %v5078 = vunpack.c.l.b16 %v4787
        %v5079 = vunpack.c.l.b16 %v4797
        %v5080 = vunpack.c.l.b16 %v4811
        %v5081 = vunpack.c.l.b16 %v4821
        %v5082 = vunpack.c.l.b16 %v4835
        %v5083 = vunpack.c.l.b16 %v4845
        %v5084 = vunpack.c.l.b16 %v4859
        %v5085 = vunpack.c.l.b16 %v4869
        %v5086 = vunpack.c.l.b16 %v4883
        %v5087 = vunpack.c.l.b16 %v4893
        %v5088 = vunpack.c.l.b16 %v4907
        %v5089 = vunpack.c.l.b16 %v4917
        %v5090 = vunpack.c.l.b16 %v4931
        %v5091 = vunpack.c.l.b16 %v4941
        %v5092 = vunpack.c.l.b16 %v4955
        %v5093 = vunpack.c.l.b16 %v4965
        %v5094 = vunpack.c.l.b16 %v4979
        %v5095 = vunpack.c.l.b16 %v4989
        %v5096 = vunpack.c.l.b16 %v5003
        %v5097 = vunpack.c.l.b16 %v5013
        %v5098 = vunpack.c.l.b16 %v5027
        %v5099 = vunpack.c.l.b16 %v5037
        %v5100 = vunpack.c.l.b16 %v5051
        %v5101 = vunpack.c.l.b16 %v5061
        %v5102 = vpack.c.b16 %v5071, %v5070
        %v5103 = vpack.c.b16 %v5073, %v5072
        %v5104 = vpack.c.b16 %v5075, %v5074
        %v5105 = vpack.c.b16 %v5077, %v5076
        %v5106 = vpack.c.b16 %v5079, %v5078
        %v5107 = vpack.c.b16 %v5081, %v5080
        %v5108 = vpack.c.b16 %v5083, %v5082
        %v5109 = vpack.c.b16 %v5085, %v5084
        %v5110 = vpack.c.b16 %v5087, %v5086
        %v5111 = vpack.c.b16 %v5089, %v5088
        %v5112 = vpack.c.b16 %v5091, %v5090
        %v5113 = vpack.c.b16 %v5093, %v5092
        %v5114 = vpack.c.b16 %v5095, %v5094
        %v5115 = vpack.c.b16 %v5097, %v5096
        %v5116 = vpack.c.b16 %v5099, %v5098
        %v5117 = vpack.c.b16 %v5101, %v5100
        %v5126 = vunpack.c.l.b16 %v5062
        %v5127 = vunpack.c.l.b16 %v5063
        %v5128 = vunpack.c.l.b16 %v5064
        %v5129 = vunpack.c.l.b16 %v5065
        %v5130 = vunpack.c.l.b16 %v5066
        %v5131 = vunpack.c.l.b16 %v5067
        %v5132 = vunpack.c.l.b16 %v5068
        %v5133 = vunpack.c.l.b16 %v5069
        %v5134 = vpack.c.b16 %v5127, %v5126
        %v5135 = vpack.c.b16 %v5129, %v5128
        %v5136 = vpack.c.b16 %v5131, %v5130
        %v5137 = vpack.c.b16 %v5133, %v5132
        %v5143 = vsel %vm1555, %v5102, 0
        %v5146 = vsel %vm1555, %v5103, 0
        %v5149 = vsel %vm1555, %v5104, 0
        %v5152 = vsel %vm1555, %v5105, 0
        %v5155 = vsel %vm1555, %v5106, 0
        %v5158 = vsel %vm1555, %v5107, 0
        %v5161 = vsel %vm1555, %v5108, 0
        %v5164 = vsel %vm1555, %v5109, 0
        %v5167 = vsel %vm1555, %v5110, 0
        %v5170 = vsel %vm1555, %v5111, 0
        %v5173 = vsel %vm1555, %v5112, 0
        %v5176 = vsel %vm1555, %v5113, 0
        %v5179 = vsel %vm1555, %v5114, 0
        %v5182 = vsel %vm1555, %v5115, 0
        %v5185 = vsel %vm1555, %v5116, 0
        %v5188 = vsel %vm1555, %v5117, 0
        %5190 = vmatprep.subr.bf16.mxu0 0
        %5191 = vmatpush1.bf16.msra.mxu0 0
        %5192 = vmatprep.subr.bf16.mxu0 0
        %5193 = vmatpush1.bf16.msra.mxu0 0
        %5194 = vmatprep.subr.bf16.mxu0 0
        %5195 = vmatpush1.bf16.msra.mxu0 0
        %5196 = vmatprep.subr.bf16.mxu0 0
        %5197 = vmatpush1.bf16.msra.mxu0 0
        %5198 = vmatprep.subr.bf16.mxu0 0
        %5199 = vmatpush1.bf16.msra.mxu0 %v5137
        %5200 = vmatprep.subr.bf16.mxu0 0
        %5201 = vmatpush1.bf16.msra.mxu0 %v5136
        %5202 = vmatprep.subr.bf16.mxu0 0
        %5203 = vmatpush1.bf16.msra.mxu0 %v5135
        %5204 = vmatprep.subr.bf16.mxu0 0
        %5205 = vmatpush1.bf16.msra.mxu0 %v5134
        %5206 = vmatprep.subr.bf16.mxu0 0
        %5207 = vmatpush2.bf16.msra.mxu0 0
        %5208 = vmatprep.subr.bf16.mxu0 0
        %5209 = vmatpush2.bf16.msra.mxu0 0
        %5210 = vmatprep.subr.bf16.mxu0 0
        %5211 = vmatpush2.bf16.msra.mxu0 0
        %5212 = vmatprep.subr.bf16.mxu0 0
        %5213 = vmatpush2.bf16.msra.mxu0 0
        %5214 = vmatprep.subr.bf16.mxu0 0
        %5215 = vmatpush2.bf16.msra.mxu0 0
        %5216 = vmatprep.subr.bf16.mxu0 0
        %5217 = vmatpush2.bf16.msra.mxu0 0
        %5218 = vmatprep.subr.bf16.mxu0 0
        %5219 = vmatpush2.bf16.msra.mxu0 0
        %5220 = vmatprep.subr.bf16.mxu0 0
        %5221 = vmatpush2.bf16.msra.mxu0 0
        %5222 = vmatprep.mubr.bf16.mxu0 0
        %5223 = vmatmul.mubr.bf16.gmra.mxu0 %v5143
        %v5224 = vpop.f32.mrf.mxu0
        %v5225 = vadd.f32 0.0, %v5224
        %v5226 = vpop.f32.mrf.mxu0
        %v5227 = vpop.f32.mrf.mxu0
        %v5228 = vadd.f32 0.0, %v5227
        %v5229 = vpop.f32.mrf.mxu0
        %5230 = vmatprep.mubr.bf16.mxu0 0
        %5231 = vmatmul.mubr.bf16.gmra.mxu0 %v5146
        %v5232 = vpop.f32.mrf.mxu0
        %v5233 = vadd.f32 0.0, %v5232
        %v5234 = vpop.f32.mrf.mxu0
        %v5235 = vpop.f32.mrf.mxu0
        %v5236 = vadd.f32 0.0, %v5235
        %v5237 = vpop.f32.mrf.mxu0
        %5238 = vmatprep.mubr.bf16.mxu0 0
        %5239 = vmatmul.mubr.bf16.gmra.mxu0 %v5149
        %v5240 = vpop.f32.mrf.mxu0
        %v5241 = vadd.f32 0.0, %v5240
        %v5242 = vpop.f32.mrf.mxu0
        %v5243 = vpop.f32.mrf.mxu0
        %v5244 = vadd.f32 0.0, %v5243
        %v5245 = vpop.f32.mrf.mxu0
        %5246 = vmatprep.mubr.bf16.mxu0 0
        %5247 = vmatmul.mubr.bf16.gmra.mxu0 %v5152
        %v5248 = vpop.f32.mrf.mxu0
        %v5249 = vadd.f32 0.0, %v5248
        %v5250 = vpop.f32.mrf.mxu0
        %v5251 = vpop.f32.mrf.mxu0
        %v5252 = vadd.f32 0.0, %v5251
        %v5253 = vpop.f32.mrf.mxu0
        %5254 = vmatprep.mubr.bf16.mxu0 0
        %5255 = vmatmul.mubr.bf16.gmra.mxu0 %v5155
        %v5256 = vpop.f32.mrf.mxu0
        %v5257 = vadd.f32 0.0, %v5256
        %v5258 = vpop.f32.mrf.mxu0
        %v5259 = vpop.f32.mrf.mxu0
        %v5260 = vadd.f32 0.0, %v5259
        %v5261 = vpop.f32.mrf.mxu0
        %5262 = vmatprep.mubr.bf16.mxu0 0
        %5263 = vmatmul.mubr.bf16.gmra.mxu0 %v5158
        %v5264 = vpop.f32.mrf.mxu0
        %v5265 = vadd.f32 0.0, %v5264
        %v5266 = vpop.f32.mrf.mxu0
        %v5267 = vpop.f32.mrf.mxu0
        %v5268 = vadd.f32 0.0, %v5267
        %v5269 = vpop.f32.mrf.mxu0
        %5270 = vmatprep.mubr.bf16.mxu0 0
        %5271 = vmatmul.mubr.bf16.gmra.mxu0 %v5161
        %v5272 = vpop.f32.mrf.mxu0
        %v5273 = vadd.f32 0.0, %v5272
        %v5274 = vpop.f32.mrf.mxu0
        %v5275 = vpop.f32.mrf.mxu0
        %v5276 = vadd.f32 0.0, %v5275
        %v5277 = vpop.f32.mrf.mxu0
        %5278 = vmatprep.mubr.bf16.mxu0 0
        %5279 = vmatmul.mubr.bf16.gmra.mxu0 %v5164
        %v5280 = vpop.f32.mrf.mxu0
        %v5281 = vadd.f32 0.0, %v5280
        %v5282 = vpop.f32.mrf.mxu0
        %v5283 = vpop.f32.mrf.mxu0
        %v5284 = vadd.f32 0.0, %v5283
        %v5285 = vpop.f32.mrf.mxu0
        %5286 = vmatprep.mubr.bf16.mxu0 0
        %5287 = vmatmul.mubr.bf16.gmra.mxu0 %v5167
        %v5288 = vpop.f32.mrf.mxu0
        %v5289 = vadd.f32 0.0, %v5288
        %v5290 = vpop.f32.mrf.mxu0
        %v5291 = vpop.f32.mrf.mxu0
        %v5292 = vadd.f32 0.0, %v5291
        %v5293 = vpop.f32.mrf.mxu0
        %5294 = vmatprep.mubr.bf16.mxu0 0
        %5295 = vmatmul.mubr.bf16.gmra.mxu0 %v5170
        %v5296 = vpop.f32.mrf.mxu0
        %v5297 = vadd.f32 0.0, %v5296
        %v5298 = vpop.f32.mrf.mxu0
        %v5299 = vpop.f32.mrf.mxu0
        %v5300 = vadd.f32 0.0, %v5299
        %v5301 = vpop.f32.mrf.mxu0
        %5302 = vmatprep.mubr.bf16.mxu0 0
        %5303 = vmatmul.mubr.bf16.gmra.mxu0 %v5173
        %v5304 = vpop.f32.mrf.mxu0
        %v5305 = vadd.f32 0.0, %v5304
        %v5306 = vpop.f32.mrf.mxu0
        %v5307 = vpop.f32.mrf.mxu0
        %v5308 = vadd.f32 0.0, %v5307
        %v5309 = vpop.f32.mrf.mxu0
        %5310 = vmatprep.mubr.bf16.mxu0 0
        %5311 = vmatmul.mubr.bf16.gmra.mxu0 %v5176
        %v5312 = vpop.f32.mrf.mxu0
        %v5313 = vadd.f32 0.0, %v5312
        %v5314 = vpop.f32.mrf.mxu0
        %v5315 = vpop.f32.mrf.mxu0
        %v5316 = vadd.f32 0.0, %v5315
        %v5317 = vpop.f32.mrf.mxu0
        %5318 = vmatprep.mubr.bf16.mxu0 0
        %5319 = vmatmul.mubr.bf16.gmra.mxu0 %v5179
        %v5320 = vpop.f32.mrf.mxu0
        %v5321 = vadd.f32 0.0, %v5320
        %v5322 = vpop.f32.mrf.mxu0
        %v5323 = vpop.f32.mrf.mxu0
        %v5324 = vadd.f32 0.0, %v5323
        %v5325 = vpop.f32.mrf.mxu0
        %5326 = vmatprep.mubr.bf16.mxu0 0
        %5327 = vmatmul.mubr.bf16.gmra.mxu0 %v5182
        %v5328 = vpop.f32.mrf.mxu0
        %v5329 = vadd.f32 0.0, %v5328
        %v5330 = vpop.f32.mrf.mxu0
        %v5331 = vpop.f32.mrf.mxu0
        %v5332 = vadd.f32 0.0, %v5331
        %v5333 = vpop.f32.mrf.mxu0
        %5334 = vmatprep.mubr.bf16.mxu0 0
        %5335 = vmatmul.mubr.bf16.gmra.mxu0 %v5185
        %v5336 = vpop.f32.mrf.mxu0
        %v5337 = vadd.f32 0.0, %v5336
        %v5338 = vpop.f32.mrf.mxu0
        %v5339 = vpop.f32.mrf.mxu0
        %v5340 = vadd.f32 0.0, %v5339
        %v5341 = vpop.f32.mrf.mxu0
        %5342 = vmatprep.mubr.bf16.mxu0 0
        %5343 = vmatmul.mubr.bf16.gmra.mxu0 %v5188
        %v5344 = vpop.f32.mrf.mxu0
        %v5345 = vadd.f32 0.0, %v5344
        %v5346 = vpop.f32.mrf.mxu0
        %v5347 = vpop.f32.mrf.mxu0
        %v5348 = vadd.f32 0.0, %v5347
        %v5349 = vpop.f32.mrf.mxu0
        %5350 = vdwg.mxu0
        %v5383 = vunpack.c.l.b16 %v4616
        %v5384 = vunpack.c.l.b16 %v4617
        %v5385 = vunpack.c.l.b16 %v4619
        %v5386 = vunpack.c.l.b16 %v4620
        %v5387 = vunpack.c.l.b16 %v4622
        %v5388 = vunpack.c.l.b16 %v4623
        %v5389 = vunpack.c.l.b16 %v4625
        %v5390 = vunpack.c.l.b16 %v4626
        %v5391 = vunpack.c.l.b16 %v4628
        %v5392 = vunpack.c.l.b16 %v4629
        %v5393 = vunpack.c.l.b16 %v4631
        %v5394 = vunpack.c.l.b16 %v4632
        %v5395 = vunpack.c.l.b16 %v4634
        %v5396 = vunpack.c.l.b16 %v4635
        %v5397 = vunpack.c.l.b16 %v4637
        %v5398 = vunpack.c.l.b16 %v4638
        %v5399 = vunpack.c.l.b16 %v4640
        %v5400 = vunpack.c.l.b16 %v4641
        %v5401 = vunpack.c.l.b16 %v4643
        %v5402 = vunpack.c.l.b16 %v4644
        %v5403 = vunpack.c.l.b16 %v4646
        %v5404 = vunpack.c.l.b16 %v4647
        %v5405 = vunpack.c.l.b16 %v4649
        %v5406 = vunpack.c.l.b16 %v4650
        %v5407 = vunpack.c.l.b16 %v4652
        %v5408 = vunpack.c.l.b16 %v4653
        %v5409 = vunpack.c.l.b16 %v4655
        %v5410 = vunpack.c.l.b16 %v4656
        %v5411 = vunpack.c.l.b16 %v4658
        %v5412 = vunpack.c.l.b16 %v4659
        %v5413 = vunpack.c.l.b16 %v4661
        %v5414 = vunpack.c.l.b16 %v4662
        %v5415 = vpack.c.b16 %v5384, %v5383
        %v5416 = vpack.c.b16 %v5386, %v5385
        %v5417 = vpack.c.b16 %v5388, %v5387
        %v5418 = vpack.c.b16 %v5390, %v5389
        %v5419 = vpack.c.b16 %v5392, %v5391
        %v5420 = vpack.c.b16 %v5394, %v5393
        %v5421 = vpack.c.b16 %v5396, %v5395
        %v5422 = vpack.c.b16 %v5398, %v5397
        %v5423 = vpack.c.b16 %v5400, %v5399
        %v5424 = vpack.c.b16 %v5402, %v5401
        %v5425 = vpack.c.b16 %v5404, %v5403
        %v5426 = vpack.c.b16 %v5406, %v5405
        %v5427 = vpack.c.b16 %v5408, %v5407
        %v5428 = vpack.c.b16 %v5410, %v5409
        %v5429 = vpack.c.b16 %v5412, %v5411
        %v5430 = vpack.c.b16 %v5414, %v5413
        %v5439 = vunpack.c.l.b16 %v4670
        %v5440 = vunpack.c.l.b16 %v4671
        %v5441 = vunpack.c.l.b16 %v4672
        %v5442 = vunpack.c.l.b16 %v4673
        %v5443 = vunpack.c.l.b16 %v4674
        %v5444 = vunpack.c.l.b16 %v4675
        %v5445 = vunpack.c.l.b16 %v4676
        %v5446 = vunpack.c.l.b16 %v4677
        %v5447 = vpack.c.b16 %v5440, %v5439
        %v5448 = vpack.c.b16 %v5442, %v5441
        %v5449 = vpack.c.b16 %v5444, %v5443
        %v5450 = vpack.c.b16 %v5446, %v5445
        %v5456 = vsel %vm1555, %v5415, 0
        %v5459 = vsel %vm1555, %v5416, 0
        %v5462 = vsel %vm1555, %v5417, 0
        %v5465 = vsel %vm1555, %v5418, 0
        %v5468 = vsel %vm1555, %v5419, 0
        %v5471 = vsel %vm1555, %v5420, 0
        %v5474 = vsel %vm1555, %v5421, 0
        %v5477 = vsel %vm1555, %v5422, 0
        %v5480 = vsel %vm1555, %v5423, 0
        %v5483 = vsel %vm1555, %v5424, 0
        %v5486 = vsel %vm1555, %v5425, 0
        %v5489 = vsel %vm1555, %v5426, 0
        %v5492 = vsel %vm1555, %v5427, 0
        %v5495 = vsel %vm1555, %v5428, 0
        %v5498 = vsel %vm1555, %v5429, 0
        %v5501 = vsel %vm1555, %v5430, 0
        %5503 = vmatprep.subr.bf16.mxu0 0
        %5504 = vmatpush1.bf16.msra.mxu0 0
        %5505 = vmatprep.subr.bf16.mxu0 0
        %5506 = vmatpush1.bf16.msra.mxu0 0
        %5507 = vmatprep.subr.bf16.mxu0 0
        %5508 = vmatpush1.bf16.msra.mxu0 0
        %5509 = vmatprep.subr.bf16.mxu0 0
        %5510 = vmatpush1.bf16.msra.mxu0 0
        %5511 = vmatprep.subr.bf16.mxu0 0
        %5512 = vmatpush1.bf16.msra.mxu0 %v5450
        %5513 = vmatprep.subr.bf16.mxu0 0
        %5514 = vmatpush1.bf16.msra.mxu0 %v5449
        %5515 = vmatprep.subr.bf16.mxu0 0
        %5516 = vmatpush1.bf16.msra.mxu0 %v5448
        %5517 = vmatprep.subr.bf16.mxu0 0
        %5518 = vmatpush1.bf16.msra.mxu0 %v5447
        %5519 = vmatprep.subr.bf16.mxu0 0
        %5520 = vmatpush2.bf16.msra.mxu0 0
        %5521 = vmatprep.subr.bf16.mxu0 0
        %5522 = vmatpush2.bf16.msra.mxu0 0
        %5523 = vmatprep.subr.bf16.mxu0 0
        %5524 = vmatpush2.bf16.msra.mxu0 0
        %5525 = vmatprep.subr.bf16.mxu0 0
        %5526 = vmatpush2.bf16.msra.mxu0 0
        %5527 = vmatprep.subr.bf16.mxu0 0
        %5528 = vmatpush2.bf16.msra.mxu0 0
        %5529 = vmatprep.subr.bf16.mxu0 0
        %5530 = vmatpush2.bf16.msra.mxu0 0
        %5531 = vmatprep.subr.bf16.mxu0 0
        %5532 = vmatpush2.bf16.msra.mxu0 0
        %5533 = vmatprep.subr.bf16.mxu0 0
        %5534 = vmatpush2.bf16.msra.mxu0 0
        %5535 = vmatprep.mubr.bf16.mxu0 0
        %5536 = vmatmul.mubr.bf16.gmra.mxu0 %v5456
        %v5537 = vpop.f32.mrf.mxu0
        %v5538 = vadd.f32 %v5225, %v5537
        %v5539 = vpop.f32.mrf.mxu0
        %v5540 = vpop.f32.mrf.mxu0
        %v5541 = vadd.f32 %v5228, %v5540
        %v5542 = vpop.f32.mrf.mxu0
        %5543 = vmatprep.mubr.bf16.mxu0 0
        %5544 = vmatmul.mubr.bf16.gmra.mxu0 %v5459
        %v5545 = vpop.f32.mrf.mxu0
        %v5546 = vadd.f32 %v5233, %v5545
        %v5547 = vpop.f32.mrf.mxu0
        %v5548 = vpop.f32.mrf.mxu0
        %v5549 = vadd.f32 %v5236, %v5548
        %v5550 = vpop.f32.mrf.mxu0
        %5551 = vmatprep.mubr.bf16.mxu0 0
        %5552 = vmatmul.mubr.bf16.gmra.mxu0 %v5462
        %v5553 = vpop.f32.mrf.mxu0
        %v5554 = vadd.f32 %v5241, %v5553
        %v5555 = vpop.f32.mrf.mxu0
        %v5556 = vpop.f32.mrf.mxu0
        %v5557 = vadd.f32 %v5244, %v5556
        %v5558 = vpop.f32.mrf.mxu0
        %5559 = vmatprep.mubr.bf16.mxu0 0
        %5560 = vmatmul.mubr.bf16.gmra.mxu0 %v5465
        %v5561 = vpop.f32.mrf.mxu0
        %v5562 = vadd.f32 %v5249, %v5561
        %v5563 = vpop.f32.mrf.mxu0
        %v5564 = vpop.f32.mrf.mxu0
        %v5565 = vadd.f32 %v5252, %v5564
        %v5566 = vpop.f32.mrf.mxu0
        %5567 = vmatprep.mubr.bf16.mxu0 0
        %5568 = vmatmul.mubr.bf16.gmra.mxu0 %v5468
        %v5569 = vpop.f32.mrf.mxu0
        %v5570 = vadd.f32 %v5257, %v5569
        %v5571 = vpop.f32.mrf.mxu0
        %v5572 = vpop.f32.mrf.mxu0
        %v5573 = vadd.f32 %v5260, %v5572
        %v5574 = vpop.f32.mrf.mxu0
        %5575 = vmatprep.mubr.bf16.mxu0 0
        %5576 = vmatmul.mubr.bf16.gmra.mxu0 %v5471
        %v5577 = vpop.f32.mrf.mxu0
        %v5578 = vadd.f32 %v5265, %v5577
        %v5579 = vpop.f32.mrf.mxu0
        %v5580 = vpop.f32.mrf.mxu0
        %v5581 = vadd.f32 %v5268, %v5580
        %v5582 = vpop.f32.mrf.mxu0
        %5583 = vmatprep.mubr.bf16.mxu0 0
        %5584 = vmatmul.mubr.bf16.gmra.mxu0 %v5474
        %v5585 = vpop.f32.mrf.mxu0
        %v5586 = vadd.f32 %v5273, %v5585
        %v5587 = vpop.f32.mrf.mxu0
        %v5588 = vpop.f32.mrf.mxu0
        %v5589 = vadd.f32 %v5276, %v5588
        %v5590 = vpop.f32.mrf.mxu0
        %5591 = vmatprep.mubr.bf16.mxu0 0
        %5592 = vmatmul.mubr.bf16.gmra.mxu0 %v5477
        %v5593 = vpop.f32.mrf.mxu0
        %v5594 = vadd.f32 %v5281, %v5593
        %v5595 = vpop.f32.mrf.mxu0
        %v5596 = vpop.f32.mrf.mxu0
        %v5597 = vadd.f32 %v5284, %v5596
        %v5598 = vpop.f32.mrf.mxu0
        %5599 = vmatprep.mubr.bf16.mxu0 0
        %5600 = vmatmul.mubr.bf16.gmra.mxu0 %v5480
        %v5601 = vpop.f32.mrf.mxu0
        %v5602 = vadd.f32 %v5289, %v5601
        %v5603 = vpop.f32.mrf.mxu0
        %v5604 = vpop.f32.mrf.mxu0
        %v5605 = vadd.f32 %v5292, %v5604
        %v5606 = vpop.f32.mrf.mxu0
        %5607 = vmatprep.mubr.bf16.mxu0 0
        %5608 = vmatmul.mubr.bf16.gmra.mxu0 %v5483
        %v5609 = vpop.f32.mrf.mxu0
        %v5610 = vadd.f32 %v5297, %v5609
        %v5611 = vpop.f32.mrf.mxu0
        %v5612 = vpop.f32.mrf.mxu0
        %v5613 = vadd.f32 %v5300, %v5612
        %v5614 = vpop.f32.mrf.mxu0
        %5615 = vmatprep.mubr.bf16.mxu0 0
        %5616 = vmatmul.mubr.bf16.gmra.mxu0 %v5486
        %v5617 = vpop.f32.mrf.mxu0
        %v5618 = vadd.f32 %v5305, %v5617
        %v5619 = vpop.f32.mrf.mxu0
        %v5620 = vpop.f32.mrf.mxu0
        %v5621 = vadd.f32 %v5308, %v5620
        %v5622 = vpop.f32.mrf.mxu0
        %5623 = vmatprep.mubr.bf16.mxu0 0
        %5624 = vmatmul.mubr.bf16.gmra.mxu0 %v5489
        %v5625 = vpop.f32.mrf.mxu0
        %v5626 = vadd.f32 %v5313, %v5625
        %v5627 = vpop.f32.mrf.mxu0
        %v5628 = vpop.f32.mrf.mxu0
        %v5629 = vadd.f32 %v5316, %v5628
        %v5630 = vpop.f32.mrf.mxu0
        %5631 = vmatprep.mubr.bf16.mxu0 0
        %5632 = vmatmul.mubr.bf16.gmra.mxu0 %v5492
        %v5633 = vpop.f32.mrf.mxu0
        %v5634 = vadd.f32 %v5321, %v5633
        %v5635 = vpop.f32.mrf.mxu0
        %v5636 = vpop.f32.mrf.mxu0
        %v5637 = vadd.f32 %v5324, %v5636
        %v5638 = vpop.f32.mrf.mxu0
        %5639 = vmatprep.mubr.bf16.mxu0 0
        %5640 = vmatmul.mubr.bf16.gmra.mxu0 %v5495
        %v5641 = vpop.f32.mrf.mxu0
        %v5642 = vadd.f32 %v5329, %v5641
        %v5643 = vpop.f32.mrf.mxu0
        %v5644 = vpop.f32.mrf.mxu0
        %v5645 = vadd.f32 %v5332, %v5644
        %v5646 = vpop.f32.mrf.mxu0
        %5647 = vmatprep.mubr.bf16.mxu0 0
        %5648 = vmatmul.mubr.bf16.gmra.mxu0 %v5498
        %v5649 = vpop.f32.mrf.mxu0
        %v5650 = vadd.f32 %v5337, %v5649
        %v5651 = vpop.f32.mrf.mxu0
        %v5652 = vpop.f32.mrf.mxu0
        %v5653 = vadd.f32 %v5340, %v5652
        %v5654 = vpop.f32.mrf.mxu0
        %5655 = vmatprep.mubr.bf16.mxu0 0
        %5656 = vmatmul.mubr.bf16.gmra.mxu0 %v5501
        %v5657 = vpop.f32.mrf.mxu0
        %v5658 = vadd.f32 %v5345, %v5657
        %v5659 = vpop.f32.mrf.mxu0
        %v5660 = vpop.f32.mrf.mxu0
        %v5661 = vadd.f32 %v5348, %v5660
        %v5662 = vpop.f32.mrf.mxu0
        %5663 = vdwg.mxu0
        %v5680 = vrot.slane %v4616, 5
        %v5681 = vrot.slane %v5680, 4
        %v5682 = vrot.slane %v4617, 5
        %v5683 = vsel %vm2096, %v5681, %v5682
        %v5684 = vrot.slane %v5682, 4
        %v5685 = vrot.slane %v4618, 5
        %v5686 = vsel %vm2096, %v5684, %v5685
        %v5687 = vrot.slane %v4619, 5
        %v5688 = vrot.slane %v5687, 4
        %v5689 = vrot.slane %v4620, 5
        %v5690 = vsel %vm2096, %v5688, %v5689
        %v5691 = vrot.slane %v5689, 4
        %v5692 = vrot.slane %v4621, 5
        %v5693 = vsel %vm2096, %v5691, %v5692
        %v5694 = vrot.slane %v4622, 5
        %v5695 = vrot.slane %v5694, 4
        %v5696 = vrot.slane %v4623, 5
        %v5697 = vsel %vm2096, %v5695, %v5696
        %v5698 = vrot.slane %v5696, 4
        %v5699 = vrot.slane %v4624, 5
        %v5700 = vsel %vm2096, %v5698, %v5699
        %v5701 = vrot.slane %v4625, 5
        %v5702 = vrot.slane %v5701, 4
        %v5703 = vrot.slane %v4626, 5
        %v5704 = vsel %vm2096, %v5702, %v5703
        %v5705 = vrot.slane %v5703, 4
        %v5706 = vrot.slane %v4627, 5
        %v5707 = vsel %vm2096, %v5705, %v5706
        %v5708 = vrot.slane %v4628, 5
        %v5709 = vrot.slane %v5708, 4
        %v5710 = vrot.slane %v4629, 5
        %v5711 = vsel %vm2096, %v5709, %v5710
        %v5712 = vrot.slane %v5710, 4
        %v5713 = vrot.slane %v4630, 5
        %v5714 = vsel %vm2096, %v5712, %v5713
        %v5715 = vrot.slane %v4631, 5
        %v5716 = vrot.slane %v5715, 4
        %v5717 = vrot.slane %v4632, 5
        %v5718 = vsel %vm2096, %v5716, %v5717
        %v5719 = vrot.slane %v5717, 4
        %v5720 = vrot.slane %v4633, 5
        %v5721 = vsel %vm2096, %v5719, %v5720
        %v5722 = vrot.slane %v4634, 5
        %v5723 = vrot.slane %v5722, 4
        %v5724 = vrot.slane %v4635, 5
        %v5725 = vsel %vm2096, %v5723, %v5724
        %v5726 = vrot.slane %v5724, 4
        %v5727 = vrot.slane %v4636, 5
        %v5728 = vsel %vm2096, %v5726, %v5727
        %v5729 = vrot.slane %v4637, 5
        %v5730 = vrot.slane %v5729, 4
        %v5731 = vrot.slane %v4638, 5
        %v5732 = vsel %vm2096, %v5730, %v5731
        %v5733 = vrot.slane %v5731, 4
        %v5734 = vrot.slane %v4639, 5
        %v5735 = vsel %vm2096, %v5733, %v5734
        %v5736 = vrot.slane %v4640, 5
        %v5737 = vrot.slane %v5736, 4
        %v5738 = vrot.slane %v4641, 5
        %v5739 = vsel %vm2096, %v5737, %v5738
        %v5740 = vrot.slane %v5738, 4
        %v5741 = vrot.slane %v4642, 5
        %v5742 = vsel %vm2096, %v5740, %v5741
        %v5743 = vrot.slane %v4643, 5
        %v5744 = vrot.slane %v5743, 4
        %v5745 = vrot.slane %v4644, 5
        %v5746 = vsel %vm2096, %v5744, %v5745
        %v5747 = vrot.slane %v5745, 4
        %v5748 = vrot.slane %v4645, 5
        %v5749 = vsel %vm2096, %v5747, %v5748
        %v5750 = vrot.slane %v4646, 5
        %v5751 = vrot.slane %v5750, 4
        %v5752 = vrot.slane %v4647, 5
        %v5753 = vsel %vm2096, %v5751, %v5752
        %v5754 = vrot.slane %v5752, 4
        %v5755 = vrot.slane %v4648, 5
        %v5756 = vsel %vm2096, %v5754, %v5755
        %v5757 = vrot.slane %v4649, 5
        %v5758 = vrot.slane %v5757, 4
        %v5759 = vrot.slane %v4650, 5
        %v5760 = vsel %vm2096, %v5758, %v5759
        %v5761 = vrot.slane %v5759, 4
        %v5762 = vrot.slane %v4651, 5
        %v5763 = vsel %vm2096, %v5761, %v5762
        %v5764 = vrot.slane %v4652, 5
        %v5765 = vrot.slane %v5764, 4
        %v5766 = vrot.slane %v4653, 5
        %v5767 = vsel %vm2096, %v5765, %v5766
        %v5768 = vrot.slane %v5766, 4
        %v5769 = vrot.slane %v4654, 5
        %v5770 = vsel %vm2096, %v5768, %v5769
        %v5771 = vrot.slane %v4655, 5
        %v5772 = vrot.slane %v5771, 4
        %v5773 = vrot.slane %v4656, 5
        %v5774 = vsel %vm2096, %v5772, %v5773
        %v5775 = vrot.slane %v5773, 4
        %v5776 = vrot.slane %v4657, 5
        %v5777 = vsel %vm2096, %v5775, %v5776
        %v5778 = vrot.slane %v4658, 5
        %v5779 = vrot.slane %v5778, 4
        %v5780 = vrot.slane %v4659, 5
        %v5781 = vsel %vm2096, %v5779, %v5780
        %v5782 = vrot.slane %v5780, 4
        %v5783 = vrot.slane %v4660, 5
        %v5784 = vsel %vm2096, %v5782, %v5783
        %v5785 = vrot.slane %v4661, 5
        %v5786 = vrot.slane %v5785, 4
        %v5787 = vrot.slane %v4662, 5
        %v5788 = vsel %vm2096, %v5786, %v5787
        %v5789 = vrot.slane %v5787, 4
        %v5790 = vrot.slane %v4663, 5
        %v5791 = vsel %vm2096, %v5789, %v5790
        %v5792 = vld [vmem:[%s3 + $0x40] sm:$0xf]
        %v5793 = vld [vmem:[%s3 + $0x44] sm:$0xf]
        %v5794 = vld [vmem:[%s3 + $0x48] sm:$0xf]
        %v5795 = vld [vmem:[%s3 + $0x4c] sm:$0xf]
        %v5796 = vld [vmem:[%s3 + $0x50] sm:$0xf]
        %v5797 = vld [vmem:[%s3 + $0x54] sm:$0xf]
        %v5798 = vld [vmem:[%s3 + $0x58] sm:$0xf]
        %v5799 = vld [vmem:[%s3 + $0x5c] sm:$0xf]
        %v5800 = vunpack.c.l.b16 %v5683
        %v5801 = vunpack.c.l.b16 %v5686
        %v5802 = vunpack.c.l.b16 %v5690
        %v5803 = vunpack.c.l.b16 %v5693
        %v5804 = vunpack.c.l.b16 %v5697
        %v5805 = vunpack.c.l.b16 %v5700
        %v5806 = vunpack.c.l.b16 %v5704
        %v5807 = vunpack.c.l.b16 %v5707
        %v5808 = vunpack.c.l.b16 %v5711
        %v5809 = vunpack.c.l.b16 %v5714
        %v5810 = vunpack.c.l.b16 %v5718
        %v5811 = vunpack.c.l.b16 %v5721
        %v5812 = vunpack.c.l.b16 %v5725
        %v5813 = vunpack.c.l.b16 %v5728
        %v5814 = vunpack.c.l.b16 %v5732
        %v5815 = vunpack.c.l.b16 %v5735
        %v5816 = vunpack.c.l.b16 %v5739
        %v5817 = vunpack.c.l.b16 %v5742
        %v5818 = vunpack.c.l.b16 %v5746
        %v5819 = vunpack.c.l.b16 %v5749
        %v5820 = vunpack.c.l.b16 %v5753
        %v5821 = vunpack.c.l.b16 %v5756
        %v5822 = vunpack.c.l.b16 %v5760
        %v5823 = vunpack.c.l.b16 %v5763
        %v5824 = vunpack.c.l.b16 %v5767
        %v5825 = vunpack.c.l.b16 %v5770
        %v5826 = vunpack.c.l.b16 %v5774
        %v5827 = vunpack.c.l.b16 %v5777
        %v5828 = vunpack.c.l.b16 %v5781
        %v5829 = vunpack.c.l.b16 %v5784
        %v5830 = vunpack.c.l.b16 %v5788
        %v5831 = vunpack.c.l.b16 %v5791
        %v5832 = vpack.c.b16 %v5801, %v5800
        %v5833 = vpack.c.b16 %v5803, %v5802
        %v5834 = vpack.c.b16 %v5805, %v5804
        %v5835 = vpack.c.b16 %v5807, %v5806
        %v5836 = vpack.c.b16 %v5809, %v5808
        %v5837 = vpack.c.b16 %v5811, %v5810
        %v5838 = vpack.c.b16 %v5813, %v5812
        %v5839 = vpack.c.b16 %v5815, %v5814
        %v5840 = vpack.c.b16 %v5817, %v5816
        %v5841 = vpack.c.b16 %v5819, %v5818
        %v5842 = vpack.c.b16 %v5821, %v5820
        %v5843 = vpack.c.b16 %v5823, %v5822
        %v5844 = vpack.c.b16 %v5825, %v5824
        %v5845 = vpack.c.b16 %v5827, %v5826
        %v5846 = vpack.c.b16 %v5829, %v5828
        %v5847 = vpack.c.b16 %v5831, %v5830
        %v5856 = vunpack.c.l.b16 %v5792
        %v5857 = vunpack.c.l.b16 %v5793
        %v5858 = vunpack.c.l.b16 %v5794
        %v5859 = vunpack.c.l.b16 %v5795
        %v5860 = vunpack.c.l.b16 %v5796
        %v5861 = vunpack.c.l.b16 %v5797
        %v5862 = vunpack.c.l.b16 %v5798
        %v5863 = vunpack.c.l.b16 %v5799
        %v5864 = vpack.c.b16 %v5857, %v5856
        %v5865 = vpack.c.b16 %v5859, %v5858
        %v5866 = vpack.c.b16 %v5861, %v5860
        %v5867 = vpack.c.b16 %v5863, %v5862
        %v5873 = vsel %vm1555, %v5832, 0
        %v5876 = vsel %vm1555, %v5833, 0
        %v5879 = vsel %vm1555, %v5834, 0
        %v5882 = vsel %vm1555, %v5835, 0
        %v5885 = vsel %vm1555, %v5836, 0
        %v5888 = vsel %vm1555, %v5837, 0
        %v5891 = vsel %vm1555, %v5838, 0
        %v5894 = vsel %vm1555, %v5839, 0
        %v5897 = vsel %vm1555, %v5840, 0
        %v5900 = vsel %vm1555, %v5841, 0
        %v5903 = vsel %vm1555, %v5842, 0
        %v5906 = vsel %vm1555, %v5843, 0
        %v5909 = vsel %vm1555, %v5844, 0
        %v5912 = vsel %vm1555, %v5845, 0
        %v5915 = vsel %vm1555, %v5846, 0
        %v5918 = vsel %vm1555, %v5847, 0
        %5920 = vmatprep.subr.bf16.mxu0 0
        %5921 = vmatpush1.bf16.msra.mxu0 0
        %5922 = vmatprep.subr.bf16.mxu0 0
        %5923 = vmatpush1.bf16.msra.mxu0 0
        %5924 = vmatprep.subr.bf16.mxu0 0
        %5925 = vmatpush1.bf16.msra.mxu0 0
        %5926 = vmatprep.subr.bf16.mxu0 0
        %5927 = vmatpush1.bf16.msra.mxu0 0
        %5928 = vmatprep.subr.bf16.mxu0 0
        %5929 = vmatpush1.bf16.msra.mxu0 %v5867
        %5930 = vmatprep.subr.bf16.mxu0 0
        %5931 = vmatpush1.bf16.msra.mxu0 %v5866
        %5932 = vmatprep.subr.bf16.mxu0 0
        %5933 = vmatpush1.bf16.msra.mxu0 %v5865
        %5934 = vmatprep.subr.bf16.mxu0 0
        %5935 = vmatpush1.bf16.msra.mxu0 %v5864
        %5936 = vmatprep.subr.bf16.mxu0 0
        %5937 = vmatpush2.bf16.msra.mxu0 0
        %5938 = vmatprep.subr.bf16.mxu0 0
        %5939 = vmatpush2.bf16.msra.mxu0 0
        %5940 = vmatprep.subr.bf16.mxu0 0
        %5941 = vmatpush2.bf16.msra.mxu0 0
        %5942 = vmatprep.subr.bf16.mxu0 0
        %5943 = vmatpush2.bf16.msra.mxu0 0
        %5944 = vmatprep.subr.bf16.mxu0 0
        %5945 = vmatpush2.bf16.msra.mxu0 0
        %5946 = vmatprep.subr.bf16.mxu0 0
        %5947 = vmatpush2.bf16.msra.mxu0 0
        %5948 = vmatprep.subr.bf16.mxu0 0
        %5949 = vmatpush2.bf16.msra.mxu0 0
        %5950 = vmatprep.subr.bf16.mxu0 0
        %5951 = vmatpush2.bf16.msra.mxu0 0
        %5952 = vmatprep.mubr.bf16.mxu0 0
        %5953 = vmatmul.mubr.bf16.gmra.mxu0 %v5873
        %v5954 = vpop.f32.mrf.mxu0
        %v5955 = vadd.f32 0.0, %v5954
        %v5956 = vpop.f32.mrf.mxu0
        %v5957 = vpop.f32.mrf.mxu0
        %v5958 = vadd.f32 0.0, %v5957
        %v5959 = vpop.f32.mrf.mxu0
        %5960 = vmatprep.mubr.bf16.mxu0 0
        %5961 = vmatmul.mubr.bf16.gmra.mxu0 %v5876
        %v5962 = vpop.f32.mrf.mxu0
        %v5963 = vadd.f32 0.0, %v5962
        %v5964 = vpop.f32.mrf.mxu0
        %v5965 = vpop.f32.mrf.mxu0
        %v5966 = vadd.f32 0.0, %v5965
        %v5967 = vpop.f32.mrf.mxu0
        %5968 = vmatprep.mubr.bf16.mxu0 0
        %5969 = vmatmul.mubr.bf16.gmra.mxu0 %v5879
        %v5970 = vpop.f32.mrf.mxu0
        %v5971 = vadd.f32 0.0, %v5970
        %v5972 = vpop.f32.mrf.mxu0
        %v5973 = vpop.f32.mrf.mxu0
        %v5974 = vadd.f32 0.0, %v5973
        %v5975 = vpop.f32.mrf.mxu0
        %5976 = vmatprep.mubr.bf16.mxu0 0
        %5977 = vmatmul.mubr.bf16.gmra.mxu0 %v5882
        %v5978 = vpop.f32.mrf.mxu0
        %v5979 = vadd.f32 0.0, %v5978
        %v5980 = vpop.f32.mrf.mxu0
        %v5981 = vpop.f32.mrf.mxu0
        %v5982 = vadd.f32 0.0, %v5981
        %v5983 = vpop.f32.mrf.mxu0
        %5984 = vmatprep.mubr.bf16.mxu0 0
        %5985 = vmatmul.mubr.bf16.gmra.mxu0 %v5885
        %v5986 = vpop.f32.mrf.mxu0
        %v5987 = vadd.f32 0.0, %v5986
        %v5988 = vpop.f32.mrf.mxu0
        %v5989 = vpop.f32.mrf.mxu0
        %v5990 = vadd.f32 0.0, %v5989
        %v5991 = vpop.f32.mrf.mxu0
        %5992 = vmatprep.mubr.bf16.mxu0 0
        %5993 = vmatmul.mubr.bf16.gmra.mxu0 %v5888
        %v5994 = vpop.f32.mrf.mxu0
        %v5995 = vadd.f32 0.0, %v5994
        %v5996 = vpop.f32.mrf.mxu0
        %v5997 = vpop.f32.mrf.mxu0
        %v5998 = vadd.f32 0.0, %v5997
        %v5999 = vpop.f32.mrf.mxu0
        %6000 = vmatprep.mubr.bf16.mxu0 0
        %6001 = vmatmul.mubr.bf16.gmra.mxu0 %v5891
        %v6002 = vpop.f32.mrf.mxu0
        %v6003 = vadd.f32 0.0, %v6002
        %v6004 = vpop.f32.mrf.mxu0
        %v6005 = vpop.f32.mrf.mxu0
        %v6006 = vadd.f32 0.0, %v6005
        %v6007 = vpop.f32.mrf.mxu0
        %6008 = vmatprep.mubr.bf16.mxu0 0
        %6009 = vmatmul.mubr.bf16.gmra.mxu0 %v5894
        %v6010 = vpop.f32.mrf.mxu0
        %v6011 = vadd.f32 0.0, %v6010
        %v6012 = vpop.f32.mrf.mxu0
        %v6013 = vpop.f32.mrf.mxu0
        %v6014 = vadd.f32 0.0, %v6013
        %v6015 = vpop.f32.mrf.mxu0
        %6016 = vmatprep.mubr.bf16.mxu0 0
        %6017 = vmatmul.mubr.bf16.gmra.mxu0 %v5897
        %v6018 = vpop.f32.mrf.mxu0
        %v6019 = vadd.f32 0.0, %v6018
        %v6020 = vpop.f32.mrf.mxu0
        %v6021 = vpop.f32.mrf.mxu0
        %v6022 = vadd.f32 0.0, %v6021
        %v6023 = vpop.f32.mrf.mxu0
        %6024 = vmatprep.mubr.bf16.mxu0 0
        %6025 = vmatmul.mubr.bf16.gmra.mxu0 %v5900
        %v6026 = vpop.f32.mrf.mxu0
        %v6027 = vadd.f32 0.0, %v6026
        %v6028 = vpop.f32.mrf.mxu0
        %v6029 = vpop.f32.mrf.mxu0
        %v6030 = vadd.f32 0.0, %v6029
        %v6031 = vpop.f32.mrf.mxu0
        %6032 = vmatprep.mubr.bf16.mxu0 0
        %6033 = vmatmul.mubr.bf16.gmra.mxu0 %v5903
        %v6034 = vpop.f32.mrf.mxu0
        %v6035 = vadd.f32 0.0, %v6034
        %v6036 = vpop.f32.mrf.mxu0
        %v6037 = vpop.f32.mrf.mxu0
        %v6038 = vadd.f32 0.0, %v6037
        %v6039 = vpop.f32.mrf.mxu0
        %6040 = vmatprep.mubr.bf16.mxu0 0
        %6041 = vmatmul.mubr.bf16.gmra.mxu0 %v5906
        %v6042 = vpop.f32.mrf.mxu0
        %v6043 = vadd.f32 0.0, %v6042
        %v6044 = vpop.f32.mrf.mxu0
        %v6045 = vpop.f32.mrf.mxu0
        %v6046 = vadd.f32 0.0, %v6045
        %v6047 = vpop.f32.mrf.mxu0
        %6048 = vmatprep.mubr.bf16.mxu0 0
        %6049 = vmatmul.mubr.bf16.gmra.mxu0 %v5909
        %v6050 = vpop.f32.mrf.mxu0
        %v6051 = vadd.f32 0.0, %v6050
        %v6052 = vpop.f32.mrf.mxu0
        %v6053 = vpop.f32.mrf.mxu0
        %v6054 = vadd.f32 0.0, %v6053
        %v6055 = vpop.f32.mrf.mxu0
        %6056 = vmatprep.mubr.bf16.mxu0 0
        %6057 = vmatmul.mubr.bf16.gmra.mxu0 %v5912
        %v6058 = vpop.f32.mrf.mxu0
        %v6059 = vadd.f32 0.0, %v6058
        %v6060 = vpop.f32.mrf.mxu0
        %v6061 = vpop.f32.mrf.mxu0
        %v6062 = vadd.f32 0.0, %v6061
        %v6063 = vpop.f32.mrf.mxu0
        %6064 = vmatprep.mubr.bf16.mxu0 0
        %6065 = vmatmul.mubr.bf16.gmra.mxu0 %v5915
        %v6066 = vpop.f32.mrf.mxu0
        %v6067 = vadd.f32 0.0, %v6066
        %v6068 = vpop.f32.mrf.mxu0
        %v6069 = vpop.f32.mrf.mxu0
        %v6070 = vadd.f32 0.0, %v6069
        %v6071 = vpop.f32.mrf.mxu0
        %6072 = vmatprep.mubr.bf16.mxu0 0
        %6073 = vmatmul.mubr.bf16.gmra.mxu0 %v5918
        %v6074 = vpop.f32.mrf.mxu0
        %v6075 = vadd.f32 0.0, %v6074
        %v6076 = vpop.f32.mrf.mxu0
        %v6077 = vpop.f32.mrf.mxu0
        %v6078 = vadd.f32 0.0, %v6077
        %v6079 = vpop.f32.mrf.mxu0
        %6080 = vdwg.mxu0
        %v6081 = vadd.f32 %v5538, %v5955
        %v6082 = vadd.f32 %v5541, %v5958
        %v6083 = vadd.f32 %v5546, %v5963
        %v6084 = vadd.f32 %v5549, %v5966
        %v6085 = vadd.f32 %v5554, %v5971
        %v6086 = vadd.f32 %v5557, %v5974
        %v6087 = vadd.f32 %v5562, %v5979
        %v6088 = vadd.f32 %v5565, %v5982
        %v6089 = vadd.f32 %v5570, %v5987
        %v6090 = vadd.f32 %v5573, %v5990
        %v6091 = vadd.f32 %v5578, %v5995
        %v6092 = vadd.f32 %v5581, %v5998
        %v6093 = vadd.f32 %v5586, %v6003
        %v6094 = vadd.f32 %v5589, %v6006
        %v6095 = vadd.f32 %v5594, %v6011
        %v6096 = vadd.f32 %v5597, %v6014
        %v6097 = vadd.f32 %v5602, %v6019
        %v6098 = vadd.f32 %v5605, %v6022
        %v6099 = vadd.f32 %v5610, %v6027
        %v6100 = vadd.f32 %v5613, %v6030
        %v6101 = vadd.f32 %v5618, %v6035
        %v6102 = vadd.f32 %v5621, %v6038
        %v6103 = vadd.f32 %v5626, %v6043
        %v6104 = vadd.f32 %v5629, %v6046
        %v6105 = vadd.f32 %v5634, %v6051
        %v6106 = vadd.f32 %v5637, %v6054
        %v6107 = vadd.f32 %v5642, %v6059
        %v6108 = vadd.f32 %v5645, %v6062
        %v6109 = vadd.f32 %v5650, %v6067
        %v6110 = vadd.f32 %v5653, %v6070
        %v6111 = vadd.f32 %v5658, %v6075
        %v6112 = vadd.f32 %v5661, %v6078
        %v6113 = vld [vmem:[%s3 + $0x60] sm:$0xf]
        %v6114 = vld [vmem:[%s3 + $0x64] sm:$0xf]
        %v6115 = vld [vmem:[%s3 + $0x68] sm:$0xf]
        %v6116 = vld [vmem:[%s3 + $0x6c] sm:$0xf]
        %v6117 = vld [vmem:[%s3 + $0x70] sm:$0xf]
        %v6118 = vld [vmem:[%s3 + $0x74] sm:$0xf]
        %v6119 = vld [vmem:[%s3 + $0x78] sm:$0xf]
        %v6120 = vld [vmem:[%s3 + $0x7c] sm:$0xf]
        %v6123 = vunpack.c.l.b16 %v4664
        %v6124 = vunpack.c.l.b16 %v4665
        %v6125 = vpack.c.b16 %v6124, %v6123
        %v6134 = vunpack.c.l.b16 %v6113
        %v6135 = vunpack.c.l.b16 %v6114
        %v6136 = vunpack.c.l.b16 %v6115
        %v6137 = vunpack.c.l.b16 %v6116
        %v6138 = vunpack.c.l.b16 %v6117
        %v6139 = vunpack.c.l.b16 %v6118
        %v6140 = vunpack.c.l.b16 %v6119
        %v6141 = vunpack.c.l.b16 %v6120
        %v6142 = vpack.c.b16 %v6135, %v6134
        %v6143 = vpack.c.b16 %v6137, %v6136
        %v6144 = vpack.c.b16 %v6139, %v6138
        %v6145 = vpack.c.b16 %v6141, %v6140
        %v6151 = vsel %vm1555, %v6125, 0
        %6153 = vmatprep.subr.bf16.mxu0 0
        %6154 = vmatpush1.bf16.msra.mxu0 0
        %6155 = vmatprep.subr.bf16.mxu0 0
        %6156 = vmatpush1.bf16.msra.mxu0 0
        %6157 = vmatprep.subr.bf16.mxu0 0
        %6158 = vmatpush1.bf16.msra.mxu0 0
        %6159 = vmatprep.subr.bf16.mxu0 0
        %6160 = vmatpush1.bf16.msra.mxu0 0
        %6161 = vmatprep.subr.bf16.mxu0 0
        %6162 = vmatpush1.bf16.msra.mxu0 %v6145
        %6163 = vmatprep.subr.bf16.mxu0 0
        %6164 = vmatpush1.bf16.msra.mxu0 %v6144
        %6165 = vmatprep.subr.bf16.mxu0 0
        %6166 = vmatpush1.bf16.msra.mxu0 %v6143
        %6167 = vmatprep.subr.bf16.mxu0 0
        %6168 = vmatpush1.bf16.msra.mxu0 %v6142
        %6169 = vmatprep.subr.bf16.mxu0 0
        %6170 = vmatpush2.bf16.msra.mxu0 0
        %6171 = vmatprep.subr.bf16.mxu0 0
        %6172 = vmatpush2.bf16.msra.mxu0 0
        %6173 = vmatprep.subr.bf16.mxu0 0
        %6174 = vmatpush2.bf16.msra.mxu0 0
        %6175 = vmatprep.subr.bf16.mxu0 0
        %6176 = vmatpush2.bf16.msra.mxu0 0
        %6177 = vmatprep.subr.bf16.mxu0 0
        %6178 = vmatpush2.bf16.msra.mxu0 0
        %6179 = vmatprep.subr.bf16.mxu0 0
        %6180 = vmatpush2.bf16.msra.mxu0 0
        %6181 = vmatprep.subr.bf16.mxu0 0
        %6182 = vmatpush2.bf16.msra.mxu0 0
        %6183 = vmatprep.subr.bf16.mxu0 0
        %6184 = vmatpush2.bf16.msra.mxu0 0
        %6185 = vmatprep.mubr.bf16.mxu0 0
        %6186 = vmatmul.mubr.bf16.gmra.mxu0 %v5459
        %v6187 = vpop.f32.mrf.mxu0
        %v6188 = vadd.f32 0.0, %v6187
        %v6189 = vpop.f32.mrf.mxu0
        %v6190 = vpop.f32.mrf.mxu0
        %v6191 = vadd.f32 0.0, %v6190
        %v6192 = vpop.f32.mrf.mxu0
        %6193 = vmatprep.mubr.bf16.mxu0 0
        %6194 = vmatmul.mubr.bf16.gmra.mxu0 %v5462
        %v6195 = vpop.f32.mrf.mxu0
        %v6196 = vadd.f32 0.0, %v6195
        %v6197 = vpop.f32.mrf.mxu0
        %v6198 = vpop.f32.mrf.mxu0
        %v6199 = vadd.f32 0.0, %v6198
        %v6200 = vpop.f32.mrf.mxu0
        %6201 = vmatprep.mubr.bf16.mxu0 0
        %6202 = vmatmul.mubr.bf16.gmra.mxu0 %v5465
        %v6203 = vpop.f32.mrf.mxu0
        %v6204 = vadd.f32 0.0, %v6203
        %v6205 = vpop.f32.mrf.mxu0
        %v6206 = vpop.f32.mrf.mxu0
        %v6207 = vadd.f32 0.0, %v6206
        %v6208 = vpop.f32.mrf.mxu0
        %6209 = vmatprep.mubr.bf16.mxu0 0
        %6210 = vmatmul.mubr.bf16.gmra.mxu0 %v5468
        %v6211 = vpop.f32.mrf.mxu0
        %v6212 = vadd.f32 0.0, %v6211
        %v6213 = vpop.f32.mrf.mxu0
        %v6214 = vpop.f32.mrf.mxu0
        %v6215 = vadd.f32 0.0, %v6214
        %v6216 = vpop.f32.mrf.mxu0
        %6217 = vmatprep.mubr.bf16.mxu0 0
        %6218 = vmatmul.mubr.bf16.gmra.mxu0 %v5471
        %v6219 = vpop.f32.mrf.mxu0
        %v6220 = vadd.f32 0.0, %v6219
        %v6221 = vpop.f32.mrf.mxu0
        %v6222 = vpop.f32.mrf.mxu0
        %v6223 = vadd.f32 0.0, %v6222
        %v6224 = vpop.f32.mrf.mxu0
        %6225 = vmatprep.mubr.bf16.mxu0 0
        %6226 = vmatmul.mubr.bf16.gmra.mxu0 %v5474
        %v6227 = vpop.f32.mrf.mxu0
        %v6228 = vadd.f32 0.0, %v6227
        %v6229 = vpop.f32.mrf.mxu0
        %v6230 = vpop.f32.mrf.mxu0
        %v6231 = vadd.f32 0.0, %v6230
        %v6232 = vpop.f32.mrf.mxu0
        %6233 = vmatprep.mubr.bf16.mxu0 0
        %6234 = vmatmul.mubr.bf16.gmra.mxu0 %v5477
        %v6235 = vpop.f32.mrf.mxu0
        %v6236 = vadd.f32 0.0, %v6235
        %v6237 = vpop.f32.mrf.mxu0
        %v6238 = vpop.f32.mrf.mxu0
        %v6239 = vadd.f32 0.0, %v6238
        %v6240 = vpop.f32.mrf.mxu0
        %6241 = vmatprep.mubr.bf16.mxu0 0
        %6242 = vmatmul.mubr.bf16.gmra.mxu0 %v5480
        %v6243 = vpop.f32.mrf.mxu0
        %v6244 = vadd.f32 0.0, %v6243
        %v6245 = vpop.f32.mrf.mxu0
        %v6246 = vpop.f32.mrf.mxu0
        %v6247 = vadd.f32 0.0, %v6246
        %v6248 = vpop.f32.mrf.mxu0
        %6249 = vmatprep.mubr.bf16.mxu0 0
        %6250 = vmatmul.mubr.bf16.gmra.mxu0 %v5483
        %v6251 = vpop.f32.mrf.mxu0
        %v6252 = vadd.f32 0.0, %v6251
        %v6253 = vpop.f32.mrf.mxu0
        %v6254 = vpop.f32.mrf.mxu0
        %v6255 = vadd.f32 0.0, %v6254
        %v6256 = vpop.f32.mrf.mxu0
        %6257 = vmatprep.mubr.bf16.mxu0 0
        %6258 = vmatmul.mubr.bf16.gmra.mxu0 %v5486
        %v6259 = vpop.f32.mrf.mxu0
        %v6260 = vadd.f32 0.0, %v6259
        %v6261 = vpop.f32.mrf.mxu0
        %v6262 = vpop.f32.mrf.mxu0
        %v6263 = vadd.f32 0.0, %v6262
        %v6264 = vpop.f32.mrf.mxu0
        %6265 = vmatprep.mubr.bf16.mxu0 0
        %6266 = vmatmul.mubr.bf16.gmra.mxu0 %v5489
        %v6267 = vpop.f32.mrf.mxu0
        %v6268 = vadd.f32 0.0, %v6267
        %v6269 = vpop.f32.mrf.mxu0
        %v6270 = vpop.f32.mrf.mxu0
        %v6271 = vadd.f32 0.0, %v6270
        %v6272 = vpop.f32.mrf.mxu0
        %6273 = vmatprep.mubr.bf16.mxu0 0
        %6274 = vmatmul.mubr.bf16.gmra.mxu0 %v5492
        %v6275 = vpop.f32.mrf.mxu0
        %v6276 = vadd.f32 0.0, %v6275
        %v6277 = vpop.f32.mrf.mxu0
        %v6278 = vpop.f32.mrf.mxu0
        %v6279 = vadd.f32 0.0, %v6278
        %v6280 = vpop.f32.mrf.mxu0
        %6281 = vmatprep.mubr.bf16.mxu0 0
        %6282 = vmatmul.mubr.bf16.gmra.mxu0 %v5495
        %v6283 = vpop.f32.mrf.mxu0
        %v6284 = vadd.f32 0.0, %v6283
        %v6285 = vpop.f32.mrf.mxu0
        %v6286 = vpop.f32.mrf.mxu0
        %v6287 = vadd.f32 0.0, %v6286
        %v6288 = vpop.f32.mrf.mxu0
        %6289 = vmatprep.mubr.bf16.mxu0 0
        %6290 = vmatmul.mubr.bf16.gmra.mxu0 %v5498
        %v6291 = vpop.f32.mrf.mxu0
        %v6292 = vadd.f32 0.0, %v6291
        %v6293 = vpop.f32.mrf.mxu0
        %v6294 = vpop.f32.mrf.mxu0
        %v6295 = vadd.f32 0.0, %v6294
        %v6296 = vpop.f32.mrf.mxu0
        %6297 = vmatprep.mubr.bf16.mxu0 0
        %6298 = vmatmul.mubr.bf16.gmra.mxu0 %v5501
        %v6299 = vpop.f32.mrf.mxu0
        %v6300 = vadd.f32 0.0, %v6299
        %v6301 = vpop.f32.mrf.mxu0
        %v6302 = vpop.f32.mrf.mxu0
        %v6303 = vadd.f32 0.0, %v6302
        %v6304 = vpop.f32.mrf.mxu0
        %6305 = vmatprep.mubr.bf16.mxu0 0
        %6306 = vmatmul.mubr.bf16.gmra.mxu0 %v6151
        %v6307 = vpop.f32.mrf.mxu0
        %v6308 = vadd.f32 0.0, %v6307
        %v6309 = vpop.f32.mrf.mxu0
        %v6310 = vpop.f32.mrf.mxu0
        %v6311 = vadd.f32 0.0, %v6310
        %v6312 = vpop.f32.mrf.mxu0
        %6313 = vdwg.mxu0
        %v6314 = vadd.f32 %v6081, %v6188
        %v6315 = vadd.f32 %v6082, %v6191
        %v6316 = vadd.f32 %v6083, %v6196
        %v6317 = vadd.f32 %v6084, %v6199
        %v6318 = vadd.f32 %v6085, %v6204
        %v6319 = vadd.f32 %v6086, %v6207
        %v6320 = vadd.f32 %v6087, %v6212
        %v6321 = vadd.f32 %v6088, %v6215
        %v6322 = vadd.f32 %v6089, %v6220
        %v6323 = vadd.f32 %v6090, %v6223
        %v6324 = vadd.f32 %v6091, %v6228
        %v6325 = vadd.f32 %v6092, %v6231
        %v6326 = vadd.f32 %v6093, %v6236
        %v6327 = vadd.f32 %v6094, %v6239
        %v6328 = vadd.f32 %v6095, %v6244
        %v6329 = vadd.f32 %v6096, %v6247
        %v6330 = vadd.f32 %v6097, %v6252
        %v6331 = vadd.f32 %v6098, %v6255
        %v6332 = vadd.f32 %v6099, %v6260
        %v6333 = vadd.f32 %v6100, %v6263
        %v6334 = vadd.f32 %v6101, %v6268
        %v6335 = vadd.f32 %v6102, %v6271
        %v6336 = vadd.f32 %v6103, %v6276
        %v6337 = vadd.f32 %v6104, %v6279
        %v6338 = vadd.f32 %v6105, %v6284
        %v6339 = vadd.f32 %v6106, %v6287
        %v6340 = vadd.f32 %v6107, %v6292
        %v6341 = vadd.f32 %v6108, %v6295
        %v6342 = vadd.f32 %v6109, %v6300
        %v6343 = vadd.f32 %v6110, %v6303
        %v6344 = vadd.f32 %v6111, %v6308
        %v6345 = vadd.f32 %v6112, %v6311
        %v6347 = vshrl.u32 %v4664, 16
        %v6349 = vrot.slane %v6347, 4
        %v6350 = vshll.u32 %v4664, 16
        %v6352 = vrot.slane %v6350, 5
        %v6353 = vor.u32 %v6349, %v6352
        %v6354 = vrot.slane %v6353, 4
        %v6356 = vshll.u32 %v4665, 16
        %v6358 = vrot.slane %v6356, 5
        %v6359 = vsel %vm1090, %v6354, %v6358
        %v6360 = vshrl.u32 %v4665, 16
        %v6362 = vrot.slane %v6360, 4
        %v6363 = vor.u32 %v6362, %v6358
        %v6364 = vrot.slane %v6363, 4
        %v6366 = vshll.u32 %v4666, 16
        %v6368 = vrot.slane %v6366, 5
        %v6369 = vsel %vm1090, %v6364, %v6368
        %v6370 = vld [vmem:[%s3 + $0x80] sm:$0xf]
        %v6371 = vld [vmem:[%s3 + $0x84] sm:$0xf]
        %v6372 = vld [vmem:[%s3 + $0x88] sm:$0xf]
        %v6373 = vld [vmem:[%s3 + $0x8c] sm:$0xf]
        %v6374 = vld [vmem:[%s3 + $0x90] sm:$0xf]
        %v6375 = vld [vmem:[%s3 + $0x94] sm:$0xf]
        %v6376 = vld [vmem:[%s3 + $0x98] sm:$0xf]
        %v6377 = vld [vmem:[%s3 + $0x9c] sm:$0xf]
        %v6378 = vunpack.c.l.b16 %v6359
        %v6379 = vunpack.c.l.b16 %v6369
        %v6380 = vpack.c.b16 %v6379, %v6378
        %v6389 = vunpack.c.l.b16 %v6370
        %v6390 = vunpack.c.l.b16 %v6371
        %v6391 = vunpack.c.l.b16 %v6372
        %v6392 = vunpack.c.l.b16 %v6373
        %v6393 = vunpack.c.l.b16 %v6374
        %v6394 = vunpack.c.l.b16 %v6375
        %v6395 = vunpack.c.l.b16 %v6376
        %v6396 = vunpack.c.l.b16 %v6377
        %v6397 = vpack.c.b16 %v6390, %v6389
        %v6398 = vpack.c.b16 %v6392, %v6391
        %v6399 = vpack.c.b16 %v6394, %v6393
        %v6400 = vpack.c.b16 %v6396, %v6395
        %v6406 = vsel %vm1555, %v6380, 0
        %6408 = vmatprep.subr.bf16.mxu0 0
        %6409 = vmatpush1.bf16.msra.mxu0 0
        %6410 = vmatprep.subr.bf16.mxu0 0
        %6411 = vmatpush1.bf16.msra.mxu0 0
        %6412 = vmatprep.subr.bf16.mxu0 0
        %6413 = vmatpush1.bf16.msra.mxu0 0
        %6414 = vmatprep.subr.bf16.mxu0 0
        %6415 = vmatpush1.bf16.msra.mxu0 0
        %6416 = vmatprep.subr.bf16.mxu0 0
        %6417 = vmatpush1.bf16.msra.mxu0 %v6400
        %6418 = vmatprep.subr.bf16.mxu0 0
        %6419 = vmatpush1.bf16.msra.mxu0 %v6399
        %6420 = vmatprep.subr.bf16.mxu0 0
        %6421 = vmatpush1.bf16.msra.mxu0 %v6398
        %6422 = vmatprep.subr.bf16.mxu0 0
        %6423 = vmatpush1.bf16.msra.mxu0 %v6397
        %6424 = vmatprep.subr.bf16.mxu0 0
        %6425 = vmatpush2.bf16.msra.mxu0 0
        %6426 = vmatprep.subr.bf16.mxu0 0
        %6427 = vmatpush2.bf16.msra.mxu0 0
        %6428 = vmatprep.subr.bf16.mxu0 0
        %6429 = vmatpush2.bf16.msra.mxu0 0
        %6430 = vmatprep.subr.bf16.mxu0 0
        %6431 = vmatpush2.bf16.msra.mxu0 0
        %6432 = vmatprep.subr.bf16.mxu0 0
        %6433 = vmatpush2.bf16.msra.mxu0 0
        %6434 = vmatprep.subr.bf16.mxu0 0
        %6435 = vmatpush2.bf16.msra.mxu0 0
        %6436 = vmatprep.subr.bf16.mxu0 0
        %6437 = vmatpush2.bf16.msra.mxu0 0
        %6438 = vmatprep.subr.bf16.mxu0 0
        %6439 = vmatpush2.bf16.msra.mxu0 0
        %6440 = vmatprep.mubr.bf16.mxu0 0
        %6441 = vmatmul.mubr.bf16.gmra.mxu0 %v5146
        %v6442 = vpop.f32.mrf.mxu0
        %v6443 = vadd.f32 0.0, %v6442
        %v6444 = vpop.f32.mrf.mxu0
        %v6445 = vpop.f32.mrf.mxu0
        %v6446 = vadd.f32 0.0, %v6445
        %v6447 = vpop.f32.mrf.mxu0
        %6448 = vmatprep.mubr.bf16.mxu0 0
        %6449 = vmatmul.mubr.bf16.gmra.mxu0 %v5149
        %v6450 = vpop.f32.mrf.mxu0
        %v6451 = vadd.f32 0.0, %v6450
        %v6452 = vpop.f32.mrf.mxu0
        %v6453 = vpop.f32.mrf.mxu0
        %v6454 = vadd.f32 0.0, %v6453
        %v6455 = vpop.f32.mrf.mxu0
        %6456 = vmatprep.mubr.bf16.mxu0 0
        %6457 = vmatmul.mubr.bf16.gmra.mxu0 %v5152
        %v6458 = vpop.f32.mrf.mxu0
        %v6459 = vadd.f32 0.0, %v6458
        %v6460 = vpop.f32.mrf.mxu0
        %v6461 = vpop.f32.mrf.mxu0
        %v6462 = vadd.f32 0.0, %v6461
        %v6463 = vpop.f32.mrf.mxu0
        %6464 = vmatprep.mubr.bf16.mxu0 0
        %6465 = vmatmul.mubr.bf16.gmra.mxu0 %v5155
        %v6466 = vpop.f32.mrf.mxu0
        %v6467 = vadd.f32 0.0, %v6466
        %v6468 = vpop.f32.mrf.mxu0
        %v6469 = vpop.f32.mrf.mxu0
        %v6470 = vadd.f32 0.0, %v6469
        %v6471 = vpop.f32.mrf.mxu0
        %6472 = vmatprep.mubr.bf16.mxu0 0
        %6473 = vmatmul.mubr.bf16.gmra.mxu0 %v5158
        %v6474 = vpop.f32.mrf.mxu0
        %v6475 = vadd.f32 0.0, %v6474
        %v6476 = vpop.f32.mrf.mxu0
        %v6477 = vpop.f32.mrf.mxu0
        %v6478 = vadd.f32 0.0, %v6477
        %v6479 = vpop.f32.mrf.mxu0
        %6480 = vmatprep.mubr.bf16.mxu0 0
        %6481 = vmatmul.mubr.bf16.gmra.mxu0 %v5161
        %v6482 = vpop.f32.mrf.mxu0
        %v6483 = vadd.f32 0.0, %v6482
        %v6484 = vpop.f32.mrf.mxu0
        %v6485 = vpop.f32.mrf.mxu0
        %v6486 = vadd.f32 0.0, %v6485
        %v6487 = vpop.f32.mrf.mxu0
        %6488 = vmatprep.mubr.bf16.mxu0 0
        %6489 = vmatmul.mubr.bf16.gmra.mxu0 %v5164
        %v6490 = vpop.f32.mrf.mxu0
        %v6491 = vadd.f32 0.0, %v6490
        %v6492 = vpop.f32.mrf.mxu0
        %v6493 = vpop.f32.mrf.mxu0
        %v6494 = vadd.f32 0.0, %v6493
        %v6495 = vpop.f32.mrf.mxu0
        %6496 = vmatprep.mubr.bf16.mxu0 0
        %6497 = vmatmul.mubr.bf16.gmra.mxu0 %v5167
        %v6498 = vpop.f32.mrf.mxu0
        %v6499 = vadd.f32 0.0, %v6498
        %v6500 = vpop.f32.mrf.mxu0
        %v6501 = vpop.f32.mrf.mxu0
        %v6502 = vadd.f32 0.0, %v6501
        %v6503 = vpop.f32.mrf.mxu0
        %6504 = vmatprep.mubr.bf16.mxu0 0
        %6505 = vmatmul.mubr.bf16.gmra.mxu0 %v5170
        %v6506 = vpop.f32.mrf.mxu0
        %v6507 = vadd.f32 0.0, %v6506
        %v6508 = vpop.f32.mrf.mxu0
        %v6509 = vpop.f32.mrf.mxu0
        %v6510 = vadd.f32 0.0, %v6509
        %v6511 = vpop.f32.mrf.mxu0
        %6512 = vmatprep.mubr.bf16.mxu0 0
        %6513 = vmatmul.mubr.bf16.gmra.mxu0 %v5173
        %v6514 = vpop.f32.mrf.mxu0
        %v6515 = vadd.f32 0.0, %v6514
        %v6516 = vpop.f32.mrf.mxu0
        %v6517 = vpop.f32.mrf.mxu0
        %v6518 = vadd.f32 0.0, %v6517
        %v6519 = vpop.f32.mrf.mxu0
        %6520 = vmatprep.mubr.bf16.mxu0 0
        %6521 = vmatmul.mubr.bf16.gmra.mxu0 %v5176
        %v6522 = vpop.f32.mrf.mxu0
        %v6523 = vadd.f32 0.0, %v6522
        %v6524 = vpop.f32.mrf.mxu0
        %v6525 = vpop.f32.mrf.mxu0
        %v6526 = vadd.f32 0.0, %v6525
        %v6527 = vpop.f32.mrf.mxu0
        %6528 = vmatprep.mubr.bf16.mxu0 0
        %6529 = vmatmul.mubr.bf16.gmra.mxu0 %v5179
        %v6530 = vpop.f32.mrf.mxu0
        %v6531 = vadd.f32 0.0, %v6530
        %v6532 = vpop.f32.mrf.mxu0
        %v6533 = vpop.f32.mrf.mxu0
        %v6534 = vadd.f32 0.0, %v6533
        %v6535 = vpop.f32.mrf.mxu0
        %6536 = vmatprep.mubr.bf16.mxu0 0
        %6537 = vmatmul.mubr.bf16.gmra.mxu0 %v5182
        %v6538 = vpop.f32.mrf.mxu0
        %v6539 = vadd.f32 0.0, %v6538
        %v6540 = vpop.f32.mrf.mxu0
        %v6541 = vpop.f32.mrf.mxu0
        %v6542 = vadd.f32 0.0, %v6541
        %v6543 = vpop.f32.mrf.mxu0
        %6544 = vmatprep.mubr.bf16.mxu0 0
        %6545 = vmatmul.mubr.bf16.gmra.mxu0 %v5185
        %v6546 = vpop.f32.mrf.mxu0
        %v6547 = vadd.f32 0.0, %v6546
        %v6548 = vpop.f32.mrf.mxu0
        %v6549 = vpop.f32.mrf.mxu0
        %v6550 = vadd.f32 0.0, %v6549
        %v6551 = vpop.f32.mrf.mxu0
        %6552 = vmatprep.mubr.bf16.mxu0 0
        %6553 = vmatmul.mubr.bf16.gmra.mxu0 %v5188
        %v6554 = vpop.f32.mrf.mxu0
        %v6555 = vadd.f32 0.0, %v6554
        %v6556 = vpop.f32.mrf.mxu0
        %v6557 = vpop.f32.mrf.mxu0
        %v6558 = vadd.f32 0.0, %v6557
        %v6559 = vpop.f32.mrf.mxu0
        %6560 = vmatprep.mubr.bf16.mxu0 0
        %6561 = vmatmul.mubr.bf16.gmra.mxu0 %v6406
        %v6562 = vpop.f32.mrf.mxu0
        %v6563 = vadd.f32 0.0, %v6562
        %v6564 = vpop.f32.mrf.mxu0
        %v6565 = vpop.f32.mrf.mxu0
        %v6566 = vadd.f32 0.0, %v6565
        %v6567 = vpop.f32.mrf.mxu0
        %6568 = vdwg.mxu0
        %v6569 = vadd.f32 %v6314, %v6443
        %v6570 = vadd.f32 %v6315, %v6446
        %v6571 = vadd.f32 %v6316, %v6451
        %v6572 = vadd.f32 %v6317, %v6454
        %v6573 = vadd.f32 %v6318, %v6459
        %v6574 = vadd.f32 %v6319, %v6462
        %v6575 = vadd.f32 %v6320, %v6467
        %v6576 = vadd.f32 %v6321, %v6470
        %v6577 = vadd.f32 %v6322, %v6475
        %v6578 = vadd.f32 %v6323, %v6478
        %v6579 = vadd.f32 %v6324, %v6483
        %v6580 = vadd.f32 %v6325, %v6486
        %v6581 = vadd.f32 %v6326, %v6491
        %v6582 = vadd.f32 %v6327, %v6494
        %v6583 = vadd.f32 %v6328, %v6499
        %v6584 = vadd.f32 %v6329, %v6502
        %v6585 = vadd.f32 %v6330, %v6507
        %v6586 = vadd.f32 %v6331, %v6510
        %v6587 = vadd.f32 %v6332, %v6515
        %v6588 = vadd.f32 %v6333, %v6518
        %v6589 = vadd.f32 %v6334, %v6523
        %v6590 = vadd.f32 %v6335, %v6526
        %v6591 = vadd.f32 %v6336, %v6531
        %v6592 = vadd.f32 %v6337, %v6534
        %v6593 = vadd.f32 %v6338, %v6539
        %v6594 = vadd.f32 %v6339, %v6542
        %v6595 = vadd.f32 %v6340, %v6547
        %v6596 = vadd.f32 %v6341, %v6550
        %v6597 = vadd.f32 %v6342, %v6555
        %v6598 = vadd.f32 %v6343, %v6558
        %v6599 = vadd.f32 %v6344, %v6563
        %v6600 = vadd.f32 %v6345, %v6566
        %v6602 = vrot.slane %v4664, 5
        %v6603 = vrot.slane %v6602, 4
        %v6604 = vrot.slane %v4665, 5
        %v6605 = vsel %vm2096, %v6603, %v6604
        %v6606 = vrot.slane %v6604, 4
        %v6607 = vrot.slane %v4666, 5
        %v6608 = vsel %vm2096, %v6606, %v6607
        %v6609 = vld [vmem:[%s3 + $0xa0] sm:$0xf]
        %v6610 = vld [vmem:[%s3 + $0xa4] sm:$0xf]
        %v6611 = vld [vmem:[%s3 + $0xa8] sm:$0xf]
        %v6612 = vld [vmem:[%s3 + $0xac] sm:$0xf]
        %v6613 = vld [vmem:[%s3 + $0xb0] sm:$0xf]
        %v6614 = vld [vmem:[%s3 + $0xb4] sm:$0xf]
        %v6615 = vld [vmem:[%s3 + $0xb8] sm:$0xf]
        %v6616 = vld [vmem:[%s3 + $0xbc] sm:$0xf]
        %v6617 = vunpack.c.l.b16 %v6605
        %v6618 = vunpack.c.l.b16 %v6608
        %v6619 = vpack.c.b16 %v6618, %v6617
        %v6628 = vunpack.c.l.b16 %v6609
        %v6629 = vunpack.c.l.b16 %v6610
        %v6630 = vunpack.c.l.b16 %v6611
        %v6631 = vunpack.c.l.b16 %v6612
        %v6632 = vunpack.c.l.b16 %v6613
        %v6633 = vunpack.c.l.b16 %v6614
        %v6634 = vunpack.c.l.b16 %v6615
        %v6635 = vunpack.c.l.b16 %v6616
        %v6636 = vpack.c.b16 %v6629, %v6628
        %v6637 = vpack.c.b16 %v6631, %v6630
        %v6638 = vpack.c.b16 %v6633, %v6632
        %v6639 = vpack.c.b16 %v6635, %v6634
        %v6645 = vsel %vm1555, %v6619, 0
        %6647 = vmatprep.subr.bf16.mxu0 0
        %6648 = vmatpush1.bf16.msra.mxu0 0
        %6649 = vmatprep.subr.bf16.mxu0 0
        %6650 = vmatpush1.bf16.msra.mxu0 0
        %6651 = vmatprep.subr.bf16.mxu0 0
        %6652 = vmatpush1.bf16.msra.mxu0 0
        %6653 = vmatprep.subr.bf16.mxu0 0
        %6654 = vmatpush1.bf16.msra.mxu0 0
        %6655 = vmatprep.subr.bf16.mxu0 0
        %6656 = vmatpush1.bf16.msra.mxu0 %v6639
        %6657 = vmatprep.subr.bf16.mxu0 0
        %6658 = vmatpush1.bf16.msra.mxu0 %v6638
        %6659 = vmatprep.subr.bf16.mxu0 0
        %6660 = vmatpush1.bf16.msra.mxu0 %v6637
        %6661 = vmatprep.subr.bf16.mxu0 0
        %6662 = vmatpush1.bf16.msra.mxu0 %v6636
        %6663 = vmatprep.subr.bf16.mxu0 0
        %6664 = vmatpush2.bf16.msra.mxu0 0
        %6665 = vmatprep.subr.bf16.mxu0 0
        %6666 = vmatpush2.bf16.msra.mxu0 0
        %6667 = vmatprep.subr.bf16.mxu0 0
        %6668 = vmatpush2.bf16.msra.mxu0 0
        %6669 = vmatprep.subr.bf16.mxu0 0
        %6670 = vmatpush2.bf16.msra.mxu0 0
        %6671 = vmatprep.subr.bf16.mxu0 0
        %6672 = vmatpush2.bf16.msra.mxu0 0
        %6673 = vmatprep.subr.bf16.mxu0 0
        %6674 = vmatpush2.bf16.msra.mxu0 0
        %6675 = vmatprep.subr.bf16.mxu0 0
        %6676 = vmatpush2.bf16.msra.mxu0 0
        %6677 = vmatprep.subr.bf16.mxu0 0
        %6678 = vmatpush2.bf16.msra.mxu0 0
        %6679 = vmatprep.mubr.bf16.mxu0 0
        %6680 = vmatmul.mubr.bf16.gmra.mxu0 %v5876
        %v6681 = vpop.f32.mrf.mxu0
        %v6682 = vadd.f32 0.0, %v6681
        %v6683 = vpop.f32.mrf.mxu0
        %v6684 = vpop.f32.mrf.mxu0
        %v6685 = vadd.f32 0.0, %v6684
        %v6686 = vpop.f32.mrf.mxu0
        %6687 = vmatprep.mubr.bf16.mxu0 0
        %6688 = vmatmul.mubr.bf16.gmra.mxu0 %v5879
        %v6689 = vpop.f32.mrf.mxu0
        %v6690 = vadd.f32 0.0, %v6689
        %v6691 = vpop.f32.mrf.mxu0
        %v6692 = vpop.f32.mrf.mxu0
        %v6693 = vadd.f32 0.0, %v6692
        %v6694 = vpop.f32.mrf.mxu0
        %6695 = vmatprep.mubr.bf16.mxu0 0
        %6696 = vmatmul.mubr.bf16.gmra.mxu0 %v5882
        %v6697 = vpop.f32.mrf.mxu0
        %v6698 = vadd.f32 0.0, %v6697
        %v6699 = vpop.f32.mrf.mxu0
        %v6700 = vpop.f32.mrf.mxu0
        %v6701 = vadd.f32 0.0, %v6700
        %v6702 = vpop.f32.mrf.mxu0
        %6703 = vmatprep.mubr.bf16.mxu0 0
        %6704 = vmatmul.mubr.bf16.gmra.mxu0 %v5885
        %v6705 = vpop.f32.mrf.mxu0
        %v6706 = vadd.f32 0.0, %v6705
        %v6707 = vpop.f32.mrf.mxu0
        %v6708 = vpop.f32.mrf.mxu0
        %v6709 = vadd.f32 0.0, %v6708
        %v6710 = vpop.f32.mrf.mxu0
        %6711 = vmatprep.mubr.bf16.mxu0 0
        %6712 = vmatmul.mubr.bf16.gmra.mxu0 %v5888
        %v6713 = vpop.f32.mrf.mxu0
        %v6714 = vadd.f32 0.0, %v6713
        %v6715 = vpop.f32.mrf.mxu0
        %v6716 = vpop.f32.mrf.mxu0
        %v6717 = vadd.f32 0.0, %v6716
        %v6718 = vpop.f32.mrf.mxu0
        %6719 = vmatprep.mubr.bf16.mxu0 0
        %6720 = vmatmul.mubr.bf16.gmra.mxu0 %v5891
        %v6721 = vpop.f32.mrf.mxu0
        %v6722 = vadd.f32 0.0, %v6721
        %v6723 = vpop.f32.mrf.mxu0
        %v6724 = vpop.f32.mrf.mxu0
        %v6725 = vadd.f32 0.0, %v6724
        %v6726 = vpop.f32.mrf.mxu0
        %6727 = vmatprep.mubr.bf16.mxu0 0
        %6728 = vmatmul.mubr.bf16.gmra.mxu0 %v5894
        %v6729 = vpop.f32.mrf.mxu0
        %v6730 = vadd.f32 0.0, %v6729
        %v6731 = vpop.f32.mrf.mxu0
        %v6732 = vpop.f32.mrf.mxu0
        %v6733 = vadd.f32 0.0, %v6732
        %v6734 = vpop.f32.mrf.mxu0
        %6735 = vmatprep.mubr.bf16.mxu0 0
        %6736 = vmatmul.mubr.bf16.gmra.mxu0 %v5897
        %v6737 = vpop.f32.mrf.mxu0
        %v6738 = vadd.f32 0.0, %v6737
        %v6739 = vpop.f32.mrf.mxu0
        %v6740 = vpop.f32.mrf.mxu0
        %v6741 = vadd.f32 0.0, %v6740
        %v6742 = vpop.f32.mrf.mxu0
        %6743 = vmatprep.mubr.bf16.mxu0 0
        %6744 = vmatmul.mubr.bf16.gmra.mxu0 %v5900
        %v6745 = vpop.f32.mrf.mxu0
        %v6746 = vadd.f32 0.0, %v6745
        %v6747 = vpop.f32.mrf.mxu0
        %v6748 = vpop.f32.mrf.mxu0
        %v6749 = vadd.f32 0.0, %v6748
        %v6750 = vpop.f32.mrf.mxu0
        %6751 = vmatprep.mubr.bf16.mxu0 0
        %6752 = vmatmul.mubr.bf16.gmra.mxu0 %v5903
        %v6753 = vpop.f32.mrf.mxu0
        %v6754 = vadd.f32 0.0, %v6753
        %v6755 = vpop.f32.mrf.mxu0
        %v6756 = vpop.f32.mrf.mxu0
        %v6757 = vadd.f32 0.0, %v6756
        %v6758 = vpop.f32.mrf.mxu0
        %6759 = vmatprep.mubr.bf16.mxu0 0
        %6760 = vmatmul.mubr.bf16.gmra.mxu0 %v5906
        %v6761 = vpop.f32.mrf.mxu0
        %v6762 = vadd.f32 0.0, %v6761
        %v6763 = vpop.f32.mrf.mxu0
        %v6764 = vpop.f32.mrf.mxu0
        %v6765 = vadd.f32 0.0, %v6764
        %v6766 = vpop.f32.mrf.mxu0
        %6767 = vmatprep.mubr.bf16.mxu0 0
        %6768 = vmatmul.mubr.bf16.gmra.mxu0 %v5909
        %v6769 = vpop.f32.mrf.mxu0
        %v6770 = vadd.f32 0.0, %v6769
        %v6771 = vpop.f32.mrf.mxu0
        %v6772 = vpop.f32.mrf.mxu0
        %v6773 = vadd.f32 0.0, %v6772
        %v6774 = vpop.f32.mrf.mxu0
        %6775 = vmatprep.mubr.bf16.mxu0 0
        %6776 = vmatmul.mubr.bf16.gmra.mxu0 %v5912
        %v6777 = vpop.f32.mrf.mxu0
        %v6778 = vadd.f32 0.0, %v6777
        %v6779 = vpop.f32.mrf.mxu0
        %v6780 = vpop.f32.mrf.mxu0
        %v6781 = vadd.f32 0.0, %v6780
        %v6782 = vpop.f32.mrf.mxu0
        %6783 = vmatprep.mubr.bf16.mxu0 0
        %6784 = vmatmul.mubr.bf16.gmra.mxu0 %v5915
        %v6785 = vpop.f32.mrf.mxu0
        %v6786 = vadd.f32 0.0, %v6785
        %v6787 = vpop.f32.mrf.mxu0
        %v6788 = vpop.f32.mrf.mxu0
        %v6789 = vadd.f32 0.0, %v6788
        %v6790 = vpop.f32.mrf.mxu0
        %6791 = vmatprep.mubr.bf16.mxu0 0
        %6792 = vmatmul.mubr.bf16.gmra.mxu0 %v5918
        %v6793 = vpop.f32.mrf.mxu0
        %v6794 = vadd.f32 0.0, %v6793
        %v6795 = vpop.f32.mrf.mxu0
        %v6796 = vpop.f32.mrf.mxu0
        %v6797 = vadd.f32 0.0, %v6796
        %v6798 = vpop.f32.mrf.mxu0
        %6799 = vmatprep.mubr.bf16.mxu0 0
        %6800 = vmatmul.mubr.bf16.gmra.mxu0 %v6645
        %v6801 = vpop.f32.mrf.mxu0
        %v6802 = vadd.f32 0.0, %v6801
        %v6803 = vpop.f32.mrf.mxu0
        %v6804 = vpop.f32.mrf.mxu0
        %v6805 = vadd.f32 0.0, %v6804
        %v6806 = vpop.f32.mrf.mxu0
        %6807 = vdwg.mxu0
        %v6808 = vadd.f32 %v6569, %v6682
        %v6809 = vadd.f32 %v6570, %v6685
        %v6810 = vadd.f32 %v6571, %v6690
        %v6811 = vadd.f32 %v6572, %v6693
        %v6812 = vadd.f32 %v6573, %v6698
        %v6813 = vadd.f32 %v6574, %v6701
        %v6814 = vadd.f32 %v6575, %v6706
        %v6815 = vadd.f32 %v6576, %v6709
        %v6816 = vadd.f32 %v6577, %v6714
        %v6817 = vadd.f32 %v6578, %v6717
        %v6818 = vadd.f32 %v6579, %v6722
        %v6819 = vadd.f32 %v6580, %v6725
        %v6820 = vadd.f32 %v6581, %v6730
        %v6821 = vadd.f32 %v6582, %v6733
        %v6822 = vadd.f32 %v6583, %v6738
        %v6823 = vadd.f32 %v6584, %v6741
        %v6824 = vadd.f32 %v6585, %v6746
        %v6825 = vadd.f32 %v6586, %v6749
        %v6826 = vadd.f32 %v6587, %v6754
        %v6827 = vadd.f32 %v6588, %v6757
        %v6828 = vadd.f32 %v6589, %v6762
        %v6829 = vadd.f32 %v6590, %v6765
        %v6830 = vadd.f32 %v6591, %v6770
        %v6831 = vadd.f32 %v6592, %v6773
        %v6832 = vadd.f32 %v6593, %v6778
        %v6833 = vadd.f32 %v6594, %v6781
        %v6834 = vadd.f32 %v6595, %v6786
        %v6835 = vadd.f32 %v6596, %v6789
        %v6836 = vadd.f32 %v6597, %v6794
        %v6837 = vadd.f32 %v6598, %v6797
        %v6838 = vadd.f32 %v6599, %v6802
        %v6839 = vadd.f32 %v6600, %v6805
        %v6840 = vld [vmem:[%s3 + $0xc0] sm:$0xf]
        %v6841 = vld [vmem:[%s3 + $0xc4] sm:$0xf]
        %v6842 = vld [vmem:[%s3 + $0xc8] sm:$0xf]
        %v6843 = vld [vmem:[%s3 + $0xcc] sm:$0xf]
        %v6844 = vld [vmem:[%s3 + $0xd0] sm:$0xf]
        %v6845 = vld [vmem:[%s3 + $0xd4] sm:$0xf]
        %v6846 = vld [vmem:[%s3 + $0xd8] sm:$0xf]
        %v6847 = vld [vmem:[%s3 + $0xdc] sm:$0xf]
        %v6850 = vunpack.c.l.b16 %v4667
        %v6851 = vunpack.c.l.b16 %v4668
        %v6852 = vpack.c.b16 %v6851, %v6850
        %v6861 = vunpack.c.l.b16 %v6840
        %v6862 = vunpack.c.l.b16 %v6841
        %v6863 = vunpack.c.l.b16 %v6842
        %v6864 = vunpack.c.l.b16 %v6843
        %v6865 = vunpack.c.l.b16 %v6844
        %v6866 = vunpack.c.l.b16 %v6845
        %v6867 = vunpack.c.l.b16 %v6846
        %v6868 = vunpack.c.l.b16 %v6847
        %v6869 = vpack.c.b16 %v6862, %v6861
        %v6870 = vpack.c.b16 %v6864, %v6863
        %v6871 = vpack.c.b16 %v6866, %v6865
        %v6872 = vpack.c.b16 %v6868, %v6867
        %v6878 = vsel %vm1555, %v6852, 0
        %6880 = vmatprep.subr.bf16.mxu0 0
        %6881 = vmatpush1.bf16.msra.mxu0 0
        %6882 = vmatprep.subr.bf16.mxu0 0
        %6883 = vmatpush1.bf16.msra.mxu0 0
        %6884 = vmatprep.subr.bf16.mxu0 0
        %6885 = vmatpush1.bf16.msra.mxu0 0
        %6886 = vmatprep.subr.bf16.mxu0 0
        %6887 = vmatpush1.bf16.msra.mxu0 0
        %6888 = vmatprep.subr.bf16.mxu0 0
        %6889 = vmatpush1.bf16.msra.mxu0 %v6872
        %6890 = vmatprep.subr.bf16.mxu0 0
        %6891 = vmatpush1.bf16.msra.mxu0 %v6871
        %6892 = vmatprep.subr.bf16.mxu0 0
        %6893 = vmatpush1.bf16.msra.mxu0 %v6870
        %6894 = vmatprep.subr.bf16.mxu0 0
        %6895 = vmatpush1.bf16.msra.mxu0 %v6869
        %6896 = vmatprep.subr.bf16.mxu0 0
        %6897 = vmatpush2.bf16.msra.mxu0 0
        %6898 = vmatprep.subr.bf16.mxu0 0
        %6899 = vmatpush2.bf16.msra.mxu0 0
        %6900 = vmatprep.subr.bf16.mxu0 0
        %6901 = vmatpush2.bf16.msra.mxu0 0
        %6902 = vmatprep.subr.bf16.mxu0 0
        %6903 = vmatpush2.bf16.msra.mxu0 0
        %6904 = vmatprep.subr.bf16.mxu0 0
        %6905 = vmatpush2.bf16.msra.mxu0 0
        %6906 = vmatprep.subr.bf16.mxu0 0
        %6907 = vmatpush2.bf16.msra.mxu0 0
        %6908 = vmatprep.subr.bf16.mxu0 0
        %6909 = vmatpush2.bf16.msra.mxu0 0
        %6910 = vmatprep.subr.bf16.mxu0 0
        %6911 = vmatpush2.bf16.msra.mxu0 0
        %6912 = vmatprep.mubr.bf16.mxu0 0
        %6913 = vmatmul.mubr.bf16.gmra.mxu0 %v5462
        %v6914 = vpop.f32.mrf.mxu0
        %v6915 = vadd.f32 0.0, %v6914
        %v6916 = vpop.f32.mrf.mxu0
        %v6917 = vpop.f32.mrf.mxu0
        %v6918 = vadd.f32 0.0, %v6917
        %v6919 = vpop.f32.mrf.mxu0
        %6920 = vmatprep.mubr.bf16.mxu0 0
        %6921 = vmatmul.mubr.bf16.gmra.mxu0 %v5465
        %v6922 = vpop.f32.mrf.mxu0
        %v6923 = vadd.f32 0.0, %v6922
        %v6924 = vpop.f32.mrf.mxu0
        %v6925 = vpop.f32.mrf.mxu0
        %v6926 = vadd.f32 0.0, %v6925
        %v6927 = vpop.f32.mrf.mxu0
        %6928 = vmatprep.mubr.bf16.mxu0 0
        %6929 = vmatmul.mubr.bf16.gmra.mxu0 %v5468
        %v6930 = vpop.f32.mrf.mxu0
        %v6931 = vadd.f32 0.0, %v6930
        %v6932 = vpop.f32.mrf.mxu0
        %v6933 = vpop.f32.mrf.mxu0
        %v6934 = vadd.f32 0.0, %v6933
        %v6935 = vpop.f32.mrf.mxu0
        %6936 = vmatprep.mubr.bf16.mxu0 0
        %6937 = vmatmul.mubr.bf16.gmra.mxu0 %v5471
        %v6938 = vpop.f32.mrf.mxu0
        %v6939 = vadd.f32 0.0, %v6938
        %v6940 = vpop.f32.mrf.mxu0
        %v6941 = vpop.f32.mrf.mxu0
        %v6942 = vadd.f32 0.0, %v6941
        %v6943 = vpop.f32.mrf.mxu0
        %6944 = vmatprep.mubr.bf16.mxu0 0
        %6945 = vmatmul.mubr.bf16.gmra.mxu0 %v5474
        %v6946 = vpop.f32.mrf.mxu0
        %v6947 = vadd.f32 0.0, %v6946
        %v6948 = vpop.f32.mrf.mxu0
        %v6949 = vpop.f32.mrf.mxu0
        %v6950 = vadd.f32 0.0, %v6949
        %v6951 = vpop.f32.mrf.mxu0
        %6952 = vmatprep.mubr.bf16.mxu0 0
        %6953 = vmatmul.mubr.bf16.gmra.mxu0 %v5477
        %v6954 = vpop.f32.mrf.mxu0
        %v6955 = vadd.f32 0.0, %v6954
        %v6956 = vpop.f32.mrf.mxu0
        %v6957 = vpop.f32.mrf.mxu0
        %v6958 = vadd.f32 0.0, %v6957
        %v6959 = vpop.f32.mrf.mxu0
        %6960 = vmatprep.mubr.bf16.mxu0 0
        %6961 = vmatmul.mubr.bf16.gmra.mxu0 %v5480
        %v6962 = vpop.f32.mrf.mxu0
        %v6963 = vadd.f32 0.0, %v6962
        %v6964 = vpop.f32.mrf.mxu0
        %v6965 = vpop.f32.mrf.mxu0
        %v6966 = vadd.f32 0.0, %v6965
        %v6967 = vpop.f32.mrf.mxu0
        %6968 = vmatprep.mubr.bf16.mxu0 0
        %6969 = vmatmul.mubr.bf16.gmra.mxu0 %v5483
        %v6970 = vpop.f32.mrf.mxu0
        %v6971 = vadd.f32 0.0, %v6970
        %v6972 = vpop.f32.mrf.mxu0
        %v6973 = vpop.f32.mrf.mxu0
        %v6974 = vadd.f32 0.0, %v6973
        %v6975 = vpop.f32.mrf.mxu0
        %6976 = vmatprep.mubr.bf16.mxu0 0
        %6977 = vmatmul.mubr.bf16.gmra.mxu0 %v5486
        %v6978 = vpop.f32.mrf.mxu0
        %v6979 = vadd.f32 0.0, %v6978
        %v6980 = vpop.f32.mrf.mxu0
        %v6981 = vpop.f32.mrf.mxu0
        %v6982 = vadd.f32 0.0, %v6981
        %v6983 = vpop.f32.mrf.mxu0
        %6984 = vmatprep.mubr.bf16.mxu0 0
        %6985 = vmatmul.mubr.bf16.gmra.mxu0 %v5489
        %v6986 = vpop.f32.mrf.mxu0
        %v6987 = vadd.f32 0.0, %v6986
        %v6988 = vpop.f32.mrf.mxu0
        %v6989 = vpop.f32.mrf.mxu0
        %v6990 = vadd.f32 0.0, %v6989
        %v6991 = vpop.f32.mrf.mxu0
        %6992 = vmatprep.mubr.bf16.mxu0 0
        %6993 = vmatmul.mubr.bf16.gmra.mxu0 %v5492
        %v6994 = vpop.f32.mrf.mxu0
        %v6995 = vadd.f32 0.0, %v6994
        %v6996 = vpop.f32.mrf.mxu0
        %v6997 = vpop.f32.mrf.mxu0
        %v6998 = vadd.f32 0.0, %v6997
        %v6999 = vpop.f32.mrf.mxu0
        %7000 = vmatprep.mubr.bf16.mxu0 0
        %7001 = vmatmul.mubr.bf16.gmra.mxu0 %v5495
        %v7002 = vpop.f32.mrf.mxu0
        %v7003 = vadd.f32 0.0, %v7002
        %v7004 = vpop.f32.mrf.mxu0
        %v7005 = vpop.f32.mrf.mxu0
        %v7006 = vadd.f32 0.0, %v7005
        %v7007 = vpop.f32.mrf.mxu0
        %7008 = vmatprep.mubr.bf16.mxu0 0
        %7009 = vmatmul.mubr.bf16.gmra.mxu0 %v5498
        %v7010 = vpop.f32.mrf.mxu0
        %v7011 = vadd.f32 0.0, %v7010
        %v7012 = vpop.f32.mrf.mxu0
        %v7013 = vpop.f32.mrf.mxu0
        %v7014 = vadd.f32 0.0, %v7013
        %v7015 = vpop.f32.mrf.mxu0
        %7016 = vmatprep.mubr.bf16.mxu0 0
        %7017 = vmatmul.mubr.bf16.gmra.mxu0 %v5501
        %v7018 = vpop.f32.mrf.mxu0
        %v7019 = vadd.f32 0.0, %v7018
        %v7020 = vpop.f32.mrf.mxu0
        %v7021 = vpop.f32.mrf.mxu0
        %v7022 = vadd.f32 0.0, %v7021
        %v7023 = vpop.f32.mrf.mxu0
        %7024 = vmatprep.mubr.bf16.mxu0 0
        %7025 = vmatmul.mubr.bf16.gmra.mxu0 %v6151
        %v7026 = vpop.f32.mrf.mxu0
        %v7027 = vadd.f32 0.0, %v7026
        %v7028 = vpop.f32.mrf.mxu0
        %v7029 = vpop.f32.mrf.mxu0
        %v7030 = vadd.f32 0.0, %v7029
        %v7031 = vpop.f32.mrf.mxu0
        %7032 = vmatprep.mubr.bf16.mxu0 0
        %7033 = vmatmul.mubr.bf16.gmra.mxu0 %v6878
        %v7034 = vpop.f32.mrf.mxu0
        %v7035 = vadd.f32 0.0, %v7034
        %v7036 = vpop.f32.mrf.mxu0
        %v7037 = vpop.f32.mrf.mxu0
        %v7038 = vadd.f32 0.0, %v7037
        %v7039 = vpop.f32.mrf.mxu0
        %7040 = vdwg.mxu0
        %v7041 = vadd.f32 %v6808, %v6915
        %v7042 = vadd.f32 %v6809, %v6918
        %v7043 = vadd.f32 %v6810, %v6923
        %v7044 = vadd.f32 %v6811, %v6926
        %v7045 = vadd.f32 %v6812, %v6931
        %v7046 = vadd.f32 %v6813, %v6934
        %v7047 = vadd.f32 %v6814, %v6939
        %v7048 = vadd.f32 %v6815, %v6942
        %v7049 = vadd.f32 %v6816, %v6947
        %v7050 = vadd.f32 %v6817, %v6950
        %v7051 = vadd.f32 %v6818, %v6955
        %v7052 = vadd.f32 %v6819, %v6958
        %v7053 = vadd.f32 %v6820, %v6963
        %v7054 = vadd.f32 %v6821, %v6966
        %v7055 = vadd.f32 %v6822, %v6971
        %v7056 = vadd.f32 %v6823, %v6974
        %v7057 = vadd.f32 %v6824, %v6979
        %v7058 = vadd.f32 %v6825, %v6982
        %v7059 = vadd.f32 %v6826, %v6987
        %v7060 = vadd.f32 %v6827, %v6990
        %v7061 = vadd.f32 %v6828, %v6995
        %v7062 = vadd.f32 %v6829, %v6998
        %v7063 = vadd.f32 %v6830, %v7003
        %v7064 = vadd.f32 %v6831, %v7006
        %v7065 = vadd.f32 %v6832, %v7011
        %v7066 = vadd.f32 %v6833, %v7014
        %v7067 = vadd.f32 %v6834, %v7019
        %v7068 = vadd.f32 %v6835, %v7022
        %v7069 = vadd.f32 %v6836, %v7027
        %v7070 = vadd.f32 %v6837, %v7030
        %v7071 = vadd.f32 %v6838, %v7035
        %v7072 = vadd.f32 %v6839, %v7038
        %v7074 = vshrl.u32 %v4667, 16
        %v7076 = vrot.slane %v7074, 4
        %v7077 = vshll.u32 %v4667, 16
        %v7079 = vrot.slane %v7077, 5
        %v7080 = vor.u32 %v7076, %v7079
        %v7081 = vrot.slane %v7080, 4
        %v7083 = vshll.u32 %v4668, 16
        %v7085 = vrot.slane %v7083, 5
        %v7086 = vsel %vm1090, %v7081, %v7085
        %v7087 = vshrl.u32 %v4668, 16
        %v7089 = vrot.slane %v7087, 4
        %v7090 = vor.u32 %v7089, %v7085
        %v7091 = vrot.slane %v7090, 4
        %v7093 = vshll.u32 %v4669, 16
        %v7095 = vrot.slane %v7093, 5
        %v7096 = vsel %vm1090, %v7091, %v7095
        %v7097 = vld [vmem:[%s3 + $0xe0] sm:$0xf]
        %v7098 = vld [vmem:[%s3 + $0xe4] sm:$0xf]
        %v7099 = vld [vmem:[%s3 + $0xe8] sm:$0xf]
        %v7100 = vld [vmem:[%s3 + $0xec] sm:$0xf]
        %v7101 = vld [vmem:[%s3 + $0xf0] sm:$0xf]
        %v7102 = vld [vmem:[%s3 + $0xf4] sm:$0xf]
        %v7103 = vld [vmem:[%s3 + $0xf8] sm:$0xf]
        %v7104 = vld [vmem:[%s3 + $0xfc] sm:$0xf]
        %v7105 = vunpack.c.l.b16 %v7086
        %v7106 = vunpack.c.l.b16 %v7096
        %v7107 = vpack.c.b16 %v7106, %v7105
        %v7116 = vunpack.c.l.b16 %v7097
        %v7117 = vunpack.c.l.b16 %v7098
        %v7118 = vunpack.c.l.b16 %v7099
        %v7119 = vunpack.c.l.b16 %v7100
        %v7120 = vunpack.c.l.b16 %v7101
        %v7121 = vunpack.c.l.b16 %v7102
        %v7122 = vunpack.c.l.b16 %v7103
        %v7123 = vunpack.c.l.b16 %v7104
        %v7124 = vpack.c.b16 %v7117, %v7116
        %v7125 = vpack.c.b16 %v7119, %v7118
        %v7126 = vpack.c.b16 %v7121, %v7120
        %v7127 = vpack.c.b16 %v7123, %v7122
        %v7133 = vsel %vm1555, %v7107, 0
        %7135 = vmatprep.subr.bf16.mxu0 0
        %7136 = vmatpush1.bf16.msra.mxu0 0
        %7137 = vmatprep.subr.bf16.mxu0 0
        %7138 = vmatpush1.bf16.msra.mxu0 0
        %7139 = vmatprep.subr.bf16.mxu0 0
        %7140 = vmatpush1.bf16.msra.mxu0 0
        %7141 = vmatprep.subr.bf16.mxu0 0
        %7142 = vmatpush1.bf16.msra.mxu0 0
        %7143 = vmatprep.subr.bf16.mxu0 0
        %7144 = vmatpush1.bf16.msra.mxu0 %v7127
        %7145 = vmatprep.subr.bf16.mxu0 0
        %7146 = vmatpush1.bf16.msra.mxu0 %v7126
        %7147 = vmatprep.subr.bf16.mxu0 0
        %7148 = vmatpush1.bf16.msra.mxu0 %v7125
        %7149 = vmatprep.subr.bf16.mxu0 0
        %7150 = vmatpush1.bf16.msra.mxu0 %v7124
        %7151 = vmatprep.subr.bf16.mxu0 0
        %7152 = vmatpush2.bf16.msra.mxu0 0
        %7153 = vmatprep.subr.bf16.mxu0 0
        %7154 = vmatpush2.bf16.msra.mxu0 0
        %7155 = vmatprep.subr.bf16.mxu0 0
        %7156 = vmatpush2.bf16.msra.mxu0 0
        %7157 = vmatprep.subr.bf16.mxu0 0
        %7158 = vmatpush2.bf16.msra.mxu0 0
        %7159 = vmatprep.subr.bf16.mxu0 0
        %7160 = vmatpush2.bf16.msra.mxu0 0
        %7161 = vmatprep.subr.bf16.mxu0 0
        %7162 = vmatpush2.bf16.msra.mxu0 0
        %7163 = vmatprep.subr.bf16.mxu0 0
        %7164 = vmatpush2.bf16.msra.mxu0 0
        %7165 = vmatprep.subr.bf16.mxu0 0
        %7166 = vmatpush2.bf16.msra.mxu0 0
        %7167 = vmatprep.mubr.bf16.mxu0 0
        %7168 = vmatmul.mubr.bf16.gmra.mxu0 %v5149
        %v7169 = vpop.f32.mrf.mxu0
        %v7170 = vadd.f32 0.0, %v7169
        %v7171 = vpop.f32.mrf.mxu0
        %v7172 = vpop.f32.mrf.mxu0
        %v7173 = vadd.f32 0.0, %v7172
        %v7174 = vpop.f32.mrf.mxu0
        %7175 = vmatprep.mubr.bf16.mxu0 0
        %7176 = vmatmul.mubr.bf16.gmra.mxu0 %v5152
        %v7177 = vpop.f32.mrf.mxu0
        %v7178 = vadd.f32 0.0, %v7177
        %v7179 = vpop.f32.mrf.mxu0
        %v7180 = vpop.f32.mrf.mxu0
        %v7181 = vadd.f32 0.0, %v7180
        %v7182 = vpop.f32.mrf.mxu0
        %7183 = vmatprep.mubr.bf16.mxu0 0
        %7184 = vmatmul.mubr.bf16.gmra.mxu0 %v5155
        %v7185 = vpop.f32.mrf.mxu0
        %v7186 = vadd.f32 0.0, %v7185
        %v7187 = vpop.f32.mrf.mxu0
        %v7188 = vpop.f32.mrf.mxu0
        %v7189 = vadd.f32 0.0, %v7188
        %v7190 = vpop.f32.mrf.mxu0
        %7191 = vmatprep.mubr.bf16.mxu0 0
        %7192 = vmatmul.mubr.bf16.gmra.mxu0 %v5158
        %v7193 = vpop.f32.mrf.mxu0
        %v7194 = vadd.f32 0.0, %v7193
        %v7195 = vpop.f32.mrf.mxu0
        %v7196 = vpop.f32.mrf.mxu0
        %v7197 = vadd.f32 0.0, %v7196
        %v7198 = vpop.f32.mrf.mxu0
        %7199 = vmatprep.mubr.bf16.mxu0 0
        %7200 = vmatmul.mubr.bf16.gmra.mxu0 %v5161
        %v7201 = vpop.f32.mrf.mxu0
        %v7202 = vadd.f32 0.0, %v7201
        %v7203 = vpop.f32.mrf.mxu0
        %v7204 = vpop.f32.mrf.mxu0
        %v7205 = vadd.f32 0.0, %v7204
        %v7206 = vpop.f32.mrf.mxu0
        %7207 = vmatprep.mubr.bf16.mxu0 0
        %7208 = vmatmul.mubr.bf16.gmra.mxu0 %v5164
        %v7209 = vpop.f32.mrf.mxu0
        %v7210 = vadd.f32 0.0, %v7209
        %v7211 = vpop.f32.mrf.mxu0
        %v7212 = vpop.f32.mrf.mxu0
        %v7213 = vadd.f32 0.0, %v7212
        %v7214 = vpop.f32.mrf.mxu0
        %7215 = vmatprep.mubr.bf16.mxu0 0
        %7216 = vmatmul.mubr.bf16.gmra.mxu0 %v5167
        %v7217 = vpop.f32.mrf.mxu0
        %v7218 = vadd.f32 0.0, %v7217
        %v7219 = vpop.f32.mrf.mxu0
        %v7220 = vpop.f32.mrf.mxu0
        %v7221 = vadd.f32 0.0, %v7220
        %v7222 = vpop.f32.mrf.mxu0
        %7223 = vmatprep.mubr.bf16.mxu0 0
        %7224 = vmatmul.mubr.bf16.gmra.mxu0 %v5170
        %v7225 = vpop.f32.mrf.mxu0
        %v7226 = vadd.f32 0.0, %v7225
        %v7227 = vpop.f32.mrf.mxu0
        %v7228 = vpop.f32.mrf.mxu0
        %v7229 = vadd.f32 0.0, %v7228
        %v7230 = vpop.f32.mrf.mxu0
        %7231 = vmatprep.mubr.bf16.mxu0 0
        %7232 = vmatmul.mubr.bf16.gmra.mxu0 %v5173
        %v7233 = vpop.f32.mrf.mxu0
        %v7234 = vadd.f32 0.0, %v7233
        %v7235 = vpop.f32.mrf.mxu0
        %v7236 = vpop.f32.mrf.mxu0
        %v7237 = vadd.f32 0.0, %v7236
        %v7238 = vpop.f32.mrf.mxu0
        %7239 = vmatprep.mubr.bf16.mxu0 0
        %7240 = vmatmul.mubr.bf16.gmra.mxu0 %v5176
        %v7241 = vpop.f32.mrf.mxu0
        %v7242 = vadd.f32 0.0, %v7241
        %v7243 = vpop.f32.mrf.mxu0
        %v7244 = vpop.f32.mrf.mxu0
        %v7245 = vadd.f32 0.0, %v7244
        %v7246 = vpop.f32.mrf.mxu0
        %7247 = vmatprep.mubr.bf16.mxu0 0
        %7248 = vmatmul.mubr.bf16.gmra.mxu0 %v5179
        %v7249 = vpop.f32.mrf.mxu0
        %v7250 = vadd.f32 0.0, %v7249
        %v7251 = vpop.f32.mrf.mxu0
        %v7252 = vpop.f32.mrf.mxu0
        %v7253 = vadd.f32 0.0, %v7252
        %v7254 = vpop.f32.mrf.mxu0
        %7255 = vmatprep.mubr.bf16.mxu0 0
        %7256 = vmatmul.mubr.bf16.gmra.mxu0 %v5182
        %v7257 = vpop.f32.mrf.mxu0
        %v7258 = vadd.f32 0.0, %v7257
        %v7259 = vpop.f32.mrf.mxu0
        %v7260 = vpop.f32.mrf.mxu0
        %v7261 = vadd.f32 0.0, %v7260
        %v7262 = vpop.f32.mrf.mxu0
        %7263 = vmatprep.mubr.bf16.mxu0 0
        %7264 = vmatmul.mubr.bf16.gmra.mxu0 %v5185
        %v7265 = vpop.f32.mrf.mxu0
        %v7266 = vadd.f32 0.0, %v7265
        %v7267 = vpop.f32.mrf.mxu0
        %v7268 = vpop.f32.mrf.mxu0
        %v7269 = vadd.f32 0.0, %v7268
        %v7270 = vpop.f32.mrf.mxu0
        %7271 = vmatprep.mubr.bf16.mxu0 0
        %7272 = vmatmul.mubr.bf16.gmra.mxu0 %v5188
        %v7273 = vpop.f32.mrf.mxu0
        %v7274 = vadd.f32 0.0, %v7273
        %v7275 = vpop.f32.mrf.mxu0
        %v7276 = vpop.f32.mrf.mxu0
        %v7277 = vadd.f32 0.0, %v7276
        %v7278 = vpop.f32.mrf.mxu0
        %7279 = vmatprep.mubr.bf16.mxu0 0
        %7280 = vmatmul.mubr.bf16.gmra.mxu0 %v6406
        %v7281 = vpop.f32.mrf.mxu0
        %v7282 = vadd.f32 0.0, %v7281
        %v7283 = vpop.f32.mrf.mxu0
        %v7284 = vpop.f32.mrf.mxu0
        %v7285 = vadd.f32 0.0, %v7284
        %v7286 = vpop.f32.mrf.mxu0
        %7287 = vmatprep.mubr.bf16.mxu0 0
        %7288 = vmatmul.mubr.bf16.gmra.mxu0 %v7133
        %v7289 = vpop.f32.mrf.mxu0
        %v7290 = vadd.f32 0.0, %v7289
        %v7291 = vpop.f32.mrf.mxu0
        %v7292 = vpop.f32.mrf.mxu0
        %v7293 = vadd.f32 0.0, %v7292
        %v7294 = vpop.f32.mrf.mxu0
        %7295 = vdwg.mxu0
        %v7296 = vadd.f32 %v7041, %v7170
        %v7297 = vadd.f32 %v7042, %v7173
        %v7298 = vadd.f32 %v7043, %v7178
        %v7299 = vadd.f32 %v7044, %v7181
        %v7300 = vadd.f32 %v7045, %v7186
        %v7301 = vadd.f32 %v7046, %v7189
        %v7302 = vadd.f32 %v7047, %v7194
        %v7303 = vadd.f32 %v7048, %v7197
        %v7304 = vadd.f32 %v7049, %v7202
        %v7305 = vadd.f32 %v7050, %v7205
        %v7306 = vadd.f32 %v7051, %v7210
        %v7307 = vadd.f32 %v7052, %v7213
        %v7308 = vadd.f32 %v7053, %v7218
        %v7309 = vadd.f32 %v7054, %v7221
        %v7310 = vadd.f32 %v7055, %v7226
        %v7311 = vadd.f32 %v7056, %v7229
        %v7312 = vadd.f32 %v7057, %v7234
        %v7313 = vadd.f32 %v7058, %v7237
        %v7314 = vadd.f32 %v7059, %v7242
        %v7315 = vadd.f32 %v7060, %v7245
        %v7316 = vadd.f32 %v7061, %v7250
        %v7317 = vadd.f32 %v7062, %v7253
        %v7318 = vadd.f32 %v7063, %v7258
        %v7319 = vadd.f32 %v7064, %v7261
        %v7320 = vadd.f32 %v7065, %v7266
        %v7321 = vadd.f32 %v7066, %v7269
        %v7322 = vadd.f32 %v7067, %v7274
        %v7323 = vadd.f32 %v7068, %v7277
        %v7324 = vadd.f32 %v7069, %v7282
        %v7325 = vadd.f32 %v7070, %v7285
        %v7326 = vadd.f32 %v7071, %v7290
        %v7327 = vadd.f32 %v7072, %v7293
        %v7329 = vrot.slane %v4667, 5
        %v7330 = vrot.slane %v7329, 4
        %v7331 = vrot.slane %v4668, 5
        %v7332 = vsel %vm2096, %v7330, %v7331
        %v7333 = vrot.slane %v7331, 4
        %v7334 = vrot.slane %v4669, 5
        %v7335 = vsel %vm2096, %v7333, %v7334
        %v7336 = vld [vmem:[%s3 + $0x100] sm:$0xf]
        %v7337 = vld [vmem:[%s3 + $0x104] sm:$0xf]
        %v7338 = vld [vmem:[%s3 + $0x108] sm:$0xf]
        %v7339 = vld [vmem:[%s3 + $0x10c] sm:$0xf]
        %v7340 = vld [vmem:[%s3 + $0x110] sm:$0xf]
        %v7341 = vld [vmem:[%s3 + $0x114] sm:$0xf]
        %v7342 = vld [vmem:[%s3 + $0x118] sm:$0xf]
        %v7343 = vld [vmem:[%s3 + $0x11c] sm:$0xf]
        %v7344 = vunpack.c.l.b16 %v7332
        %v7345 = vunpack.c.l.b16 %v7335
        %v7346 = vpack.c.b16 %v7345, %v7344
        %v7355 = vunpack.c.l.b16 %v7336
        %v7356 = vunpack.c.l.b16 %v7337
        %v7357 = vunpack.c.l.b16 %v7338
        %v7358 = vunpack.c.l.b16 %v7339
        %v7359 = vunpack.c.l.b16 %v7340
        %v7360 = vunpack.c.l.b16 %v7341
        %v7361 = vunpack.c.l.b16 %v7342
        %v7362 = vunpack.c.l.b16 %v7343
        %v7363 = vpack.c.b16 %v7356, %v7355
        %v7364 = vpack.c.b16 %v7358, %v7357
        %v7365 = vpack.c.b16 %v7360, %v7359
        %v7366 = vpack.c.b16 %v7362, %v7361
        %v7372 = vsel %vm1555, %v7346, 0
        %7374 = vmatprep.subr.bf16.mxu0 0
        %7375 = vmatpush1.bf16.msra.mxu0 0
        %7376 = vmatprep.subr.bf16.mxu0 0
        %7377 = vmatpush1.bf16.msra.mxu0 0
        %7378 = vmatprep.subr.bf16.mxu0 0
        %7379 = vmatpush1.bf16.msra.mxu0 0
        %7380 = vmatprep.subr.bf16.mxu0 0
        %7381 = vmatpush1.bf16.msra.mxu0 0
        %7382 = vmatprep.subr.bf16.mxu0 0
        %7383 = vmatpush1.bf16.msra.mxu0 %v7366
        %7384 = vmatprep.subr.bf16.mxu0 0
        %7385 = vmatpush1.bf16.msra.mxu0 %v7365
        %7386 = vmatprep.subr.bf16.mxu0 0
        %7387 = vmatpush1.bf16.msra.mxu0 %v7364
        %7388 = vmatprep.subr.bf16.mxu0 0
        %7389 = vmatpush1.bf16.msra.mxu0 %v7363
        %7390 = vmatprep.subr.bf16.mxu0 0
        %7391 = vmatpush2.bf16.msra.mxu0 0
        %7392 = vmatprep.subr.bf16.mxu0 0
        %7393 = vmatpush2.bf16.msra.mxu0 0
        %7394 = vmatprep.subr.bf16.mxu0 0
        %7395 = vmatpush2.bf16.msra.mxu0 0
        %7396 = vmatprep.subr.bf16.mxu0 0
        %7397 = vmatpush2.bf16.msra.mxu0 0
        %7398 = vmatprep.subr.bf16.mxu0 0
        %7399 = vmatpush2.bf16.msra.mxu0 0
        %7400 = vmatprep.subr.bf16.mxu0 0
        %7401 = vmatpush2.bf16.msra.mxu0 0
        %7402 = vmatprep.subr.bf16.mxu0 0
        %7403 = vmatpush2.bf16.msra.mxu0 0
        %7404 = vmatprep.subr.bf16.mxu0 0
        %7405 = vmatpush2.bf16.msra.mxu0 0
        %7406 = vmatprep.mubr.bf16.mxu0 0
        %7407 = vmatmul.mubr.bf16.gmra.mxu0 %v5879
        %v7408 = vpop.f32.mrf.mxu0
        %v7409 = vadd.f32 0.0, %v7408
        %v7410 = vpop.f32.mrf.mxu0
        %v7411 = vpop.f32.mrf.mxu0
        %v7412 = vadd.f32 0.0, %v7411
        %v7413 = vpop.f32.mrf.mxu0
        %7414 = vmatprep.mubr.bf16.mxu0 0
        %7415 = vmatmul.mubr.bf16.gmra.mxu0 %v5882
        %v7416 = vpop.f32.mrf.mxu0
        %v7417 = vadd.f32 0.0, %v7416
        %v7418 = vpop.f32.mrf.mxu0
        %v7419 = vpop.f32.mrf.mxu0
        %v7420 = vadd.f32 0.0, %v7419
        %v7421 = vpop.f32.mrf.mxu0
        %7422 = vmatprep.mubr.bf16.mxu0 0
        %7423 = vmatmul.mubr.bf16.gmra.mxu0 %v5885
        %v7424 = vpop.f32.mrf.mxu0
        %v7425 = vadd.f32 0.0, %v7424
        %v7426 = vpop.f32.mrf.mxu0
        %v7427 = vpop.f32.mrf.mxu0
        %v7428 = vadd.f32 0.0, %v7427
        %v7429 = vpop.f32.mrf.mxu0
        %7430 = vmatprep.mubr.bf16.mxu0 0
        %7431 = vmatmul.mubr.bf16.gmra.mxu0 %v5888
        %v7432 = vpop.f32.mrf.mxu0
        %v7433 = vadd.f32 0.0, %v7432
        %v7434 = vpop.f32.mrf.mxu0
        %v7435 = vpop.f32.mrf.mxu0
        %v7436 = vadd.f32 0.0, %v7435
        %v7437 = vpop.f32.mrf.mxu0
        %7438 = vmatprep.mubr.bf16.mxu0 0
        %7439 = vmatmul.mubr.bf16.gmra.mxu0 %v5891
        %v7440 = vpop.f32.mrf.mxu0
        %v7441 = vadd.f32 0.0, %v7440
        %v7442 = vpop.f32.mrf.mxu0
        %v7443 = vpop.f32.mrf.mxu0
        %v7444 = vadd.f32 0.0, %v7443
        %v7445 = vpop.f32.mrf.mxu0
        %7446 = vmatprep.mubr.bf16.mxu0 0
        %7447 = vmatmul.mubr.bf16.gmra.mxu0 %v5894
        %v7448 = vpop.f32.mrf.mxu0
        %v7449 = vadd.f32 0.0, %v7448
        %v7450 = vpop.f32.mrf.mxu0
        %v7451 = vpop.f32.mrf.mxu0
        %v7452 = vadd.f32 0.0, %v7451
        %v7453 = vpop.f32.mrf.mxu0
        %7454 = vmatprep.mubr.bf16.mxu0 0
        %7455 = vmatmul.mubr.bf16.gmra.mxu0 %v5897
        %v7456 = vpop.f32.mrf.mxu0
        %v7457 = vadd.f32 0.0, %v7456
        %v7458 = vpop.f32.mrf.mxu0
        %v7459 = vpop.f32.mrf.mxu0
        %v7460 = vadd.f32 0.0, %v7459
        %v7461 = vpop.f32.mrf.mxu0
        %7462 = vmatprep.mubr.bf16.mxu0 0
        %7463 = vmatmul.mubr.bf16.gmra.mxu0 %v5900
        %v7464 = vpop.f32.mrf.mxu0
        %v7465 = vadd.f32 0.0, %v7464
        %v7466 = vpop.f32.mrf.mxu0
        %v7467 = vpop.f32.mrf.mxu0
        %v7468 = vadd.f32 0.0, %v7467
        %v7469 = vpop.f32.mrf.mxu0
        %7470 = vmatprep.mubr.bf16.mxu0 0
        %7471 = vmatmul.mubr.bf16.gmra.mxu0 %v5903
        %v7472 = vpop.f32.mrf.mxu0
        %v7473 = vadd.f32 0.0, %v7472
        %v7474 = vpop.f32.mrf.mxu0
        %v7475 = vpop.f32.mrf.mxu0
        %v7476 = vadd.f32 0.0, %v7475
        %v7477 = vpop.f32.mrf.mxu0
        %7478 = vmatprep.mubr.bf16.mxu0 0
        %7479 = vmatmul.mubr.bf16.gmra.mxu0 %v5906
        %v7480 = vpop.f32.mrf.mxu0
        %v7481 = vadd.f32 0.0, %v7480
        %v7482 = vpop.f32.mrf.mxu0
        %v7483 = vpop.f32.mrf.mxu0
        %v7484 = vadd.f32 0.0, %v7483
        %v7485 = vpop.f32.mrf.mxu0
        %7486 = vmatprep.mubr.bf16.mxu0 0
        %7487 = vmatmul.mubr.bf16.gmra.mxu0 %v5909
        %v7488 = vpop.f32.mrf.mxu0
        %v7489 = vadd.f32 0.0, %v7488
        %v7490 = vpop.f32.mrf.mxu0
        %v7491 = vpop.f32.mrf.mxu0
        %v7492 = vadd.f32 0.0, %v7491
        %v7493 = vpop.f32.mrf.mxu0
        %7494 = vmatprep.mubr.bf16.mxu0 0
        %7495 = vmatmul.mubr.bf16.gmra.mxu0 %v5912
        %v7496 = vpop.f32.mrf.mxu0
        %v7497 = vadd.f32 0.0, %v7496
        %v7498 = vpop.f32.mrf.mxu0
        %v7499 = vpop.f32.mrf.mxu0
        %v7500 = vadd.f32 0.0, %v7499
        %v7501 = vpop.f32.mrf.mxu0
        %7502 = vmatprep.mubr.bf16.mxu0 0
        %7503 = vmatmul.mubr.bf16.gmra.mxu0 %v5915
        %v7504 = vpop.f32.mrf.mxu0
        %v7505 = vadd.f32 0.0, %v7504
        %v7506 = vpop.f32.mrf.mxu0
        %v7507 = vpop.f32.mrf.mxu0
        %v7508 = vadd.f32 0.0, %v7507
        %v7509 = vpop.f32.mrf.mxu0
        %7510 = vmatprep.mubr.bf16.mxu0 0
        %7511 = vmatmul.mubr.bf16.gmra.mxu0 %v5918
        %v7512 = vpop.f32.mrf.mxu0
        %v7513 = vadd.f32 0.0, %v7512
        %v7514 = vpop.f32.mrf.mxu0
        %v7515 = vpop.f32.mrf.mxu0
        %v7516 = vadd.f32 0.0, %v7515
        %v7517 = vpop.f32.mrf.mxu0
        %7518 = vmatprep.mubr.bf16.mxu0 0
        %7519 = vmatmul.mubr.bf16.gmra.mxu0 %v6645
        %v7520 = vpop.f32.mrf.mxu0
        %v7521 = vadd.f32 0.0, %v7520
        %v7522 = vpop.f32.mrf.mxu0
        %v7523 = vpop.f32.mrf.mxu0
        %v7524 = vadd.f32 0.0, %v7523
        %v7525 = vpop.f32.mrf.mxu0
        %7526 = vmatprep.mubr.bf16.mxu0 0
        %7527 = vmatmul.mubr.bf16.gmra.mxu0 %v7372
        %v7528 = vpop.f32.mrf.mxu0
        %v7529 = vadd.f32 0.0, %v7528
        %v7530 = vpop.f32.mrf.mxu0
        %v7531 = vpop.f32.mrf.mxu0
        %v7532 = vadd.f32 0.0, %v7531
        %v7533 = vpop.f32.mrf.mxu0
        %7534 = vdwg.mxu0
        %v7535 = vadd.f32 %v7296, %v7409
        %v7536 = vadd.f32 %v7297, %v7412
        %v7537 = vadd.f32 %v7298, %v7417
        %v7538 = vadd.f32 %v7299, %v7420
        %v7539 = vadd.f32 %v7300, %v7425
        %v7540 = vadd.f32 %v7301, %v7428
        %v7541 = vadd.f32 %v7302, %v7433
        %v7542 = vadd.f32 %v7303, %v7436
        %v7543 = vadd.f32 %v7304, %v7441
        %v7544 = vadd.f32 %v7305, %v7444
        %v7545 = vadd.f32 %v7306, %v7449
        %v7546 = vadd.f32 %v7307, %v7452
        %v7547 = vadd.f32 %v7308, %v7457
        %v7548 = vadd.f32 %v7309, %v7460
        %v7549 = vadd.f32 %v7310, %v7465
        %v7550 = vadd.f32 %v7311, %v7468
        %v7551 = vadd.f32 %v7312, %v7473
        %v7552 = vadd.f32 %v7313, %v7476
        %v7553 = vadd.f32 %v7314, %v7481
        %v7554 = vadd.f32 %v7315, %v7484
        %v7555 = vadd.f32 %v7316, %v7489
        %v7556 = vadd.f32 %v7317, %v7492
        %v7557 = vadd.f32 %v7318, %v7497
        %v7558 = vadd.f32 %v7319, %v7500
        %v7559 = vadd.f32 %v7320, %v7505
        %v7560 = vadd.f32 %v7321, %v7508
        %v7561 = vadd.f32 %v7322, %v7513
        %v7562 = vadd.f32 %v7323, %v7516
        %v7563 = vadd.f32 %v7324, %v7521
        %v7564 = vadd.f32 %v7325, %v7524
        %v7565 = vadd.f32 %v7326, %v7529
        %v7566 = vadd.f32 %v7327, %v7532
        %v7567 = vld [vmem:[%s4] sm:$0x1]
        %v7569 = vlaneseq
        %v7570 = vshrl.u32 %v7569, 7
        %v7571 = vsub.s32 0, %v7570
        %v7572 = vrot.slane %v7567, %v7571
        %v7574 = vadd.f32 %v7535, %v7572
        %v7575 = vadd.f32 %v7536, %v7572
        %v7576 = vadd.f32 %v7537, %v7572
        %v7577 = vadd.f32 %v7538, %v7572
        %v7578 = vadd.f32 %v7539, %v7572
        %v7579 = vadd.f32 %v7540, %v7572
        %v7580 = vadd.f32 %v7541, %v7572
        %v7581 = vadd.f32 %v7542, %v7572
        %v7582 = vadd.f32 %v7543, %v7572
        %v7583 = vadd.f32 %v7544, %v7572
        %v7584 = vadd.f32 %v7545, %v7572
        %v7585 = vadd.f32 %v7546, %v7572
        %v7586 = vadd.f32 %v7547, %v7572
        %v7587 = vadd.f32 %v7548, %v7572
        %v7588 = vadd.f32 %v7549, %v7572
        %v7589 = vadd.f32 %v7550, %v7572
        %v7590 = vadd.f32 %v7551, %v7572
        %v7591 = vadd.f32 %v7552, %v7572
        %v7592 = vadd.f32 %v7553, %v7572
        %v7593 = vadd.f32 %v7554, %v7572
        %v7594 = vadd.f32 %v7555, %v7572
        %v7595 = vadd.f32 %v7556, %v7572
        %v7596 = vadd.f32 %v7557, %v7572
        %v7597 = vadd.f32 %v7558, %v7572
        %v7598 = vadd.f32 %v7559, %v7572
        %v7599 = vadd.f32 %v7560, %v7572
        %v7600 = vadd.f32 %v7561, %v7572
        %v7601 = vadd.f32 %v7562, %v7572
        %v7602 = vadd.f32 %v7563, %v7572
        %v7603 = vadd.f32 %v7564, %v7572
        %v7604 = vadd.f32 %v7565, %v7572
        %v7605 = vadd.f32 %v7566, %v7572
        %v7606 = vmax.f32 %v7574, 0.0
        %v7607 = vmax.f32 %v7575, 0.0
        %v7608 = vmax.f32 %v7576, 0.0
        %v7609 = vmax.f32 %v7577, 0.0
        %v7610 = vmax.f32 %v7578, 0.0
        %v7611 = vmax.f32 %v7579, 0.0
        %v7612 = vmax.f32 %v7580, 0.0
        %v7613 = vmax.f32 %v7581, 0.0
        %v7614 = vmax.f32 %v7582, 0.0
        %v7615 = vmax.f32 %v7583, 0.0
        %v7616 = vmax.f32 %v7584, 0.0
        %v7617 = vmax.f32 %v7585, 0.0
        %v7618 = vmax.f32 %v7586, 0.0
        %v7619 = vmax.f32 %v7587, 0.0
        %v7620 = vmax.f32 %v7588, 0.0
        %v7621 = vmax.f32 %v7589, 0.0
        %v7622 = vmax.f32 %v7590, 0.0
        %v7623 = vmax.f32 %v7591, 0.0
        %v7624 = vmax.f32 %v7592, 0.0
        %v7625 = vmax.f32 %v7593, 0.0
        %v7626 = vmax.f32 %v7594, 0.0
        %v7627 = vmax.f32 %v7595, 0.0
        %v7628 = vmax.f32 %v7596, 0.0
        %v7629 = vmax.f32 %v7597, 0.0
        %v7630 = vmax.f32 %v7598, 0.0
        %v7631 = vmax.f32 %v7599, 0.0
        %v7632 = vmax.f32 %v7600, 0.0
        %v7633 = vmax.f32 %v7601, 0.0
        %v7634 = vmax.f32 %v7602, 0.0
        %v7635 = vmax.f32 %v7603, 0.0
        %v7636 = vmax.f32 %v7604, 0.0
        %v7637 = vmax.f32 %v7605, 0.0
        %v7638 = vpack.c.bf16 %v7607, %v7606
        %v7639 = vpack.c.bf16 %v7609, %v7608
        %v7640 = vpack.c.bf16 %v7611, %v7610
        %v7641 = vpack.c.bf16 %v7613, %v7612
        %v7642 = vpack.c.bf16 %v7615, %v7614
        %v7643 = vpack.c.bf16 %v7617, %v7616
        %v7644 = vpack.c.bf16 %v7619, %v7618
        %v7645 = vpack.c.bf16 %v7621, %v7620
        %v7646 = vpack.c.bf16 %v7623, %v7622
        %v7647 = vpack.c.bf16 %v7625, %v7624
        %v7648 = vpack.c.bf16 %v7627, %v7626
        %v7649 = vpack.c.bf16 %v7629, %v7628
        %v7650 = vpack.c.bf16 %v7631, %v7630
        %v7651 = vpack.c.bf16 %v7633, %v7632
        %v7652 = vpack.c.bf16 %v7635, %v7634
        %v7653 = vpack.c.bf16 %v7637, %v7636
        %v7670 = vunpack.c.l.b16 %v7638
        %v7671 = vunpack.c.h.b16 %v7638
        %v7672 = vunpack.c.l.b16 %v7639
        %v7673 = vunpack.c.h.b16 %v7639
        %v7674 = vunpack.c.l.b16 %v7640
        %v7675 = vunpack.c.h.b16 %v7640
        %v7676 = vunpack.c.l.b16 %v7641
        %v7677 = vunpack.c.h.b16 %v7641
        %v7678 = vunpack.c.l.b16 %v7642
        %v7679 = vunpack.c.h.b16 %v7642
        %v7680 = vunpack.c.l.b16 %v7643
        %v7681 = vunpack.c.h.b16 %v7643
        %v7682 = vunpack.c.l.b16 %v7644
        %v7683 = vunpack.c.h.b16 %v7644
        %v7684 = vunpack.c.l.b16 %v7645
        %v7685 = vunpack.c.h.b16 %v7645
        %v7686 = vunpack.c.l.b16 %v7646
        %v7687 = vunpack.c.h.b16 %v7646
        %v7688 = vunpack.c.l.b16 %v7647
        %v7689 = vunpack.c.h.b16 %v7647
        %v7690 = vunpack.c.l.b16 %v7648
        %v7691 = vunpack.c.h.b16 %v7648
        %v7692 = vunpack.c.l.b16 %v7649
        %v7693 = vunpack.c.h.b16 %v7649
        %v7694 = vunpack.c.l.b16 %v7650
        %v7695 = vunpack.c.h.b16 %v7650
        %v7696 = vunpack.c.l.b16 %v7651
        %v7697 = vunpack.c.h.b16 %v7651
        %v7698 = vunpack.c.l.b16 %v7652
        %v7699 = vunpack.c.h.b16 %v7652
        %v7700 = vunpack.c.l.b16 %v7653
        %v7701 = vunpack.c.h.b16 %v7653
        %v7702 = vpack.c.b16 %v7670, %v7670
        %v7703 = vpack.c.b16 %v7671, %v7671
        %v7704 = vpack.c.b16 %v7672, %v7672
        %v7705 = vpack.c.b16 %v7673, %v7673
        %v7706 = vpack.c.b16 %v7674, %v7674
        %v7707 = vpack.c.b16 %v7675, %v7675
        %v7708 = vpack.c.b16 %v7676, %v7676
        %v7709 = vpack.c.b16 %v7677, %v7677
        %v7710 = vpack.c.b16 %v7678, %v7678
        %v7711 = vpack.c.b16 %v7679, %v7679
        %v7712 = vpack.c.b16 %v7680, %v7680
        %v7713 = vpack.c.b16 %v7681, %v7681
        %v7714 = vpack.c.b16 %v7682, %v7682
        %v7715 = vpack.c.b16 %v7683, %v7683
        %v7716 = vpack.c.b16 %v7684, %v7684
        %v7717 = vpack.c.b16 %v7685, %v7685
        %v7718 = vpack.c.b16 %v7686, %v7686
        %v7719 = vpack.c.b16 %v7687, %v7687
        %v7720 = vpack.c.b16 %v7688, %v7688
        %v7721 = vpack.c.b16 %v7689, %v7689
        %v7722 = vpack.c.b16 %v7690, %v7690
        %v7723 = vpack.c.b16 %v7691, %v7691
        %v7724 = vpack.c.b16 %v7692, %v7692
        %v7725 = vpack.c.b16 %v7693, %v7693
        %v7726 = vpack.c.b16 %v7694, %v7694
        %v7727 = vpack.c.b16 %v7695, %v7695
        %v7728 = vpack.c.b16 %v7696, %v7696
        %v7729 = vpack.c.b16 %v7697, %v7697
        %v7730 = vpack.c.b16 %v7698, %v7698
        %v7731 = vpack.c.b16 %v7699, %v7699
        %v7732 = vpack.c.b16 %v7700, %v7700
        %v7733 = vpack.c.b16 %v7701, %v7701
        %v7735 = vshrl.u32 %v7702, 16
        %v7737 = vrot.slane %v7735, 7
        %v7738 = vshll.u32 %v7702, 16
        %v7740 = vor.u32 %v7737, %v7738
        %v7741 = vrot.slane %v7737, 4
        %v7743 = vshrl.u32 %v7703, 16
        %v7745 = vrot.slane %v7743, 7
        %v7746 = vshll.u32 %v7703, 16
        %v7748 = vor.u32 %v7745, %v7746
        %v7749 = vsel %vm590, %v7741, %v7748
        %v7750 = vrot.slane %v7745, 4
        %v7752 = vshrl.u32 %v7704, 16
        %v7754 = vrot.slane %v7752, 7
        %v7755 = vshll.u32 %v7704, 16
        %v7757 = vor.u32 %v7754, %v7755
        %v7758 = vrot.slane %v7754, 4
        %v7760 = vshrl.u32 %v7705, 16
        %v7762 = vrot.slane %v7760, 7
        %v7763 = vshll.u32 %v7705, 16
        %v7765 = vor.u32 %v7762, %v7763
        %v7766 = vsel %vm590, %v7758, %v7765
        %v7767 = vrot.slane %v7762, 4
        %v7769 = vshrl.u32 %v7706, 16
        %v7771 = vrot.slane %v7769, 7
        %v7772 = vshll.u32 %v7706, 16
        %v7774 = vor.u32 %v7771, %v7772
        %v7775 = vrot.slane %v7771, 4
        %v7777 = vshrl.u32 %v7707, 16
        %v7779 = vrot.slane %v7777, 7
        %v7780 = vshll.u32 %v7707, 16
        %v7782 = vor.u32 %v7779, %v7780
        %v7783 = vsel %vm590, %v7775, %v7782
        %v7784 = vrot.slane %v7779, 4
        %v7786 = vshrl.u32 %v7708, 16
        %v7788 = vrot.slane %v7786, 7
        %v7789 = vshll.u32 %v7708, 16
        %v7791 = vor.u32 %v7788, %v7789
        %v7792 = vrot.slane %v7788, 4
        %v7794 = vshrl.u32 %v7709, 16
        %v7796 = vrot.slane %v7794, 7
        %v7797 = vshll.u32 %v7709, 16
        %v7799 = vor.u32 %v7796, %v7797
        %v7800 = vsel %vm590, %v7792, %v7799
        %v7801 = vrot.slane %v7796, 4
        %v7803 = vshrl.u32 %v7710, 16
        %v7805 = vrot.slane %v7803, 7
        %v7806 = vshll.u32 %v7710, 16
        %v7808 = vor.u32 %v7805, %v7806
        %v7809 = vrot.slane %v7805, 4
        %v7811 = vshrl.u32 %v7711, 16
        %v7813 = vrot.slane %v7811, 7
        %v7814 = vshll.u32 %v7711, 16
        %v7816 = vor.u32 %v7813, %v7814
        %v7817 = vsel %vm590, %v7809, %v7816
        %v7818 = vrot.slane %v7813, 4
        %v7820 = vshrl.u32 %v7712, 16
        %v7822 = vrot.slane %v7820, 7
        %v7823 = vshll.u32 %v7712, 16
        %v7825 = vor.u32 %v7822, %v7823
        %v7826 = vrot.slane %v7822, 4
        %v7828 = vshrl.u32 %v7713, 16
        %v7830 = vrot.slane %v7828, 7
        %v7831 = vshll.u32 %v7713, 16
        %v7833 = vor.u32 %v7830, %v7831
        %v7834 = vsel %vm590, %v7826, %v7833
        %v7835 = vrot.slane %v7830, 4
        %v7837 = vshrl.u32 %v7714, 16
        %v7839 = vrot.slane %v7837, 7
        %v7840 = vshll.u32 %v7714, 16
        %v7842 = vor.u32 %v7839, %v7840
        %v7843 = vrot.slane %v7839, 4
        %v7845 = vshrl.u32 %v7715, 16
        %v7847 = vrot.slane %v7845, 7
        %v7848 = vshll.u32 %v7715, 16
        %v7850 = vor.u32 %v7847, %v7848
        %v7851 = vsel %vm590, %v7843, %v7850
        %v7852 = vrot.slane %v7847, 4
        %v7854 = vshrl.u32 %v7716, 16
        %v7856 = vrot.slane %v7854, 7
        %v7857 = vshll.u32 %v7716, 16
        %v7859 = vor.u32 %v7856, %v7857
        %v7860 = vrot.slane %v7856, 4
        %v7862 = vshrl.u32 %v7717, 16
        %v7864 = vrot.slane %v7862, 7
        %v7865 = vshll.u32 %v7717, 16
        %v7867 = vor.u32 %v7864, %v7865
        %v7868 = vsel %vm590, %v7860, %v7867
        %v7869 = vrot.slane %v7864, 4
        %v7871 = vshrl.u32 %v7718, 16
        %v7873 = vrot.slane %v7871, 7
        %v7874 = vshll.u32 %v7718, 16
        %v7876 = vor.u32 %v7873, %v7874
        %v7877 = vrot.slane %v7873, 4
        %v7879 = vshrl.u32 %v7719, 16
        %v7881 = vrot.slane %v7879, 7
        %v7882 = vshll.u32 %v7719, 16
        %v7884 = vor.u32 %v7881, %v7882
        %v7885 = vsel %vm590, %v7877, %v7884
        %v7886 = vrot.slane %v7881, 4
        %v7888 = vshrl.u32 %v7720, 16
        %v7890 = vrot.slane %v7888, 7
        %v7891 = vshll.u32 %v7720, 16
        %v7893 = vor.u32 %v7890, %v7891
        %v7894 = vrot.slane %v7890, 4
        %v7896 = vshrl.u32 %v7721, 16
        %v7898 = vrot.slane %v7896, 7
        %v7899 = vshll.u32 %v7721, 16
        %v7901 = vor.u32 %v7898, %v7899
        %v7902 = vsel %vm590, %v7894, %v7901
        %v7903 = vrot.slane %v7898, 4
        %v7905 = vshrl.u32 %v7722, 16
        %v7907 = vrot.slane %v7905, 7
        %v7908 = vshll.u32 %v7722, 16
        %v7910 = vor.u32 %v7907, %v7908
        %v7911 = vrot.slane %v7907, 4
        %v7913 = vshrl.u32 %v7723, 16
        %v7915 = vrot.slane %v7913, 7
        %v7916 = vshll.u32 %v7723, 16
        %v7918 = vor.u32 %v7915, %v7916
        %v7919 = vsel %vm590, %v7911, %v7918
        %v7920 = vrot.slane %v7915, 4
        %v7922 = vshrl.u32 %v7724, 16
        %v7924 = vrot.slane %v7922, 7
        %v7925 = vshll.u32 %v7724, 16
        %v7927 = vor.u32 %v7924, %v7925
        %v7928 = vrot.slane %v7924, 4
        %v7930 = vshrl.u32 %v7725, 16
        %v7932 = vrot.slane %v7930, 7
        %v7933 = vshll.u32 %v7725, 16
        %v7935 = vor.u32 %v7932, %v7933
        %v7936 = vsel %vm590, %v7928, %v7935
        %v7937 = vrot.slane %v7932, 4
        %v7939 = vshrl.u32 %v7726, 16
        %v7941 = vrot.slane %v7939, 7
        %v7942 = vshll.u32 %v7726, 16
        %v7944 = vor.u32 %v7941, %v7942
        %v7945 = vrot.slane %v7941, 4
        %v7947 = vshrl.u32 %v7727, 16
        %v7949 = vrot.slane %v7947, 7
        %v7950 = vshll.u32 %v7727, 16
        %v7952 = vor.u32 %v7949, %v7950
        %v7953 = vsel %vm590, %v7945, %v7952
        %v7954 = vrot.slane %v7949, 4
        %v7956 = vshrl.u32 %v7728, 16
        %v7958 = vrot.slane %v7956, 7
        %v7959 = vshll.u32 %v7728, 16
        %v7961 = vor.u32 %v7958, %v7959
        %v7962 = vrot.slane %v7958, 4
        %v7964 = vshrl.u32 %v7729, 16
        %v7966 = vrot.slane %v7964, 7
        %v7967 = vshll.u32 %v7729, 16
        %v7969 = vor.u32 %v7966, %v7967
        %v7970 = vsel %vm590, %v7962, %v7969
        %v7971 = vrot.slane %v7966, 4
        %v7973 = vshrl.u32 %v7730, 16
        %v7975 = vrot.slane %v7973, 7
        %v7976 = vshll.u32 %v7730, 16
        %v7978 = vor.u32 %v7975, %v7976
        %v7979 = vrot.slane %v7975, 4
        %v7981 = vshrl.u32 %v7731, 16
        %v7983 = vrot.slane %v7981, 7
        %v7984 = vshll.u32 %v7731, 16
        %v7986 = vor.u32 %v7983, %v7984
        %v7987 = vsel %vm590, %v7979, %v7986
        %v7988 = vrot.slane %v7983, 4
        %v7990 = vshrl.u32 %v7732, 16
        %v7992 = vrot.slane %v7990, 7
        %v7993 = vshll.u32 %v7732, 16
        %v7995 = vor.u32 %v7992, %v7993
        %v7996 = vrot.slane %v7992, 4
        %v7998 = vshrl.u32 %v7733, 16
        %v8000 = vrot.slane %v7998, 7
        %v8001 = vshll.u32 %v7733, 16
        %v8003 = vor.u32 %v8000, %v8001
        %v8004 = vsel %vm590, %v7996, %v8003
        %v8005 = vrot.slane %v8000, 4
        %v8054 = vld [vmem:[%s4503] sm:$0xf]
        %v8055 = vsel %vm913, %v7740, %v8054
        %8056 = vst [vmem:[%s4503] sm:$0xf] %v8055
        %8057 = vst.msk [vmem:[%s4503 + $0x4] sm:$0xf] %vm224, %v7749
        %v8058 = vld [vmem:[%s4503 + $0x8] sm:$0x1]
        %v8059 = vsel %vm235, %v7750, %v8058
        %8060 = vst [vmem:[%s4503 + $0x8] sm:$0x1] %v8059
        %v8061 = vld [vmem:[%s4503 + $0xc] sm:$0xf]
        %v8062 = vsel %vm913, %v7757, %v8061
        %8063 = vst [vmem:[%s4503 + $0xc] sm:$0xf] %v8062
        %8064 = vst.msk [vmem:[%s4503 + $0x10] sm:$0xf] %vm224, %v7766
        %v8065 = vld [vmem:[%s4503 + $0x14] sm:$0x1]
        %v8066 = vsel %vm235, %v7767, %v8065
        %8067 = vst [vmem:[%s4503 + $0x14] sm:$0x1] %v8066
        %v8068 = vld [vmem:[%s4503 + $0x18] sm:$0xf]
        %v8069 = vsel %vm913, %v7774, %v8068
        %8070 = vst [vmem:[%s4503 + $0x18] sm:$0xf] %v8069
        %8071 = vst.msk [vmem:[%s4503 + $0x1c] sm:$0xf] %vm224, %v7783
        %v8072 = vld [vmem:[%s4503 + $0x20] sm:$0x1]
        %v8073 = vsel %vm235, %v7784, %v8072
        %8074 = vst [vmem:[%s4503 + $0x20] sm:$0x1] %v8073
        %v8075 = vld [vmem:[%s4503 + $0x24] sm:$0xf]
        %v8076 = vsel %vm913, %v7791, %v8075
        %8077 = vst [vmem:[%s4503 + $0x24] sm:$0xf] %v8076
        %8078 = vst.msk [vmem:[%s4503 + $0x28] sm:$0xf] %vm224, %v7800
        %v8079 = vld [vmem:[%s4503 + $0x2c] sm:$0x1]
        %v8080 = vsel %vm235, %v7801, %v8079
        %8081 = vst [vmem:[%s4503 + $0x2c] sm:$0x1] %v8080
        %v8082 = vld [vmem:[%s4503 + $0x30] sm:$0xf]
        %v8083 = vsel %vm913, %v7808, %v8082
        %8084 = vst [vmem:[%s4503 + $0x30] sm:$0xf] %v8083
        %8085 = vst.msk [vmem:[%s4503 + $0x34] sm:$0xf] %vm224, %v7817
        %v8086 = vld [vmem:[%s4503 + $0x38] sm:$0x1]
        %v8087 = vsel %vm235, %v7818, %v8086
        %8088 = vst [vmem:[%s4503 + $0x38] sm:$0x1] %v8087
        %v8089 = vld [vmem:[%s4503 + $0x3c] sm:$0xf]
        %v8090 = vsel %vm913, %v7825, %v8089
        %8091 = vst [vmem:[%s4503 + $0x3c] sm:$0xf] %v8090
        %8092 = vst.msk [vmem:[%s4503 + $0x40] sm:$0xf] %vm224, %v7834
        %v8093 = vld [vmem:[%s4503 + $0x44] sm:$0x1]
        %v8094 = vsel %vm235, %v7835, %v8093
        %8095 = vst [vmem:[%s4503 + $0x44] sm:$0x1] %v8094
        %v8096 = vld [vmem:[%s4503 + $0x48] sm:$0xf]
        %v8097 = vsel %vm913, %v7842, %v8096
        %8098 = vst [vmem:[%s4503 + $0x48] sm:$0xf] %v8097
        %8099 = vst.msk [vmem:[%s4503 + $0x4c] sm:$0xf] %vm224, %v7851
        %v8100 = vld [vmem:[%s4503 + $0x50] sm:$0x1]
        %v8101 = vsel %vm235, %v7852, %v8100
        %8102 = vst [vmem:[%s4503 + $0x50] sm:$0x1] %v8101
        %v8103 = vld [vmem:[%s4503 + $0x54] sm:$0xf]
        %v8104 = vsel %vm913, %v7859, %v8103
        %8105 = vst [vmem:[%s4503 + $0x54] sm:$0xf] %v8104
        %8106 = vst.msk [vmem:[%s4503 + $0x58] sm:$0xf] %vm224, %v7868
        %v8107 = vld [vmem:[%s4503 + $0x5c] sm:$0x1]
        %v8108 = vsel %vm235, %v7869, %v8107
        %8109 = vst [vmem:[%s4503 + $0x5c] sm:$0x1] %v8108
        %v8110 = vld [vmem:[%s4503 + $0x60] sm:$0xf]
        %v8111 = vsel %vm913, %v7876, %v8110
        %8112 = vst [vmem:[%s4503 + $0x60] sm:$0xf] %v8111
        %8113 = vst.msk [vmem:[%s4503 + $0x64] sm:$0xf] %vm224, %v7885
        %v8114 = vld [vmem:[%s4503 + $0x68] sm:$0x1]
        %v8115 = vsel %vm235, %v7886, %v8114
        %8116 = vst [vmem:[%s4503 + $0x68] sm:$0x1] %v8115
        %v8117 = vld [vmem:[%s4503 + $0x6c] sm:$0xf]
        %v8118 = vsel %vm913, %v7893, %v8117
        %8119 = vst [vmem:[%s4503 + $0x6c] sm:$0xf] %v8118
        %8120 = vst.msk [vmem:[%s4503 + $0x70] sm:$0xf] %vm224, %v7902
        %v8121 = vld [vmem:[%s4503 + $0x74] sm:$0x1]
        %v8122 = vsel %vm235, %v7903, %v8121
        %8123 = vst [vmem:[%s4503 + $0x74] sm:$0x1] %v8122
        %v8124 = vld [vmem:[%s4503 + $0x78] sm:$0xf]
        %v8125 = vsel %vm913, %v7910, %v8124
        %8126 = vst [vmem:[%s4503 + $0x78] sm:$0xf] %v8125
        %8127 = vst.msk [vmem:[%s4503 + $0x7c] sm:$0xf] %vm224, %v7919
        %v8128 = vld [vmem:[%s4503 + $0x80] sm:$0x1]
        %v8129 = vsel %vm235, %v7920, %v8128
        %8130 = vst [vmem:[%s4503 + $0x80] sm:$0x1] %v8129
        %v8131 = vld [vmem:[%s4503 + $0x84] sm:$0xf]
        %v8132 = vsel %vm913, %v7927, %v8131
        %8133 = vst [vmem:[%s4503 + $0x84] sm:$0xf] %v8132
        %8134 = vst.msk [vmem:[%s4503 + $0x88] sm:$0xf] %vm224, %v7936
        %v8135 = vld [vmem:[%s4503 + $0x8c] sm:$0x1]
        %v8136 = vsel %vm235, %v7937, %v8135
        %8137 = vst [vmem:[%s4503 + $0x8c] sm:$0x1] %v8136
        %v8138 = vld [vmem:[%s4503 + $0x90] sm:$0xf]
        %v8139 = vsel %vm913, %v7944, %v8138
        %8140 = vst [vmem:[%s4503 + $0x90] sm:$0xf] %v8139
        %8141 = vst.msk [vmem:[%s4503 + $0x94] sm:$0xf] %vm224, %v7953
        %v8142 = vld [vmem:[%s4503 + $0x98] sm:$0x1]
        %v8143 = vsel %vm235, %v7954, %v8142
        %8144 = vst [vmem:[%s4503 + $0x98] sm:$0x1] %v8143
        %v8145 = vld [vmem:[%s4503 + $0x9c] sm:$0xf]
        %v8146 = vsel %vm913, %v7961, %v8145
        %8147 = vst [vmem:[%s4503 + $0x9c] sm:$0xf] %v8146
        %8148 = vst.msk [vmem:[%s4503 + $0xa0] sm:$0xf] %vm224, %v7970
        %v8149 = vld [vmem:[%s4503 + $0xa4] sm:$0x1]
        %v8150 = vsel %vm235, %v7971, %v8149
        %8151 = vst [vmem:[%s4503 + $0xa4] sm:$0x1] %v8150
        %v8152 = vld [vmem:[%s4503 + $0xa8] sm:$0xf]
        %v8153 = vsel %vm913, %v7978, %v8152
        %8154 = vst [vmem:[%s4503 + $0xa8] sm:$0xf] %v8153
        %8155 = vst.msk [vmem:[%s4503 + $0xac] sm:$0xf] %vm224, %v7987
        %v8156 = vld [vmem:[%s4503 + $0xb0] sm:$0x1]
        %v8157 = vsel %vm235, %v7988, %v8156
        %8158 = vst [vmem:[%s4503 + $0xb0] sm:$0x1] %v8157
        %v8159 = vld [vmem:[%s4503 + $0xb4] sm:$0xf]
        %v8160 = vsel %vm913, %v7995, %v8159
        %8161 = vst [vmem:[%s4503 + $0xb4] sm:$0xf] %v8160
        %8162 = vst.msk [vmem:[%s4503 + $0xb8] sm:$0xf] %vm224, %v8004
        %v8163 = vld [vmem:[%s4503 + $0xbc] sm:$0x1]
        %v8164 = vsel %vm235, %v8005, %v8163
        %8165 = vst [vmem:[%s4503 + $0xbc] sm:$0x1] %v8164
        %v8166 = vld [vmem:[#allocation3] sm:$0xf]
        %v8167 = vld [vmem:[#allocation3 + $0x4] sm:$0xf]
        %v8168 = vld [vmem:[#allocation3 + $0x8] sm:$0x1]
        %v8169 = vld [vmem:[#allocation3 + $0xc] sm:$0xf]
        %v8170 = vld [vmem:[#allocation3 + $0x10] sm:$0xf]
        %v8171 = vld [vmem:[#allocation3 + $0x14] sm:$0x1]
        %v8172 = vld [vmem:[#allocation3 + $0x18] sm:$0xf]
        %v8173 = vld [vmem:[#allocation3 + $0x1c] sm:$0xf]
        %v8174 = vld [vmem:[#allocation3 + $0x20] sm:$0x1]
        %v8175 = vld [vmem:[#allocation3 + $0x24] sm:$0xf]
        %v8176 = vld [vmem:[#allocation3 + $0x28] sm:$0xf]
        %v8177 = vld [vmem:[#allocation3 + $0x2c] sm:$0x1]
        %v8178 = vld [vmem:[#allocation3 + $0x30] sm:$0xf]
        %v8179 = vld [vmem:[#allocation3 + $0x34] sm:$0xf]
        %v8180 = vld [vmem:[#allocation3 + $0x38] sm:$0x1]
        %v8181 = vld [vmem:[#allocation3 + $0x3c] sm:$0xf]
        %v8182 = vld [vmem:[#allocation3 + $0x40] sm:$0xf]
        %v8183 = vld [vmem:[#allocation3 + $0x44] sm:$0x1]
        %v8184 = vld [vmem:[#allocation3 + $0x48] sm:$0xf]
        %v8185 = vld [vmem:[#allocation3 + $0x4c] sm:$0xf]
        %v8186 = vld [vmem:[#allocation3 + $0x50] sm:$0x1]
        %v8187 = vld [vmem:[#allocation3 + $0x54] sm:$0xf]
        %v8188 = vld [vmem:[#allocation3 + $0x58] sm:$0xf]
        %v8189 = vld [vmem:[#allocation3 + $0x5c] sm:$0x1]
        %v8190 = vld [vmem:[#allocation3 + $0x60] sm:$0xf]
        %v8191 = vld [vmem:[#allocation3 + $0x64] sm:$0xf]
        %v8192 = vld [vmem:[#allocation3 + $0x68] sm:$0x1]
        %v8193 = vld [vmem:[#allocation3 + $0x6c] sm:$0xf]
        %v8194 = vld [vmem:[#allocation3 + $0x70] sm:$0xf]
        %v8195 = vld [vmem:[#allocation3 + $0x74] sm:$0x1]
        %v8196 = vld [vmem:[#allocation3 + $0x78] sm:$0xf]
        %v8197 = vld [vmem:[#allocation3 + $0x7c] sm:$0xf]
        %v8198 = vld [vmem:[#allocation3 + $0x80] sm:$0x1]
        %v8199 = vld [vmem:[#allocation3 + $0x84] sm:$0xf]
        %v8200 = vld [vmem:[#allocation3 + $0x88] sm:$0xf]
        %v8201 = vld [vmem:[#allocation3 + $0x8c] sm:$0x1]
        %v8202 = vld [vmem:[#allocation3 + $0x90] sm:$0xf]
        %v8203 = vld [vmem:[#allocation3 + $0x94] sm:$0xf]
        %v8204 = vld [vmem:[#allocation3 + $0x98] sm:$0x1]
        %v8205 = vld [vmem:[#allocation3 + $0x9c] sm:$0xf]
        %v8206 = vld [vmem:[#allocation3 + $0xa0] sm:$0xf]
        %v8207 = vld [vmem:[#allocation3 + $0xa4] sm:$0x1]
        %v8208 = vld [vmem:[#allocation3 + $0xa8] sm:$0xf]
        %v8209 = vld [vmem:[#allocation3 + $0xac] sm:$0xf]
        %v8210 = vld [vmem:[#allocation3 + $0xb0] sm:$0x1]
        %v8211 = vld [vmem:[#allocation3 + $0xb4] sm:$0xf]
        %v8212 = vld [vmem:[#allocation3 + $0xb8] sm:$0xf]
        %v8213 = vld [vmem:[#allocation3 + $0xbc] sm:$0x1]
        %v8214 = vld [vmem:[#allocation3 + $0xc0] sm:$0xf]
        %v8215 = vld [vmem:[#allocation3 + $0xc4] sm:$0xf]
        %v8216 = vld [vmem:[#allocation3 + $0xc8] sm:$0x1]
        %v8217 = vld [vmem:[#allocation3 + $0xcc] sm:$0xf]
        %v8218 = vld [vmem:[#allocation3 + $0xd0] sm:$0xf]
        %v8219 = vld [vmem:[#allocation3 + $0xd4] sm:$0x1]
        %v8220 = vld [vmem:[%s3] sm:$0xf]
        %v8221 = vld [vmem:[%s3 + $0x4] sm:$0xf]
        %v8222 = vld [vmem:[%s3 + $0x8] sm:$0xf]
        %v8223 = vld [vmem:[%s3 + $0xc] sm:$0xf]
        %v8224 = vld [vmem:[%s3 + $0x10] sm:$0xf]
        %v8225 = vld [vmem:[%s3 + $0x14] sm:$0xf]
        %v8226 = vld [vmem:[%s3 + $0x18] sm:$0xf]
        %v8227 = vld [vmem:[%s3 + $0x1c] sm:$0xf]
        %v8229 = vshrl.u32 %v8166, 16
        %v8231 = vrot.slane %v8229, 4
        %v8232 = vshll.u32 %v8166, 16
        %v8234 = vrot.slane %v8232, 5
        %v8235 = vor.u32 %v8231, %v8234
        %v8236 = vrot.slane %v8235, 4
        %v8238 = vshll.u32 %v8167, 16
        %v8240 = vrot.slane %v8238, 5
        %v8241 = vsel %vm1090, %v8236, %v8240
        %v8242 = vshrl.u32 %v8167, 16
        %v8244 = vrot.slane %v8242, 4
        %v8245 = vor.u32 %v8244, %v8240
        %v8246 = vrot.slane %v8245, 4
        %v8248 = vshll.u32 %v8168, 16
        %v8250 = vrot.slane %v8248, 5
        %v8251 = vsel %vm1090, %v8246, %v8250
        %v8253 = vshrl.u32 %v8169, 16
        %v8255 = vrot.slane %v8253, 4
        %v8256 = vshll.u32 %v8169, 16
        %v8258 = vrot.slane %v8256, 5
        %v8259 = vor.u32 %v8255, %v8258
        %v8260 = vrot.slane %v8259, 4
        %v8262 = vshll.u32 %v8170, 16
        %v8264 = vrot.slane %v8262, 5
        %v8265 = vsel %vm1090, %v8260, %v8264
        %v8266 = vshrl.u32 %v8170, 16
        %v8268 = vrot.slane %v8266, 4
        %v8269 = vor.u32 %v8268, %v8264
        %v8270 = vrot.slane %v8269, 4
        %v8272 = vshll.u32 %v8171, 16
        %v8274 = vrot.slane %v8272, 5
        %v8275 = vsel %vm1090, %v8270, %v8274
        %v8277 = vshrl.u32 %v8172, 16
        %v8279 = vrot.slane %v8277, 4
        %v8280 = vshll.u32 %v8172, 16
        %v8282 = vrot.slane %v8280, 5
        %v8283 = vor.u32 %v8279, %v8282
        %v8284 = vrot.slane %v8283, 4
        %v8286 = vshll.u32 %v8173, 16
        %v8288 = vrot.slane %v8286, 5
        %v8289 = vsel %vm1090, %v8284, %v8288
        %v8290 = vshrl.u32 %v8173, 16
        %v8292 = vrot.slane %v8290, 4
        %v8293 = vor.u32 %v8292, %v8288
        %v8294 = vrot.slane %v8293, 4
        %v8296 = vshll.u32 %v8174, 16
        %v8298 = vrot.slane %v8296, 5
        %v8299 = vsel %vm1090, %v8294, %v8298
        %v8301 = vshrl.u32 %v8175, 16
        %v8303 = vrot.slane %v8301, 4
        %v8304 = vshll.u32 %v8175, 16
        %v8306 = vrot.slane %v8304, 5
        %v8307 = vor.u32 %v8303, %v8306
        %v8308 = vrot.slane %v8307, 4
        %v8310 = vshll.u32 %v8176, 16
        %v8312 = vrot.slane %v8310, 5
        %v8313 = vsel %vm1090, %v8308, %v8312
        %v8314 = vshrl.u32 %v8176, 16
        %v8316 = vrot.slane %v8314, 4
        %v8317 = vor.u32 %v8316, %v8312
        %v8318 = vrot.slane %v8317, 4
        %v8320 = vshll.u32 %v8177, 16
        %v8322 = vrot.slane %v8320, 5
        %v8323 = vsel %vm1090, %v8318, %v8322
        %v8325 = vshrl.u32 %v8178, 16
        %v8327 = vrot.slane %v8325, 4
        %v8328 = vshll.u32 %v8178, 16
        %v8330 = vrot.slane %v8328, 5
        %v8331 = vor.u32 %v8327, %v8330
        %v8332 = vrot.slane %v8331, 4
        %v8334 = vshll.u32 %v8179, 16
        %v8336 = vrot.slane %v8334, 5
        %v8337 = vsel %vm1090, %v8332, %v8336
        %v8338 = vshrl.u32 %v8179, 16
        %v8340 = vrot.slane %v8338, 4
        %v8341 = vor.u32 %v8340, %v8336
        %v8342 = vrot.slane %v8341, 4
        %v8344 = vshll.u32 %v8180, 16
        %v8346 = vrot.slane %v8344, 5
        %v8347 = vsel %vm1090, %v8342, %v8346
        %v8349 = vshrl.u32 %v8181, 16
        %v8351 = vrot.slane %v8349, 4
        %v8352 = vshll.u32 %v8181, 16
        %v8354 = vrot.slane %v8352, 5
        %v8355 = vor.u32 %v8351, %v8354
        %v8356 = vrot.slane %v8355, 4
        %v8358 = vshll.u32 %v8182, 16
        %v8360 = vrot.slane %v8358, 5
        %v8361 = vsel %vm1090, %v8356, %v8360
        %v8362 = vshrl.u32 %v8182, 16
        %v8364 = vrot.slane %v8362, 4
        %v8365 = vor.u32 %v8364, %v8360
        %v8366 = vrot.slane %v8365, 4
        %v8368 = vshll.u32 %v8183, 16
        %v8370 = vrot.slane %v8368, 5
        %v8371 = vsel %vm1090, %v8366, %v8370
        %v8373 = vshrl.u32 %v8184, 16
        %v8375 = vrot.slane %v8373, 4
        %v8376 = vshll.u32 %v8184, 16
        %v8378 = vrot.slane %v8376, 5
        %v8379 = vor.u32 %v8375, %v8378
        %v8380 = vrot.slane %v8379, 4
        %v8382 = vshll.u32 %v8185, 16
        %v8384 = vrot.slane %v8382, 5
        %v8385 = vsel %vm1090, %v8380, %v8384
        %v8386 = vshrl.u32 %v8185, 16
        %v8388 = vrot.slane %v8386, 4
        %v8389 = vor.u32 %v8388, %v8384
        %v8390 = vrot.slane %v8389, 4
        %v8392 = vshll.u32 %v8186, 16
        %v8394 = vrot.slane %v8392, 5
        %v8395 = vsel %vm1090, %v8390, %v8394
        %v8397 = vshrl.u32 %v8187, 16
        %v8399 = vrot.slane %v8397, 4
        %v8400 = vshll.u32 %v8187, 16
        %v8402 = vrot.slane %v8400, 5
        %v8403 = vor.u32 %v8399, %v8402
        %v8404 = vrot.slane %v8403, 4
        %v8406 = vshll.u32 %v8188, 16
        %v8408 = vrot.slane %v8406, 5
        %v8409 = vsel %vm1090, %v8404, %v8408
        %v8410 = vshrl.u32 %v8188, 16
        %v8412 = vrot.slane %v8410, 4
        %v8413 = vor.u32 %v8412, %v8408
        %v8414 = vrot.slane %v8413, 4
        %v8416 = vshll.u32 %v8189, 16
        %v8418 = vrot.slane %v8416, 5
        %v8419 = vsel %vm1090, %v8414, %v8418
        %v8421 = vshrl.u32 %v8190, 16
        %v8423 = vrot.slane %v8421, 4
        %v8424 = vshll.u32 %v8190, 16
        %v8426 = vrot.slane %v8424, 5
        %v8427 = vor.u32 %v8423, %v8426
        %v8428 = vrot.slane %v8427, 4
        %v8430 = vshll.u32 %v8191, 16
        %v8432 = vrot.slane %v8430, 5
        %v8433 = vsel %vm1090, %v8428, %v8432
        %v8434 = vshrl.u32 %v8191, 16
        %v8436 = vrot.slane %v8434, 4
        %v8437 = vor.u32 %v8436, %v8432
        %v8438 = vrot.slane %v8437, 4
        %v8440 = vshll.u32 %v8192, 16
        %v8442 = vrot.slane %v8440, 5
        %v8443 = vsel %vm1090, %v8438, %v8442
        %v8445 = vshrl.u32 %v8193, 16
        %v8447 = vrot.slane %v8445, 4
        %v8448 = vshll.u32 %v8193, 16
        %v8450 = vrot.slane %v8448, 5
        %v8451 = vor.u32 %v8447, %v8450
        %v8452 = vrot.slane %v8451, 4
        %v8454 = vshll.u32 %v8194, 16
        %v8456 = vrot.slane %v8454, 5
        %v8457 = vsel %vm1090, %v8452, %v8456
        %v8458 = vshrl.u32 %v8194, 16
        %v8460 = vrot.slane %v8458, 4
        %v8461 = vor.u32 %v8460, %v8456
        %v8462 = vrot.slane %v8461, 4
        %v8464 = vshll.u32 %v8195, 16
        %v8466 = vrot.slane %v8464, 5
        %v8467 = vsel %vm1090, %v8462, %v8466
        %v8469 = vshrl.u32 %v8196, 16
        %v8471 = vrot.slane %v8469, 4
        %v8472 = vshll.u32 %v8196, 16
        %v8474 = vrot.slane %v8472, 5
        %v8475 = vor.u32 %v8471, %v8474
        %v8476 = vrot.slane %v8475, 4
        %v8478 = vshll.u32 %v8197, 16
        %v8480 = vrot.slane %v8478, 5
        %v8481 = vsel %vm1090, %v8476, %v8480
        %v8482 = vshrl.u32 %v8197, 16
        %v8484 = vrot.slane %v8482, 4
        %v8485 = vor.u32 %v8484, %v8480
        %v8486 = vrot.slane %v8485, 4
        %v8488 = vshll.u32 %v8198, 16
        %v8490 = vrot.slane %v8488, 5
        %v8491 = vsel %vm1090, %v8486, %v8490
        %v8493 = vshrl.u32 %v8199, 16
        %v8495 = vrot.slane %v8493, 4
        %v8496 = vshll.u32 %v8199, 16
        %v8498 = vrot.slane %v8496, 5
        %v8499 = vor.u32 %v8495, %v8498
        %v8500 = vrot.slane %v8499, 4
        %v8502 = vshll.u32 %v8200, 16
        %v8504 = vrot.slane %v8502, 5
        %v8505 = vsel %vm1090, %v8500, %v8504
        %v8506 = vshrl.u32 %v8200, 16
        %v8508 = vrot.slane %v8506, 4
        %v8509 = vor.u32 %v8508, %v8504
        %v8510 = vrot.slane %v8509, 4
        %v8512 = vshll.u32 %v8201, 16
        %v8514 = vrot.slane %v8512, 5
        %v8515 = vsel %vm1090, %v8510, %v8514
        %v8517 = vshrl.u32 %v8202, 16
        %v8519 = vrot.slane %v8517, 4
        %v8520 = vshll.u32 %v8202, 16
        %v8522 = vrot.slane %v8520, 5
        %v8523 = vor.u32 %v8519, %v8522
        %v8524 = vrot.slane %v8523, 4
        %v8526 = vshll.u32 %v8203, 16
        %v8528 = vrot.slane %v8526, 5
        %v8529 = vsel %vm1090, %v8524, %v8528
        %v8530 = vshrl.u32 %v8203, 16
        %v8532 = vrot.slane %v8530, 4
        %v8533 = vor.u32 %v8532, %v8528
        %v8534 = vrot.slane %v8533, 4
        %v8536 = vshll.u32 %v8204, 16
        %v8538 = vrot.slane %v8536, 5
        %v8539 = vsel %vm1090, %v8534, %v8538
        %v8541 = vshrl.u32 %v8205, 16
        %v8543 = vrot.slane %v8541, 4
        %v8544 = vshll.u32 %v8205, 16
        %v8546 = vrot.slane %v8544, 5
        %v8547 = vor.u32 %v8543, %v8546
        %v8548 = vrot.slane %v8547, 4
        %v8550 = vshll.u32 %v8206, 16
        %v8552 = vrot.slane %v8550, 5
        %v8553 = vsel %vm1090, %v8548, %v8552
        %v8554 = vshrl.u32 %v8206, 16
        %v8556 = vrot.slane %v8554, 4
        %v8557 = vor.u32 %v8556, %v8552
        %v8558 = vrot.slane %v8557, 4
        %v8560 = vshll.u32 %v8207, 16
        %v8562 = vrot.slane %v8560, 5
        %v8563 = vsel %vm1090, %v8558, %v8562
        %v8565 = vshrl.u32 %v8208, 16
        %v8567 = vrot.slane %v8565, 4
        %v8568 = vshll.u32 %v8208, 16
        %v8570 = vrot.slane %v8568, 5
        %v8571 = vor.u32 %v8567, %v8570
        %v8572 = vrot.slane %v8571, 4
        %v8574 = vshll.u32 %v8209, 16
        %v8576 = vrot.slane %v8574, 5
        %v8577 = vsel %vm1090, %v8572, %v8576
        %v8578 = vshrl.u32 %v8209, 16
        %v8580 = vrot.slane %v8578, 4
        %v8581 = vor.u32 %v8580, %v8576
        %v8582 = vrot.slane %v8581, 4
        %v8584 = vshll.u32 %v8210, 16
        %v8586 = vrot.slane %v8584, 5
        %v8587 = vsel %vm1090, %v8582, %v8586
        %v8589 = vshrl.u32 %v8211, 16
        %v8591 = vrot.slane %v8589, 4
        %v8592 = vshll.u32 %v8211, 16
        %v8594 = vrot.slane %v8592, 5
        %v8595 = vor.u32 %v8591, %v8594
        %v8596 = vrot.slane %v8595, 4
        %v8598 = vshll.u32 %v8212, 16
        %v8600 = vrot.slane %v8598, 5
        %v8601 = vsel %vm1090, %v8596, %v8600
        %v8602 = vshrl.u32 %v8212, 16
        %v8604 = vrot.slane %v8602, 4
        %v8605 = vor.u32 %v8604, %v8600
        %v8606 = vrot.slane %v8605, 4
        %v8608 = vshll.u32 %v8213, 16
        %v8610 = vrot.slane %v8608, 5
        %v8611 = vsel %vm1090, %v8606, %v8610
        %v8612 = vld [vmem:[%s3 + $0x20] sm:$0xf]
        %v8613 = vld [vmem:[%s3 + $0x24] sm:$0xf]
        %v8614 = vld [vmem:[%s3 + $0x28] sm:$0xf]
        %v8615 = vld [vmem:[%s3 + $0x2c] sm:$0xf]
        %v8616 = vld [vmem:[%s3 + $0x30] sm:$0xf]
        %v8617 = vld [vmem:[%s3 + $0x34] sm:$0xf]
        %v8618 = vld [vmem:[%s3 + $0x38] sm:$0xf]
        %v8619 = vld [vmem:[%s3 + $0x3c] sm:$0xf]
        %v8620 = vunpack.c.l.b16 %v8241
        %v8621 = vunpack.c.l.b16 %v8251
        %v8622 = vunpack.c.l.b16 %v8265
        %v8623 = vunpack.c.l.b16 %v8275
        %v8624 = vunpack.c.l.b16 %v8289
        %v8625 = vunpack.c.l.b16 %v8299
        %v8626 = vunpack.c.l.b16 %v8313
        %v8627 = vunpack.c.l.b16 %v8323
        %v8628 = vunpack.c.l.b16 %v8337
        %v8629 = vunpack.c.l.b16 %v8347
        %v8630 = vunpack.c.l.b16 %v8361
        %v8631 = vunpack.c.l.b16 %v8371
        %v8632 = vunpack.c.l.b16 %v8385
        %v8633 = vunpack.c.l.b16 %v8395
        %v8634 = vunpack.c.l.b16 %v8409
        %v8635 = vunpack.c.l.b16 %v8419
        %v8636 = vunpack.c.l.b16 %v8433
        %v8637 = vunpack.c.l.b16 %v8443
        %v8638 = vunpack.c.l.b16 %v8457
        %v8639 = vunpack.c.l.b16 %v8467
        %v8640 = vunpack.c.l.b16 %v8481
        %v8641 = vunpack.c.l.b16 %v8491
        %v8642 = vunpack.c.l.b16 %v8505
        %v8643 = vunpack.c.l.b16 %v8515
        %v8644 = vunpack.c.l.b16 %v8529
        %v8645 = vunpack.c.l.b16 %v8539
        %v8646 = vunpack.c.l.b16 %v8553
        %v8647 = vunpack.c.l.b16 %v8563
        %v8648 = vunpack.c.l.b16 %v8577
        %v8649 = vunpack.c.l.b16 %v8587
        %v8650 = vunpack.c.l.b16 %v8601
        %v8651 = vunpack.c.l.b16 %v8611
        %v8652 = vpack.c.b16 %v8621, %v8620
        %v8653 = vpack.c.b16 %v8623, %v8622
        %v8654 = vpack.c.b16 %v8625, %v8624
        %v8655 = vpack.c.b16 %v8627, %v8626
        %v8656 = vpack.c.b16 %v8629, %v8628
        %v8657 = vpack.c.b16 %v8631, %v8630
        %v8658 = vpack.c.b16 %v8633, %v8632
        %v8659 = vpack.c.b16 %v8635, %v8634
        %v8660 = vpack.c.b16 %v8637, %v8636
        %v8661 = vpack.c.b16 %v8639, %v8638
        %v8662 = vpack.c.b16 %v8641, %v8640
        %v8663 = vpack.c.b16 %v8643, %v8642
        %v8664 = vpack.c.b16 %v8645, %v8644
        %v8665 = vpack.c.b16 %v8647, %v8646
        %v8666 = vpack.c.b16 %v8649, %v8648
        %v8667 = vpack.c.b16 %v8651, %v8650
        %v8676 = vunpack.c.l.b16 %v8612
        %v8677 = vunpack.c.l.b16 %v8613
        %v8678 = vunpack.c.l.b16 %v8614
        %v8679 = vunpack.c.l.b16 %v8615
        %v8680 = vunpack.c.l.b16 %v8616
        %v8681 = vunpack.c.l.b16 %v8617
        %v8682 = vunpack.c.l.b16 %v8618
        %v8683 = vunpack.c.l.b16 %v8619
        %v8684 = vpack.c.b16 %v8677, %v8676
        %v8685 = vpack.c.b16 %v8679, %v8678
        %v8686 = vpack.c.b16 %v8681, %v8680
        %v8687 = vpack.c.b16 %v8683, %v8682
        %v8693 = vsel %vm1555, %v8652, 0
        %v8696 = vsel %vm1555, %v8653, 0
        %v8699 = vsel %vm1555, %v8654, 0
        %v8702 = vsel %vm1555, %v8655, 0
        %v8705 = vsel %vm1555, %v8656, 0
        %v8708 = vsel %vm1555, %v8657, 0
        %v8711 = vsel %vm1555, %v8658, 0
        %v8714 = vsel %vm1555, %v8659, 0
        %v8717 = vsel %vm1555, %v8660, 0
        %v8720 = vsel %vm1555, %v8661, 0
        %v8723 = vsel %vm1555, %v8662, 0
        %v8726 = vsel %vm1555, %v8663, 0
        %v8729 = vsel %vm1555, %v8664, 0
        %v8732 = vsel %vm1555, %v8665, 0
        %v8735 = vsel %vm1555, %v8666, 0
        %v8738 = vsel %vm1555, %v8667, 0
        %8740 = vmatprep.subr.bf16.mxu0 0
        %8741 = vmatpush1.bf16.msra.mxu0 0
        %8742 = vmatprep.subr.bf16.mxu0 0
        %8743 = vmatpush1.bf16.msra.mxu0 0
        %8744 = vmatprep.subr.bf16.mxu0 0
        %8745 = vmatpush1.bf16.msra.mxu0 0
        %8746 = vmatprep.subr.bf16.mxu0 0
        %8747 = vmatpush1.bf16.msra.mxu0 0
        %8748 = vmatprep.subr.bf16.mxu0 0
        %8749 = vmatpush1.bf16.msra.mxu0 %v8687
        %8750 = vmatprep.subr.bf16.mxu0 0
        %8751 = vmatpush1.bf16.msra.mxu0 %v8686
        %8752 = vmatprep.subr.bf16.mxu0 0
        %8753 = vmatpush1.bf16.msra.mxu0 %v8685
        %8754 = vmatprep.subr.bf16.mxu0 0
        %8755 = vmatpush1.bf16.msra.mxu0 %v8684
        %8756 = vmatprep.subr.bf16.mxu0 0
        %8757 = vmatpush2.bf16.msra.mxu0 0
        %8758 = vmatprep.subr.bf16.mxu0 0
        %8759 = vmatpush2.bf16.msra.mxu0 0
        %8760 = vmatprep.subr.bf16.mxu0 0
        %8761 = vmatpush2.bf16.msra.mxu0 0
        %8762 = vmatprep.subr.bf16.mxu0 0
        %8763 = vmatpush2.bf16.msra.mxu0 0
        %8764 = vmatprep.subr.bf16.mxu0 0
        %8765 = vmatpush2.bf16.msra.mxu0 0
        %8766 = vmatprep.subr.bf16.mxu0 0
        %8767 = vmatpush2.bf16.msra.mxu0 0
        %8768 = vmatprep.subr.bf16.mxu0 0
        %8769 = vmatpush2.bf16.msra.mxu0 0
        %8770 = vmatprep.subr.bf16.mxu0 0
        %8771 = vmatpush2.bf16.msra.mxu0 0
        %8772 = vmatprep.mubr.bf16.mxu0 0
        %8773 = vmatmul.mubr.bf16.gmra.mxu0 %v8693
        %v8774 = vpop.f32.mrf.mxu0
        %v8775 = vadd.f32 0.0, %v8774
        %v8776 = vpop.f32.mrf.mxu0
        %v8777 = vpop.f32.mrf.mxu0
        %v8778 = vadd.f32 0.0, %v8777
        %v8779 = vpop.f32.mrf.mxu0
        %8780 = vmatprep.mubr.bf16.mxu0 0
        %8781 = vmatmul.mubr.bf16.gmra.mxu0 %v8696
        %v8782 = vpop.f32.mrf.mxu0
        %v8783 = vadd.f32 0.0, %v8782
        %v8784 = vpop.f32.mrf.mxu0
        %v8785 = vpop.f32.mrf.mxu0
        %v8786 = vadd.f32 0.0, %v8785
        %v8787 = vpop.f32.mrf.mxu0
        %8788 = vmatprep.mubr.bf16.mxu0 0
        %8789 = vmatmul.mubr.bf16.gmra.mxu0 %v8699
        %v8790 = vpop.f32.mrf.mxu0
        %v8791 = vadd.f32 0.0, %v8790
        %v8792 = vpop.f32.mrf.mxu0
        %v8793 = vpop.f32.mrf.mxu0
        %v8794 = vadd.f32 0.0, %v8793
        %v8795 = vpop.f32.mrf.mxu0
        %8796 = vmatprep.mubr.bf16.mxu0 0
        %8797 = vmatmul.mubr.bf16.gmra.mxu0 %v8702
        %v8798 = vpop.f32.mrf.mxu0
        %v8799 = vadd.f32 0.0, %v8798
        %v8800 = vpop.f32.mrf.mxu0
        %v8801 = vpop.f32.mrf.mxu0
        %v8802 = vadd.f32 0.0, %v8801
        %v8803 = vpop.f32.mrf.mxu0
        %8804 = vmatprep.mubr.bf16.mxu0 0
        %8805 = vmatmul.mubr.bf16.gmra.mxu0 %v8705
        %v8806 = vpop.f32.mrf.mxu0
        %v8807 = vadd.f32 0.0, %v8806
        %v8808 = vpop.f32.mrf.mxu0
        %v8809 = vpop.f32.mrf.mxu0
        %v8810 = vadd.f32 0.0, %v8809
        %v8811 = vpop.f32.mrf.mxu0
        %8812 = vmatprep.mubr.bf16.mxu0 0
        %8813 = vmatmul.mubr.bf16.gmra.mxu0 %v8708
        %v8814 = vpop.f32.mrf.mxu0
        %v8815 = vadd.f32 0.0, %v8814
        %v8816 = vpop.f32.mrf.mxu0
        %v8817 = vpop.f32.mrf.mxu0
        %v8818 = vadd.f32 0.0, %v8817
        %v8819 = vpop.f32.mrf.mxu0
        %8820 = vmatprep.mubr.bf16.mxu0 0
        %8821 = vmatmul.mubr.bf16.gmra.mxu0 %v8711
        %v8822 = vpop.f32.mrf.mxu0
        %v8823 = vadd.f32 0.0, %v8822
        %v8824 = vpop.f32.mrf.mxu0
        %v8825 = vpop.f32.mrf.mxu0
        %v8826 = vadd.f32 0.0, %v8825
        %v8827 = vpop.f32.mrf.mxu0
        %8828 = vmatprep.mubr.bf16.mxu0 0
        %8829 = vmatmul.mubr.bf16.gmra.mxu0 %v8714
        %v8830 = vpop.f32.mrf.mxu0
        %v8831 = vadd.f32 0.0, %v8830
        %v8832 = vpop.f32.mrf.mxu0
        %v8833 = vpop.f32.mrf.mxu0
        %v8834 = vadd.f32 0.0, %v8833
        %v8835 = vpop.f32.mrf.mxu0
        %8836 = vmatprep.mubr.bf16.mxu0 0
        %8837 = vmatmul.mubr.bf16.gmra.mxu0 %v8717
        %v8838 = vpop.f32.mrf.mxu0
        %v8839 = vadd.f32 0.0, %v8838
        %v8840 = vpop.f32.mrf.mxu0
        %v8841 = vpop.f32.mrf.mxu0
        %v8842 = vadd.f32 0.0, %v8841
        %v8843 = vpop.f32.mrf.mxu0
        %8844 = vmatprep.mubr.bf16.mxu0 0
        %8845 = vmatmul.mubr.bf16.gmra.mxu0 %v8720
        %v8846 = vpop.f32.mrf.mxu0
        %v8847 = vadd.f32 0.0, %v8846
        %v8848 = vpop.f32.mrf.mxu0
        %v8849 = vpop.f32.mrf.mxu0
        %v8850 = vadd.f32 0.0, %v8849
        %v8851 = vpop.f32.mrf.mxu0
        %8852 = vmatprep.mubr.bf16.mxu0 0
        %8853 = vmatmul.mubr.bf16.gmra.mxu0 %v8723
        %v8854 = vpop.f32.mrf.mxu0
        %v8855 = vadd.f32 0.0, %v8854
        %v8856 = vpop.f32.mrf.mxu0
        %v8857 = vpop.f32.mrf.mxu0
        %v8858 = vadd.f32 0.0, %v8857
        %v8859 = vpop.f32.mrf.mxu0
        %8860 = vmatprep.mubr.bf16.mxu0 0
        %8861 = vmatmul.mubr.bf16.gmra.mxu0 %v8726
        %v8862 = vpop.f32.mrf.mxu0
        %v8863 = vadd.f32 0.0, %v8862
        %v8864 = vpop.f32.mrf.mxu0
        %v8865 = vpop.f32.mrf.mxu0
        %v8866 = vadd.f32 0.0, %v8865
        %v8867 = vpop.f32.mrf.mxu0
        %8868 = vmatprep.mubr.bf16.mxu0 0
        %8869 = vmatmul.mubr.bf16.gmra.mxu0 %v8729
        %v8870 = vpop.f32.mrf.mxu0
        %v8871 = vadd.f32 0.0, %v8870
        %v8872 = vpop.f32.mrf.mxu0
        %v8873 = vpop.f32.mrf.mxu0
        %v8874 = vadd.f32 0.0, %v8873
        %v8875 = vpop.f32.mrf.mxu0
        %8876 = vmatprep.mubr.bf16.mxu0 0
        %8877 = vmatmul.mubr.bf16.gmra.mxu0 %v8732
        %v8878 = vpop.f32.mrf.mxu0
        %v8879 = vadd.f32 0.0, %v8878
        %v8880 = vpop.f32.mrf.mxu0
        %v8881 = vpop.f32.mrf.mxu0
        %v8882 = vadd.f32 0.0, %v8881
        %v8883 = vpop.f32.mrf.mxu0
        %8884 = vmatprep.mubr.bf16.mxu0 0
        %8885 = vmatmul.mubr.bf16.gmra.mxu0 %v8735
        %v8886 = vpop.f32.mrf.mxu0
        %v8887 = vadd.f32 0.0, %v8886
        %v8888 = vpop.f32.mrf.mxu0
        %v8889 = vpop.f32.mrf.mxu0
        %v8890 = vadd.f32 0.0, %v8889
        %v8891 = vpop.f32.mrf.mxu0
        %8892 = vmatprep.mubr.bf16.mxu0 0
        %8893 = vmatmul.mubr.bf16.gmra.mxu0 %v8738
        %v8894 = vpop.f32.mrf.mxu0
        %v8895 = vadd.f32 0.0, %v8894
        %v8896 = vpop.f32.mrf.mxu0
        %v8897 = vpop.f32.mrf.mxu0
        %v8898 = vadd.f32 0.0, %v8897
        %v8899 = vpop.f32.mrf.mxu0
        %8900 = vdwg.mxu0
        %v8933 = vunpack.c.l.b16 %v8166
        %v8934 = vunpack.c.l.b16 %v8167
        %v8935 = vunpack.c.l.b16 %v8169
        %v8936 = vunpack.c.l.b16 %v8170
        %v8937 = vunpack.c.l.b16 %v8172
        %v8938 = vunpack.c.l.b16 %v8173
        %v8939 = vunpack.c.l.b16 %v8175
        %v8940 = vunpack.c.l.b16 %v8176
        %v8941 = vunpack.c.l.b16 %v8178
        %v8942 = vunpack.c.l.b16 %v8179
        %v8943 = vunpack.c.l.b16 %v8181
        %v8944 = vunpack.c.l.b16 %v8182
        %v8945 = vunpack.c.l.b16 %v8184
        %v8946 = vunpack.c.l.b16 %v8185
        %v8947 = vunpack.c.l.b16 %v8187
        %v8948 = vunpack.c.l.b16 %v8188
        %v8949 = vunpack.c.l.b16 %v8190
        %v8950 = vunpack.c.l.b16 %v8191
        %v8951 = vunpack.c.l.b16 %v8193
        %v8952 = vunpack.c.l.b16 %v8194
        %v8953 = vunpack.c.l.b16 %v8196
        %v8954 = vunpack.c.l.b16 %v8197
        %v8955 = vunpack.c.l.b16 %v8199
        %v8956 = vunpack.c.l.b16 %v8200
        %v8957 = vunpack.c.l.b16 %v8202
        %v8958 = vunpack.c.l.b16 %v8203
        %v8959 = vunpack.c.l.b16 %v8205
        %v8960 = vunpack.c.l.b16 %v8206
        %v8961 = vunpack.c.l.b16 %v8208
        %v8962 = vunpack.c.l.b16 %v8209
        %v8963 = vunpack.c.l.b16 %v8211
        %v8964 = vunpack.c.l.b16 %v8212
        %v8965 = vpack.c.b16 %v8934, %v8933
        %v8966 = vpack.c.b16 %v8936, %v8935
        %v8967 = vpack.c.b16 %v8938, %v8937
        %v8968 = vpack.c.b16 %v8940, %v8939
        %v8969 = vpack.c.b16 %v8942, %v8941
        %v8970 = vpack.c.b16 %v8944, %v8943
        %v8971 = vpack.c.b16 %v8946, %v8945
        %v8972 = vpack.c.b16 %v8948, %v8947
        %v8973 = vpack.c.b16 %v8950, %v8949
        %v8974 = vpack.c.b16 %v8952, %v8951
        %v8975 = vpack.c.b16 %v8954, %v8953
        %v8976 = vpack.c.b16 %v8956, %v8955
        %v8977 = vpack.c.b16 %v8958, %v8957
        %v8978 = vpack.c.b16 %v8960, %v8959
        %v8979 = vpack.c.b16 %v8962, %v8961
        %v8980 = vpack.c.b16 %v8964, %v8963
        %v8989 = vunpack.c.l.b16 %v8220
        %v8990 = vunpack.c.l.b16 %v8221
        %v8991 = vunpack.c.l.b16 %v8222
        %v8992 = vunpack.c.l.b16 %v8223
        %v8993 = vunpack.c.l.b16 %v8224
        %v8994 = vunpack.c.l.b16 %v8225
        %v8995 = vunpack.c.l.b16 %v8226
        %v8996 = vunpack.c.l.b16 %v8227
        %v8997 = vpack.c.b16 %v8990, %v8989
        %v8998 = vpack.c.b16 %v8992, %v8991
        %v8999 = vpack.c.b16 %v8994, %v8993
        %v9000 = vpack.c.b16 %v8996, %v8995
        %v9006 = vsel %vm1555, %v8965, 0
        %v9009 = vsel %vm1555, %v8966, 0
        %v9012 = vsel %vm1555, %v8967, 0
        %v9015 = vsel %vm1555, %v8968, 0
        %v9018 = vsel %vm1555, %v8969, 0
        %v9021 = vsel %vm1555, %v8970, 0
        %v9024 = vsel %vm1555, %v8971, 0
        %v9027 = vsel %vm1555, %v8972, 0
        %v9030 = vsel %vm1555, %v8973, 0
        %v9033 = vsel %vm1555, %v8974, 0
        %v9036 = vsel %vm1555, %v8975, 0
        %v9039 = vsel %vm1555, %v8976, 0
        %v9042 = vsel %vm1555, %v8977, 0
        %v9045 = vsel %vm1555, %v8978, 0
        %v9048 = vsel %vm1555, %v8979, 0
        %v9051 = vsel %vm1555, %v8980, 0
        %9053 = vmatprep.subr.bf16.mxu0 0
        %9054 = vmatpush1.bf16.msra.mxu0 0
        %9055 = vmatprep.subr.bf16.mxu0 0
        %9056 = vmatpush1.bf16.msra.mxu0 0
        %9057 = vmatprep.subr.bf16.mxu0 0
        %9058 = vmatpush1.bf16.msra.mxu0 0
        %9059 = vmatprep.subr.bf16.mxu0 0
        %9060 = vmatpush1.bf16.msra.mxu0 0
        %9061 = vmatprep.subr.bf16.mxu0 0
        %9062 = vmatpush1.bf16.msra.mxu0 %v9000
        %9063 = vmatprep.subr.bf16.mxu0 0
        %9064 = vmatpush1.bf16.msra.mxu0 %v8999
        %9065 = vmatprep.subr.bf16.mxu0 0
        %9066 = vmatpush1.bf16.msra.mxu0 %v8998
        %9067 = vmatprep.subr.bf16.mxu0 0
        %9068 = vmatpush1.bf16.msra.mxu0 %v8997
        %9069 = vmatprep.subr.bf16.mxu0 0
        %9070 = vmatpush2.bf16.msra.mxu0 0
        %9071 = vmatprep.subr.bf16.mxu0 0
        %9072 = vmatpush2.bf16.msra.mxu0 0
        %9073 = vmatprep.subr.bf16.mxu0 0
        %9074 = vmatpush2.bf16.msra.mxu0 0
        %9075 = vmatprep.subr.bf16.mxu0 0
        %9076 = vmatpush2.bf16.msra.mxu0 0
        %9077 = vmatprep.subr.bf16.mxu0 0
        %9078 = vmatpush2.bf16.msra.mxu0 0
        %9079 = vmatprep.subr.bf16.mxu0 0
        %9080 = vmatpush2.bf16.msra.mxu0 0
        %9081 = vmatprep.subr.bf16.mxu0 0
        %9082 = vmatpush2.bf16.msra.mxu0 0
        %9083 = vmatprep.subr.bf16.mxu0 0
        %9084 = vmatpush2.bf16.msra.mxu0 0
        %9085 = vmatprep.mubr.bf16.mxu0 0
        %9086 = vmatmul.mubr.bf16.gmra.mxu0 %v9006
        %v9087 = vpop.f32.mrf.mxu0
        %v9088 = vadd.f32 %v8775, %v9087
        %v9089 = vpop.f32.mrf.mxu0
        %v9090 = vpop.f32.mrf.mxu0
        %v9091 = vadd.f32 %v8778, %v9090
        %v9092 = vpop.f32.mrf.mxu0
        %9093 = vmatprep.mubr.bf16.mxu0 0
        %9094 = vmatmul.mubr.bf16.gmra.mxu0 %v9009
        %v9095 = vpop.f32.mrf.mxu0
        %v9096 = vadd.f32 %v8783, %v9095
        %v9097 = vpop.f32.mrf.mxu0
        %v9098 = vpop.f32.mrf.mxu0
        %v9099 = vadd.f32 %v8786, %v9098
        %v9100 = vpop.f32.mrf.mxu0
        %9101 = vmatprep.mubr.bf16.mxu0 0
        %9102 = vmatmul.mubr.bf16.gmra.mxu0 %v9012
        %v9103 = vpop.f32.mrf.mxu0
        %v9104 = vadd.f32 %v8791, %v9103
        %v9105 = vpop.f32.mrf.mxu0
        %v9106 = vpop.f32.mrf.mxu0
        %v9107 = vadd.f32 %v8794, %v9106
        %v9108 = vpop.f32.mrf.mxu0
        %9109 = vmatprep.mubr.bf16.mxu0 0
        %9110 = vmatmul.mubr.bf16.gmra.mxu0 %v9015
        %v9111 = vpop.f32.mrf.mxu0
        %v9112 = vadd.f32 %v8799, %v9111
        %v9113 = vpop.f32.mrf.mxu0
        %v9114 = vpop.f32.mrf.mxu0
        %v9115 = vadd.f32 %v8802, %v9114
        %v9116 = vpop.f32.mrf.mxu0
        %9117 = vmatprep.mubr.bf16.mxu0 0
        %9118 = vmatmul.mubr.bf16.gmra.mxu0 %v9018
        %v9119 = vpop.f32.mrf.mxu0
        %v9120 = vadd.f32 %v8807, %v9119
        %v9121 = vpop.f32.mrf.mxu0
        %v9122 = vpop.f32.mrf.mxu0
        %v9123 = vadd.f32 %v8810, %v9122
        %v9124 = vpop.f32.mrf.mxu0
        %9125 = vmatprep.mubr.bf16.mxu0 0
        %9126 = vmatmul.mubr.bf16.gmra.mxu0 %v9021
        %v9127 = vpop.f32.mrf.mxu0
        %v9128 = vadd.f32 %v8815, %v9127
        %v9129 = vpop.f32.mrf.mxu0
        %v9130 = vpop.f32.mrf.mxu0
        %v9131 = vadd.f32 %v8818, %v9130
        %v9132 = vpop.f32.mrf.mxu0
        %9133 = vmatprep.mubr.bf16.mxu0 0
        %9134 = vmatmul.mubr.bf16.gmra.mxu0 %v9024
        %v9135 = vpop.f32.mrf.mxu0
        %v9136 = vadd.f32 %v8823, %v9135
        %v9137 = vpop.f32.mrf.mxu0
        %v9138 = vpop.f32.mrf.mxu0
        %v9139 = vadd.f32 %v8826, %v9138
        %v9140 = vpop.f32.mrf.mxu0
        %9141 = vmatprep.mubr.bf16.mxu0 0
        %9142 = vmatmul.mubr.bf16.gmra.mxu0 %v9027
        %v9143 = vpop.f32.mrf.mxu0
        %v9144 = vadd.f32 %v8831, %v9143
        %v9145 = vpop.f32.mrf.mxu0
        %v9146 = vpop.f32.mrf.mxu0
        %v9147 = vadd.f32 %v8834, %v9146
        %v9148 = vpop.f32.mrf.mxu0
        %9149 = vmatprep.mubr.bf16.mxu0 0
        %9150 = vmatmul.mubr.bf16.gmra.mxu0 %v9030
        %v9151 = vpop.f32.mrf.mxu0
        %v9152 = vadd.f32 %v8839, %v9151
        %v9153 = vpop.f32.mrf.mxu0
        %v9154 = vpop.f32.mrf.mxu0
        %v9155 = vadd.f32 %v8842, %v9154
        %v9156 = vpop.f32.mrf.mxu0
        %9157 = vmatprep.mubr.bf16.mxu0 0
        %9158 = vmatmul.mubr.bf16.gmra.mxu0 %v9033
        %v9159 = vpop.f32.mrf.mxu0
        %v9160 = vadd.f32 %v8847, %v9159
        %v9161 = vpop.f32.mrf.mxu0
        %v9162 = vpop.f32.mrf.mxu0
        %v9163 = vadd.f32 %v8850, %v9162
        %v9164 = vpop.f32.mrf.mxu0
        %9165 = vmatprep.mubr.bf16.mxu0 0
        %9166 = vmatmul.mubr.bf16.gmra.mxu0 %v9036
        %v9167 = vpop.f32.mrf.mxu0
        %v9168 = vadd.f32 %v8855, %v9167
        %v9169 = vpop.f32.mrf.mxu0
        %v9170 = vpop.f32.mrf.mxu0
        %v9171 = vadd.f32 %v8858, %v9170
        %v9172 = vpop.f32.mrf.mxu0
        %9173 = vmatprep.mubr.bf16.mxu0 0
        %9174 = vmatmul.mubr.bf16.gmra.mxu0 %v9039
        %v9175 = vpop.f32.mrf.mxu0
        %v9176 = vadd.f32 %v8863, %v9175
        %v9177 = vpop.f32.mrf.mxu0
        %v9178 = vpop.f32.mrf.mxu0
        %v9179 = vadd.f32 %v8866, %v9178
        %v9180 = vpop.f32.mrf.mxu0
        %9181 = vmatprep.mubr.bf16.mxu0 0
        %9182 = vmatmul.mubr.bf16.gmra.mxu0 %v9042
        %v9183 = vpop.f32.mrf.mxu0
        %v9184 = vadd.f32 %v8871, %v9183
        %v9185 = vpop.f32.mrf.mxu0
        %v9186 = vpop.f32.mrf.mxu0
        %v9187 = vadd.f32 %v8874, %v9186
        %v9188 = vpop.f32.mrf.mxu0
        %9189 = vmatprep.mubr.bf16.mxu0 0
        %9190 = vmatmul.mubr.bf16.gmra.mxu0 %v9045
        %v9191 = vpop.f32.mrf.mxu0
        %v9192 = vadd.f32 %v8879, %v9191
        %v9193 = vpop.f32.mrf.mxu0
        %v9194 = vpop.f32.mrf.mxu0
        %v9195 = vadd.f32 %v8882, %v9194
        %v9196 = vpop.f32.mrf.mxu0
        %9197 = vmatprep.mubr.bf16.mxu0 0
        %9198 = vmatmul.mubr.bf16.gmra.mxu0 %v9048
        %v9199 = vpop.f32.mrf.mxu0
        %v9200 = vadd.f32 %v8887, %v9199
        %v9201 = vpop.f32.mrf.mxu0
        %v9202 = vpop.f32.mrf.mxu0
        %v9203 = vadd.f32 %v8890, %v9202
        %v9204 = vpop.f32.mrf.mxu0
        %9205 = vmatprep.mubr.bf16.mxu0 0
        %9206 = vmatmul.mubr.bf16.gmra.mxu0 %v9051
        %v9207 = vpop.f32.mrf.mxu0
        %v9208 = vadd.f32 %v8895, %v9207
        %v9209 = vpop.f32.mrf.mxu0
        %v9210 = vpop.f32.mrf.mxu0
        %v9211 = vadd.f32 %v8898, %v9210
        %v9212 = vpop.f32.mrf.mxu0
        %9213 = vdwg.mxu0
        %v9230 = vrot.slane %v8166, 5
        %v9231 = vrot.slane %v9230, 4
        %v9232 = vrot.slane %v8167, 5
        %v9233 = vsel %vm2096, %v9231, %v9232
        %v9234 = vrot.slane %v9232, 4
        %v9235 = vrot.slane %v8168, 5
        %v9236 = vsel %vm2096, %v9234, %v9235
        %v9237 = vrot.slane %v8169, 5
        %v9238 = vrot.slane %v9237, 4
        %v9239 = vrot.slane %v8170, 5
        %v9240 = vsel %vm2096, %v9238, %v9239
        %v9241 = vrot.slane %v9239, 4
        %v9242 = vrot.slane %v8171, 5
        %v9243 = vsel %vm2096, %v9241, %v9242
        %v9244 = vrot.slane %v8172, 5
        %v9245 = vrot.slane %v9244, 4
        %v9246 = vrot.slane %v8173, 5
        %v9247 = vsel %vm2096, %v9245, %v9246
        %v9248 = vrot.slane %v9246, 4
        %v9249 = vrot.slane %v8174, 5
        %v9250 = vsel %vm2096, %v9248, %v9249
        %v9251 = vrot.slane %v8175, 5
        %v9252 = vrot.slane %v9251, 4
        %v9253 = vrot.slane %v8176, 5
        %v9254 = vsel %vm2096, %v9252, %v9253
        %v9255 = vrot.slane %v9253, 4
        %v9256 = vrot.slane %v8177, 5
        %v9257 = vsel %vm2096, %v9255, %v9256
        %v9258 = vrot.slane %v8178, 5
        %v9259 = vrot.slane %v9258, 4
        %v9260 = vrot.slane %v8179, 5
        %v9261 = vsel %vm2096, %v9259, %v9260
        %v9262 = vrot.slane %v9260, 4
        %v9263 = vrot.slane %v8180, 5
        %v9264 = vsel %vm2096, %v9262, %v9263
        %v9265 = vrot.slane %v8181, 5
        %v9266 = vrot.slane %v9265, 4
        %v9267 = vrot.slane %v8182, 5
        %v9268 = vsel %vm2096, %v9266, %v9267
        %v9269 = vrot.slane %v9267, 4
        %v9270 = vrot.slane %v8183, 5
        %v9271 = vsel %vm2096, %v9269, %v9270
        %v9272 = vrot.slane %v8184, 5
        %v9273 = vrot.slane %v9272, 4
        %v9274 = vrot.slane %v8185, 5
        %v9275 = vsel %vm2096, %v9273, %v9274
        %v9276 = vrot.slane %v9274, 4
        %v9277 = vrot.slane %v8186, 5
        %v9278 = vsel %vm2096, %v9276, %v9277
        %v9279 = vrot.slane %v8187, 5
        %v9280 = vrot.slane %v9279, 4
        %v9281 = vrot.slane %v8188, 5
        %v9282 = vsel %vm2096, %v9280, %v9281
        %v9283 = vrot.slane %v9281, 4
        %v9284 = vrot.slane %v8189, 5
        %v9285 = vsel %vm2096, %v9283, %v9284
        %v9286 = vrot.slane %v8190, 5
        %v9287 = vrot.slane %v9286, 4
        %v9288 = vrot.slane %v8191, 5
        %v9289 = vsel %vm2096, %v9287, %v9288
        %v9290 = vrot.slane %v9288, 4
        %v9291 = vrot.slane %v8192, 5
        %v9292 = vsel %vm2096, %v9290, %v9291
        %v9293 = vrot.slane %v8193, 5
        %v9294 = vrot.slane %v9293, 4
        %v9295 = vrot.slane %v8194, 5
        %v9296 = vsel %vm2096, %v9294, %v9295
        %v9297 = vrot.slane %v9295, 4
        %v9298 = vrot.slane %v8195, 5
        %v9299 = vsel %vm2096, %v9297, %v9298
        %v9300 = vrot.slane %v8196, 5
        %v9301 = vrot.slane %v9300, 4
        %v9302 = vrot.slane %v8197, 5
        %v9303 = vsel %vm2096, %v9301, %v9302
        %v9304 = vrot.slane %v9302, 4
        %v9305 = vrot.slane %v8198, 5
        %v9306 = vsel %vm2096, %v9304, %v9305
        %v9307 = vrot.slane %v8199, 5
        %v9308 = vrot.slane %v9307, 4
        %v9309 = vrot.slane %v8200, 5
        %v9310 = vsel %vm2096, %v9308, %v9309
        %v9311 = vrot.slane %v9309, 4
        %v9312 = vrot.slane %v8201, 5
        %v9313 = vsel %vm2096, %v9311, %v9312
        %v9314 = vrot.slane %v8202, 5
        %v9315 = vrot.slane %v9314, 4
        %v9316 = vrot.slane %v8203, 5
        %v9317 = vsel %vm2096, %v9315, %v9316
        %v9318 = vrot.slane %v9316, 4
        %v9319 = vrot.slane %v8204, 5
        %v9320 = vsel %vm2096, %v9318, %v9319
        %v9321 = vrot.slane %v8205, 5
        %v9322 = vrot.slane %v9321, 4
        %v9323 = vrot.slane %v8206, 5
        %v9324 = vsel %vm2096, %v9322, %v9323
        %v9325 = vrot.slane %v9323, 4
        %v9326 = vrot.slane %v8207, 5
        %v9327 = vsel %vm2096, %v9325, %v9326
        %v9328 = vrot.slane %v8208, 5
        %v9329 = vrot.slane %v9328, 4
        %v9330 = vrot.slane %v8209, 5
        %v9331 = vsel %vm2096, %v9329, %v9330
        %v9332 = vrot.slane %v9330, 4
        %v9333 = vrot.slane %v8210, 5
        %v9334 = vsel %vm2096, %v9332, %v9333
        %v9335 = vrot.slane %v8211, 5
        %v9336 = vrot.slane %v9335, 4
        %v9337 = vrot.slane %v8212, 5
        %v9338 = vsel %vm2096, %v9336, %v9337
        %v9339 = vrot.slane %v9337, 4
        %v9340 = vrot.slane %v8213, 5
        %v9341 = vsel %vm2096, %v9339, %v9340
        %v9342 = vld [vmem:[%s3 + $0x40] sm:$0xf]
        %v9343 = vld [vmem:[%s3 + $0x44] sm:$0xf]
        %v9344 = vld [vmem:[%s3 + $0x48] sm:$0xf]
        %v9345 = vld [vmem:[%s3 + $0x4c] sm:$0xf]
        %v9346 = vld [vmem:[%s3 + $0x50] sm:$0xf]
        %v9347 = vld [vmem:[%s3 + $0x54] sm:$0xf]
        %v9348 = vld [vmem:[%s3 + $0x58] sm:$0xf]
        %v9349 = vld [vmem:[%s3 + $0x5c] sm:$0xf]
        %v9350 = vunpack.c.l.b16 %v9233
        %v9351 = vunpack.c.l.b16 %v9236
        %v9352 = vunpack.c.l.b16 %v9240
        %v9353 = vunpack.c.l.b16 %v9243
        %v9354 = vunpack.c.l.b16 %v9247
        %v9355 = vunpack.c.l.b16 %v9250
        %v9356 = vunpack.c.l.b16 %v9254
        %v9357 = vunpack.c.l.b16 %v9257
        %v9358 = vunpack.c.l.b16 %v9261
        %v9359 = vunpack.c.l.b16 %v9264
        %v9360 = vunpack.c.l.b16 %v9268
        %v9361 = vunpack.c.l.b16 %v9271
        %v9362 = vunpack.c.l.b16 %v9275
        %v9363 = vunpack.c.l.b16 %v9278
        %v9364 = vunpack.c.l.b16 %v9282
        %v9365 = vunpack.c.l.b16 %v9285
        %v9366 = vunpack.c.l.b16 %v9289
        %v9367 = vunpack.c.l.b16 %v9292
        %v9368 = vunpack.c.l.b16 %v9296
        %v9369 = vunpack.c.l.b16 %v9299
        %v9370 = vunpack.c.l.b16 %v9303
        %v9371 = vunpack.c.l.b16 %v9306
        %v9372 = vunpack.c.l.b16 %v9310
        %v9373 = vunpack.c.l.b16 %v9313
        %v9374 = vunpack.c.l.b16 %v9317
        %v9375 = vunpack.c.l.b16 %v9320
        %v9376 = vunpack.c.l.b16 %v9324
        %v9377 = vunpack.c.l.b16 %v9327
        %v9378 = vunpack.c.l.b16 %v9331
        %v9379 = vunpack.c.l.b16 %v9334
        %v9380 = vunpack.c.l.b16 %v9338
        %v9381 = vunpack.c.l.b16 %v9341
        %v9382 = vpack.c.b16 %v9351, %v9350
        %v9383 = vpack.c.b16 %v9353, %v9352
        %v9384 = vpack.c.b16 %v9355, %v9354
        %v9385 = vpack.c.b16 %v9357, %v9356
        %v9386 = vpack.c.b16 %v9359, %v9358
        %v9387 = vpack.c.b16 %v9361, %v9360
        %v9388 = vpack.c.b16 %v9363, %v9362
        %v9389 = vpack.c.b16 %v9365, %v9364
        %v9390 = vpack.c.b16 %v9367, %v9366
        %v9391 = vpack.c.b16 %v9369, %v9368
        %v9392 = vpack.c.b16 %v9371, %v9370
        %v9393 = vpack.c.b16 %v9373, %v9372
        %v9394 = vpack.c.b16 %v9375, %v9374
        %v9395 = vpack.c.b16 %v9377, %v9376
        %v9396 = vpack.c.b16 %v9379, %v9378
        %v9397 = vpack.c.b16 %v9381, %v9380
        %v9406 = vunpack.c.l.b16 %v9342
        %v9407 = vunpack.c.l.b16 %v9343
        %v9408 = vunpack.c.l.b16 %v9344
        %v9409 = vunpack.c.l.b16 %v9345
        %v9410 = vunpack.c.l.b16 %v9346
        %v9411 = vunpack.c.l.b16 %v9347
        %v9412 = vunpack.c.l.b16 %v9348
        %v9413 = vunpack.c.l.b16 %v9349
        %v9414 = vpack.c.b16 %v9407, %v9406
        %v9415 = vpack.c.b16 %v9409, %v9408
        %v9416 = vpack.c.b16 %v9411, %v9410
        %v9417 = vpack.c.b16 %v9413, %v9412
        %v9423 = vsel %vm1555, %v9382, 0
        %v9426 = vsel %vm1555, %v9383, 0
        %v9429 = vsel %vm1555, %v9384, 0
        %v9432 = vsel %vm1555, %v9385, 0
        %v9435 = vsel %vm1555, %v9386, 0
        %v9438 = vsel %vm1555, %v9387, 0
        %v9441 = vsel %vm1555, %v9388, 0
        %v9444 = vsel %vm1555, %v9389, 0
        %v9447 = vsel %vm1555, %v9390, 0
        %v9450 = vsel %vm1555, %v9391, 0
        %v9453 = vsel %vm1555, %v9392, 0
        %v9456 = vsel %vm1555, %v9393, 0
        %v9459 = vsel %vm1555, %v9394, 0
        %v9462 = vsel %vm1555, %v9395, 0
        %v9465 = vsel %vm1555, %v9396, 0
        %v9468 = vsel %vm1555, %v9397, 0
        %9470 = vmatprep.subr.bf16.mxu0 0
        %9471 = vmatpush1.bf16.msra.mxu0 0
        %9472 = vmatprep.subr.bf16.mxu0 0
        %9473 = vmatpush1.bf16.msra.mxu0 0
        %9474 = vmatprep.subr.bf16.mxu0 0
        %9475 = vmatpush1.bf16.msra.mxu0 0
        %9476 = vmatprep.subr.bf16.mxu0 0
        %9477 = vmatpush1.bf16.msra.mxu0 0
        %9478 = vmatprep.subr.bf16.mxu0 0
        %9479 = vmatpush1.bf16.msra.mxu0 %v9417
        %9480 = vmatprep.subr.bf16.mxu0 0
        %9481 = vmatpush1.bf16.msra.mxu0 %v9416
        %9482 = vmatprep.subr.bf16.mxu0 0
        %9483 = vmatpush1.bf16.msra.mxu0 %v9415
        %9484 = vmatprep.subr.bf16.mxu0 0
        %9485 = vmatpush1.bf16.msra.mxu0 %v9414
        %9486 = vmatprep.subr.bf16.mxu0 0
        %9487 = vmatpush2.bf16.msra.mxu0 0
        %9488 = vmatprep.subr.bf16.mxu0 0
        %9489 = vmatpush2.bf16.msra.mxu0 0
        %9490 = vmatprep.subr.bf16.mxu0 0
        %9491 = vmatpush2.bf16.msra.mxu0 0
        %9492 = vmatprep.subr.bf16.mxu0 0
        %9493 = vmatpush2.bf16.msra.mxu0 0
        %9494 = vmatprep.subr.bf16.mxu0 0
        %9495 = vmatpush2.bf16.msra.mxu0 0
        %9496 = vmatprep.subr.bf16.mxu0 0
        %9497 = vmatpush2.bf16.msra.mxu0 0
        %9498 = vmatprep.subr.bf16.mxu0 0
        %9499 = vmatpush2.bf16.msra.mxu0 0
        %9500 = vmatprep.subr.bf16.mxu0 0
        %9501 = vmatpush2.bf16.msra.mxu0 0
        %9502 = vmatprep.mubr.bf16.mxu0 0
        %9503 = vmatmul.mubr.bf16.gmra.mxu0 %v9423
        %v9504 = vpop.f32.mrf.mxu0
        %v9505 = vadd.f32 0.0, %v9504
        %v9506 = vpop.f32.mrf.mxu0
        %v9507 = vpop.f32.mrf.mxu0
        %v9508 = vadd.f32 0.0, %v9507
        %v9509 = vpop.f32.mrf.mxu0
        %9510 = vmatprep.mubr.bf16.mxu0 0
        %9511 = vmatmul.mubr.bf16.gmra.mxu0 %v9426
        %v9512 = vpop.f32.mrf.mxu0
        %v9513 = vadd.f32 0.0, %v9512
        %v9514 = vpop.f32.mrf.mxu0
        %v9515 = vpop.f32.mrf.mxu0
        %v9516 = vadd.f32 0.0, %v9515
        %v9517 = vpop.f32.mrf.mxu0
        %9518 = vmatprep.mubr.bf16.mxu0 0
        %9519 = vmatmul.mubr.bf16.gmra.mxu0 %v9429
        %v9520 = vpop.f32.mrf.mxu0
        %v9521 = vadd.f32 0.0, %v9520
        %v9522 = vpop.f32.mrf.mxu0
        %v9523 = vpop.f32.mrf.mxu0
        %v9524 = vadd.f32 0.0, %v9523
        %v9525 = vpop.f32.mrf.mxu0
        %9526 = vmatprep.mubr.bf16.mxu0 0
        %9527 = vmatmul.mubr.bf16.gmra.mxu0 %v9432
        %v9528 = vpop.f32.mrf.mxu0
        %v9529 = vadd.f32 0.0, %v9528
        %v9530 = vpop.f32.mrf.mxu0
        %v9531 = vpop.f32.mrf.mxu0
        %v9532 = vadd.f32 0.0, %v9531
        %v9533 = vpop.f32.mrf.mxu0
        %9534 = vmatprep.mubr.bf16.mxu0 0
        %9535 = vmatmul.mubr.bf16.gmra.mxu0 %v9435
        %v9536 = vpop.f32.mrf.mxu0
        %v9537 = vadd.f32 0.0, %v9536
        %v9538 = vpop.f32.mrf.mxu0
        %v9539 = vpop.f32.mrf.mxu0
        %v9540 = vadd.f32 0.0, %v9539
        %v9541 = vpop.f32.mrf.mxu0
        %9542 = vmatprep.mubr.bf16.mxu0 0
        %9543 = vmatmul.mubr.bf16.gmra.mxu0 %v9438
        %v9544 = vpop.f32.mrf.mxu0
        %v9545 = vadd.f32 0.0, %v9544
        %v9546 = vpop.f32.mrf.mxu0
        %v9547 = vpop.f32.mrf.mxu0
        %v9548 = vadd.f32 0.0, %v9547
        %v9549 = vpop.f32.mrf.mxu0
        %9550 = vmatprep.mubr.bf16.mxu0 0
        %9551 = vmatmul.mubr.bf16.gmra.mxu0 %v9441
        %v9552 = vpop.f32.mrf.mxu0
        %v9553 = vadd.f32 0.0, %v9552
        %v9554 = vpop.f32.mrf.mxu0
        %v9555 = vpop.f32.mrf.mxu0
        %v9556 = vadd.f32 0.0, %v9555
        %v9557 = vpop.f32.mrf.mxu0
        %9558 = vmatprep.mubr.bf16.mxu0 0
        %9559 = vmatmul.mubr.bf16.gmra.mxu0 %v9444
        %v9560 = vpop.f32.mrf.mxu0
        %v9561 = vadd.f32 0.0, %v9560
        %v9562 = vpop.f32.mrf.mxu0
        %v9563 = vpop.f32.mrf.mxu0
        %v9564 = vadd.f32 0.0, %v9563
        %v9565 = vpop.f32.mrf.mxu0
        %9566 = vmatprep.mubr.bf16.mxu0 0
        %9567 = vmatmul.mubr.bf16.gmra.mxu0 %v9447
        %v9568 = vpop.f32.mrf.mxu0
        %v9569 = vadd.f32 0.0, %v9568
        %v9570 = vpop.f32.mrf.mxu0
        %v9571 = vpop.f32.mrf.mxu0
        %v9572 = vadd.f32 0.0, %v9571
        %v9573 = vpop.f32.mrf.mxu0
        %9574 = vmatprep.mubr.bf16.mxu0 0
        %9575 = vmatmul.mubr.bf16.gmra.mxu0 %v9450
        %v9576 = vpop.f32.mrf.mxu0
        %v9577 = vadd.f32 0.0, %v9576
        %v9578 = vpop.f32.mrf.mxu0
        %v9579 = vpop.f32.mrf.mxu0
        %v9580 = vadd.f32 0.0, %v9579
        %v9581 = vpop.f32.mrf.mxu0
        %9582 = vmatprep.mubr.bf16.mxu0 0
        %9583 = vmatmul.mubr.bf16.gmra.mxu0 %v9453
        %v9584 = vpop.f32.mrf.mxu0
        %v9585 = vadd.f32 0.0, %v9584
        %v9586 = vpop.f32.mrf.mxu0
        %v9587 = vpop.f32.mrf.mxu0
        %v9588 = vadd.f32 0.0, %v9587
        %v9589 = vpop.f32.mrf.mxu0
        %9590 = vmatprep.mubr.bf16.mxu0 0
        %9591 = vmatmul.mubr.bf16.gmra.mxu0 %v9456
        %v9592 = vpop.f32.mrf.mxu0
        %v9593 = vadd.f32 0.0, %v9592
        %v9594 = vpop.f32.mrf.mxu0
        %v9595 = vpop.f32.mrf.mxu0
        %v9596 = vadd.f32 0.0, %v9595
        %v9597 = vpop.f32.mrf.mxu0
        %9598 = vmatprep.mubr.bf16.mxu0 0
        %9599 = vmatmul.mubr.bf16.gmra.mxu0 %v9459
        %v9600 = vpop.f32.mrf.mxu0
        %v9601 = vadd.f32 0.0, %v9600
        %v9602 = vpop.f32.mrf.mxu0
        %v9603 = vpop.f32.mrf.mxu0
        %v9604 = vadd.f32 0.0, %v9603
        %v9605 = vpop.f32.mrf.mxu0
        %9606 = vmatprep.mubr.bf16.mxu0 0
        %9607 = vmatmul.mubr.bf16.gmra.mxu0 %v9462
        %v9608 = vpop.f32.mrf.mxu0
        %v9609 = vadd.f32 0.0, %v9608
        %v9610 = vpop.f32.mrf.mxu0
        %v9611 = vpop.f32.mrf.mxu0
        %v9612 = vadd.f32 0.0, %v9611
        %v9613 = vpop.f32.mrf.mxu0
        %9614 = vmatprep.mubr.bf16.mxu0 0
        %9615 = vmatmul.mubr.bf16.gmra.mxu0 %v9465
        %v9616 = vpop.f32.mrf.mxu0
        %v9617 = vadd.f32 0.0, %v9616
        %v9618 = vpop.f32.mrf.mxu0
        %v9619 = vpop.f32.mrf.mxu0
        %v9620 = vadd.f32 0.0, %v9619
        %v9621 = vpop.f32.mrf.mxu0
        %9622 = vmatprep.mubr.bf16.mxu0 0
        %9623 = vmatmul.mubr.bf16.gmra.mxu0 %v9468
        %v9624 = vpop.f32.mrf.mxu0
        %v9625 = vadd.f32 0.0, %v9624
        %v9626 = vpop.f32.mrf.mxu0
        %v9627 = vpop.f32.mrf.mxu0
        %v9628 = vadd.f32 0.0, %v9627
        %v9629 = vpop.f32.mrf.mxu0
        %9630 = vdwg.mxu0
        %v9631 = vadd.f32 %v9088, %v9505
        %v9632 = vadd.f32 %v9091, %v9508
        %v9633 = vadd.f32 %v9096, %v9513
        %v9634 = vadd.f32 %v9099, %v9516
        %v9635 = vadd.f32 %v9104, %v9521
        %v9636 = vadd.f32 %v9107, %v9524
        %v9637 = vadd.f32 %v9112, %v9529
        %v9638 = vadd.f32 %v9115, %v9532
        %v9639 = vadd.f32 %v9120, %v9537
        %v9640 = vadd.f32 %v9123, %v9540
        %v9641 = vadd.f32 %v9128, %v9545
        %v9642 = vadd.f32 %v9131, %v9548
        %v9643 = vadd.f32 %v9136, %v9553
        %v9644 = vadd.f32 %v9139, %v9556
        %v9645 = vadd.f32 %v9144, %v9561
        %v9646 = vadd.f32 %v9147, %v9564
        %v9647 = vadd.f32 %v9152, %v9569
        %v9648 = vadd.f32 %v9155, %v9572
        %v9649 = vadd.f32 %v9160, %v9577
        %v9650 = vadd.f32 %v9163, %v9580
        %v9651 = vadd.f32 %v9168, %v9585
        %v9652 = vadd.f32 %v9171, %v9588
        %v9653 = vadd.f32 %v9176, %v9593
        %v9654 = vadd.f32 %v9179, %v9596
        %v9655 = vadd.f32 %v9184, %v9601
        %v9656 = vadd.f32 %v9187, %v9604
        %v9657 = vadd.f32 %v9192, %v9609
        %v9658 = vadd.f32 %v9195, %v9612
        %v9659 = vadd.f32 %v9200, %v9617
        %v9660 = vadd.f32 %v9203, %v9620
        %v9661 = vadd.f32 %v9208, %v9625
        %v9662 = vadd.f32 %v9211, %v9628
        %v9663 = vld [vmem:[%s3 + $0x60] sm:$0xf]
        %v9664 = vld [vmem:[%s3 + $0x64] sm:$0xf]
        %v9665 = vld [vmem:[%s3 + $0x68] sm:$0xf]
        %v9666 = vld [vmem:[%s3 + $0x6c] sm:$0xf]
        %v9667 = vld [vmem:[%s3 + $0x70] sm:$0xf]
        %v9668 = vld [vmem:[%s3 + $0x74] sm:$0xf]
        %v9669 = vld [vmem:[%s3 + $0x78] sm:$0xf]
        %v9670 = vld [vmem:[%s3 + $0x7c] sm:$0xf]
        %v9673 = vunpack.c.l.b16 %v8214
        %v9674 = vunpack.c.l.b16 %v8215
        %v9675 = vpack.c.b16 %v9674, %v9673
        %v9684 = vunpack.c.l.b16 %v9663
        %v9685 = vunpack.c.l.b16 %v9664
        %v9686 = vunpack.c.l.b16 %v9665
        %v9687 = vunpack.c.l.b16 %v9666
        %v9688 = vunpack.c.l.b16 %v9667
        %v9689 = vunpack.c.l.b16 %v9668
        %v9690 = vunpack.c.l.b16 %v9669
        %v9691 = vunpack.c.l.b16 %v9670
        %v9692 = vpack.c.b16 %v9685, %v9684
        %v9693 = vpack.c.b16 %v9687, %v9686
        %v9694 = vpack.c.b16 %v9689, %v9688
        %v9695 = vpack.c.b16 %v9691, %v9690
        %v9701 = vsel %vm1555, %v9675, 0
        %9703 = vmatprep.subr.bf16.mxu0 0
        %9704 = vmatpush1.bf16.msra.mxu0 0
        %9705 = vmatprep.subr.bf16.mxu0 0
        %9706 = vmatpush1.bf16.msra.mxu0 0
        %9707 = vmatprep.subr.bf16.mxu0 0
        %9708 = vmatpush1.bf16.msra.mxu0 0
        %9709 = vmatprep.subr.bf16.mxu0 0
        %9710 = vmatpush1.bf16.msra.mxu0 0
        %9711 = vmatprep.subr.bf16.mxu0 0
        %9712 = vmatpush1.bf16.msra.mxu0 %v9695
        %9713 = vmatprep.subr.bf16.mxu0 0
        %9714 = vmatpush1.bf16.msra.mxu0 %v9694
        %9715 = vmatprep.subr.bf16.mxu0 0
        %9716 = vmatpush1.bf16.msra.mxu0 %v9693
        %9717 = vmatprep.subr.bf16.mxu0 0
        %9718 = vmatpush1.bf16.msra.mxu0 %v9692
        %9719 = vmatprep.subr.bf16.mxu0 0
        %9720 = vmatpush2.bf16.msra.mxu0 0
        %9721 = vmatprep.subr.bf16.mxu0 0
        %9722 = vmatpush2.bf16.msra.mxu0 0
        %9723 = vmatprep.subr.bf16.mxu0 0
        %9724 = vmatpush2.bf16.msra.mxu0 0
        %9725 = vmatprep.subr.bf16.mxu0 0
        %9726 = vmatpush2.bf16.msra.mxu0 0
        %9727 = vmatprep.subr.bf16.mxu0 0
        %9728 = vmatpush2.bf16.msra.mxu0 0
        %9729 = vmatprep.subr.bf16.mxu0 0
        %9730 = vmatpush2.bf16.msra.mxu0 0
        %9731 = vmatprep.subr.bf16.mxu0 0
        %9732 = vmatpush2.bf16.msra.mxu0 0
        %9733 = vmatprep.subr.bf16.mxu0 0
        %9734 = vmatpush2.bf16.msra.mxu0 0
        %9735 = vmatprep.mubr.bf16.mxu0 0
        %9736 = vmatmul.mubr.bf16.gmra.mxu0 %v9009
        %v9737 = vpop.f32.mrf.mxu0
        %v9738 = vadd.f32 0.0, %v9737
        %v9739 = vpop.f32.mrf.mxu0
        %v9740 = vpop.f32.mrf.mxu0
        %v9741 = vadd.f32 0.0, %v9740
        %v9742 = vpop.f32.mrf.mxu0
        %9743 = vmatprep.mubr.bf16.mxu0 0
        %9744 = vmatmul.mubr.bf16.gmra.mxu0 %v9012
        %v9745 = vpop.f32.mrf.mxu0
        %v9746 = vadd.f32 0.0, %v9745
        %v9747 = vpop.f32.mrf.mxu0
        %v9748 = vpop.f32.mrf.mxu0
        %v9749 = vadd.f32 0.0, %v9748
        %v9750 = vpop.f32.mrf.mxu0
        %9751 = vmatprep.mubr.bf16.mxu0 0
        %9752 = vmatmul.mubr.bf16.gmra.mxu0 %v9015
        %v9753 = vpop.f32.mrf.mxu0
        %v9754 = vadd.f32 0.0, %v9753
        %v9755 = vpop.f32.mrf.mxu0
        %v9756 = vpop.f32.mrf.mxu0
        %v9757 = vadd.f32 0.0, %v9756
        %v9758 = vpop.f32.mrf.mxu0
        %9759 = vmatprep.mubr.bf16.mxu0 0
        %9760 = vmatmul.mubr.bf16.gmra.mxu0 %v9018
        %v9761 = vpop.f32.mrf.mxu0
        %v9762 = vadd.f32 0.0, %v9761
        %v9763 = vpop.f32.mrf.mxu0
        %v9764 = vpop.f32.mrf.mxu0
        %v9765 = vadd.f32 0.0, %v9764
        %v9766 = vpop.f32.mrf.mxu0
        %9767 = vmatprep.mubr.bf16.mxu0 0
        %9768 = vmatmul.mubr.bf16.gmra.mxu0 %v9021
        %v9769 = vpop.f32.mrf.mxu0
        %v9770 = vadd.f32 0.0, %v9769
        %v9771 = vpop.f32.mrf.mxu0
        %v9772 = vpop.f32.mrf.mxu0
        %v9773 = vadd.f32 0.0, %v9772
        %v9774 = vpop.f32.mrf.mxu0
        %9775 = vmatprep.mubr.bf16.mxu0 0
        %9776 = vmatmul.mubr.bf16.gmra.mxu0 %v9024
        %v9777 = vpop.f32.mrf.mxu0
        %v9778 = vadd.f32 0.0, %v9777
        %v9779 = vpop.f32.mrf.mxu0
        %v9780 = vpop.f32.mrf.mxu0
        %v9781 = vadd.f32 0.0, %v9780
        %v9782 = vpop.f32.mrf.mxu0
        %9783 = vmatprep.mubr.bf16.mxu0 0
        %9784 = vmatmul.mubr.bf16.gmra.mxu0 %v9027
        %v9785 = vpop.f32.mrf.mxu0
        %v9786 = vadd.f32 0.0, %v9785
        %v9787 = vpop.f32.mrf.mxu0
        %v9788 = vpop.f32.mrf.mxu0
        %v9789 = vadd.f32 0.0, %v9788
        %v9790 = vpop.f32.mrf.mxu0
        %9791 = vmatprep.mubr.bf16.mxu0 0
        %9792 = vmatmul.mubr.bf16.gmra.mxu0 %v9030
        %v9793 = vpop.f32.mrf.mxu0
        %v9794 = vadd.f32 0.0, %v9793
        %v9795 = vpop.f32.mrf.mxu0
        %v9796 = vpop.f32.mrf.mxu0
        %v9797 = vadd.f32 0.0, %v9796
        %v9798 = vpop.f32.mrf.mxu0
        %9799 = vmatprep.mubr.bf16.mxu0 0
        %9800 = vmatmul.mubr.bf16.gmra.mxu0 %v9033
        %v9801 = vpop.f32.mrf.mxu0
        %v9802 = vadd.f32 0.0, %v9801
        %v9803 = vpop.f32.mrf.mxu0
        %v9804 = vpop.f32.mrf.mxu0
        %v9805 = vadd.f32 0.0, %v9804
        %v9806 = vpop.f32.mrf.mxu0
        %9807 = vmatprep.mubr.bf16.mxu0 0
        %9808 = vmatmul.mubr.bf16.gmra.mxu0 %v9036
        %v9809 = vpop.f32.mrf.mxu0
        %v9810 = vadd.f32 0.0, %v9809
        %v9811 = vpop.f32.mrf.mxu0
        %v9812 = vpop.f32.mrf.mxu0
        %v9813 = vadd.f32 0.0, %v9812
        %v9814 = vpop.f32.mrf.mxu0
        %9815 = vmatprep.mubr.bf16.mxu0 0
        %9816 = vmatmul.mubr.bf16.gmra.mxu0 %v9039
        %v9817 = vpop.f32.mrf.mxu0
        %v9818 = vadd.f32 0.0, %v9817
        %v9819 = vpop.f32.mrf.mxu0
        %v9820 = vpop.f32.mrf.mxu0
        %v9821 = vadd.f32 0.0, %v9820
        %v9822 = vpop.f32.mrf.mxu0
        %9823 = vmatprep.mubr.bf16.mxu0 0
        %9824 = vmatmul.mubr.bf16.gmra.mxu0 %v9042
        %v9825 = vpop.f32.mrf.mxu0
        %v9826 = vadd.f32 0.0, %v9825
        %v9827 = vpop.f32.mrf.mxu0
        %v9828 = vpop.f32.mrf.mxu0
        %v9829 = vadd.f32 0.0, %v9828
        %v9830 = vpop.f32.mrf.mxu0
        %9831 = vmatprep.mubr.bf16.mxu0 0
        %9832 = vmatmul.mubr.bf16.gmra.mxu0 %v9045
        %v9833 = vpop.f32.mrf.mxu0
        %v9834 = vadd.f32 0.0, %v9833
        %v9835 = vpop.f32.mrf.mxu0
        %v9836 = vpop.f32.mrf.mxu0
        %v9837 = vadd.f32 0.0, %v9836
        %v9838 = vpop.f32.mrf.mxu0
        %9839 = vmatprep.mubr.bf16.mxu0 0
        %9840 = vmatmul.mubr.bf16.gmra.mxu0 %v9048
        %v9841 = vpop.f32.mrf.mxu0
        %v9842 = vadd.f32 0.0, %v9841
        %v9843 = vpop.f32.mrf.mxu0
        %v9844 = vpop.f32.mrf.mxu0
        %v9845 = vadd.f32 0.0, %v9844
        %v9846 = vpop.f32.mrf.mxu0
        %9847 = vmatprep.mubr.bf16.mxu0 0
        %9848 = vmatmul.mubr.bf16.gmra.mxu0 %v9051
        %v9849 = vpop.f32.mrf.mxu0
        %v9850 = vadd.f32 0.0, %v9849
        %v9851 = vpop.f32.mrf.mxu0
        %v9852 = vpop.f32.mrf.mxu0
        %v9853 = vadd.f32 0.0, %v9852
        %v9854 = vpop.f32.mrf.mxu0
        %9855 = vmatprep.mubr.bf16.mxu0 0
        %9856 = vmatmul.mubr.bf16.gmra.mxu0 %v9701
        %v9857 = vpop.f32.mrf.mxu0
        %v9858 = vadd.f32 0.0, %v9857
        %v9859 = vpop.f32.mrf.mxu0
        %v9860 = vpop.f32.mrf.mxu0
        %v9861 = vadd.f32 0.0, %v9860
        %v9862 = vpop.f32.mrf.mxu0
        %9863 = vdwg.mxu0
        %v9864 = vadd.f32 %v9631, %v9738
        %v9865 = vadd.f32 %v9632, %v9741
        %v9866 = vadd.f32 %v9633, %v9746
        %v9867 = vadd.f32 %v9634, %v9749
        %v9868 = vadd.f32 %v9635, %v9754
        %v9869 = vadd.f32 %v9636, %v9757
        %v9870 = vadd.f32 %v9637, %v9762
        %v9871 = vadd.f32 %v9638, %v9765
        %v9872 = vadd.f32 %v9639, %v9770
        %v9873 = vadd.f32 %v9640, %v9773
        %v9874 = vadd.f32 %v9641, %v9778
        %v9875 = vadd.f32 %v9642, %v9781
        %v9876 = vadd.f32 %v9643, %v9786
        %v9877 = vadd.f32 %v9644, %v9789
        %v9878 = vadd.f32 %v9645, %v9794
        %v9879 = vadd.f32 %v9646, %v9797
        %v9880 = vadd.f32 %v9647, %v9802
        %v9881 = vadd.f32 %v9648, %v9805
        %v9882 = vadd.f32 %v9649, %v9810
        %v9883 = vadd.f32 %v9650, %v9813
        %v9884 = vadd.f32 %v9651, %v9818
        %v9885 = vadd.f32 %v9652, %v9821
        %v9886 = vadd.f32 %v9653, %v9826
        %v9887 = vadd.f32 %v9654, %v9829
        %v9888 = vadd.f32 %v9655, %v9834
        %v9889 = vadd.f32 %v9656, %v9837
        %v9890 = vadd.f32 %v9657, %v9842
        %v9891 = vadd.f32 %v9658, %v9845
        %v9892 = vadd.f32 %v9659, %v9850
        %v9893 = vadd.f32 %v9660, %v9853
        %v9894 = vadd.f32 %v9661, %v9858
        %v9895 = vadd.f32 %v9662, %v9861
        %v9897 = vshrl.u32 %v8214, 16
        %v9899 = vrot.slane %v9897, 4
        %v9900 = vshll.u32 %v8214, 16
        %v9902 = vrot.slane %v9900, 5
        %v9903 = vor.u32 %v9899, %v9902
        %v9904 = vrot.slane %v9903, 4
        %v9906 = vshll.u32 %v8215, 16
        %v9908 = vrot.slane %v9906, 5
        %v9909 = vsel %vm1090, %v9904, %v9908
        %v9910 = vshrl.u32 %v8215, 16
        %v9912 = vrot.slane %v9910, 4
        %v9913 = vor.u32 %v9912, %v9908
        %v9914 = vrot.slane %v9913, 4
        %v9916 = vshll.u32 %v8216, 16
        %v9918 = vrot.slane %v9916, 5
        %v9919 = vsel %vm1090, %v9914, %v9918
        %v9920 = vld [vmem:[%s3 + $0x80] sm:$0xf]
        %v9921 = vld [vmem:[%s3 + $0x84] sm:$0xf]
        %v9922 = vld [vmem:[%s3 + $0x88] sm:$0xf]
        %v9923 = vld [vmem:[%s3 + $0x8c] sm:$0xf]
        %v9924 = vld [vmem:[%s3 + $0x90] sm:$0xf]
        %v9925 = vld [vmem:[%s3 + $0x94] sm:$0xf]
        %v9926 = vld [vmem:[%s3 + $0x98] sm:$0xf]
        %v9927 = vld [vmem:[%s3 + $0x9c] sm:$0xf]
        %v9928 = vunpack.c.l.b16 %v9909
        %v9929 = vunpack.c.l.b16 %v9919
        %v9930 = vpack.c.b16 %v9929, %v9928
        %v9939 = vunpack.c.l.b16 %v9920
        %v9940 = vunpack.c.l.b16 %v9921
        %v9941 = vunpack.c.l.b16 %v9922
        %v9942 = vunpack.c.l.b16 %v9923
        %v9943 = vunpack.c.l.b16 %v9924
        %v9944 = vunpack.c.l.b16 %v9925
        %v9945 = vunpack.c.l.b16 %v9926
        %v9946 = vunpack.c.l.b16 %v9927
        %v9947 = vpack.c.b16 %v9940, %v9939
        %v9948 = vpack.c.b16 %v9942, %v9941
        %v9949 = vpack.c.b16 %v9944, %v9943
        %v9950 = vpack.c.b16 %v9946, %v9945
        %v9956 = vsel %vm1555, %v9930, 0
        %9958 = vmatprep.subr.bf16.mxu0 0
        %9959 = vmatpush1.bf16.msra.mxu0 0
        %9960 = vmatprep.subr.bf16.mxu0 0
        %9961 = vmatpush1.bf16.msra.mxu0 0
        %9962 = vmatprep.subr.bf16.mxu0 0
        %9963 = vmatpush1.bf16.msra.mxu0 0
        %9964 = vmatprep.subr.bf16.mxu0 0
        %9965 = vmatpush1.bf16.msra.mxu0 0
        %9966 = vmatprep.subr.bf16.mxu0 0
        %9967 = vmatpush1.bf16.msra.mxu0 %v9950
        %9968 = vmatprep.subr.bf16.mxu0 0
        %9969 = vmatpush1.bf16.msra.mxu0 %v9949
        %9970 = vmatprep.subr.bf16.mxu0 0
        %9971 = vmatpush1.bf16.msra.mxu0 %v9948
        %9972 = vmatprep.subr.bf16.mxu0 0
        %9973 = vmatpush1.bf16.msra.mxu0 %v9947
        %9974 = vmatprep.subr.bf16.mxu0 0
        %9975 = vmatpush2.bf16.msra.mxu0 0
        %9976 = vmatprep.subr.bf16.mxu0 0
        %9977 = vmatpush2.bf16.msra.mxu0 0
        %9978 = vmatprep.subr.bf16.mxu0 0
        %9979 = vmatpush2.bf16.msra.mxu0 0
        %9980 = vmatprep.subr.bf16.mxu0 0
        %9981 = vmatpush2.bf16.msra.mxu0 0
        %9982 = vmatprep.subr.bf16.mxu0 0
        %9983 = vmatpush2.bf16.msra.mxu0 0
        %9984 = vmatprep.subr.bf16.mxu0 0
        %9985 = vmatpush2.bf16.msra.mxu0 0
        %9986 = vmatprep.subr.bf16.mxu0 0
        %9987 = vmatpush2.bf16.msra.mxu0 0
        %9988 = vmatprep.subr.bf16.mxu0 0
        %9989 = vmatpush2.bf16.msra.mxu0 0
        %9990 = vmatprep.mubr.bf16.mxu0 0
        %9991 = vmatmul.mubr.bf16.gmra.mxu0 %v8696
        %v9992 = vpop.f32.mrf.mxu0
        %v9993 = vadd.f32 0.0, %v9992
        %v9994 = vpop.f32.mrf.mxu0
        %v9995 = vpop.f32.mrf.mxu0
        %v9996 = vadd.f32 0.0, %v9995
        %v9997 = vpop.f32.mrf.mxu0
        %9998 = vmatprep.mubr.bf16.mxu0 0
        %9999 = vmatmul.mubr.bf16.gmra.mxu0 %v8699
        %v10000 = vpop.f32.mrf.mxu0
        %v10001 = vadd.f32 0.0, %v10000
        %v10002 = vpop.f32.mrf.mxu0
        %v10003 = vpop.f32.mrf.mxu0
        %v10004 = vadd.f32 0.0, %v10003
        %v10005 = vpop.f32.mrf.mxu0
        %10006 = vmatprep.mubr.bf16.mxu0 0
        %10007 = vmatmul.mubr.bf16.gmra.mxu0 %v8702
        %v10008 = vpop.f32.mrf.mxu0
        %v10009 = vadd.f32 0.0, %v10008
        %v10010 = vpop.f32.mrf.mxu0
        %v10011 = vpop.f32.mrf.mxu0
        %v10012 = vadd.f32 0.0, %v10011
        %v10013 = vpop.f32.mrf.mxu0
        %10014 = vmatprep.mubr.bf16.mxu0 0
        %10015 = vmatmul.mubr.bf16.gmra.mxu0 %v8705
        %v10016 = vpop.f32.mrf.mxu0
        %v10017 = vadd.f32 0.0, %v10016
        %v10018 = vpop.f32.mrf.mxu0
        %v10019 = vpop.f32.mrf.mxu0
        %v10020 = vadd.f32 0.0, %v10019
        %v10021 = vpop.f32.mrf.mxu0
        %10022 = vmatprep.mubr.bf16.mxu0 0
        %10023 = vmatmul.mubr.bf16.gmra.mxu0 %v8708
        %v10024 = vpop.f32.mrf.mxu0
        %v10025 = vadd.f32 0.0, %v10024
        %v10026 = vpop.f32.mrf.mxu0
        %v10027 = vpop.f32.mrf.mxu0
        %v10028 = vadd.f32 0.0, %v10027
        %v10029 = vpop.f32.mrf.mxu0
        %10030 = vmatprep.mubr.bf16.mxu0 0
        %10031 = vmatmul.mubr.bf16.gmra.mxu0 %v8711
        %v10032 = vpop.f32.mrf.mxu0
        %v10033 = vadd.f32 0.0, %v10032
        %v10034 = vpop.f32.mrf.mxu0
        %v10035 = vpop.f32.mrf.mxu0
        %v10036 = vadd.f32 0.0, %v10035
        %v10037 = vpop.f32.mrf.mxu0
        %10038 = vmatprep.mubr.bf16.mxu0 0
        %10039 = vmatmul.mubr.bf16.gmra.mxu0 %v8714
        %v10040 = vpop.f32.mrf.mxu0
        %v10041 = vadd.f32 0.0, %v10040
        %v10042 = vpop.f32.mrf.mxu0
        %v10043 = vpop.f32.mrf.mxu0
        %v10044 = vadd.f32 0.0, %v10043
        %v10045 = vpop.f32.mrf.mxu0
        %10046 = vmatprep.mubr.bf16.mxu0 0
        %10047 = vmatmul.mubr.bf16.gmra.mxu0 %v8717
        %v10048 = vpop.f32.mrf.mxu0
        %v10049 = vadd.f32 0.0, %v10048
        %v10050 = vpop.f32.mrf.mxu0
        %v10051 = vpop.f32.mrf.mxu0
        %v10052 = vadd.f32 0.0, %v10051
        %v10053 = vpop.f32.mrf.mxu0
        %10054 = vmatprep.mubr.bf16.mxu0 0
        %10055 = vmatmul.mubr.bf16.gmra.mxu0 %v8720
        %v10056 = vpop.f32.mrf.mxu0
        %v10057 = vadd.f32 0.0, %v10056
        %v10058 = vpop.f32.mrf.mxu0
        %v10059 = vpop.f32.mrf.mxu0
        %v10060 = vadd.f32 0.0, %v10059
        %v10061 = vpop.f32.mrf.mxu0
        %10062 = vmatprep.mubr.bf16.mxu0 0
        %10063 = vmatmul.mubr.bf16.gmra.mxu0 %v8723
        %v10064 = vpop.f32.mrf.mxu0
        %v10065 = vadd.f32 0.0, %v10064
        %v10066 = vpop.f32.mrf.mxu0
        %v10067 = vpop.f32.mrf.mxu0
        %v10068 = vadd.f32 0.0, %v10067
        %v10069 = vpop.f32.mrf.mxu0
        %10070 = vmatprep.mubr.bf16.mxu0 0
        %10071 = vmatmul.mubr.bf16.gmra.mxu0 %v8726
        %v10072 = vpop.f32.mrf.mxu0
        %v10073 = vadd.f32 0.0, %v10072
        %v10074 = vpop.f32.mrf.mxu0
        %v10075 = vpop.f32.mrf.mxu0
        %v10076 = vadd.f32 0.0, %v10075
        %v10077 = vpop.f32.mrf.mxu0
        %10078 = vmatprep.mubr.bf16.mxu0 0
        %10079 = vmatmul.mubr.bf16.gmra.mxu0 %v8729
        %v10080 = vpop.f32.mrf.mxu0
        %v10081 = vadd.f32 0.0, %v10080
        %v10082 = vpop.f32.mrf.mxu0
        %v10083 = vpop.f32.mrf.mxu0
        %v10084 = vadd.f32 0.0, %v10083
        %v10085 = vpop.f32.mrf.mxu0
        %10086 = vmatprep.mubr.bf16.mxu0 0
        %10087 = vmatmul.mubr.bf16.gmra.mxu0 %v8732
        %v10088 = vpop.f32.mrf.mxu0
        %v10089 = vadd.f32 0.0, %v10088
        %v10090 = vpop.f32.mrf.mxu0
        %v10091 = vpop.f32.mrf.mxu0
        %v10092 = vadd.f32 0.0, %v10091
        %v10093 = vpop.f32.mrf.mxu0
        %10094 = vmatprep.mubr.bf16.mxu0 0
        %10095 = vmatmul.mubr.bf16.gmra.mxu0 %v8735
        %v10096 = vpop.f32.mrf.mxu0
        %v10097 = vadd.f32 0.0, %v10096
        %v10098 = vpop.f32.mrf.mxu0
        %v10099 = vpop.f32.mrf.mxu0
        %v10100 = vadd.f32 0.0, %v10099
        %v10101 = vpop.f32.mrf.mxu0
        %10102 = vmatprep.mubr.bf16.mxu0 0
        %10103 = vmatmul.mubr.bf16.gmra.mxu0 %v8738
        %v10104 = vpop.f32.mrf.mxu0
        %v10105 = vadd.f32 0.0, %v10104
        %v10106 = vpop.f32.mrf.mxu0
        %v10107 = vpop.f32.mrf.mxu0
        %v10108 = vadd.f32 0.0, %v10107
        %v10109 = vpop.f32.mrf.mxu0
        %10110 = vmatprep.mubr.bf16.mxu0 0
        %10111 = vmatmul.mubr.bf16.gmra.mxu0 %v9956
        %v10112 = vpop.f32.mrf.mxu0
        %v10113 = vadd.f32 0.0, %v10112
        %v10114 = vpop.f32.mrf.mxu0
        %v10115 = vpop.f32.mrf.mxu0
        %v10116 = vadd.f32 0.0, %v10115
        %v10117 = vpop.f32.mrf.mxu0
        %10118 = vdwg.mxu0
        %v10119 = vadd.f32 %v9864, %v9993
        %v10120 = vadd.f32 %v9865, %v9996
        %v10121 = vadd.f32 %v9866, %v10001
        %v10122 = vadd.f32 %v9867, %v10004
        %v10123 = vadd.f32 %v9868, %v10009
        %v10124 = vadd.f32 %v9869, %v10012
        %v10125 = vadd.f32 %v9870, %v10017
        %v10126 = vadd.f32 %v9871, %v10020
        %v10127 = vadd.f32 %v9872, %v10025
        %v10128 = vadd.f32 %v9873, %v10028
        %v10129 = vadd.f32 %v9874, %v10033
        %v10130 = vadd.f32 %v9875, %v10036
        %v10131 = vadd.f32 %v9876, %v10041
        %v10132 = vadd.f32 %v9877, %v10044
        %v10133 = vadd.f32 %v9878, %v10049
        %v10134 = vadd.f32 %v9879, %v10052
        %v10135 = vadd.f32 %v9880, %v10057
        %v10136 = vadd.f32 %v9881, %v10060
        %v10137 = vadd.f32 %v9882, %v10065
        %v10138 = vadd.f32 %v9883, %v10068
        %v10139 = vadd.f32 %v9884, %v10073
        %v10140 = vadd.f32 %v9885, %v10076
        %v10141 = vadd.f32 %v9886, %v10081
        %v10142 = vadd.f32 %v9887, %v10084
        %v10143 = vadd.f32 %v9888, %v10089
        %v10144 = vadd.f32 %v9889, %v10092
        %v10145 = vadd.f32 %v9890, %v10097
        %v10146 = vadd.f32 %v9891, %v10100
        %v10147 = vadd.f32 %v9892, %v10105
        %v10148 = vadd.f32 %v9893, %v10108
        %v10149 = vadd.f32 %v9894, %v10113
        %v10150 = vadd.f32 %v9895, %v10116
        %v10152 = vrot.slane %v8214, 5
        %v10153 = vrot.slane %v10152, 4
        %v10154 = vrot.slane %v8215, 5
        %v10155 = vsel %vm2096, %v10153, %v10154
        %v10156 = vrot.slane %v10154, 4
        %v10157 = vrot.slane %v8216, 5
        %v10158 = vsel %vm2096, %v10156, %v10157
        %v10159 = vld [vmem:[%s3 + $0xa0] sm:$0xf]
        %v10160 = vld [vmem:[%s3 + $0xa4] sm:$0xf]
        %v10161 = vld [vmem:[%s3 + $0xa8] sm:$0xf]
        %v10162 = vld [vmem:[%s3 + $0xac] sm:$0xf]
        %v10163 = vld [vmem:[%s3 + $0xb0] sm:$0xf]
        %v10164 = vld [vmem:[%s3 + $0xb4] sm:$0xf]
        %v10165 = vld [vmem:[%s3 + $0xb8] sm:$0xf]
        %v10166 = vld [vmem:[%s3 + $0xbc] sm:$0xf]
        %v10167 = vunpack.c.l.b16 %v10155
        %v10168 = vunpack.c.l.b16 %v10158
        %v10169 = vpack.c.b16 %v10168, %v10167
        %v10178 = vunpack.c.l.b16 %v10159
        %v10179 = vunpack.c.l.b16 %v10160
        %v10180 = vunpack.c.l.b16 %v10161
        %v10181 = vunpack.c.l.b16 %v10162
        %v10182 = vunpack.c.l.b16 %v10163
        %v10183 = vunpack.c.l.b16 %v10164
        %v10184 = vunpack.c.l.b16 %v10165
        %v10185 = vunpack.c.l.b16 %v10166
        %v10186 = vpack.c.b16 %v10179, %v10178
        %v10187 = vpack.c.b16 %v10181, %v10180
        %v10188 = vpack.c.b16 %v10183, %v10182
        %v10189 = vpack.c.b16 %v10185, %v10184
        %v10195 = vsel %vm1555, %v10169, 0
        %10197 = vmatprep.subr.bf16.mxu0 0
        %10198 = vmatpush1.bf16.msra.mxu0 0
        %10199 = vmatprep.subr.bf16.mxu0 0
        %10200 = vmatpush1.bf16.msra.mxu0 0
        %10201 = vmatprep.subr.bf16.mxu0 0
        %10202 = vmatpush1.bf16.msra.mxu0 0
        %10203 = vmatprep.subr.bf16.mxu0 0
        %10204 = vmatpush1.bf16.msra.mxu0 0
        %10205 = vmatprep.subr.bf16.mxu0 0
        %10206 = vmatpush1.bf16.msra.mxu0 %v10189
        %10207 = vmatprep.subr.bf16.mxu0 0
        %10208 = vmatpush1.bf16.msra.mxu0 %v10188
        %10209 = vmatprep.subr.bf16.mxu0 0
        %10210 = vmatpush1.bf16.msra.mxu0 %v10187
        %10211 = vmatprep.subr.bf16.mxu0 0
        %10212 = vmatpush1.bf16.msra.mxu0 %v10186
        %10213 = vmatprep.subr.bf16.mxu0 0
        %10214 = vmatpush2.bf16.msra.mxu0 0
        %10215 = vmatprep.subr.bf16.mxu0 0
        %10216 = vmatpush2.bf16.msra.mxu0 0
        %10217 = vmatprep.subr.bf16.mxu0 0
        %10218 = vmatpush2.bf16.msra.mxu0 0
        %10219 = vmatprep.subr.bf16.mxu0 0
        %10220 = vmatpush2.bf16.msra.mxu0 0
        %10221 = vmatprep.subr.bf16.mxu0 0
        %10222 = vmatpush2.bf16.msra.mxu0 0
        %10223 = vmatprep.subr.bf16.mxu0 0
        %10224 = vmatpush2.bf16.msra.mxu0 0
        %10225 = vmatprep.subr.bf16.mxu0 0
        %10226 = vmatpush2.bf16.msra.mxu0 0
        %10227 = vmatprep.subr.bf16.mxu0 0
        %10228 = vmatpush2.bf16.msra.mxu0 0
        %10229 = vmatprep.mubr.bf16.mxu0 0
        %10230 = vmatmul.mubr.bf16.gmra.mxu0 %v9426
        %v10231 = vpop.f32.mrf.mxu0
        %v10232 = vadd.f32 0.0, %v10231
        %v10233 = vpop.f32.mrf.mxu0
        %v10234 = vpop.f32.mrf.mxu0
        %v10235 = vadd.f32 0.0, %v10234
        %v10236 = vpop.f32.mrf.mxu0
        %10237 = vmatprep.mubr.bf16.mxu0 0
        %10238 = vmatmul.mubr.bf16.gmra.mxu0 %v9429
        %v10239 = vpop.f32.mrf.mxu0
        %v10240 = vadd.f32 0.0, %v10239
        %v10241 = vpop.f32.mrf.mxu0
        %v10242 = vpop.f32.mrf.mxu0
        %v10243 = vadd.f32 0.0, %v10242
        %v10244 = vpop.f32.mrf.mxu0
        %10245 = vmatprep.mubr.bf16.mxu0 0
        %10246 = vmatmul.mubr.bf16.gmra.mxu0 %v9432
        %v10247 = vpop.f32.mrf.mxu0
        %v10248 = vadd.f32 0.0, %v10247
        %v10249 = vpop.f32.mrf.mxu0
        %v10250 = vpop.f32.mrf.mxu0
        %v10251 = vadd.f32 0.0, %v10250
        %v10252 = vpop.f32.mrf.mxu0
        %10253 = vmatprep.mubr.bf16.mxu0 0
        %10254 = vmatmul.mubr.bf16.gmra.mxu0 %v9435
        %v10255 = vpop.f32.mrf.mxu0
        %v10256 = vadd.f32 0.0, %v10255
        %v10257 = vpop.f32.mrf.mxu0
        %v10258 = vpop.f32.mrf.mxu0
        %v10259 = vadd.f32 0.0, %v10258
        %v10260 = vpop.f32.mrf.mxu0
        %10261 = vmatprep.mubr.bf16.mxu0 0
        %10262 = vmatmul.mubr.bf16.gmra.mxu0 %v9438
        %v10263 = vpop.f32.mrf.mxu0
        %v10264 = vadd.f32 0.0, %v10263
        %v10265 = vpop.f32.mrf.mxu0
        %v10266 = vpop.f32.mrf.mxu0
        %v10267 = vadd.f32 0.0, %v10266
        %v10268 = vpop.f32.mrf.mxu0
        %10269 = vmatprep.mubr.bf16.mxu0 0
        %10270 = vmatmul.mubr.bf16.gmra.mxu0 %v9441
        %v10271 = vpop.f32.mrf.mxu0
        %v10272 = vadd.f32 0.0, %v10271
        %v10273 = vpop.f32.mrf.mxu0
        %v10274 = vpop.f32.mrf.mxu0
        %v10275 = vadd.f32 0.0, %v10274
        %v10276 = vpop.f32.mrf.mxu0
        %10277 = vmatprep.mubr.bf16.mxu0 0
        %10278 = vmatmul.mubr.bf16.gmra.mxu0 %v9444
        %v10279 = vpop.f32.mrf.mxu0
        %v10280 = vadd.f32 0.0, %v10279
        %v10281 = vpop.f32.mrf.mxu0
        %v10282 = vpop.f32.mrf.mxu0
        %v10283 = vadd.f32 0.0, %v10282
        %v10284 = vpop.f32.mrf.mxu0
        %10285 = vmatprep.mubr.bf16.mxu0 0
        %10286 = vmatmul.mubr.bf16.gmra.mxu0 %v9447
        %v10287 = vpop.f32.mrf.mxu0
        %v10288 = vadd.f32 0.0, %v10287
        %v10289 = vpop.f32.mrf.mxu0
        %v10290 = vpop.f32.mrf.mxu0
        %v10291 = vadd.f32 0.0, %v10290
        %v10292 = vpop.f32.mrf.mxu0
        %10293 = vmatprep.mubr.bf16.mxu0 0
        %10294 = vmatmul.mubr.bf16.gmra.mxu0 %v9450
        %v10295 = vpop.f32.mrf.mxu0
        %v10296 = vadd.f32 0.0, %v10295
        %v10297 = vpop.f32.mrf.mxu0
        %v10298 = vpop.f32.mrf.mxu0
        %v10299 = vadd.f32 0.0, %v10298
        %v10300 = vpop.f32.mrf.mxu0
        %10301 = vmatprep.mubr.bf16.mxu0 0
        %10302 = vmatmul.mubr.bf16.gmra.mxu0 %v9453
        %v10303 = vpop.f32.mrf.mxu0
        %v10304 = vadd.f32 0.0, %v10303
        %v10305 = vpop.f32.mrf.mxu0
        %v10306 = vpop.f32.mrf.mxu0
        %v10307 = vadd.f32 0.0, %v10306
        %v10308 = vpop.f32.mrf.mxu0
        %10309 = vmatprep.mubr.bf16.mxu0 0
        %10310 = vmatmul.mubr.bf16.gmra.mxu0 %v9456
        %v10311 = vpop.f32.mrf.mxu0
        %v10312 = vadd.f32 0.0, %v10311
        %v10313 = vpop.f32.mrf.mxu0
        %v10314 = vpop.f32.mrf.mxu0
        %v10315 = vadd.f32 0.0, %v10314
        %v10316 = vpop.f32.mrf.mxu0
        %10317 = vmatprep.mubr.bf16.mxu0 0
        %10318 = vmatmul.mubr.bf16.gmra.mxu0 %v9459
        %v10319 = vpop.f32.mrf.mxu0
        %v10320 = vadd.f32 0.0, %v10319
        %v10321 = vpop.f32.mrf.mxu0
        %v10322 = vpop.f32.mrf.mxu0
        %v10323 = vadd.f32 0.0, %v10322
        %v10324 = vpop.f32.mrf.mxu0
        %10325 = vmatprep.mubr.bf16.mxu0 0
        %10326 = vmatmul.mubr.bf16.gmra.mxu0 %v9462
        %v10327 = vpop.f32.mrf.mxu0
        %v10328 = vadd.f32 0.0, %v10327
        %v10329 = vpop.f32.mrf.mxu0
        %v10330 = vpop.f32.mrf.mxu0
        %v10331 = vadd.f32 0.0, %v10330
        %v10332 = vpop.f32.mrf.mxu0
        %10333 = vmatprep.mubr.bf16.mxu0 0
        %10334 = vmatmul.mubr.bf16.gmra.mxu0 %v9465
        %v10335 = vpop.f32.mrf.mxu0
        %v10336 = vadd.f32 0.0, %v10335
        %v10337 = vpop.f32.mrf.mxu0
        %v10338 = vpop.f32.mrf.mxu0
        %v10339 = vadd.f32 0.0, %v10338
        %v10340 = vpop.f32.mrf.mxu0
        %10341 = vmatprep.mubr.bf16.mxu0 0
        %10342 = vmatmul.mubr.bf16.gmra.mxu0 %v9468
        %v10343 = vpop.f32.mrf.mxu0
        %v10344 = vadd.f32 0.0, %v10343
        %v10345 = vpop.f32.mrf.mxu0
        %v10346 = vpop.f32.mrf.mxu0
        %v10347 = vadd.f32 0.0, %v10346
        %v10348 = vpop.f32.mrf.mxu0
        %10349 = vmatprep.mubr.bf16.mxu0 0
        %10350 = vmatmul.mubr.bf16.gmra.mxu0 %v10195
        %v10351 = vpop.f32.mrf.mxu0
        %v10352 = vadd.f32 0.0, %v10351
        %v10353 = vpop.f32.mrf.mxu0
        %v10354 = vpop.f32.mrf.mxu0
        %v10355 = vadd.f32 0.0, %v10354
        %v10356 = vpop.f32.mrf.mxu0
        %10357 = vdwg.mxu0
        %v10358 = vadd.f32 %v10119, %v10232
        %v10359 = vadd.f32 %v10120, %v10235
        %v10360 = vadd.f32 %v10121, %v10240
        %v10361 = vadd.f32 %v10122, %v10243
        %v10362 = vadd.f32 %v10123, %v10248
        %v10363 = vadd.f32 %v10124, %v10251
        %v10364 = vadd.f32 %v10125, %v10256
        %v10365 = vadd.f32 %v10126, %v10259
        %v10366 = vadd.f32 %v10127, %v10264
        %v10367 = vadd.f32 %v10128, %v10267
        %v10368 = vadd.f32 %v10129, %v10272
        %v10369 = vadd.f32 %v10130, %v10275
        %v10370 = vadd.f32 %v10131, %v10280
        %v10371 = vadd.f32 %v10132, %v10283
        %v10372 = vadd.f32 %v10133, %v10288
        %v10373 = vadd.f32 %v10134, %v10291
        %v10374 = vadd.f32 %v10135, %v10296
        %v10375 = vadd.f32 %v10136, %v10299
        %v10376 = vadd.f32 %v10137, %v10304
        %v10377 = vadd.f32 %v10138, %v10307
        %v10378 = vadd.f32 %v10139, %v10312
        %v10379 = vadd.f32 %v10140, %v10315
        %v10380 = vadd.f32 %v10141, %v10320
        %v10381 = vadd.f32 %v10142, %v10323
        %v10382 = vadd.f32 %v10143, %v10328
        %v10383 = vadd.f32 %v10144, %v10331
        %v10384 = vadd.f32 %v10145, %v10336
        %v10385 = vadd.f32 %v10146, %v10339
        %v10386 = vadd.f32 %v10147, %v10344
        %v10387 = vadd.f32 %v10148, %v10347
        %v10388 = vadd.f32 %v10149, %v10352
        %v10389 = vadd.f32 %v10150, %v10355
        %v10390 = vld [vmem:[%s3 + $0xc0] sm:$0xf]
        %v10391 = vld [vmem:[%s3 + $0xc4] sm:$0xf]
        %v10392 = vld [vmem:[%s3 + $0xc8] sm:$0xf]
        %v10393 = vld [vmem:[%s3 + $0xcc] sm:$0xf]
        %v10394 = vld [vmem:[%s3 + $0xd0] sm:$0xf]
        %v10395 = vld [vmem:[%s3 + $0xd4] sm:$0xf]
        %v10396 = vld [vmem:[%s3 + $0xd8] sm:$0xf]
        %v10397 = vld [vmem:[%s3 + $0xdc] sm:$0xf]
        %v10400 = vunpack.c.l.b16 %v8217
        %v10401 = vunpack.c.l.b16 %v8218
        %v10402 = vpack.c.b16 %v10401, %v10400
        %v10411 = vunpack.c.l.b16 %v10390
        %v10412 = vunpack.c.l.b16 %v10391
        %v10413 = vunpack.c.l.b16 %v10392
        %v10414 = vunpack.c.l.b16 %v10393
        %v10415 = vunpack.c.l.b16 %v10394
        %v10416 = vunpack.c.l.b16 %v10395
        %v10417 = vunpack.c.l.b16 %v10396
        %v10418 = vunpack.c.l.b16 %v10397
        %v10419 = vpack.c.b16 %v10412, %v10411
        %v10420 = vpack.c.b16 %v10414, %v10413
        %v10421 = vpack.c.b16 %v10416, %v10415
        %v10422 = vpack.c.b16 %v10418, %v10417
        %v10428 = vsel %vm1555, %v10402, 0
        %10430 = vmatprep.subr.bf16.mxu0 0
        %10431 = vmatpush1.bf16.msra.mxu0 0
        %10432 = vmatprep.subr.bf16.mxu0 0
        %10433 = vmatpush1.bf16.msra.mxu0 0
        %10434 = vmatprep.subr.bf16.mxu0 0
        %10435 = vmatpush1.bf16.msra.mxu0 0
        %10436 = vmatprep.subr.bf16.mxu0 0
        %10437 = vmatpush1.bf16.msra.mxu0 0
        %10438 = vmatprep.subr.bf16.mxu0 0
        %10439 = vmatpush1.bf16.msra.mxu0 %v10422
        %10440 = vmatprep.subr.bf16.mxu0 0
        %10441 = vmatpush1.bf16.msra.mxu0 %v10421
        %10442 = vmatprep.subr.bf16.mxu0 0
        %10443 = vmatpush1.bf16.msra.mxu0 %v10420
        %10444 = vmatprep.subr.bf16.mxu0 0
        %10445 = vmatpush1.bf16.msra.mxu0 %v10419
        %10446 = vmatprep.subr.bf16.mxu0 0
        %10447 = vmatpush2.bf16.msra.mxu0 0
        %10448 = vmatprep.subr.bf16.mxu0 0
        %10449 = vmatpush2.bf16.msra.mxu0 0
        %10450 = vmatprep.subr.bf16.mxu0 0
        %10451 = vmatpush2.bf16.msra.mxu0 0
        %10452 = vmatprep.subr.bf16.mxu0 0
        %10453 = vmatpush2.bf16.msra.mxu0 0
        %10454 = vmatprep.subr.bf16.mxu0 0
        %10455 = vmatpush2.bf16.msra.mxu0 0
        %10456 = vmatprep.subr.bf16.mxu0 0
        %10457 = vmatpush2.bf16.msra.mxu0 0
        %10458 = vmatprep.subr.bf16.mxu0 0
        %10459 = vmatpush2.bf16.msra.mxu0 0
        %10460 = vmatprep.subr.bf16.mxu0 0
        %10461 = vmatpush2.bf16.msra.mxu0 0
        %10462 = vmatprep.mubr.bf16.mxu0 0
        %10463 = vmatmul.mubr.bf16.gmra.mxu0 %v9012
        %v10464 = vpop.f32.mrf.mxu0
        %v10465 = vadd.f32 0.0, %v10464
        %v10466 = vpop.f32.mrf.mxu0
        %v10467 = vpop.f32.mrf.mxu0
        %v10468 = vadd.f32 0.0, %v10467
        %v10469 = vpop.f32.mrf.mxu0
        %10470 = vmatprep.mubr.bf16.mxu0 0
        %10471 = vmatmul.mubr.bf16.gmra.mxu0 %v9015
        %v10472 = vpop.f32.mrf.mxu0
        %v10473 = vadd.f32 0.0, %v10472
        %v10474 = vpop.f32.mrf.mxu0
        %v10475 = vpop.f32.mrf.mxu0
        %v10476 = vadd.f32 0.0, %v10475
        %v10477 = vpop.f32.mrf.mxu0
        %10478 = vmatprep.mubr.bf16.mxu0 0
        %10479 = vmatmul.mubr.bf16.gmra.mxu0 %v9018
        %v10480 = vpop.f32.mrf.mxu0
        %v10481 = vadd.f32 0.0, %v10480
        %v10482 = vpop.f32.mrf.mxu0
        %v10483 = vpop.f32.mrf.mxu0
        %v10484 = vadd.f32 0.0, %v10483
        %v10485 = vpop.f32.mrf.mxu0
        %10486 = vmatprep.mubr.bf16.mxu0 0
        %10487 = vmatmul.mubr.bf16.gmra.mxu0 %v9021
        %v10488 = vpop.f32.mrf.mxu0
        %v10489 = vadd.f32 0.0, %v10488
        %v10490 = vpop.f32.mrf.mxu0
        %v10491 = vpop.f32.mrf.mxu0
        %v10492 = vadd.f32 0.0, %v10491
        %v10493 = vpop.f32.mrf.mxu0
        %10494 = vmatprep.mubr.bf16.mxu0 0
        %10495 = vmatmul.mubr.bf16.gmra.mxu0 %v9024
        %v10496 = vpop.f32.mrf.mxu0
        %v10497 = vadd.f32 0.0, %v10496
        %v10498 = vpop.f32.mrf.mxu0
        %v10499 = vpop.f32.mrf.mxu0
        %v10500 = vadd.f32 0.0, %v10499
        %v10501 = vpop.f32.mrf.mxu0
        %10502 = vmatprep.mubr.bf16.mxu0 0
        %10503 = vmatmul.mubr.bf16.gmra.mxu0 %v9027
        %v10504 = vpop.f32.mrf.mxu0
        %v10505 = vadd.f32 0.0, %v10504
        %v10506 = vpop.f32.mrf.mxu0
        %v10507 = vpop.f32.mrf.mxu0
        %v10508 = vadd.f32 0.0, %v10507
        %v10509 = vpop.f32.mrf.mxu0
        %10510 = vmatprep.mubr.bf16.mxu0 0
        %10511 = vmatmul.mubr.bf16.gmra.mxu0 %v9030
        %v10512 = vpop.f32.mrf.mxu0
        %v10513 = vadd.f32 0.0, %v10512
        %v10514 = vpop.f32.mrf.mxu0
        %v10515 = vpop.f32.mrf.mxu0
        %v10516 = vadd.f32 0.0, %v10515
        %v10517 = vpop.f32.mrf.mxu0
        %10518 = vmatprep.mubr.bf16.mxu0 0
        %10519 = vmatmul.mubr.bf16.gmra.mxu0 %v9033
        %v10520 = vpop.f32.mrf.mxu0
        %v10521 = vadd.f32 0.0, %v10520
        %v10522 = vpop.f32.mrf.mxu0
        %v10523 = vpop.f32.mrf.mxu0
        %v10524 = vadd.f32 0.0, %v10523
        %v10525 = vpop.f32.mrf.mxu0
        %10526 = vmatprep.mubr.bf16.mxu0 0
        %10527 = vmatmul.mubr.bf16.gmra.mxu0 %v9036
        %v10528 = vpop.f32.mrf.mxu0
        %v10529 = vadd.f32 0.0, %v10528
        %v10530 = vpop.f32.mrf.mxu0
        %v10531 = vpop.f32.mrf.mxu0
        %v10532 = vadd.f32 0.0, %v10531
        %v10533 = vpop.f32.mrf.mxu0
        %10534 = vmatprep.mubr.bf16.mxu0 0
        %10535 = vmatmul.mubr.bf16.gmra.mxu0 %v9039
        %v10536 = vpop.f32.mrf.mxu0
        %v10537 = vadd.f32 0.0, %v10536
        %v10538 = vpop.f32.mrf.mxu0
        %v10539 = vpop.f32.mrf.mxu0
        %v10540 = vadd.f32 0.0, %v10539
        %v10541 = vpop.f32.mrf.mxu0
        %10542 = vmatprep.mubr.bf16.mxu0 0
        %10543 = vmatmul.mubr.bf16.gmra.mxu0 %v9042
        %v10544 = vpop.f32.mrf.mxu0
        %v10545 = vadd.f32 0.0, %v10544
        %v10546 = vpop.f32.mrf.mxu0
        %v10547 = vpop.f32.mrf.mxu0
        %v10548 = vadd.f32 0.0, %v10547
        %v10549 = vpop.f32.mrf.mxu0
        %10550 = vmatprep.mubr.bf16.mxu0 0
        %10551 = vmatmul.mubr.bf16.gmra.mxu0 %v9045
        %v10552 = vpop.f32.mrf.mxu0
        %v10553 = vadd.f32 0.0, %v10552
        %v10554 = vpop.f32.mrf.mxu0
        %v10555 = vpop.f32.mrf.mxu0
        %v10556 = vadd.f32 0.0, %v10555
        %v10557 = vpop.f32.mrf.mxu0
        %10558 = vmatprep.mubr.bf16.mxu0 0
        %10559 = vmatmul.mubr.bf16.gmra.mxu0 %v9048
        %v10560 = vpop.f32.mrf.mxu0
        %v10561 = vadd.f32 0.0, %v10560
        %v10562 = vpop.f32.mrf.mxu0
        %v10563 = vpop.f32.mrf.mxu0
        %v10564 = vadd.f32 0.0, %v10563
        %v10565 = vpop.f32.mrf.mxu0
        %10566 = vmatprep.mubr.bf16.mxu0 0
        %10567 = vmatmul.mubr.bf16.gmra.mxu0 %v9051
        %v10568 = vpop.f32.mrf.mxu0
        %v10569 = vadd.f32 0.0, %v10568
        %v10570 = vpop.f32.mrf.mxu0
        %v10571 = vpop.f32.mrf.mxu0
        %v10572 = vadd.f32 0.0, %v10571
        %v10573 = vpop.f32.mrf.mxu0
        %10574 = vmatprep.mubr.bf16.mxu0 0
        %10575 = vmatmul.mubr.bf16.gmra.mxu0 %v9701
        %v10576 = vpop.f32.mrf.mxu0
        %v10577 = vadd.f32 0.0, %v10576
        %v10578 = vpop.f32.mrf.mxu0
        %v10579 = vpop.f32.mrf.mxu0
        %v10580 = vadd.f32 0.0, %v10579
        %v10581 = vpop.f32.mrf.mxu0
        %10582 = vmatprep.mubr.bf16.mxu0 0
        %10583 = vmatmul.mubr.bf16.gmra.mxu0 %v10428
        %v10584 = vpop.f32.mrf.mxu0
        %v10585 = vadd.f32 0.0, %v10584
        %v10586 = vpop.f32.mrf.mxu0
        %v10587 = vpop.f32.mrf.mxu0
        %v10588 = vadd.f32 0.0, %v10587
        %v10589 = vpop.f32.mrf.mxu0
        %10590 = vdwg.mxu0
        %v10591 = vadd.f32 %v10358, %v10465
        %v10592 = vadd.f32 %v10359, %v10468
        %v10593 = vadd.f32 %v10360, %v10473
        %v10594 = vadd.f32 %v10361, %v10476
        %v10595 = vadd.f32 %v10362, %v10481
        %v10596 = vadd.f32 %v10363, %v10484
        %v10597 = vadd.f32 %v10364, %v10489
        %v10598 = vadd.f32 %v10365, %v10492
        %v10599 = vadd.f32 %v10366, %v10497
        %v10600 = vadd.f32 %v10367, %v10500
        %v10601 = vadd.f32 %v10368, %v10505
        %v10602 = vadd.f32 %v10369, %v10508
        %v10603 = vadd.f32 %v10370, %v10513
        %v10604 = vadd.f32 %v10371, %v10516
        %v10605 = vadd.f32 %v10372, %v10521
        %v10606 = vadd.f32 %v10373, %v10524
        %v10607 = vadd.f32 %v10374, %v10529
        %v10608 = vadd.f32 %v10375, %v10532
        %v10609 = vadd.f32 %v10376, %v10537
        %v10610 = vadd.f32 %v10377, %v10540
        %v10611 = vadd.f32 %v10378, %v10545
        %v10612 = vadd.f32 %v10379, %v10548
        %v10613 = vadd.f32 %v10380, %v10553
        %v10614 = vadd.f32 %v10381, %v10556
        %v10615 = vadd.f32 %v10382, %v10561
        %v10616 = vadd.f32 %v10383, %v10564
        %v10617 = vadd.f32 %v10384, %v10569
        %v10618 = vadd.f32 %v10385, %v10572
        %v10619 = vadd.f32 %v10386, %v10577
        %v10620 = vadd.f32 %v10387, %v10580
        %v10621 = vadd.f32 %v10388, %v10585
        %v10622 = vadd.f32 %v10389, %v10588
        %v10624 = vshrl.u32 %v8217, 16
        %v10626 = vrot.slane %v10624, 4
        %v10627 = vshll.u32 %v8217, 16
        %v10629 = vrot.slane %v10627, 5
        %v10630 = vor.u32 %v10626, %v10629
        %v10631 = vrot.slane %v10630, 4
        %v10633 = vshll.u32 %v8218, 16
        %v10635 = vrot.slane %v10633, 5
        %v10636 = vsel %vm1090, %v10631, %v10635
        %v10637 = vshrl.u32 %v8218, 16
        %v10639 = vrot.slane %v10637, 4
        %v10640 = vor.u32 %v10639, %v10635
        %v10641 = vrot.slane %v10640, 4
        %v10643 = vshll.u32 %v8219, 16
        %v10645 = vrot.slane %v10643, 5
        %v10646 = vsel %vm1090, %v10641, %v10645
        %v10647 = vld [vmem:[%s3 + $0xe0] sm:$0xf]
        %v10648 = vld [vmem:[%s3 + $0xe4] sm:$0xf]
        %v10649 = vld [vmem:[%s3 + $0xe8] sm:$0xf]
        %v10650 = vld [vmem:[%s3 + $0xec] sm:$0xf]
        %v10651 = vld [vmem:[%s3 + $0xf0] sm:$0xf]
        %v10652 = vld [vmem:[%s3 + $0xf4] sm:$0xf]
        %v10653 = vld [vmem:[%s3 + $0xf8] sm:$0xf]
        %v10654 = vld [vmem:[%s3 + $0xfc] sm:$0xf]
        %v10655 = vunpack.c.l.b16 %v10636
        %v10656 = vunpack.c.l.b16 %v10646
        %v10657 = vpack.c.b16 %v10656, %v10655
        %v10666 = vunpack.c.l.b16 %v10647
        %v10667 = vunpack.c.l.b16 %v10648
        %v10668 = vunpack.c.l.b16 %v10649
        %v10669 = vunpack.c.l.b16 %v10650
        %v10670 = vunpack.c.l.b16 %v10651
        %v10671 = vunpack.c.l.b16 %v10652
        %v10672 = vunpack.c.l.b16 %v10653
        %v10673 = vunpack.c.l.b16 %v10654
        %v10674 = vpack.c.b16 %v10667, %v10666
        %v10675 = vpack.c.b16 %v10669, %v10668
        %v10676 = vpack.c.b16 %v10671, %v10670
        %v10677 = vpack.c.b16 %v10673, %v10672
        %v10683 = vsel %vm1555, %v10657, 0
        %10685 = vmatprep.subr.bf16.mxu0 0
        %10686 = vmatpush1.bf16.msra.mxu0 0
        %10687 = vmatprep.subr.bf16.mxu0 0
        %10688 = vmatpush1.bf16.msra.mxu0 0
        %10689 = vmatprep.subr.bf16.mxu0 0
        %10690 = vmatpush1.bf16.msra.mxu0 0
        %10691 = vmatprep.subr.bf16.mxu0 0
        %10692 = vmatpush1.bf16.msra.mxu0 0
        %10693 = vmatprep.subr.bf16.mxu0 0
        %10694 = vmatpush1.bf16.msra.mxu0 %v10677
        %10695 = vmatprep.subr.bf16.mxu0 0
        %10696 = vmatpush1.bf16.msra.mxu0 %v10676
        %10697 = vmatprep.subr.bf16.mxu0 0
        %10698 = vmatpush1.bf16.msra.mxu0 %v10675
        %10699 = vmatprep.subr.bf16.mxu0 0
        %10700 = vmatpush1.bf16.msra.mxu0 %v10674
        %10701 = vmatprep.subr.bf16.mxu0 0
        %10702 = vmatpush2.bf16.msra.mxu0 0
        %10703 = vmatprep.subr.bf16.mxu0 0
        %10704 = vmatpush2.bf16.msra.mxu0 0
        %10705 = vmatprep.subr.bf16.mxu0 0
        %10706 = vmatpush2.bf16.msra.mxu0 0
        %10707 = vmatprep.subr.bf16.mxu0 0
        %10708 = vmatpush2.bf16.msra.mxu0 0
        %10709 = vmatprep.subr.bf16.mxu0 0
        %10710 = vmatpush2.bf16.msra.mxu0 0
        %10711 = vmatprep.subr.bf16.mxu0 0
        %10712 = vmatpush2.bf16.msra.mxu0 0
        %10713 = vmatprep.subr.bf16.mxu0 0
        %10714 = vmatpush2.bf16.msra.mxu0 0
        %10715 = vmatprep.subr.bf16.mxu0 0
        %10716 = vmatpush2.bf16.msra.mxu0 0
        %10717 = vmatprep.mubr.bf16.mxu0 0
        %10718 = vmatmul.mubr.bf16.gmra.mxu0 %v8699
        %v10719 = vpop.f32.mrf.mxu0
        %v10720 = vadd.f32 0.0, %v10719
        %v10721 = vpop.f32.mrf.mxu0
        %v10722 = vpop.f32.mrf.mxu0
        %v10723 = vadd.f32 0.0, %v10722
        %v10724 = vpop.f32.mrf.mxu0
        %10725 = vmatprep.mubr.bf16.mxu0 0
        %10726 = vmatmul.mubr.bf16.gmra.mxu0 %v8702
        %v10727 = vpop.f32.mrf.mxu0
        %v10728 = vadd.f32 0.0, %v10727
        %v10729 = vpop.f32.mrf.mxu0
        %v10730 = vpop.f32.mrf.mxu0
        %v10731 = vadd.f32 0.0, %v10730
        %v10732 = vpop.f32.mrf.mxu0
        %10733 = vmatprep.mubr.bf16.mxu0 0
        %10734 = vmatmul.mubr.bf16.gmra.mxu0 %v8705
        %v10735 = vpop.f32.mrf.mxu0
        %v10736 = vadd.f32 0.0, %v10735
        %v10737 = vpop.f32.mrf.mxu0
        %v10738 = vpop.f32.mrf.mxu0
        %v10739 = vadd.f32 0.0, %v10738
        %v10740 = vpop.f32.mrf.mxu0
        %10741 = vmatprep.mubr.bf16.mxu0 0
        %10742 = vmatmul.mubr.bf16.gmra.mxu0 %v8708
        %v10743 = vpop.f32.mrf.mxu0
        %v10744 = vadd.f32 0.0, %v10743
        %v10745 = vpop.f32.mrf.mxu0
        %v10746 = vpop.f32.mrf.mxu0
        %v10747 = vadd.f32 0.0, %v10746
        %v10748 = vpop.f32.mrf.mxu0
        %10749 = vmatprep.mubr.bf16.mxu0 0
        %10750 = vmatmul.mubr.bf16.gmra.mxu0 %v8711
        %v10751 = vpop.f32.mrf.mxu0
        %v10752 = vadd.f32 0.0, %v10751
        %v10753 = vpop.f32.mrf.mxu0
        %v10754 = vpop.f32.mrf.mxu0
        %v10755 = vadd.f32 0.0, %v10754
        %v10756 = vpop.f32.mrf.mxu0
        %10757 = vmatprep.mubr.bf16.mxu0 0
        %10758 = vmatmul.mubr.bf16.gmra.mxu0 %v8714
        %v10759 = vpop.f32.mrf.mxu0
        %v10760 = vadd.f32 0.0, %v10759
        %v10761 = vpop.f32.mrf.mxu0
        %v10762 = vpop.f32.mrf.mxu0
        %v10763 = vadd.f32 0.0, %v10762
        %v10764 = vpop.f32.mrf.mxu0
        %10765 = vmatprep.mubr.bf16.mxu0 0
        %10766 = vmatmul.mubr.bf16.gmra.mxu0 %v8717
        %v10767 = vpop.f32.mrf.mxu0
        %v10768 = vadd.f32 0.0, %v10767
        %v10769 = vpop.f32.mrf.mxu0
        %v10770 = vpop.f32.mrf.mxu0
        %v10771 = vadd.f32 0.0, %v10770
        %v10772 = vpop.f32.mrf.mxu0
        %10773 = vmatprep.mubr.bf16.mxu0 0
        %10774 = vmatmul.mubr.bf16.gmra.mxu0 %v8720
        %v10775 = vpop.f32.mrf.mxu0
        %v10776 = vadd.f32 0.0, %v10775
        %v10777 = vpop.f32.mrf.mxu0
        %v10778 = vpop.f32.mrf.mxu0
        %v10779 = vadd.f32 0.0, %v10778
        %v10780 = vpop.f32.mrf.mxu0
        %10781 = vmatprep.mubr.bf16.mxu0 0
        %10782 = vmatmul.mubr.bf16.gmra.mxu0 %v8723
        %v10783 = vpop.f32.mrf.mxu0
        %v10784 = vadd.f32 0.0, %v10783
        %v10785 = vpop.f32.mrf.mxu0
        %v10786 = vpop.f32.mrf.mxu0
        %v10787 = vadd.f32 0.0, %v10786
        %v10788 = vpop.f32.mrf.mxu0
        %10789 = vmatprep.mubr.bf16.mxu0 0
        %10790 = vmatmul.mubr.bf16.gmra.mxu0 %v8726
        %v10791 = vpop.f32.mrf.mxu0
        %v10792 = vadd.f32 0.0, %v10791
        %v10793 = vpop.f32.mrf.mxu0
        %v10794 = vpop.f32.mrf.mxu0
        %v10795 = vadd.f32 0.0, %v10794
        %v10796 = vpop.f32.mrf.mxu0
        %10797 = vmatprep.mubr.bf16.mxu0 0
        %10798 = vmatmul.mubr.bf16.gmra.mxu0 %v8729
        %v10799 = vpop.f32.mrf.mxu0
        %v10800 = vadd.f32 0.0, %v10799
        %v10801 = vpop.f32.mrf.mxu0
        %v10802 = vpop.f32.mrf.mxu0
        %v10803 = vadd.f32 0.0, %v10802
        %v10804 = vpop.f32.mrf.mxu0
        %10805 = vmatprep.mubr.bf16.mxu0 0
        %10806 = vmatmul.mubr.bf16.gmra.mxu0 %v8732
        %v10807 = vpop.f32.mrf.mxu0
        %v10808 = vadd.f32 0.0, %v10807
        %v10809 = vpop.f32.mrf.mxu0
        %v10810 = vpop.f32.mrf.mxu0
        %v10811 = vadd.f32 0.0, %v10810
        %v10812 = vpop.f32.mrf.mxu0
        %10813 = vmatprep.mubr.bf16.mxu0 0
        %10814 = vmatmul.mubr.bf16.gmra.mxu0 %v8735
        %v10815 = vpop.f32.mrf.mxu0
        %v10816 = vadd.f32 0.0, %v10815
        %v10817 = vpop.f32.mrf.mxu0
        %v10818 = vpop.f32.mrf.mxu0
        %v10819 = vadd.f32 0.0, %v10818
        %v10820 = vpop.f32.mrf.mxu0
        %10821 = vmatprep.mubr.bf16.mxu0 0
        %10822 = vmatmul.mubr.bf16.gmra.mxu0 %v8738
        %v10823 = vpop.f32.mrf.mxu0
        %v10824 = vadd.f32 0.0, %v10823
        %v10825 = vpop.f32.mrf.mxu0
        %v10826 = vpop.f32.mrf.mxu0
        %v10827 = vadd.f32 0.0, %v10826
        %v10828 = vpop.f32.mrf.mxu0
        %10829 = vmatprep.mubr.bf16.mxu0 0
        %10830 = vmatmul.mubr.bf16.gmra.mxu0 %v9956
        %v10831 = vpop.f32.mrf.mxu0
        %v10832 = vadd.f32 0.0, %v10831
        %v10833 = vpop.f32.mrf.mxu0
        %v10834 = vpop.f32.mrf.mxu0
        %v10835 = vadd.f32 0.0, %v10834
        %v10836 = vpop.f32.mrf.mxu0
        %10837 = vmatprep.mubr.bf16.mxu0 0
        %10838 = vmatmul.mubr.bf16.gmra.mxu0 %v10683
        %v10839 = vpop.f32.mrf.mxu0
        %v10840 = vadd.f32 0.0, %v10839
        %v10841 = vpop.f32.mrf.mxu0
        %v10842 = vpop.f32.mrf.mxu0
        %v10843 = vadd.f32 0.0, %v10842
        %v10844 = vpop.f32.mrf.mxu0
        %10845 = vdwg.mxu0
        %v10846 = vadd.f32 %v10591, %v10720
        %v10847 = vadd.f32 %v10592, %v10723
        %v10848 = vadd.f32 %v10593, %v10728
        %v10849 = vadd.f32 %v10594, %v10731
        %v10850 = vadd.f32 %v10595, %v10736
        %v10851 = vadd.f32 %v10596, %v10739
        %v10852 = vadd.f32 %v10597, %v10744
        %v10853 = vadd.f32 %v10598, %v10747
        %v10854 = vadd.f32 %v10599, %v10752
        %v10855 = vadd.f32 %v10600, %v10755
        %v10856 = vadd.f32 %v10601, %v10760
        %v10857 = vadd.f32 %v10602, %v10763
        %v10858 = vadd.f32 %v10603, %v10768
        %v10859 = vadd.f32 %v10604, %v10771
        %v10860 = vadd.f32 %v10605, %v10776
        %v10861 = vadd.f32 %v10606, %v10779
        %v10862 = vadd.f32 %v10607, %v10784
        %v10863 = vadd.f32 %v10608, %v10787
        %v10864 = vadd.f32 %v10609, %v10792
        %v10865 = vadd.f32 %v10610, %v10795
        %v10866 = vadd.f32 %v10611, %v10800
        %v10867 = vadd.f32 %v10612, %v10803
        %v10868 = vadd.f32 %v10613, %v10808
        %v10869 = vadd.f32 %v10614, %v10811
        %v10870 = vadd.f32 %v10615, %v10816
        %v10871 = vadd.f32 %v10616, %v10819
        %v10872 = vadd.f32 %v10617, %v10824
        %v10873 = vadd.f32 %v10618, %v10827
        %v10874 = vadd.f32 %v10619, %v10832
        %v10875 = vadd.f32 %v10620, %v10835
        %v10876 = vadd.f32 %v10621, %v10840
        %v10877 = vadd.f32 %v10622, %v10843
        %v10879 = vrot.slane %v8217, 5
        %v10880 = vrot.slane %v10879, 4
        %v10881 = vrot.slane %v8218, 5
        %v10882 = vsel %vm2096, %v10880, %v10881
        %v10883 = vrot.slane %v10881, 4
        %v10884 = vrot.slane %v8219, 5
        %v10885 = vsel %vm2096, %v10883, %v10884
        %v10886 = vld [vmem:[%s3 + $0x100] sm:$0xf]
        %v10887 = vld [vmem:[%s3 + $0x104] sm:$0xf]
        %v10888 = vld [vmem:[%s3 + $0x108] sm:$0xf]
        %v10889 = vld [vmem:[%s3 + $0x10c] sm:$0xf]
        %v10890 = vld [vmem:[%s3 + $0x110] sm:$0xf]
        %v10891 = vld [vmem:[%s3 + $0x114] sm:$0xf]
        %v10892 = vld [vmem:[%s3 + $0x118] sm:$0xf]
        %v10893 = vld [vmem:[%s3 + $0x11c] sm:$0xf]
        %v10894 = vunpack.c.l.b16 %v10882
        %v10895 = vunpack.c.l.b16 %v10885
        %v10896 = vpack.c.b16 %v10895, %v10894
        %v10905 = vunpack.c.l.b16 %v10886
        %v10906 = vunpack.c.l.b16 %v10887
        %v10907 = vunpack.c.l.b16 %v10888
        %v10908 = vunpack.c.l.b16 %v10889
        %v10909 = vunpack.c.l.b16 %v10890
        %v10910 = vunpack.c.l.b16 %v10891
        %v10911 = vunpack.c.l.b16 %v10892
        %v10912 = vunpack.c.l.b16 %v10893
        %v10913 = vpack.c.b16 %v10906, %v10905
        %v10914 = vpack.c.b16 %v10908, %v10907
        %v10915 = vpack.c.b16 %v10910, %v10909
        %v10916 = vpack.c.b16 %v10912, %v10911
        %v10922 = vsel %vm1555, %v10896, 0
        %10924 = vmatprep.subr.bf16.mxu0 0
        %10925 = vmatpush1.bf16.msra.mxu0 0
        %10926 = vmatprep.subr.bf16.mxu0 0
        %10927 = vmatpush1.bf16.msra.mxu0 0
        %10928 = vmatprep.subr.bf16.mxu0 0
        %10929 = vmatpush1.bf16.msra.mxu0 0
        %10930 = vmatprep.subr.bf16.mxu0 0
        %10931 = vmatpush1.bf16.msra.mxu0 0
        %10932 = vmatprep.subr.bf16.mxu0 0
        %10933 = vmatpush1.bf16.msra.mxu0 %v10916
        %10934 = vmatprep.subr.bf16.mxu0 0
        %10935 = vmatpush1.bf16.msra.mxu0 %v10915
        %10936 = vmatprep.subr.bf16.mxu0 0
        %10937 = vmatpush1.bf16.msra.mxu0 %v10914
        %10938 = vmatprep.subr.bf16.mxu0 0
        %10939 = vmatpush1.bf16.msra.mxu0 %v10913
        %10940 = vmatprep.subr.bf16.mxu0 0
        %10941 = vmatpush2.bf16.msra.mxu0 0
        %10942 = vmatprep.subr.bf16.mxu0 0
        %10943 = vmatpush2.bf16.msra.mxu0 0
        %10944 = vmatprep.subr.bf16.mxu0 0
        %10945 = vmatpush2.bf16.msra.mxu0 0
        %10946 = vmatprep.subr.bf16.mxu0 0
        %10947 = vmatpush2.bf16.msra.mxu0 0
        %10948 = vmatprep.subr.bf16.mxu0 0
        %10949 = vmatpush2.bf16.msra.mxu0 0
        %10950 = vmatprep.subr.bf16.mxu0 0
        %10951 = vmatpush2.bf16.msra.mxu0 0
        %10952 = vmatprep.subr.bf16.mxu0 0
        %10953 = vmatpush2.bf16.msra.mxu0 0
        %10954 = vmatprep.subr.bf16.mxu0 0
        %10955 = vmatpush2.bf16.msra.mxu0 0
        %10956 = vmatprep.mubr.bf16.mxu0 0
        %10957 = vmatmul.mubr.bf16.gmra.mxu0 %v9429
        %v10958 = vpop.f32.mrf.mxu0
        %v10959 = vadd.f32 0.0, %v10958
        %v10960 = vpop.f32.mrf.mxu0
        %v10961 = vpop.f32.mrf.mxu0
        %v10962 = vadd.f32 0.0, %v10961
        %v10963 = vpop.f32.mrf.mxu0
        %10964 = vmatprep.mubr.bf16.mxu0 0
        %10965 = vmatmul.mubr.bf16.gmra.mxu0 %v9432
        %v10966 = vpop.f32.mrf.mxu0
        %v10967 = vadd.f32 0.0, %v10966
        %v10968 = vpop.f32.mrf.mxu0
        %v10969 = vpop.f32.mrf.mxu0
        %v10970 = vadd.f32 0.0, %v10969
        %v10971 = vpop.f32.mrf.mxu0
        %10972 = vmatprep.mubr.bf16.mxu0 0
        %10973 = vmatmul.mubr.bf16.gmra.mxu0 %v9435
        %v10974 = vpop.f32.mrf.mxu0
        %v10975 = vadd.f32 0.0, %v10974
        %v10976 = vpop.f32.mrf.mxu0
        %v10977 = vpop.f32.mrf.mxu0
        %v10978 = vadd.f32 0.0, %v10977
        %v10979 = vpop.f32.mrf.mxu0
        %10980 = vmatprep.mubr.bf16.mxu0 0
        %10981 = vmatmul.mubr.bf16.gmra.mxu0 %v9438
        %v10982 = vpop.f32.mrf.mxu0
        %v10983 = vadd.f32 0.0, %v10982
        %v10984 = vpop.f32.mrf.mxu0
        %v10985 = vpop.f32.mrf.mxu0
        %v10986 = vadd.f32 0.0, %v10985
        %v10987 = vpop.f32.mrf.mxu0
        %10988 = vmatprep.mubr.bf16.mxu0 0
        %10989 = vmatmul.mubr.bf16.gmra.mxu0 %v9441
        %v10990 = vpop.f32.mrf.mxu0
        %v10991 = vadd.f32 0.0, %v10990
        %v10992 = vpop.f32.mrf.mxu0
        %v10993 = vpop.f32.mrf.mxu0
        %v10994 = vadd.f32 0.0, %v10993
        %v10995 = vpop.f32.mrf.mxu0
        %10996 = vmatprep.mubr.bf16.mxu0 0
        %10997 = vmatmul.mubr.bf16.gmra.mxu0 %v9444
        %v10998 = vpop.f32.mrf.mxu0
        %v10999 = vadd.f32 0.0, %v10998
        %v11000 = vpop.f32.mrf.mxu0
        %v11001 = vpop.f32.mrf.mxu0
        %v11002 = vadd.f32 0.0, %v11001
        %v11003 = vpop.f32.mrf.mxu0
        %11004 = vmatprep.mubr.bf16.mxu0 0
        %11005 = vmatmul.mubr.bf16.gmra.mxu0 %v9447
        %v11006 = vpop.f32.mrf.mxu0
        %v11007 = vadd.f32 0.0, %v11006
        %v11008 = vpop.f32.mrf.mxu0
        %v11009 = vpop.f32.mrf.mxu0
        %v11010 = vadd.f32 0.0, %v11009
        %v11011 = vpop.f32.mrf.mxu0
        %11012 = vmatprep.mubr.bf16.mxu0 0
        %11013 = vmatmul.mubr.bf16.gmra.mxu0 %v9450
        %v11014 = vpop.f32.mrf.mxu0
        %v11015 = vadd.f32 0.0, %v11014
        %v11016 = vpop.f32.mrf.mxu0
        %v11017 = vpop.f32.mrf.mxu0
        %v11018 = vadd.f32 0.0, %v11017
        %v11019 = vpop.f32.mrf.mxu0
        %11020 = vmatprep.mubr.bf16.mxu0 0
        %11021 = vmatmul.mubr.bf16.gmra.mxu0 %v9453
        %v11022 = vpop.f32.mrf.mxu0
        %v11023 = vadd.f32 0.0, %v11022
        %v11024 = vpop.f32.mrf.mxu0
        %v11025 = vpop.f32.mrf.mxu0
        %v11026 = vadd.f32 0.0, %v11025
        %v11027 = vpop.f32.mrf.mxu0
        %11028 = vmatprep.mubr.bf16.mxu0 0
        %11029 = vmatmul.mubr.bf16.gmra.mxu0 %v9456
        %v11030 = vpop.f32.mrf.mxu0
        %v11031 = vadd.f32 0.0, %v11030
        %v11032 = vpop.f32.mrf.mxu0
        %v11033 = vpop.f32.mrf.mxu0
        %v11034 = vadd.f32 0.0, %v11033
        %v11035 = vpop.f32.mrf.mxu0
        %11036 = vmatprep.mubr.bf16.mxu0 0
        %11037 = vmatmul.mubr.bf16.gmra.mxu0 %v9459
        %v11038 = vpop.f32.mrf.mxu0
        %v11039 = vadd.f32 0.0, %v11038
        %v11040 = vpop.f32.mrf.mxu0
        %v11041 = vpop.f32.mrf.mxu0
        %v11042 = vadd.f32 0.0, %v11041
        %v11043 = vpop.f32.mrf.mxu0
        %11044 = vmatprep.mubr.bf16.mxu0 0
        %11045 = vmatmul.mubr.bf16.gmra.mxu0 %v9462
        %v11046 = vpop.f32.mrf.mxu0
        %v11047 = vadd.f32 0.0, %v11046
        %v11048 = vpop.f32.mrf.mxu0
        %v11049 = vpop.f32.mrf.mxu0
        %v11050 = vadd.f32 0.0, %v11049
        %v11051 = vpop.f32.mrf.mxu0
        %11052 = vmatprep.mubr.bf16.mxu0 0
        %11053 = vmatmul.mubr.bf16.gmra.mxu0 %v9465
        %v11054 = vpop.f32.mrf.mxu0
        %v11055 = vadd.f32 0.0, %v11054
        %v11056 = vpop.f32.mrf.mxu0
        %v11057 = vpop.f32.mrf.mxu0
        %v11058 = vadd.f32 0.0, %v11057
        %v11059 = vpop.f32.mrf.mxu0
        %11060 = vmatprep.mubr.bf16.mxu0 0
        %11061 = vmatmul.mubr.bf16.gmra.mxu0 %v9468
        %v11062 = vpop.f32.mrf.mxu0
        %v11063 = vadd.f32 0.0, %v11062
        %v11064 = vpop.f32.mrf.mxu0
        %v11065 = vpop.f32.mrf.mxu0
        %v11066 = vadd.f32 0.0, %v11065
        %v11067 = vpop.f32.mrf.mxu0
        %11068 = vmatprep.mubr.bf16.mxu0 0
        %11069 = vmatmul.mubr.bf16.gmra.mxu0 %v10195
        %v11070 = vpop.f32.mrf.mxu0
        %v11071 = vadd.f32 0.0, %v11070
        %v11072 = vpop.f32.mrf.mxu0
        %v11073 = vpop.f32.mrf.mxu0
        %v11074 = vadd.f32 0.0, %v11073
        %v11075 = vpop.f32.mrf.mxu0
        %11076 = vmatprep.mubr.bf16.mxu0 0
        %11077 = vmatmul.mubr.bf16.gmra.mxu0 %v10922
        %v11078 = vpop.f32.mrf.mxu0
        %v11079 = vadd.f32 0.0, %v11078
        %v11080 = vpop.f32.mrf.mxu0
        %v11081 = vpop.f32.mrf.mxu0
        %v11082 = vadd.f32 0.0, %v11081
        %v11083 = vpop.f32.mrf.mxu0
        %11084 = vdwg.mxu0
        %v11085 = vadd.f32 %v10846, %v10959
        %v11086 = vadd.f32 %v10847, %v10962
        %v11087 = vadd.f32 %v10848, %v10967
        %v11088 = vadd.f32 %v10849, %v10970
        %v11089 = vadd.f32 %v10850, %v10975
        %v11090 = vadd.f32 %v10851, %v10978
        %v11091 = vadd.f32 %v10852, %v10983
        %v11092 = vadd.f32 %v10853, %v10986
        %v11093 = vadd.f32 %v10854, %v10991
        %v11094 = vadd.f32 %v10855, %v10994
        %v11095 = vadd.f32 %v10856, %v10999
        %v11096 = vadd.f32 %v10857, %v11002
        %v11097 = vadd.f32 %v10858, %v11007
        %v11098 = vadd.f32 %v10859, %v11010
        %v11099 = vadd.f32 %v10860, %v11015
        %v11100 = vadd.f32 %v10861, %v11018
        %v11101 = vadd.f32 %v10862, %v11023
        %v11102 = vadd.f32 %v10863, %v11026
        %v11103 = vadd.f32 %v10864, %v11031
        %v11104 = vadd.f32 %v10865, %v11034
        %v11105 = vadd.f32 %v10866, %v11039
        %v11106 = vadd.f32 %v10867, %v11042
        %v11107 = vadd.f32 %v10868, %v11047
        %v11108 = vadd.f32 %v10869, %v11050
        %v11109 = vadd.f32 %v10870, %v11055
        %v11110 = vadd.f32 %v10871, %v11058
        %v11111 = vadd.f32 %v10872, %v11063
        %v11112 = vadd.f32 %v10873, %v11066
        %v11113 = vadd.f32 %v10874, %v11071
        %v11114 = vadd.f32 %v10875, %v11074
        %v11115 = vadd.f32 %v10876, %v11079
        %v11116 = vadd.f32 %v10877, %v11082
        %v11117 = vld [vmem:[%s4] sm:$0x1]
        %v11119 = vlaneseq
        %v11120 = vshrl.u32 %v11119, 7
        %v11121 = vsub.s32 0, %v11120
        %v11122 = vrot.slane %v11117, %v11121
        %v11124 = vadd.f32 %v11085, %v11122
        %v11125 = vadd.f32 %v11086, %v11122
        %v11126 = vadd.f32 %v11087, %v11122
        %v11127 = vadd.f32 %v11088, %v11122
        %v11128 = vadd.f32 %v11089, %v11122
        %v11129 = vadd.f32 %v11090, %v11122
        %v11130 = vadd.f32 %v11091, %v11122
        %v11131 = vadd.f32 %v11092, %v11122
        %v11132 = vadd.f32 %v11093, %v11122
        %v11133 = vadd.f32 %v11094, %v11122
        %v11134 = vadd.f32 %v11095, %v11122
        %v11135 = vadd.f32 %v11096, %v11122
        %v11136 = vadd.f32 %v11097, %v11122
        %v11137 = vadd.f32 %v11098, %v11122
        %v11138 = vadd.f32 %v11099, %v11122
        %v11139 = vadd.f32 %v11100, %v11122
        %v11140 = vadd.f32 %v11101, %v11122
        %v11141 = vadd.f32 %v11102, %v11122
        %v11142 = vadd.f32 %v11103, %v11122
        %v11143 = vadd.f32 %v11104, %v11122
        %v11144 = vadd.f32 %v11105, %v11122
        %v11145 = vadd.f32 %v11106, %v11122
        %v11146 = vadd.f32 %v11107, %v11122
        %v11147 = vadd.f32 %v11108, %v11122
        %v11148 = vadd.f32 %v11109, %v11122
        %v11149 = vadd.f32 %v11110, %v11122
        %v11150 = vadd.f32 %v11111, %v11122
        %v11151 = vadd.f32 %v11112, %v11122
        %v11152 = vadd.f32 %v11113, %v11122
        %v11153 = vadd.f32 %v11114, %v11122
        %v11154 = vadd.f32 %v11115, %v11122
        %v11155 = vadd.f32 %v11116, %v11122
        %v11156 = vmax.f32 %v11124, 0.0
        %v11157 = vmax.f32 %v11125, 0.0
        %v11158 = vmax.f32 %v11126, 0.0
        %v11159 = vmax.f32 %v11127, 0.0
        %v11160 = vmax.f32 %v11128, 0.0
        %v11161 = vmax.f32 %v11129, 0.0
        %v11162 = vmax.f32 %v11130, 0.0
        %v11163 = vmax.f32 %v11131, 0.0
        %v11164 = vmax.f32 %v11132, 0.0
        %v11165 = vmax.f32 %v11133, 0.0
        %v11166 = vmax.f32 %v11134, 0.0
        %v11167 = vmax.f32 %v11135, 0.0
        %v11168 = vmax.f32 %v11136, 0.0
        %v11169 = vmax.f32 %v11137, 0.0
        %v11170 = vmax.f32 %v11138, 0.0
        %v11171 = vmax.f32 %v11139, 0.0
        %v11172 = vmax.f32 %v11140, 0.0
        %v11173 = vmax.f32 %v11141, 0.0
        %v11174 = vmax.f32 %v11142, 0.0
        %v11175 = vmax.f32 %v11143, 0.0
        %v11176 = vmax.f32 %v11144, 0.0
        %v11177 = vmax.f32 %v11145, 0.0
        %v11178 = vmax.f32 %v11146, 0.0
        %v11179 = vmax.f32 %v11147, 0.0
        %v11180 = vmax.f32 %v11148, 0.0
        %v11181 = vmax.f32 %v11149, 0.0
        %v11182 = vmax.f32 %v11150, 0.0
        %v11183 = vmax.f32 %v11151, 0.0
        %v11184 = vmax.f32 %v11152, 0.0
        %v11185 = vmax.f32 %v11153, 0.0
        %v11186 = vmax.f32 %v11154, 0.0
        %v11187 = vmax.f32 %v11155, 0.0
        %v11188 = vld [vmem:[#allocation4] sm:$0xff]
        %v11189 = vld [vmem:[#allocation4 + $0x8] sm:$0xff]
        %v11190 = vld [vmem:[#allocation4 + $0x10] sm:$0xff]
        %v11191 = vld [vmem:[#allocation4 + $0x18] sm:$0xff]
        %v11192 = vld [vmem:[#allocation4 + $0x20] sm:$0xff]
        %v11193 = vld [vmem:[#allocation4 + $0x28] sm:$0xff]
        %v11194 = vld [vmem:[#allocation4 + $0x30] sm:$0xff]
        %v11195 = vld [vmem:[#allocation4 + $0x38] sm:$0xff]
        %v11196 = vld [vmem:[#allocation4 + $0x40] sm:$0xff]
        %v11197 = vld [vmem:[#allocation4 + $0x48] sm:$0xff]
        %v11198 = vld [vmem:[#allocation4 + $0x50] sm:$0xff]
        %v11199 = vld [vmem:[#allocation4 + $0x58] sm:$0xff]
        %v11200 = vld [vmem:[#allocation4 + $0x60] sm:$0xff]
        %v11201 = vld [vmem:[#allocation4 + $0x68] sm:$0xff]
        %v11202 = vld [vmem:[#allocation4 + $0x70] sm:$0xff]
        %v11203 = vld [vmem:[#allocation4 + $0x78] sm:$0xff]
        %v11204 = vld [vmem:[#allocation4 + $0x80] sm:$0xff]
        %v11205 = vld [vmem:[#allocation4 + $0x88] sm:$0xff]
        %v11206 = vld [vmem:[#allocation4 + $0x90] sm:$0xff]
        %v11207 = vld [vmem:[#allocation4 + $0x98] sm:$0xff]
        %v11208 = vld [vmem:[#allocation4 + $0xa0] sm:$0xff]
        %v11209 = vld [vmem:[#allocation4 + $0xa8] sm:$0xff]
        %v11210 = vld [vmem:[#allocation4 + $0xb0] sm:$0xff]
        %v11211 = vld [vmem:[#allocation4 + $0xb8] sm:$0xff]
        %v11212 = vld [vmem:[#allocation4 + $0xc0] sm:$0xff]
        %v11213 = vld [vmem:[#allocation4 + $0xc8] sm:$0xff]
        %v11214 = vld [vmem:[#allocation4 + $0xd0] sm:$0xff]
        %v11215 = vld [vmem:[#allocation4 + $0xd8] sm:$0xff]
        %v11216 = vld [vmem:[#allocation4 + $0xe0] sm:$0xff]
        %v11217 = vld [vmem:[#allocation4 + $0xe8] sm:$0xff]
        %v11218 = vld [vmem:[#allocation4 + $0xf0] sm:$0xff]
        %v11219 = vld [vmem:[#allocation4 + $0xf8] sm:$0xff]
        %v11220 = vadd.f32 %v11156, %v11188
        %v11221 = vadd.f32 %v11157, %v11189
        %v11222 = vadd.f32 %v11158, %v11190
        %v11223 = vadd.f32 %v11159, %v11191
        %v11224 = vadd.f32 %v11160, %v11192
        %v11225 = vadd.f32 %v11161, %v11193
        %v11226 = vadd.f32 %v11162, %v11194
        %v11227 = vadd.f32 %v11163, %v11195
        %v11228 = vadd.f32 %v11164, %v11196
        %v11229 = vadd.f32 %v11165, %v11197
        %v11230 = vadd.f32 %v11166, %v11198
        %v11231 = vadd.f32 %v11167, %v11199
        %v11232 = vadd.f32 %v11168, %v11200
        %v11233 = vadd.f32 %v11169, %v11201
        %v11234 = vadd.f32 %v11170, %v11202
        %v11235 = vadd.f32 %v11171, %v11203
        %v11236 = vadd.f32 %v11172, %v11204
        %v11237 = vadd.f32 %v11173, %v11205
        %v11238 = vadd.f32 %v11174, %v11206
        %v11239 = vadd.f32 %v11175, %v11207
        %v11240 = vadd.f32 %v11176, %v11208
        %v11241 = vadd.f32 %v11177, %v11209
        %v11242 = vadd.f32 %v11178, %v11210
        %v11243 = vadd.f32 %v11179, %v11211
        %v11244 = vadd.f32 %v11180, %v11212
        %v11245 = vadd.f32 %v11181, %v11213
        %v11246 = vadd.f32 %v11182, %v11214
        %v11247 = vadd.f32 %v11183, %v11215
        %v11248 = vadd.f32 %v11184, %v11216
        %v11249 = vadd.f32 %v11185, %v11217
        %v11250 = vadd.f32 %v11186, %v11218
        %v11251 = vadd.f32 %v11187, %v11219
        %11252 = vst.msk [vmem:[%s217] sm:$0xff] %vm1555, %v11220
        %11253 = vst.msk [vmem:[%s217 + $0x8] sm:$0xff] %vm1555, %v11221
        %11254 = vst.msk [vmem:[%s217 + $0x10] sm:$0xff] %vm1555, %v11222
        %11255 = vst.msk [vmem:[%s217 + $0x18] sm:$0xff] %vm1555, %v11223
        %11256 = vst.msk [vmem:[%s217 + $0x20] sm:$0xff] %vm1555, %v11224
        %11257 = vst.msk [vmem:[%s217 + $0x28] sm:$0xff] %vm1555, %v11225
        %11258 = vst.msk [vmem:[%s217 + $0x30] sm:$0xff] %vm1555, %v11226
        %11259 = vst.msk [vmem:[%s217 + $0x38] sm:$0xff] %vm1555, %v11227
        %11260 = vst.msk [vmem:[%s217 + $0x40] sm:$0xff] %vm1555, %v11228
        %11261 = vst.msk [vmem:[%s217 + $0x48] sm:$0xff] %vm1555, %v11229
        %11262 = vst.msk [vmem:[%s217 + $0x50] sm:$0xff] %vm1555, %v11230
        %11263 = vst.msk [vmem:[%s217 + $0x58] sm:$0xff] %vm1555, %v11231
        %11264 = vst.msk [vmem:[%s217 + $0x60] sm:$0xff] %vm1555, %v11232
        %11265 = vst.msk [vmem:[%s217 + $0x68] sm:$0xff] %vm1555, %v11233
        %11266 = vst.msk [vmem:[%s217 + $0x70] sm:$0xff] %vm1555, %v11234
        %11267 = vst.msk [vmem:[%s217 + $0x78] sm:$0xff] %vm1555, %v11235
        %11268 = vst.msk [vmem:[%s217 + $0x80] sm:$0xff] %vm1555, %v11236
        %11269 = vst.msk [vmem:[%s217 + $0x88] sm:$0xff] %vm1555, %v11237
        %11270 = vst.msk [vmem:[%s217 + $0x90] sm:$0xff] %vm1555, %v11238
        %11271 = vst.msk [vmem:[%s217 + $0x98] sm:$0xff] %vm1555, %v11239
        %11272 = vst.msk [vmem:[%s217 + $0xa0] sm:$0xff] %vm1555, %v11240
        %11273 = vst.msk [vmem:[%s217 + $0xa8] sm:$0xff] %vm1555, %v11241
        %11274 = vst.msk [vmem:[%s217 + $0xb0] sm:$0xff] %vm1555, %v11242
        %11275 = vst.msk [vmem:[%s217 + $0xb8] sm:$0xff] %vm1555, %v11243
        %11276 = vst.msk [vmem:[%s217 + $0xc0] sm:$0xff] %vm1555, %v11244
        %11277 = vst.msk [vmem:[%s217 + $0xc8] sm:$0xff] %vm1555, %v11245
        %11278 = vst.msk [vmem:[%s217 + $0xd0] sm:$0xff] %vm1555, %v11246
        %11279 = vst.msk [vmem:[%s217 + $0xd8] sm:$0xff] %vm1555, %v11247
        %11280 = vst.msk [vmem:[%s217 + $0xe0] sm:$0xff] %vm1555, %v11248
        %11281 = vst.msk [vmem:[%s217 + $0xe8] sm:$0xff] %vm1555, %v11249
        %11282 = vst.msk [vmem:[%s217 + $0xf0] sm:$0xff] %vm1555, %v11250
        %11283 = vst.msk [vmem:[%s217 + $0xf8] sm:$0xff] %vm1555, %v11251
        %s11284 = sand.u32 %s137, 1
        %s11285 = scalar_lea.sflag [#allocation6], %s11284
        %s11286 = sand.u32 %s137, 1
        %s11287 = smul.addr %s11286, 256
        %s11288 = scalar_lea.vmem [#allocation5], %s11287
        // Predicated region
        $region41: #{tpu_custom_call.1} parent=39 // pred_check
          %p11289 = pneg %p147
        $region42: #{tpu_custom_call.1} parent=39 // pred_check_branch
          %11291 = sbr.rel (%p11289) target = $region44
        $region43: #{tpu_custom_call.1} parent=39 // pred_region
          %s11293 = ssub.s32 4096, 4096
          %11294 = vsyncadd %s11285, %s11293
          %s11295 = smul.addr %s19, 32
          %s11296 = smul.addr %s11295, 128
          %s11297 = scalar_lea.hbm %s5, %s11296
          %s11298 = sshll.u32 %s11288, 4
          %s11299 = int_to_ptr.vmem [resolvable:$true] %s11298
          %11304 = dma.vmem_to_hbm [thread:$0]  %s11299, 4096, %s11297, %s11285, 128, 128, 8
        $region44: #{tpu_custom_call.1} parent=39 // pred_fallthru
          _
      $region40: #{tpu_custom_call.1} parent=5 // pred_fallthru
        _
      %p11305 = scmp.le.s32.totalorder 2, %s14
      // Predicated region
      $region45: #{tpu_custom_call.1} parent=5 // pred_check
        %p11306 = pneg %p11305
      $region46: #{tpu_custom_call.1} parent=5 // pred_check_branch
        %11308 = sbr.rel (%p11306) target = $region48
      $region47: #{tpu_custom_call.1} parent=5 // pred_region
        %s11309 = ssub.s32 %s14, 2
        // Predicated region
        $region49: #{tpu_custom_call.1} parent=47 // pred_check
          %p11310 = pneg %p153
        $region50: #{tpu_custom_call.1} parent=47 // pred_check_branch
          %11312 = sbr.rel (%p11310) target = $region52
        $region51: #{tpu_custom_call.1} parent=47 // pred_region
          %s11313 = sand.u32 %s138, 1
          %s11314 = scalar_lea.sflag [#allocation6], %s11313
          %s11315 = sand.u32 %s138, 1
          %s11316 = smul.addr %s11315, 256
          %s11317 = scalar_lea.vmem [#allocation5], %s11316
          %11318 = dma.done %s11314, 4096
        $region52: #{tpu_custom_call.1} parent=47 // pred_fallthru
          _
      $region48: #{tpu_custom_call.1} parent=5 // pred_fallthru
        _
    $region6: #{tpu_custom_call.1} parent=1 // loop_footer
      %s18 = sadd.s32 1, %s14
    $region7: #{tpu_custom_call.1} parent=1 // loop_footer_branch
      %13 = sbr.rel target = $region3
    $region8: #{tpu_custom_call.1} parent=1 // loop_exit
      _
    %11319 = vsyncpa [#allocation6], 1
    %s11320 = scalar_lea.sflag [#allocation6], 1
    %11321 = vsyncpa %s11320, 1

</llo_original>
